<compile_context>
chip_gen: v5e
topology: v5e:2x2
jax: 0.10.0
libtpu: 0.0.40
codegen_flags: <defaults>
</compile_context>

<pallas_src>
import jax
import jax.numpy as jnp
from jax import lax
from jax.experimental import pallas as pl
from jax.experimental.pallas import tpu as pltpu

EPS = 1e-5


# ----------------------------------------------------------------------------
# Weight fusion: ConvTranspose2d(2,2,s=2) o Conv2d(3,3,'same')  ==  per output
# parity (gh,gw), a 2x2 convolution over the ORIGINAL input with fused weights.
# ----------------------------------------------------------------------------
def _fuse_deconv_conv_weights(wd, bd, wc):
    """wd:(Cin,C,2,2)  bd:(C,)  wc:(C,C,3,3)  ->  (4 parities, 4 taps, Cin+1, C).

    Row Cin (the appended "ones channel") of every tap carries the deconv-bias
    contribution bd @ wc_tap, so the zero 'same'-padding of the deconv output
    is reproduced exactly at the image edges (the ones channel is 0 in the halo).
    """
    Cin, C = wd.shape[0], wd.shape[1]
    wc_io = jnp.transpose(wc, (2, 3, 1, 0)).astype(jnp.float32)   # (3,3,in,out)
    wd = wd.astype(jnp.float32)
    bd = bd.astype(jnp.float32)
    parities = []
    for gh in range(2):
        for gw in range(2):
            taps = []
            for u in range(2):
                for v in range(2):
                    di, dj = gh - 1 + u, gw - 1 + v          # input-pixel offset
                    w_sum = jnp.zeros((Cin, C), jnp.float32)
                    b_sum = jnp.zeros((C,), jnp.float32)
                    for dh in range(3):
                        for dw in range(3):
                            a, b = gh + dh - 1, gw + dw - 1
                            if a // 2 == di and b // 2 == dj:
                                m = wc_io[dh, dw]            # (C,C) in->out
                                w_sum = w_sum + jnp.matmul(
                                    wd[:, :, a % 2, b % 2], m,
                                    precision=lax.Precision.HIGHEST)
                                b_sum = b_sum + jnp.matmul(
                                    bd[None, :], m,
                                    precision=lax.Precision.HIGHEST)[0]
                    taps.append(jnp.concatenate([w_sum, b_sum[None, :]], axis=0))
            parities.append(jnp.stack(taps, axis=0))          # (4, Cin+1, C)
    return jnp.stack(parities, axis=0)                        # (4, 4, Cin+1, C)


# ----------------------------------------------------------------------------
# Pass A: fused (deconv o conv3x3) + per-image channel statistics
# ----------------------------------------------------------------------------
def _fused_deconv_conv_kernel(xp_ref, w_ref, bc_ref, z_ref, stats_ref):
    # xp_ref   : (1, H+2, W+2, Cin+1) bf16  zero halo; last channel == 1 inside
    # w_ref    : (4, 4, Cin+1, C)     bf16  fused per-parity / per-tap weights
    # bc_ref   : (1, C)               f32   conv bias
    # z_ref    : (1, 4, H*W, C)       bf16  conv output, space-to-depth layout
    # stats_ref: (1, 2, C)            f32   [sum, sum-of-squares] of this image
    _, Hp, Wp, Cin1 = xp_ref.shape
    H, W = Hp - 2, Wp - 2
    C = z_ref.shape[-1]

    s = jnp.zeros((1, C), jnp.float32)
    ss = jnp.zeros((1, C), jnp.float32)
    for gh in range(2):
        for gw in range(2):
            og = gh * 2 + gw
            acc = jnp.zeros((H * W, C), jnp.float32)
            # 2x2 fused conv over the padded input: 4 MXU dots with K = Cin+1,
            # f32 accumulation (replaces deconv + 9-tap conv of the old kernel).
            for u in range(2):
                for v in range(2):
                    tap = xp_ref[0, gh + u:gh + u + H, gw + v:gw + v + W, :]
                    acc = acc + jnp.dot(tap.reshape(H * W, Cin1),
                                        w_ref[og, u * 2 + v],
                                        preferred_element_type=jnp.float32)
            zc = acc + bc_ref[...]                            # (H*W, C) f32
            z_ref[0, og] = zc.astype(z_ref.dtype)             # bf16 intermediate
            # fused batch-stat epilogue (per image; wrapper reduces over N)
            s = s + jnp.sum(zc, axis=0, keepdims=True)
            ss = ss + jnp.sum(zc * zc, axis=0, keepdims=True)
    stats_ref[0, 0:1, :] = s
    stats_ref[0, 1:2, :] = ss


# ----------------------------------------------------------------------------
# Pass B: BatchNorm (precomputed scale/shift, broadcast in-kernel) + ReLU
# ----------------------------------------------------------------------------
def _bn_relu_kernel(z_ref, scale_ref, shift_ref, o_ref):
    z = z_ref[...].astype(jnp.float32)                        # (1, hw_tile, C)
    o_ref[...] = jnp.maximum(z * scale_ref[...] + shift_ref[...], 0.0)


def _largest_tile(total, cap):
    """Largest divisor of `total` that is a multiple of 8 and <= cap; else total."""
    best = 0
    d = 8
    lim = min(total, cap)
    while d <= lim:
        if total % d == 0:
            best = d
        d += 8
    return best if best > 0 else total


# ----------------------------------------------------------------------------
# DecoderBlock forward
# ----------------------------------------------------------------------------
@jax.jit
def decoder_block_forward(img_nchw, params):
    wd, bd, wc, bc, gamma, beta = (
        params["deconv_w"], params["deconv_b"],
        params["conv_w"], params["conv_b"],
        params["bn_gamma"], params["bn_beta"],
    )
    N, Cin, H, W = img_nchw.shape
    C = wd.shape[1]
    H2, W2 = 2 * H, 2 * W
    Cin1 = Cin + 1

    # ---- fused weights (would be cached once per step in real training) -----
    w_eff = _fuse_deconv_conv_weights(wd, bd, wc).astype(jnp.bfloat16)
    bc2 = bc.reshape(1, C).astype(jnp.float32)

    # ---- NCHW -> NHWC, append ones channel, zero halo of 1, bf16 operands ---
    x = jnp.transpose(img_nchw, (0, 2, 3, 1))
    x = jnp.concatenate([x, jnp.ones((N, H, W, 1), x.dtype)], axis=-1)
    x_pad = jnp.pad(x, ((0, 0), (1, 1), (1, 1), (0, 0))).astype(jnp.bfloat16)

    z, stats = pl.pallas_call(
        _fused_deconv_conv_kernel,
        out_shape=(
            jax.ShapeDtypeStruct((N, 4, H * W, C), jnp.bfloat16),  # z (s2d)
            jax.ShapeDtypeStruct((N, 2, C), jnp.float32),          # [sum, ssq]
        ),
        grid=(N,),
        in_specs=[
            pl.BlockSpec((1, H + 2, W + 2, Cin1), lambda n: (n, 0, 0, 0)),
            pl.BlockSpec((4, 4, Cin1, C), lambda n: (0, 0, 0, 0)),
            pl.BlockSpec((1, C), lambda n: (0, 0)),
        ],
        out_specs=(
            pl.BlockSpec((1, 4, H * W, C), lambda n: (n, 0, 0, 0)),
            pl.BlockSpec((1, 2, C), lambda n: (n, 0, 0)),
        ),
        compiler_params=pltpu.CompilerParams(
            dimension_semantics=("parallel",),
            vmem_limit_bytes=40 * 1024 * 1024,     # v7x-safe headroom
        ),
    )(x_pad, w_eff, bc2)

    # ---- batch statistics (tiny (C,) math) and folded BN affine -------------
    cnt = jnp.float32(N * H2 * W2)
    mean = jnp.sum(stats[:, 0, :], axis=0) / cnt
    var = jnp.sum(stats[:, 1, :], axis=0) / cnt - mean * mean
    var = jnp.maximum(var, 0.0)
    scale_v = gamma * lax.rsqrt(var + EPS)
    shift_v = beta - mean * scale_v
    scale3 = scale_v.reshape(1, 1, C).astype(jnp.float32)
    shift3 = shift_v.reshape(1, 1, C).astype(jnp.float32)

    # ---- BN + ReLU, tiled (image x spatial-chunk) over the bf16 z ------------
    R = 4 * H * W
    hw_tile = _largest_tile(R, max(8, (1 << 19) // max(C, 1)))
    z3 = z.reshape(N, R, C)

    out3 = pl.pallas_call(
        _bn_relu_kernel,
        out_shape=jax.ShapeDtypeStruct((N, R, C), jnp.float32),
        grid=(N, R // hw_tile),
        in_specs=[
            pl.BlockSpec((1, hw_tile, C), lambda n, r: (n, r, 0)),
            pl.BlockSpec((1, 1, C), lambda n, r: (0, 0, 0)),
            pl.BlockSpec((1, 1, C), lambda n, r: (0, 0, 0)),
        ],
        out_specs=pl.BlockSpec((1, hw_tile, C), lambda n, r: (n, r, 0)),
        compiler_params=pltpu.CompilerParams(
            dimension_semantics=("parallel", "parallel"),
            vmem_limit_bytes=40 * 1024 * 1024,
        ),
    )(z3, scale3, shift3)

    # ---- space-to-depth -> NCHW (single XLA permute; module contract is NCHW)
    out = out3.reshape(N, 2, 2, H, W, C)
    out = jnp.transpose(out, (0, 5, 3, 1, 4, 2)).reshape(N, C, H2, W2)
    return out


# ----------------------------------------------------------------------------
# Pure-JAX reference (for correctness check)
# ----------------------------------------------------------------------------
def reference_forward(img_nchw, params):
    wd, bd, wc, bc, gamma, beta = (
        params["deconv_w"], params["deconv_b"],
        params["conv_w"], params["conv_b"],
        params["bn_gamma"], params["bn_beta"],
    )
    N, Cin, H, W = img_nchw.shape
    Cout = wd.shape[1]
    x = jnp.transpose(img_nchw, (0, 2, 3, 1))
    # deconv (k==s==2)
    y = jnp.einsum("nhwc,cokl->nhwklo", x, wd, precision=lax.Precision.HIGHEST)
    y = jnp.transpose(y, (0, 1, 3, 2, 4, 5)).reshape(N, 2 * H, 2 * W, Cout) + bd
    # conv 3x3 same
    w_hwio = jnp.transpose(wc, (2, 3, 1, 0))
    z = lax.conv_general_dilated(
        y, w_hwio, window_strides=(1, 1), padding="SAME",
        dimension_numbers=("NHWC", "HWIO", "NHWC"),
        precision=lax.Precision.HIGHEST,
    ) + bc
    # batchnorm (training-mode batch stats) + relu
    mean = jnp.mean(z, axis=(0, 1, 2))
    var = jnp.mean((z - mean) ** 2, axis=(0, 1, 2))
    zn = (z - mean) * lax.rsqrt(var + EPS) * gamma + beta
    out = jnp.maximum(zn, 0.0)
    return jnp.transpose(out, (0, 3, 1, 2))


# ----------------------------------------------------------------------------
if __name__ == "__main__":
    key = jax.random.PRNGKey(0)
    k_img, k_wd, k_bd, k_wc, k_bc = jax.random.split(key, 5)

    N, Cin, Cout, H, W = 2, 32, 16, 16, 16

    img = jax.random.normal(k_img, (N, Cin, H, W), dtype=jnp.float32)

    params = {
        # ConvTranspose2d weight: (in_channels, out_channels, 2, 2)
        "deconv_w": 0.2 * jax.random.normal(k_wd, (Cin, Cout, 2, 2), jnp.float32),
        "deconv_b": 0.1 * jax.random.normal(k_bd, (Cout,), jnp.float32),
        # Conv2d weight: (out_channels, in_channels, 3, 3)
        "conv_w": 0.2 * jax.random.normal(k_wc, (Cout, Cout, 3, 3), jnp.float32),
        "conv_b": 0.1 * jax.random.normal(k_bc, (Cout,), jnp.float32),
        # BatchNorm2d defaults: weight=1, bias=0
        "bn_gamma": jnp.ones((Cout,), jnp.float32),
        "bn_beta": jnp.zeros((Cout,), jnp.float32),
    }

    out = decoder_block_forward(img, params)
    out = jax.block_until_ready(out)

    ref = reference_forward(img, params)
    assert out.shape == (N, Cout, 2 * H, 2 * W), out.shape
    # bf16 matmul operands / bf16 z intermediate (f32 accumulation) -> loose tol.
    assert jnp.allclose(out, ref, rtol=5e-2, atol=5e-2), float(
        jnp.max(jnp.abs(out - ref))
    )

    print("KERNEL_OK")
</pallas_src>

<mosaic_0001>
module attributes {stable_mosaic.version = 11 : i64} {
  func.func @_fused_deconv_conv_kernel(%arg0: i32, %arg1: memref<1x18x18x33xbf16, #tpu.memory_space<vmem>>, %arg2: memref<4x4x33x16xbf16, #tpu.memory_space<vmem>>, %arg3: memref<1x16xf32, #tpu.memory_space<vmem>>, %arg4: memref<1x4x256x16xbf16, #tpu.memory_space<vmem>>, %arg5: memref<1x2x16xf32, #tpu.memory_space<vmem>>) attributes {dimension_semantics = [#tpu.dimension_semantics<parallel>], iteration_bounds = array<i64: 2>, scalar_prefetch = 0 : i64, scratch_operands = 0 : i64, tpu.core_type = #tpu.core_type<tc>, window_params = [{transform_indices = @transform_0, window_bounds = array<i64: 1, 18, 18, 33>}, {pipeline_mode = #tpu.pipeline_mode<synchronous>, transform_indices = @transform_1, window_bounds = array<i64: 4, 4, 33, 16>}, {pipeline_mode = #tpu.pipeline_mode<synchronous>, transform_indices = @transform_2, window_bounds = array<i64: 1, 16>}, {transform_indices = @transform_3, window_bounds = array<i64: 1, 4, 256, 16>}, {transform_indices = @transform_4, window_bounds = array<i64: 1, 2, 16>}]} {
    %cst = arith.constant 0.000000e+00 : f32
    %0 = vector.broadcast %cst : f32 to vector<1x16xf32>
    %cst_0 = arith.constant 0.000000e+00 : f32
    %1 = vector.broadcast %cst_0 : f32 to vector<1x16xf32>
    %cst_1 = arith.constant 0.000000e+00 : f32
    %2 = vector.broadcast %cst_1 : f32 to vector<256x16xf32>
    %c0 = arith.constant 0 : index
    %c0_2 = arith.constant 0 : index
    %c0_3 = arith.constant 0 : index
    %c0_4 = arith.constant 0 : index
    %3 = vector.load %arg1[%c0, %c0_2, %c0_3, %c0_4] : memref<1x18x18x33xbf16, #tpu.memory_space<vmem>>, vector<1x16x16x33xbf16>
    %4 = vector.shape_cast %3 : vector<1x16x16x33xbf16> to vector<16x16x33xbf16>
    %5 = vector.shape_cast %4 : vector<16x16x33xbf16> to vector<256x33xbf16>
    %c0_5 = arith.constant 0 : index
    %c0_6 = arith.constant 0 : index
    %c0_7 = arith.constant 0 : index
    %c0_8 = arith.constant 0 : index
    %6 = vector.load %arg2[%c0_5, %c0_6, %c0_7, %c0_8] : memref<4x4x33x16xbf16, #tpu.memory_space<vmem>>, vector<1x1x33x16xbf16>
    %7 = vector.shape_cast %6 : vector<1x1x33x16xbf16> to vector<33x16xbf16>
    %cst_9 = arith.constant dense<0.000000e+00> : vector<256x16xf32>
    %8 = tpu.matmul %5, %7, %cst_9 {dimension_numbers = #tpu.dot_dimension_numbers<[1], [0], [0], [1], [0, 0, 1, 1], [], []>} : vector<256x33xbf16>, vector<33x16xbf16>, vector<256x16xf32> -> vector<256x16xf32>
    %9 = arith.addf %2, %8 : vector<256x16xf32>
    %c0_10 = arith.constant 0 : index
    %c0_11 = arith.constant 0 : index
    %c1 = arith.constant 1 : index
    %c0_12 = arith.constant 0 : index
    %10 = vector.load %arg1[%c0_10, %c0_11, %c1, %c0_12] : memref<1x18x18x33xbf16, #tpu.memory_space<vmem>>, vector<1x16x16x33xbf16>
    %11 = vector.shape_cast %10 : vector<1x16x16x33xbf16> to vector<16x16x33xbf16>
    %12 = vector.shape_cast %11 : vector<16x16x33xbf16> to vector<256x33xbf16>
    %c0_13 = arith.constant 0 : index
    %c1_14 = arith.constant 1 : index
    %c0_15 = arith.constant 0 : index
    %c0_16 = arith.constant 0 : index
    %13 = vector.load %arg2[%c0_13, %c1_14, %c0_15, %c0_16] : memref<4x4x33x16xbf16, #tpu.memory_space<vmem>>, vector<1x1x33x16xbf16>
    %14 = vector.shape_cast %13 : vector<1x1x33x16xbf16> to vector<33x16xbf16>
    %cst_17 = arith.constant dense<0.000000e+00> : vector<256x16xf32>
    %15 = tpu.matmul %12, %14, %cst_17 {dimension_numbers = #tpu.dot_dimension_numbers<[1], [0], [0], [1], [0, 0, 1, 1], [], []>} : vector<256x33xbf16>, vector<33x16xbf16>, vector<256x16xf32> -> vector<256x16xf32>
    %16 = arith.addf %9, %15 : vector<256x16xf32>
    %c0_18 = arith.constant 0 : index
    %c1_19 = arith.constant 1 : index
    %c0_20 = arith.constant 0 : index
    %c0_21 = arith.constant 0 : index
    %17 = vector.load %arg1[%c0_18, %c1_19, %c0_20, %c0_21] : memref<1x18x18x33xbf16, #tpu.memory_space<vmem>>, vector<1x16x16x33xbf16>
    %18 = vector.shape_cast %17 : vector<1x16x16x33xbf16> to vector<16x16x33xbf16>
    %19 = vector.shape_cast %18 : vector<16x16x33xbf16> to vector<256x33xbf16>
    %c0_22 = arith.constant 0 : index
    %c2 = arith.constant 2 : index
    %c0_23 = arith.constant 0 : index
    %c0_24 = arith.constant 0 : index
    %20 = vector.load %arg2[%c0_22, %c2, %c0_23, %c0_24] : memref<4x4x33x16xbf16, #tpu.memory_space<vmem>>, vector<1x1x33x16xbf16>
    %21 = vector.shape_cast %20 : vector<1x1x33x16xbf16> to vector<33x16xbf16>
    %cst_25 = arith.constant dense<0.000000e+00> : vector<256x16xf32>
    %22 = tpu.matmul %19, %21, %cst_25 {dimension_numbers = #tpu.dot_dimension_numbers<[1], [0], [0], [1], [0, 0, 1, 1], [], []>} : vector<256x33xbf16>, vector<33x16xbf16>, vector<256x16xf32> -> vector<256x16xf32>
    %23 = arith.addf %16, %22 : vector<256x16xf32>
    %c0_26 = arith.constant 0 : index
    %c1_27 = arith.constant 1 : index
    %c1_28 = arith.constant 1 : index
    %c0_29 = arith.constant 0 : index
    %24 = vector.load %arg1[%c0_26, %c1_27, %c1_28, %c0_29] : memref<1x18x18x33xbf16, #tpu.memory_space<vmem>>, vector<1x16x16x33xbf16>
    %25 = vector.shape_cast %24 : vector<1x16x16x33xbf16> to vector<16x16x33xbf16>
    %26 = vector.shape_cast %25 : vector<16x16x33xbf16> to vector<256x33xbf16>
    %c0_30 = arith.constant 0 : index
    %c3 = arith.constant 3 : index
    %c0_31 = arith.constant 0 : index
    %c0_32 = arith.constant 0 : index
    %27 = vector.load %arg2[%c0_30, %c3, %c0_31, %c0_32] : memref<4x4x33x16xbf16, #tpu.memory_space<vmem>>, vector<1x1x33x16xbf16>
    %28 = vector.shape_cast %27 : vector<1x1x33x16xbf16> to vector<33x16xbf16>
    %cst_33 = arith.constant dense<0.000000e+00> : vector<256x16xf32>
    %29 = tpu.matmul %26, %28, %cst_33 {dimension_numbers = #tpu.dot_dimension_numbers<[1], [0], [0], [1], [0, 0, 1, 1], [], []>} : vector<256x33xbf16>, vector<33x16xbf16>, vector<256x16xf32> -> vector<256x16xf32>
    %30 = arith.addf %23, %29 : vector<256x16xf32>
    %c0_34 = arith.constant 0 : index
    %c0_35 = arith.constant 0 : index
    %31 = vector.load %arg3[%c0_34, %c0_35] : memref<1x16xf32, #tpu.memory_space<vmem>>, vector<1x16xf32>
    %32 = vector.broadcast %31 : vector<1x16xf32> to vector<256x16xf32>
    %33 = arith.addf %30, %32 : vector<256x16xf32>
    %34 = arith.truncf %33 : vector<256x16xf32> to vector<256x16xbf16>
    %c0_36 = arith.constant 0 : index
    %c0_37 = arith.constant 0 : index
    %c0_38 = arith.constant 0 : index
    %c0_39 = arith.constant 0 : index
    %35 = vector.load %arg4[%c0_36, %c0_37, %c0_38, %c0_39] : memref<1x4x256x16xbf16, #tpu.memory_space<vmem>>, vector<1x1x256x16xbf16>
    %36 = vector.shape_cast %35 : vector<1x1x256x16xbf16> to vector<256x16xbf16>
    %37 = vector.shape_cast %34 : vector<256x16xbf16> to vector<1x1x256x16xbf16>
    tpu.vector_store %arg4[%c0_36, %c0_37, %c0_38, %c0_39], %37 {strides = array<i32>} : memref<1x4x256x16xbf16, #tpu.memory_space<vmem>>, vector<1x1x256x16xbf16>,
    %cst_40 = arith.constant dense<0.000000e+00> : vector<16xf32>
    %38 = vector.multi_reduction <add>, %33, %cst_40 [0] : vector<256x16xf32> to vector<16xf32>
    %39 = vector.shape_cast %38 : vector<16xf32> to vector<1x16xf32>
    %40 = arith.addf %0, %39 : vector<1x16xf32>
    %41 = arith.mulf %33, %33 : vector<256x16xf32>
    %cst_41 = arith.constant dense<0.000000e+00> : vector<16xf32>
    %42 = vector.multi_reduction <add>, %41, %cst_41 [0] : vector<256x16xf32> to vector<16xf32>
    %43 = vector.shape_cast %42 : vector<16xf32> to vector<1x16xf32>
    %44 = arith.addf %1, %43 : vector<1x16xf32>
    %cst_42 = arith.constant 0.000000e+00 : f32
    %45 = vector.broadcast %cst_42 : f32 to vector<256x16xf32>
    %c0_43 = arith.constant 0 : index
    %c0_44 = arith.constant 0 : index
    %c1_45 = arith.constant 1 : index
    %c0_46 = arith.constant 0 : index
    %46 = vector.load %arg1[%c0_43, %c0_44, %c1_45, %c0_46] : memref<1x18x18x33xbf16, #tpu.memory_space<vmem>>, vector<1x16x16x33xbf16>
    %47 = vector.shape_cast %46 : vector<1x16x16x33xbf16> to vector<16x16x33xbf16>
    %48 = vector.shape_cast %47 : vector<16x16x33xbf16> to vector<256x33xbf16>
    %c1_47 = arith.constant 1 : index
    %c0_48 = arith.constant 0 : index
    %c0_49 = arith.constant 0 : index
    %c0_50 = arith.constant 0 : index
    %49 = vector.load %arg2[%c1_47, %c0_48, %c0_49, %c0_50] : memref<4x4x33x16xbf16, #tpu.memory_space<vmem>>, vector<1x1x33x16xbf16>
    %50 = vector.shape_cast %49 : vector<1x1x33x16xbf16> to vector<33x16xbf16>
    %cst_51 = arith.constant dense<0.000000e+00> : vector<256x16xf32>
    %51 = tpu.matmul %48, %50, %cst_51 {dimension_numbers = #tpu.dot_dimension_numbers<[1], [0], [0], [1], [0, 0, 1, 1], [], []>} : vector<256x33xbf16>, vector<33x16xbf16>, vector<256x16xf32> -> vector<256x16xf32>
    %52 = arith.addf %45, %51 : vector<256x16xf32>
    %c0_52 = arith.constant 0 : index
    %c0_53 = arith.constant 0 : index
    %c2_54 = arith.constant 2 : index
    %c0_55 = arith.constant 0 : index
    %53 = vector.load %arg1[%c0_52, %c0_53, %c2_54, %c0_55] : memref<1x18x18x33xbf16, #tpu.memory_space<vmem>>, vector<1x16x16x33xbf16>
    %54 = vector.shape_cast %53 : vector<1x16x16x33xbf16> to vector<16x16x33xbf16>
    %55 = vector.shape_cast %54 : vector<16x16x33xbf16> to vector<256x33xbf16>
    %c1_56 = arith.constant 1 : index
    %c1_57 = arith.constant 1 : index
    %c0_58 = arith.constant 0 : index
    %c0_59 = arith.constant 0 : index
    %56 = vector.load %arg2[%c1_56, %c1_57, %c0_58, %c0_59] : memref<4x4x33x16xbf16, #tpu.memory_space<vmem>>, vector<1x1x33x16xbf16>
    %57 = vector.shape_cast %56 : vector<1x1x33x16xbf16> to vector<33x16xbf16>
    %cst_60 = arith.constant dense<0.000000e+00> : vector<256x16xf32>
    %58 = tpu.matmul %55, %57, %cst_60 {dimension_numbers = #tpu.dot_dimension_numbers<[1], [0], [0], [1], [0, 0, 1, 1], [], []>} : vector<256x33xbf16>, vector<33x16xbf16>, vector<256x16xf32> -> vector<256x16xf32>
    %59 = arith.addf %52, %58 : vector<256x16xf32>
    %c0_61 = arith.constant 0 : index
    %c1_62 = arith.constant 1 : index
    %c1_63 = arith.constant 1 : index
    %c0_64 = arith.constant 0 : index
    %60 = vector.load %arg1[%c0_61, %c1_62, %c1_63, %c0_64] : memref<1x18x18x33xbf16, #tpu.memory_space<vmem>>, vector<1x16x16x33xbf16>
    %61 = vector.shape_cast %60 : vector<1x16x16x33xbf16> to vector<16x16x33xbf16>
    %62 = vector.shape_cast %61 : vector<16x16x33xbf16> to vector<256x33xbf16>
    %c1_65 = arith.constant 1 : index
    %c2_66 = arith.constant 2 : index
    %c0_67 = arith.constant 0 : index
    %c0_68 = arith.constant 0 : index
    %63 = vector.load %arg2[%c1_65, %c2_66, %c0_67, %c0_68] : memref<4x4x33x16xbf16, #tpu.memory_space<vmem>>, vector<1x1x33x16xbf16>
    %64 = vector.shape_cast %63 : vector<1x1x33x16xbf16> to vector<33x16xbf16>
    %cst_69 = arith.constant dense<0.000000e+00> : vector<256x16xf32>
    %65 = tpu.matmul %62, %64, %cst_69 {dimension_numbers = #tpu.dot_dimension_numbers<[1], [0], [0], [1], [0, 0, 1, 1], [], []>} : vector<256x33xbf16>, vector<33x16xbf16>, vector<256x16xf32> -> vector<256x16xf32>
    %66 = arith.addf %59, %65 : vector<256x16xf32>
    %c0_70 = arith.constant 0 : index
    %c1_71 = arith.constant 1 : index
    %c2_72 = arith.constant 2 : index
    %c0_73 = arith.constant 0 : index
    %67 = vector.load %arg1[%c0_70, %c1_71, %c2_72, %c0_73] : memref<1x18x18x33xbf16, #tpu.memory_space<vmem>>, vector<1x16x16x33xbf16>
    %68 = vector.shape_cast %67 : vector<1x16x16x33xbf16> to vector<16x16x33xbf16>
    %69 = vector.shape_cast %68 : vector<16x16x33xbf16> to vector<256x33xbf16>
    %c1_74 = arith.constant 1 : index
    %c3_75 = arith.constant 3 : index
    %c0_76 = arith.constant 0 : index
    %c0_77 = arith.constant 0 : index
    %70 = vector.load %arg2[%c1_74, %c3_75, %c0_76, %c0_77] : memref<4x4x33x16xbf16, #tpu.memory_space<vmem>>, vector<1x1x33x16xbf16>
    %71 = vector.shape_cast %70 : vector<1x1x33x16xbf16> to vector<33x16xbf16>
    %cst_78 = arith.constant dense<0.000000e+00> : vector<256x16xf32>
    %72 = tpu.matmul %69, %71, %cst_78 {dimension_numbers = #tpu.dot_dimension_numbers<[1], [0], [0], [1], [0, 0, 1, 1], [], []>} : vector<256x33xbf16>, vector<33x16xbf16>, vector<256x16xf32> -> vector<256x16xf32>
    %73 = arith.addf %66, %72 : vector<256x16xf32>
    %c0_79 = arith.constant 0 : index
    %c0_80 = arith.constant 0 : index
    %74 = vector.load %arg3[%c0_79, %c0_80] : memref<1x16xf32, #tpu.memory_space<vmem>>, vector<1x16xf32>
    %75 = vector.broadcast %74 : vector<1x16xf32> to vector<256x16xf32>
    %76 = arith.addf %73, %75 : vector<256x16xf32>
    %77 = arith.truncf %76 : vector<256x16xf32> to vector<256x16xbf16>
    %c0_81 = arith.constant 0 : index
    %c1_82 = arith.constant 1 : index
    %c0_83 = arith.constant 0 : index
    %c0_84 = arith.constant 0 : index
    %78 = vector.load %arg4[%c0_81, %c1_82, %c0_83, %c0_84] : memref<1x4x256x16xbf16, #tpu.memory_space<vmem>>, vector<1x1x256x16xbf16>
    %79 = vector.shape_cast %78 : vector<1x1x256x16xbf16> to vector<256x16xbf16>
    %80 = vector.shape_cast %77 : vector<256x16xbf16> to vector<1x1x256x16xbf16>
    tpu.vector_store %arg4[%c0_81, %c1_82, %c0_83, %c0_84], %80 {strides = array<i32>} : memref<1x4x256x16xbf16, #tpu.memory_space<vmem>>, vector<1x1x256x16xbf16>,
    %cst_85 = arith.constant dense<0.000000e+00> : vector<16xf32>
    %81 = vector.multi_reduction <add>, %76, %cst_85 [0] : vector<256x16xf32> to vector<16xf32>
    %82 = vector.shape_cast %81 : vector<16xf32> to vector<1x16xf32>
    %83 = arith.addf %40, %82 : vector<1x16xf32>
    %84 = arith.mulf %76, %76 : vector<256x16xf32>
    %cst_86 = arith.constant dense<0.000000e+00> : vector<16xf32>
    %85 = vector.multi_reduction <add>, %84, %cst_86 [0] : vector<256x16xf32> to vector<16xf32>
    %86 = vector.shape_cast %85 : vector<16xf32> to vector<1x16xf32>
    %87 = arith.addf %44, %86 : vector<1x16xf32>
    %cst_87 = arith.constant 0.000000e+00 : f32
    %88 = vector.broadcast %cst_87 : f32 to vector<256x16xf32>
    %c0_88 = arith.constant 0 : index
    %c1_89 = arith.constant 1 : index
    %c0_90 = arith.constant 0 : index
    %c0_91 = arith.constant 0 : index
    %89 = vector.load %arg1[%c0_88, %c1_89, %c0_90, %c0_91] : memref<1x18x18x33xbf16, #tpu.memory_space<vmem>>, vector<1x16x16x33xbf16>
    %90 = vector.shape_cast %89 : vector<1x16x16x33xbf16> to vector<16x16x33xbf16>
    %91 = vector.shape_cast %90 : vector<16x16x33xbf16> to vector<256x33xbf16>
    %c2_92 = arith.constant 2 : index
    %c0_93 = arith.constant 0 : index
    %c0_94 = arith.constant 0 : index
    %c0_95 = arith.constant 0 : index
    %92 = vector.load %arg2[%c2_92, %c0_93, %c0_94, %c0_95] : memref<4x4x33x16xbf16, #tpu.memory_space<vmem>>, vector<1x1x33x16xbf16>
    %93 = vector.shape_cast %92 : vector<1x1x33x16xbf16> to vector<33x16xbf16>
    %cst_96 = arith.constant dense<0.000000e+00> : vector<256x16xf32>
    %94 = tpu.matmul %91, %93, %cst_96 {dimension_numbers = #tpu.dot_dimension_numbers<[1], [0], [0], [1], [0, 0, 1, 1], [], []>} : vector<256x33xbf16>, vector<33x16xbf16>, vector<256x16xf32> -> vector<256x16xf32>
    %95 = arith.addf %88, %94 : vector<256x16xf32>
    %c0_97 = arith.constant 0 : index
    %c1_98 = arith.constant 1 : index
    %c1_99 = arith.constant 1 : index
    %c0_100 = arith.constant 0 : index
    %96 = vector.load %arg1[%c0_97, %c1_98, %c1_99, %c0_100] : memref<1x18x18x33xbf16, #tpu.memory_space<vmem>>, vector<1x16x16x33xbf16>
    %97 = vector.shape_cast %96 : vector<1x16x16x33xbf16> to vector<16x16x33xbf16>
    %98 = vector.shape_cast %97 : vector<16x16x33xbf16> to vector<256x33xbf16>
    %c2_101 = arith.constant 2 : index
    %c1_102 = arith.constant 1 : index
    %c0_103 = arith.constant 0 : index
    %c0_104 = arith.constant 0 : index
    %99 = vector.load %arg2[%c2_101, %c1_102, %c0_103, %c0_104] : memref<4x4x33x16xbf16, #tpu.memory_space<vmem>>, vector<1x1x33x16xbf16>
    %100 = vector.shape_cast %99 : vector<1x1x33x16xbf16> to vector<33x16xbf16>
    %cst_105 = arith.constant dense<0.000000e+00> : vector<256x16xf32>
    %101 = tpu.matmul %98, %100, %cst_105 {dimension_numbers = #tpu.dot_dimension_numbers<[1], [0], [0], [1], [0, 0, 1, 1], [], []>} : vector<256x33xbf16>, vector<33x16xbf16>, vector<256x16xf32> -> vector<256x16xf32>
    %102 = arith.addf %95, %101 : vector<256x16xf32>
    %c0_106 = arith.constant 0 : index
    %c2_107 = arith.constant 2 : index
    %c0_108 = arith.constant 0 : index
    %c0_109 = arith.constant 0 : index
    %103 = vector.load %arg1[%c0_106, %c2_107, %c0_108, %c0_109] : memref<1x18x18x33xbf16, #tpu.memory_space<vmem>>, vector<1x16x16x33xbf16>
    %104 = vector.shape_cast %103 : vector<1x16x16x33xbf16> to vector<16x16x33xbf16>
    %105 = vector.shape_cast %104 : vector<16x16x33xbf16> to vector<256x33xbf16>
    %c2_110 = arith.constant 2 : index
    %c2_111 = arith.constant 2 : index
    %c0_112 = arith.constant 0 : index
    %c0_113 = arith.constant 0 : index
    %106 = vector.load %arg2[%c2_110, %c2_111, %c0_112, %c0_113] : memref<4x4x33x16xbf16, #tpu.memory_space<vmem>>, vector<1x1x33x16xbf16>
    %107 = vector.shape_cast %106 : vector<1x1x33x16xbf16> to vector<33x16xbf16>
    %cst_114 = arith.constant dense<0.000000e+00> : vector<256x16xf32>
    %108 = tpu.matmul %105, %107, %cst_114 {dimension_numbers = #tpu.dot_dimension_numbers<[1], [0], [0], [1], [0, 0, 1, 1], [], []>} : vector<256x33xbf16>, vector<33x16xbf16>, vector<256x16xf32> -> vector<256x16xf32>
    %109 = arith.addf %102, %108 : vector<256x16xf32>
    %c0_115 = arith.constant 0 : index
    %c2_116 = arith.constant 2 : index
    %c1_117 = arith.constant 1 : index
    %c0_118 = arith.constant 0 : index
    %110 = vector.load %arg1[%c0_115, %c2_116, %c1_117, %c0_118] : memref<1x18x18x33xbf16, #tpu.memory_space<vmem>>, vector<1x16x16x33xbf16>
    %111 = vector.shape_cast %110 : vector<1x16x16x33xbf16> to vector<16x16x33xbf16>
    %112 = vector.shape_cast %111 : vector<16x16x33xbf16> to vector<256x33xbf16>
    %c2_119 = arith.constant 2 : index
    %c3_120 = arith.constant 3 : index
    %c0_121 = arith.constant 0 : index
    %c0_122 = arith.constant 0 : index
    %113 = vector.load %arg2[%c2_119, %c3_120, %c0_121, %c0_122] : memref<4x4x33x16xbf16, #tpu.memory_space<vmem>>, vector<1x1x33x16xbf16>
    %114 = vector.shape_cast %113 : vector<1x1x33x16xbf16> to vector<33x16xbf16>
    %cst_123 = arith.constant dense<0.000000e+00> : vector<256x16xf32>
    %115 = tpu.matmul %112, %114, %cst_123 {dimension_numbers = #tpu.dot_dimension_numbers<[1], [0], [0], [1], [0, 0, 1, 1], [], []>} : vector<256x33xbf16>, vector<33x16xbf16>, vector<256x16xf32> -> vector<256x16xf32>
    %116 = arith.addf %109, %115 : vector<256x16xf32>
    %c0_124 = arith.constant 0 : index
    %c0_125 = arith.constant 0 : index
    %117 = vector.load %arg3[%c0_124, %c0_125] : memref<1x16xf32, #tpu.memory_space<vmem>>, vector<1x16xf32>
    %118 = vector.broadcast %117 : vector<1x16xf32> to vector<256x16xf32>
    %119 = arith.addf %116, %118 : vector<256x16xf32>
    %120 = arith.truncf %119 : vector<256x16xf32> to vector<256x16xbf16>
    %c0_126 = arith.constant 0 : index
    %c2_127 = arith.constant 2 : index
    %c0_128 = arith.constant 0 : index
    %c0_129 = arith.constant 0 : index
    %121 = vector.load %arg4[%c0_126, %c2_127, %c0_128, %c0_129] : memref<1x4x256x16xbf16, #tpu.memory_space<vmem>>, vector<1x1x256x16xbf16>
    %122 = vector.shape_cast %121 : vector<1x1x256x16xbf16> to vector<256x16xbf16>
    %123 = vector.shape_cast %120 : vector<256x16xbf16> to vector<1x1x256x16xbf16>
    tpu.vector_store %arg4[%c0_126, %c2_127, %c0_128, %c0_129], %123 {strides = array<i32>} : memref<1x4x256x16xbf16, #tpu.memory_space<vmem>>, vector<1x1x256x16xbf16>,
    %cst_130 = arith.constant dense<0.000000e+00> : vector<16xf32>
    %124 = vector.multi_reduction <add>, %119, %cst_130 [0] : vector<256x16xf32> to vector<16xf32>
    %125 = vector.shape_cast %124 : vector<16xf32> to vector<1x16xf32>
    %126 = arith.addf %83, %125 : vector<1x16xf32>
    %127 = arith.mulf %119, %119 : vector<256x16xf32>
    %cst_131 = arith.constant dense<0.000000e+00> : vector<16xf32>
    %128 = vector.multi_reduction <add>, %127, %cst_131 [0] : vector<256x16xf32> to vector<16xf32>
    %129 = vector.shape_cast %128 : vector<16xf32> to vector<1x16xf32>
    %130 = arith.addf %87, %129 : vector<1x16xf32>
    %cst_132 = arith.constant 0.000000e+00 : f32
    %131 = vector.broadcast %cst_132 : f32 to vector<256x16xf32>
    %c0_133 = arith.constant 0 : index
    %c1_134 = arith.constant 1 : index
    %c1_135 = arith.constant 1 : index
    %c0_136 = arith.constant 0 : index
    %132 = vector.load %arg1[%c0_133, %c1_134, %c1_135, %c0_136] : memref<1x18x18x33xbf16, #tpu.memory_space<vmem>>, vector<1x16x16x33xbf16>
    %133 = vector.shape_cast %132 : vector<1x16x16x33xbf16> to vector<16x16x33xbf16>
    %134 = vector.shape_cast %133 : vector<16x16x33xbf16> to vector<256x33xbf16>
    %c3_137 = arith.constant 3 : index
    %c0_138 = arith.constant 0 : index
    %c0_139 = arith.constant 0 : index
    %c0_140 = arith.constant 0 : index
    %135 = vector.load %arg2[%c3_137, %c0_138, %c0_139, %c0_140] : memref<4x4x33x16xbf16, #tpu.memory_space<vmem>>, vector<1x1x33x16xbf16>
    %136 = vector.shape_cast %135 : vector<1x1x33x16xbf16> to vector<33x16xbf16>
    %cst_141 = arith.constant dense<0.000000e+00> : vector<256x16xf32>
    %137 = tpu.matmul %134, %136, %cst_141 {dimension_numbers = #tpu.dot_dimension_numbers<[1], [0], [0], [1], [0, 0, 1, 1], [], []>} : vector<256x33xbf16>, vector<33x16xbf16>, vector<256x16xf32> -> vector<256x16xf32>
    %138 = arith.addf %131, %137 : vector<256x16xf32>
    %c0_142 = arith.constant 0 : index
    %c1_143 = arith.constant 1 : index
    %c2_144 = arith.constant 2 : index
    %c0_145 = arith.constant 0 : index
    %139 = vector.load %arg1[%c0_142, %c1_143, %c2_144, %c0_145] : memref<1x18x18x33xbf16, #tpu.memory_space<vmem>>, vector<1x16x16x33xbf16>
    %140 = vector.shape_cast %139 : vector<1x16x16x33xbf16> to vector<16x16x33xbf16>
    %141 = vector.shape_cast %140 : vector<16x16x33xbf16> to vector<256x33xbf16>
    %c3_146 = arith.constant 3 : index
    %c1_147 = arith.constant 1 : index
    %c0_148 = arith.constant 0 : index
    %c0_149 = arith.constant 0 : index
    %142 = vector.load %arg2[%c3_146, %c1_147, %c0_148, %c0_149] : memref<4x4x33x16xbf16, #tpu.memory_space<vmem>>, vector<1x1x33x16xbf16>
    %143 = vector.shape_cast %142 : vector<1x1x33x16xbf16> to vector<33x16xbf16>
    %cst_150 = arith.constant dense<0.000000e+00> : vector<256x16xf32>
    %144 = tpu.matmul %141, %143, %cst_150 {dimension_numbers = #tpu.dot_dimension_numbers<[1], [0], [0], [1], [0, 0, 1, 1], [], []>} : vector<256x33xbf16>, vector<33x16xbf16>, vector<256x16xf32> -> vector<256x16xf32>
    %145 = arith.addf %138, %144 : vector<256x16xf32>
    %c0_151 = arith.constant 0 : index
    %c2_152 = arith.constant 2 : index
    %c1_153 = arith.constant 1 : index
    %c0_154 = arith.constant 0 : index
    %146 = vector.load %arg1[%c0_151, %c2_152, %c1_153, %c0_154] : memref<1x18x18x33xbf16, #tpu.memory_space<vmem>>, vector<1x16x16x33xbf16>
    %147 = vector.shape_cast %146 : vector<1x16x16x33xbf16> to vector<16x16x33xbf16>
    %148 = vector.shape_cast %147 : vector<16x16x33xbf16> to vector<256x33xbf16>
    %c3_155 = arith.constant 3 : index
    %c2_156 = arith.constant 2 : index
    %c0_157 = arith.constant 0 : index
    %c0_158 = arith.constant 0 : index
    %149 = vector.load %arg2[%c3_155, %c2_156, %c0_157, %c0_158] : memref<4x4x33x16xbf16, #tpu.memory_space<vmem>>, vector<1x1x33x16xbf16>
    %150 = vector.shape_cast %149 : vector<1x1x33x16xbf16> to vector<33x16xbf16>
    %cst_159 = arith.constant dense<0.000000e+00> : vector<256x16xf32>
    %151 = tpu.matmul %148, %150, %cst_159 {dimension_numbers = #tpu.dot_dimension_numbers<[1], [0], [0], [1], [0, 0, 1, 1], [], []>} : vector<256x33xbf16>, vector<33x16xbf16>, vector<256x16xf32> -> vector<256x16xf32>
    %152 = arith.addf %145, %151 : vector<256x16xf32>
    %c0_160 = arith.constant 0 : index
    %c2_161 = arith.constant 2 : index
    %c2_162 = arith.constant 2 : index
    %c0_163 = arith.constant 0 : index
    %153 = vector.load %arg1[%c0_160, %c2_161, %c2_162, %c0_163] : memref<1x18x18x33xbf16, #tpu.memory_space<vmem>>, vector<1x16x16x33xbf16>
    %154 = vector.shape_cast %153 : vector<1x16x16x33xbf16> to vector<16x16x33xbf16>
    %155 = vector.shape_cast %154 : vector<16x16x33xbf16> to vector<256x33xbf16>
    %c3_164 = arith.constant 3 : index
    %c3_165 = arith.constant 3 : index
    %c0_166 = arith.constant 0 : index
    %c0_167 = arith.constant 0 : index
    %156 = vector.load %arg2[%c3_164, %c3_165, %c0_166, %c0_167] : memref<4x4x33x16xbf16, #tpu.memory_space<vmem>>, vector<1x1x33x16xbf16>
    %157 = vector.shape_cast %156 : vector<1x1x33x16xbf16> to vector<33x16xbf16>
    %cst_168 = arith.constant dense<0.000000e+00> : vector<256x16xf32>
    %158 = tpu.matmul %155, %157, %cst_168 {dimension_numbers = #tpu.dot_dimension_numbers<[1], [0], [0], [1], [0, 0, 1, 1], [], []>} : vector<256x33xbf16>, vector<33x16xbf16>, vector<256x16xf32> -> vector<256x16xf32>
    %159 = arith.addf %152, %158 : vector<256x16xf32>
    %c0_169 = arith.constant 0 : index
    %c0_170 = arith.constant 0 : index
    %160 = vector.load %arg3[%c0_169, %c0_170] : memref<1x16xf32, #tpu.memory_space<vmem>>, vector<1x16xf32>
    %161 = vector.broadcast %160 : vector<1x16xf32> to vector<256x16xf32>
    %162 = arith.addf %159, %161 : vector<256x16xf32>
    %163 = arith.truncf %162 : vector<256x16xf32> to vector<256x16xbf16>
    %c0_171 = arith.constant 0 : index
    %c3_172 = arith.constant 3 : index
    %c0_173 = arith.constant 0 : index
    %c0_174 = arith.constant 0 : index
    %164 = vector.load %arg4[%c0_171, %c3_172, %c0_173, %c0_174] : memref<1x4x256x16xbf16, #tpu.memory_space<vmem>>, vector<1x1x256x16xbf16>
    %165 = vector.shape_cast %164 : vector<1x1x256x16xbf16> to vector<256x16xbf16>
    %166 = vector.shape_cast %163 : vector<256x16xbf16> to vector<1x1x256x16xbf16>
    tpu.vector_store %arg4[%c0_171, %c3_172, %c0_173, %c0_174], %166 {strides = array<i32>} : memref<1x4x256x16xbf16, #tpu.memory_space<vmem>>, vector<1x1x256x16xbf16>,
    %cst_175 = arith.constant dense<0.000000e+00> : vector<16xf32>
    %167 = vector.multi_reduction <add>, %162, %cst_175 [0] : vector<256x16xf32> to vector<16xf32>
    %168 = vector.shape_cast %167 : vector<16xf32> to vector<1x16xf32>
    %169 = arith.addf %126, %168 : vector<1x16xf32>
    %170 = arith.mulf %162, %162 : vector<256x16xf32>
    %cst_176 = arith.constant dense<0.000000e+00> : vector<16xf32>
    %171 = vector.multi_reduction <add>, %170, %cst_176 [0] : vector<256x16xf32> to vector<16xf32>
    %172 = vector.shape_cast %171 : vector<16xf32> to vector<1x16xf32>
    %173 = arith.addf %130, %172 : vector<1x16xf32>
    %c0_177 = arith.constant 0 : index
    %c0_178 = arith.constant 0 : index
    %c0_179 = arith.constant 0 : index
    %174 = vector.load %arg5[%c0_177, %c0_178, %c0_179] : memref<1x2x16xf32, #tpu.memory_space<vmem>>, vector<1x1x16xf32>
    %175 = vector.shape_cast %174 : vector<1x1x16xf32> to vector<1x16xf32>
    %176 = vector.shape_cast %169 : vector<1x16xf32> to vector<1x1x16xf32>
    tpu.vector_store %arg5[%c0_177, %c0_178, %c0_179], %176 {strides = array<i32>} : memref<1x2x16xf32, #tpu.memory_space<vmem>>, vector<1x1x16xf32>,
    %c0_180 = arith.constant 0 : index
    %c1_181 = arith.constant 1 : index
    %c0_182 = arith.constant 0 : index
    %177 = vector.load %arg5[%c0_180, %c1_181, %c0_182] : memref<1x2x16xf32, #tpu.memory_space<vmem>>, vector<1x1x16xf32>
    %178 = vector.shape_cast %177 : vector<1x1x16xf32> to vector<1x16xf32>
    %179 = vector.shape_cast %173 : vector<1x16xf32> to vector<1x1x16xf32>
    tpu.vector_store %arg5[%c0_180, %c1_181, %c0_182], %179 {strides = array<i32>} : memref<1x2x16xf32, #tpu.memory_space<vmem>>, vector<1x1x16xf32>,
    return
  }
  func.func @transform_0(%arg0: i32) -> (i32, i32, i32, i32) {
    %c0_i32 = arith.constant 0 : i32
    %c0_i32_0 = arith.constant 0 : i32
    %c0_i32_1 = arith.constant 0 : i32
    %c0_i32_2 = arith.constant 0 : i32
    return %arg0, %c0_i32, %c0_i32_0, %c0_i32_1 : i32, i32, i32, i32
  }
  func.func @transform_1(%arg0: i32) -> (i32, i32, i32, i32) {
    %c0_i32 = arith.constant 0 : i32
    %c0_i32_0 = arith.constant 0 : i32
    %c0_i32_1 = arith.constant 0 : i32
    %c0_i32_2 = arith.constant 0 : i32
    %c0_i32_3 = arith.constant 0 : i32
    return %c0_i32, %c0_i32_0, %c0_i32_1, %c0_i32_2 : i32, i32, i32, i32
  }
  func.func @transform_2(%arg0: i32) -> (i32, i32) {
    %c0_i32 = arith.constant 0 : i32
    %c0_i32_0 = arith.constant 0 : i32
    %c0_i32_1 = arith.constant 0 : i32
    return %c0_i32, %c0_i32_0 : i32, i32
  }
  func.func @transform_3(%arg0: i32) -> (i32, i32, i32, i32) {
    %c0_i32 = arith.constant 0 : i32
    %c0_i32_0 = arith.constant 0 : i32
    %c0_i32_1 = arith.constant 0 : i32
    %c0_i32_2 = arith.constant 0 : i32
    return %arg0, %c0_i32, %c0_i32_0, %c0_i32_1 : i32, i32, i32, i32
  }
  func.func @transform_4(%arg0: i32) -> (i32, i32, i32) {
    %c0_i32 = arith.constant 0 : i32
    %c0_i32_0 = arith.constant 0 : i32
    %c0_i32_1 = arith.constant 0 : i32
    return %arg0, %c0_i32, %c0_i32_0 : i32, i32, i32
  }
}

module attributes {stable_mosaic.version = 11 : i64} {
  func.func @_bn_relu_kernel(%arg0: i32, %arg1: i32, %arg2: memref<1x1024x16xbf16, #tpu.memory_space<vmem>>, %arg3: memref<1x1x16xf32, #tpu.memory_space<vmem>>, %arg4: memref<1x1x16xf32, #tpu.memory_space<vmem>>, %arg5: memref<1x1024x16xf32, #tpu.memory_space<vmem>>) attributes {dimension_semantics = [#tpu.dimension_semantics<parallel>, #tpu.dimension_semantics<parallel>], iteration_bounds = array<i64: 2, 1>, scalar_prefetch = 0 : i64, scratch_operands = 0 : i64, tpu.core_type = #tpu.core_type<tc>, window_params = [{transform_indices = @transform_0, window_bounds = array<i64: 1, 1024, 16>}, {pipeline_mode = #tpu.pipeline_mode<synchronous>, transform_indices = @transform_1, window_bounds = array<i64: 1, 1, 16>}, {pipeline_mode = #tpu.pipeline_mode<synchronous>, transform_indices = @transform_2, window_bounds = array<i64: 1, 1, 16>}, {transform_indices = @transform_3, window_bounds = array<i64: 1, 1024, 16>}]} {
    %c0 = arith.constant 0 : index
    %c0_0 = arith.constant 0 : index
    %c0_1 = arith.constant 0 : index
    %0 = vector.load %arg2[%c0, %c0_0, %c0_1] : memref<1x1024x16xbf16, #tpu.memory_space<vmem>>, vector<1x1024x16xbf16>
    %1 = arith.extf %0 : vector<1x1024x16xbf16> to vector<1x1024x16xf32>
    %c0_2 = arith.constant 0 : index
    %c0_3 = arith.constant 0 : index
    %c0_4 = arith.constant 0 : index
    %2 = vector.load %arg3[%c0_2, %c0_3, %c0_4] : memref<1x1x16xf32, #tpu.memory_space<vmem>>, vector<1x1x16xf32>
    %3 = vector.broadcast %2 : vector<1x1x16xf32> to vector<1x1024x16xf32>
    %4 = arith.mulf %1, %3 : vector<1x1024x16xf32>
    %c0_5 = arith.constant 0 : index
    %c0_6 = arith.constant 0 : index
    %c0_7 = arith.constant 0 : index
    %5 = vector.load %arg4[%c0_5, %c0_6, %c0_7] : memref<1x1x16xf32, #tpu.memory_space<vmem>>, vector<1x1x16xf32>
    %6 = vector.broadcast %5 : vector<1x1x16xf32> to vector<1x1024x16xf32>
    %7 = arith.addf %4, %6 : vector<1x1024x16xf32>
    %cst = arith.constant 0.000000e+00 : f32
    %8 = vector.broadcast %cst : f32 to vector<1x1024x16xf32>
    %9 = arith.maximumf %7, %8 : vector<1x1024x16xf32>
    %c0_8 = arith.constant 0 : index
    %c0_9 = arith.constant 0 : index
    %c0_10 = arith.constant 0 : index
    %10 = vector.load %arg5[%c0_8, %c0_9, %c0_10] : memref<1x1024x16xf32, #tpu.memory_space<vmem>>, vector<1x1024x16xf32>
    tpu.vector_store %arg5[%c0_8, %c0_9, %c0_10], %9 {strides = array<i32>} : memref<1x1024x16xf32, #tpu.memory_space<vmem>>, vector<1x1024x16xf32>,
    return
  }
  func.func @transform_0(%arg0: i32, %arg1: i32) -> (i32, i32, i32) {
    %c0_i32 = arith.constant 0 : i32
    %c0_i32_0 = arith.constant 0 : i32
    return %arg0, %arg1, %c0_i32 : i32, i32, i32
  }
  func.func @transform_1(%arg0: i32, %arg1: i32) -> (i32, i32, i32) {
    %c0_i32 = arith.constant 0 : i32
    %c0_i32_0 = arith.constant 0 : i32
    %c0_i32_1 = arith.constant 0 : i32
    %c0_i32_2 = arith.constant 0 : i32
    return %c0_i32, %c0_i32_0, %c0_i32_1 : i32, i32, i32
  }
  func.func @transform_2(%arg0: i32, %arg1: i32) -> (i32, i32, i32) {
    %c0_i32 = arith.constant 0 : i32
    %c0_i32_0 = arith.constant 0 : i32
    %c0_i32_1 = arith.constant 0 : i32
    %c0_i32_2 = arith.constant 0 : i32
    return %c0_i32, %c0_i32_0, %c0_i32_1 : i32, i32, i32
  }
  func.func @transform_3(%arg0: i32, %arg1: i32) -> (i32, i32, i32) {
    %c0_i32 = arith.constant 0 : i32
    %c0_i32_0 = arith.constant 0 : i32
    return %arg0, %arg1, %c0_i32 : i32, i32, i32
  }
}

</mosaic_0001>

<llo_original>
// kernel: decoder_block_forward.3
$region0: #{decoder_block_forward.3}
  #allocation0 [shape = 'u32[]', space=smem, size = 0x4, offset = 0x4, fixed_abs, tag = 'smem constant byte address 0x4 - core index']
  #allocation1 [shape = 'u32[72,128]{1,0:T(1,128)}', space=vmem, size = 0x9000, scoped, tag = 'internal scratch']
  %s0 = inlined_call_operand.vmem [shape: bf16[2,1024,16], index: 0, kind: input, shape index: {}]
  %s1 = inlined_call_operand.vmem [shape: f32[1,1,16], index: 1, kind: input, shape index: {}]
  %s2 = inlined_call_operand.vmem [shape: f32[1,1,16], index: 2, kind: input, shape index: {}]
  %s3 = inlined_call_operand.vmem [shape: f32[2,1024,16], index: 3, kind: output, shape index: {}]
  %s4 = sld [smem:[#allocation0]]
  $region45: #{decoder_block_forward.3} parent=0
    _
  %s6 = ssub.s32 1, %s4
  %s7 = scalar_select 0, %s6, %s4
  loop: start=0, step=1, limit=4
  $region2: #{decoder_block_forward.3} parent=0 // loop_pre_header
    _
  $region3: #{decoder_block_forward.3} parent=0 // loop_header
    %s9 = sphi 0, %s13
    %p10 = scmp.ge.s32.totalorder %s9, 4
    %s16 = sphi 0, %s28
    %s17 = sphi 0, %s24
    %s18 = sphi 0, %s16
    %s19 = sphi 0, %s17
    %s20 = sphi 0, %s18
    %s21 = sphi 0, %s19
    %s33 = sphi 0, %s35
    %s36 = sphi 0, %s33
    %s37 = sphi 0, %s36
    %s53 = sphi 0, %s37
    %s57 = sphi 0, %s57
    %s59 = sphi 0, %s57
    %s60 = sphi 0, %s59
    %s74 = sphi 0, %s60
    %s78 = sphi 0, %s78
    %s80 = sphi 0, %s78
    %s81 = sphi 0, %s80
    %s95 = sphi 0, %s81
    %s103 = sphi 0, %s105
    %s106 = sphi 0, %s103
    %s107 = sphi 0, %s106
    %s123 = sphi 0, %s107
  $region4: #{decoder_block_forward.3} parent=0 // loop_header_branch
    %12 = sbr.rel (%p10) target = $region8
  $region5: #{decoder_block_forward.3} parent=0 // loop_body
    %s14 = ssub.s32 %s9, 1
    %s15 = ssub.s32 %s9, 2
    %s22 = sadd.s32 1, %s17
    %p23 = scmp.ge.s32.totalorder %s22, 1
    %s24 = scalar_select %p23, 0, %s22
    %s25 = sadd.s32 1, %s16
    %s26 = scalar_select %p23, %s25, %s16
    %p27 = scmp.ge.s32.totalorder %s26, 2
    %s28 = scalar_select %p27, 0, %s26
    %s29 = ssub.s32 %s16, %s28
    %s30 = ssub.s32 %s17, %s24
    %s31 = sor.u32 %s29, %s30
    %p32 = scmp.eq.s32.totalorder %s31, 0
    %s34 = sadd.s32 %s33, 1
    %s35 = scalar_select %p32, %s33, %s34
    %p38 = pneg %p32
    %p39 = scmp.eq.s32.totalorder %s9, 1
    %p40 = por %p38, %p39
    %p41 = scmp.ne.s32.totalorder %s33, %s36
    %p42 = scmp.eq.s32.totalorder %s9, 0
    %p43 = por %p41, %p42
    %p44 = scmp.ne.s32.totalorder %s33, %s36
    %p45 = scmp.eq.s32.totalorder %s14, 1
    %p46 = por %p44, %p45
    %p47 = scmp.ne.s32.totalorder %s36, %s37
    %p48 = scmp.eq.s32.totalorder %s14, 0
    %p49 = por %p47, %p48
    %p50 = scmp.ne.s32.totalorder %s36, %s37
    %p51 = scmp.eq.s32.totalorder %s15, 1
    %p52 = por %p50, %p51
    %p54 = scmp.ne.s32.totalorder %s37, %s53
    %p55 = scmp.eq.s32.totalorder %s15, 0
    %p56 = por %p54, %p55
    %s58 = sadd.s32 %s57, 1
    %p61 = scmp.eq.s32.totalorder %s9, 1
    %p62 = scmp.ne.s32.totalorder %s57, %s59
    %p63 = scmp.eq.s32.totalorder %s9, 0
    %p64 = por %p62, %p63
    %p65 = scmp.ne.s32.totalorder %s57, %s59
    %p66 = scmp.eq.s32.totalorder %s14, 1
    %p67 = por %p65, %p66
    %p68 = scmp.ne.s32.totalorder %s59, %s60
    %p69 = scmp.eq.s32.totalorder %s14, 0
    %p70 = por %p68, %p69
    %p71 = scmp.ne.s32.totalorder %s59, %s60
    %p72 = scmp.eq.s32.totalorder %s15, 1
    %p73 = por %p71, %p72
    %p75 = scmp.ne.s32.totalorder %s60, %s74
    %p76 = scmp.eq.s32.totalorder %s15, 0
    %p77 = por %p75, %p76
    %s79 = sadd.s32 %s78, 1
    %p82 = scmp.eq.s32.totalorder %s9, 1
    %p83 = scmp.ne.s32.totalorder %s78, %s80
    %p84 = scmp.eq.s32.totalorder %s9, 0
    %p85 = por %p83, %p84
    %p86 = scmp.ne.s32.totalorder %s78, %s80
    %p87 = scmp.eq.s32.totalorder %s14, 1
    %p88 = por %p86, %p87
    %p89 = scmp.ne.s32.totalorder %s80, %s81
    %p90 = scmp.eq.s32.totalorder %s14, 0
    %p91 = por %p89, %p90
    %p92 = scmp.ne.s32.totalorder %s80, %s81
    %p93 = scmp.eq.s32.totalorder %s15, 1
    %p94 = por %p92, %p93
    %p96 = scmp.ne.s32.totalorder %s81, %s95
    %p97 = scmp.eq.s32.totalorder %s15, 0
    %p98 = por %p96, %p97
    %s99 = ssub.s32 %s16, %s28
    %s100 = ssub.s32 %s17, %s24
    %s101 = sor.u32 %s99, %s100
    %p102 = scmp.eq.s32.totalorder %s101, 0
    %s104 = sadd.s32 %s103, 1
    %s105 = scalar_select %p102, %s103, %s104
    %p108 = pneg %p102
    %p109 = scmp.eq.s32.totalorder %s9, 1
    %p110 = por %p108, %p109
    %p111 = scmp.ne.s32.totalorder %s103, %s106
    %p112 = scmp.eq.s32.totalorder %s9, 0
    %p113 = por %p111, %p112
    %p114 = scmp.ne.s32.totalorder %s103, %s106
    %p115 = scmp.eq.s32.totalorder %s14, 1
    %p116 = por %p114, %p115
    %p117 = scmp.ne.s32.totalorder %s106, %s107
    %p118 = scmp.eq.s32.totalorder %s14, 0
    %p119 = por %p117, %p118
    %p120 = scmp.ne.s32.totalorder %s106, %s107
    %p121 = scmp.eq.s32.totalorder %s15, 1
    %p122 = por %p120, %p121
    %p124 = scmp.ne.s32.totalorder %s107, %s123
    %p125 = scmp.eq.s32.totalorder %s15, 0
    %p126 = por %p124, %p125
    %p127 = scmp.le.s32.totalorder 1, %s9
    %p128 = scmp.lt.s32.totalorder %s9, 3
    %p129 = pnand %p127, %p128
    %p130 = pneg %p129
    // Predicated region
    $region9: #{decoder_block_forward.3} parent=5 // pred_check
      _
    $region10: #{decoder_block_forward.3} parent=5 // pred_check_branch
      %132 = sbr.rel (%p129) target = $region12
    $region11: #{decoder_block_forward.3} parent=5 // pred_region
      %s133 = ssub.s32 %s9, 1
      // Predicated region
      $region13: #{decoder_block_forward.3} parent=11 // pred_check
        %p134 = pneg %p70
      $region14: #{decoder_block_forward.3} parent=11 // pred_check_branch
        %136 = sbr.rel (%p134) target = $region16
      $region15: #{decoder_block_forward.3} parent=11 // pred_region
        _
      $region16: #{decoder_block_forward.3} parent=11 // pred_fallthru
        _
      // Predicated region
      $region17: #{decoder_block_forward.3} parent=11 // pred_check
        %p137 = pneg %p91
      $region18: #{decoder_block_forward.3} parent=11 // pred_check_branch
        %139 = sbr.rel (%p137) target = $region20
      $region19: #{decoder_block_forward.3} parent=11 // pred_region
        _
      $region20: #{decoder_block_forward.3} parent=11 // pred_fallthru
        _
    $region12: #{decoder_block_forward.3} parent=5 // pred_fallthru
      _
    %p140 = scmp.lt.s32.totalorder %s9, 2
    // Predicated region
    $region21: #{decoder_block_forward.3} parent=5 // pred_check
      %p141 = pneg %p140
    $region22: #{decoder_block_forward.3} parent=5 // pred_check_branch
      %143 = sbr.rel (%p141) target = $region24
    $region23: #{decoder_block_forward.3} parent=5 // pred_region
      // Predicated region
      $region25: #{decoder_block_forward.3} parent=23 // pred_check
        %p144 = pneg %p43
      $region26: #{decoder_block_forward.3} parent=23 // pred_check_branch
        %146 = sbr.rel (%p144) target = $region28
      $region27: #{decoder_block_forward.3} parent=23 // pred_region
        %s147 = smul.u32 128, %s17
        %p148 = scmp.lt.s32.totalorder %s16, 1
        %s149 = scalar_select %p148, %s16, 1
        %p150 = scmp.lt.s32.totalorder %s147, 127
        %s151 = scalar_select %p150, %s147, 127
        %s152 = smul.addr %s149, 128
        %s153 = sadd.s32 %s151, %s152
        %s154 = smul.addr %s153, 4
        %s155 = scalar_lea.vmem %s0, %s154
        %s156 = smul.u32 128, %s17
      $region28: #{decoder_block_forward.3} parent=23 // pred_fallthru
        _
    $region24: #{decoder_block_forward.3} parent=5 // pred_fallthru
      _
    %p157 = scmp.le.s32.totalorder 1, %s9
    %p158 = scmp.lt.s32.totalorder %s9, 3
    %p159 = pnand %p157, %p158
    %p160 = pneg %p159
    // Predicated region
    $region29: #{decoder_block_forward.3} parent=5 // pred_check
      _
    $region30: #{decoder_block_forward.3} parent=5 // pred_check_branch
      %162 = sbr.rel (%p159) target = $region32
    $region31: #{decoder_block_forward.3} parent=5 // pred_region
      %s163 = ssub.s32 %s9, 1
      %s164 = smul.u32 128, %s19
      %p165 = scmp.lt.s32.totalorder %s18, 1
      %s166 = scalar_select %p165, %s18, 1
      %p167 = scmp.lt.s32.totalorder %s164, 127
      %s168 = scalar_select %p167, %s164, 127
      %s169 = smul.addr %s166, 128
      %s170 = sadd.s32 %s168, %s169
      %s171 = smul.addr %s170, 4
      %s172 = scalar_lea.vmem %s0, %s171
      %p173 = pneg %p49
      %p174 = pneg %p46
      %p175 = pneg %p70
      %p176 = pneg %p67
      %p177 = pneg %p91
      %p178 = pneg %p88
      %p179 = pneg %p119
      %p180 = pneg %p116
      %s181 = smul.u32 128, %s19
      %p182 = scmp.lt.s32.totalorder %s18, 1
      %s183 = scalar_select %p182, %s18, 1
      %p184 = scmp.lt.s32.totalorder %s181, 127
      %s185 = scalar_select %p184, %s181, 127
      %s186 = smul.addr %s183, 128
      %s187 = sadd.s32 %s185, %s186
      %s188 = smul.addr %s187, 8
      %s189 = scalar_lea.vmem %s3, %s188
      %s190 = smul.u32 128, %s19
      %p191 = scmp.lt.s32.totalorder %s18, 1
      %s192 = scalar_select %p191, %s18, 1
      %p193 = scmp.lt.s32.totalorder %s190, 127
      %s194 = scalar_select %p193, %s190, 127
      %s195 = smul.addr %s192, 128
      %s196 = sadd.s32 %s194, %s195
      %s197 = smul.addr %s196, 4
      %s198 = scalar_lea.vmem %s0, %s197
      %s199 = smul.u32 128, %s19
      %s200 = smul.u32 128, %s19
      %p201 = scmp.lt.s32.totalorder %s18, 1
      %s202 = scalar_select %p201, %s18, 1
      %p203 = scmp.lt.s32.totalorder %s200, 127
      %s204 = scalar_select %p203, %s200, 127
      %s205 = smul.addr %s202, 128
      %s206 = sadd.s32 %s204, %s205
      %s207 = smul.addr %s206, 8
      %s208 = scalar_lea.vmem %s3, %s207
      %s209 = smul.u32 128, %s19
      %v210 = vld [vmem:[%s198] sm:$0xf]
      %v211 = vld [vmem:[%s198 + $0x4] sm:$0xf]
      %v212 = vld [vmem:[%s198 + $0x8] sm:$0xf]
      %v213 = vld [vmem:[%s198 + $0xc] sm:$0xf]
      %v214 = vld [vmem:[%s198 + $0x10] sm:$0xf]
      %v215 = vld [vmem:[%s198 + $0x14] sm:$0xf]
      %v216 = vld [vmem:[%s198 + $0x18] sm:$0xf]
      %v217 = vld [vmem:[%s198 + $0x1c] sm:$0xf]
      %v218 = vld [vmem:[%s198 + $0x20] sm:$0xf]
      %v219 = vld [vmem:[%s198 + $0x24] sm:$0xf]
      %v220 = vld [vmem:[%s198 + $0x28] sm:$0xf]
      %v221 = vld [vmem:[%s198 + $0x2c] sm:$0xf]
      %v222 = vld [vmem:[%s198 + $0x30] sm:$0xf]
      %v223 = vld [vmem:[%s198 + $0x34] sm:$0xf]
      %v224 = vld [vmem:[%s198 + $0x38] sm:$0xf]
      %v225 = vld [vmem:[%s198 + $0x3c] sm:$0xf]
      %v226 = vld [vmem:[%s198 + $0x40] sm:$0xf]
      %v227 = vld [vmem:[%s198 + $0x44] sm:$0xf]
      %v228 = vld [vmem:[%s198 + $0x48] sm:$0xf]
      %v229 = vld [vmem:[%s198 + $0x4c] sm:$0xf]
      %v230 = vld [vmem:[%s198 + $0x50] sm:$0xf]
      %v231 = vld [vmem:[%s198 + $0x54] sm:$0xf]
      %v232 = vld [vmem:[%s198 + $0x58] sm:$0xf]
      %v233 = vld [vmem:[%s198 + $0x5c] sm:$0xf]
      %v234 = vld [vmem:[%s198 + $0x60] sm:$0xf]
      %v235 = vld [vmem:[%s198 + $0x64] sm:$0xf]
      %v236 = vld [vmem:[%s198 + $0x68] sm:$0xf]
      %v237 = vld [vmem:[%s198 + $0x6c] sm:$0xf]
      %v238 = vld [vmem:[%s198 + $0x70] sm:$0xf]
      %v239 = vld [vmem:[%s198 + $0x74] sm:$0xf]
      %v240 = vld [vmem:[%s198 + $0x78] sm:$0xf]
      %v241 = vld [vmem:[%s198 + $0x7c] sm:$0xf]
      %v242 = vld [vmem:[%s198 + $0x80] sm:$0xf]
      %v243 = vld [vmem:[%s198 + $0x84] sm:$0xf]
      %v244 = vld [vmem:[%s198 + $0x88] sm:$0xf]
      %v245 = vld [vmem:[%s198 + $0x8c] sm:$0xf]
      %v246 = vld [vmem:[%s198 + $0x90] sm:$0xf]
      %v247 = vld [vmem:[%s198 + $0x94] sm:$0xf]
      %v248 = vld [vmem:[%s198 + $0x98] sm:$0xf]
      %v249 = vld [vmem:[%s198 + $0x9c] sm:$0xf]
      %v250 = vld [vmem:[%s198 + $0xa0] sm:$0xf]
      %v251 = vld [vmem:[%s198 + $0xa4] sm:$0xf]
      %v252 = vld [vmem:[%s198 + $0xa8] sm:$0xf]
      %v253 = vld [vmem:[%s198 + $0xac] sm:$0xf]
      %v254 = vld [vmem:[%s198 + $0xb0] sm:$0xf]
      %v255 = vld [vmem:[%s198 + $0xb4] sm:$0xf]
      %v256 = vld [vmem:[%s198 + $0xb8] sm:$0xf]
      %v257 = vld [vmem:[%s198 + $0xbc] sm:$0xf]
      %v258 = vld [vmem:[%s198 + $0xc0] sm:$0xf]
      %v259 = vld [vmem:[%s198 + $0xc4] sm:$0xf]
      %v260 = vld [vmem:[%s198 + $0xc8] sm:$0xf]
      %v261 = vld [vmem:[%s198 + $0xcc] sm:$0xf]
      %v262 = vld [vmem:[%s198 + $0xd0] sm:$0xf]
      %v263 = vld [vmem:[%s198 + $0xd4] sm:$0xf]
      %v264 = vld [vmem:[%s198 + $0xd8] sm:$0xf]
      %v265 = vld [vmem:[%s198 + $0xdc] sm:$0xf]
      %v266 = vld [vmem:[%s198 + $0xe0] sm:$0xf]
      %v267 = vld [vmem:[%s198 + $0xe4] sm:$0xf]
      %v268 = vld [vmem:[%s198 + $0xe8] sm:$0xf]
      %v269 = vld [vmem:[%s198 + $0xec] sm:$0xf]
      %v270 = vld [vmem:[%s198 + $0xf0] sm:$0xf]
      %v271 = vld [vmem:[%s198 + $0xf4] sm:$0xf]
      %v272 = vld [vmem:[%s198 + $0xf8] sm:$0xf]
      %v273 = vld [vmem:[%s198 + $0xfc] sm:$0xf]
      %v274 = vld [vmem:[%s198 + $0x100] sm:$0xf]
      %v275 = vld [vmem:[%s198 + $0x104] sm:$0xf]
      %v276 = vld [vmem:[%s198 + $0x108] sm:$0xf]
      %v277 = vld [vmem:[%s198 + $0x10c] sm:$0xf]
      %v278 = vld [vmem:[%s198 + $0x110] sm:$0xf]
      %v279 = vld [vmem:[%s198 + $0x114] sm:$0xf]
      %v280 = vld [vmem:[%s198 + $0x118] sm:$0xf]
      %v281 = vld [vmem:[%s198 + $0x11c] sm:$0xf]
      %v282 = vld [vmem:[%s198 + $0x120] sm:$0xf]
      %v283 = vld [vmem:[%s198 + $0x124] sm:$0xf]
      %v284 = vld [vmem:[%s198 + $0x128] sm:$0xf]
      %v285 = vld [vmem:[%s198 + $0x12c] sm:$0xf]
      %v286 = vld [vmem:[%s198 + $0x130] sm:$0xf]
      %v287 = vld [vmem:[%s198 + $0x134] sm:$0xf]
      %v288 = vld [vmem:[%s198 + $0x138] sm:$0xf]
      %v289 = vld [vmem:[%s198 + $0x13c] sm:$0xf]
      %v290 = vld [vmem:[%s198 + $0x140] sm:$0xf]
      %v291 = vld [vmem:[%s198 + $0x144] sm:$0xf]
      %v292 = vld [vmem:[%s198 + $0x148] sm:$0xf]
      %v293 = vld [vmem:[%s198 + $0x14c] sm:$0xf]
      %v294 = vld [vmem:[%s198 + $0x150] sm:$0xf]
      %v295 = vld [vmem:[%s198 + $0x154] sm:$0xf]
      %v296 = vld [vmem:[%s198 + $0x158] sm:$0xf]
      %v297 = vld [vmem:[%s198 + $0x15c] sm:$0xf]
      %v298 = vld [vmem:[%s198 + $0x160] sm:$0xf]
      %v299 = vld [vmem:[%s198 + $0x164] sm:$0xf]
      %v300 = vld [vmem:[%s198 + $0x168] sm:$0xf]
      %v301 = vld [vmem:[%s198 + $0x16c] sm:$0xf]
      %v302 = vld [vmem:[%s198 + $0x170] sm:$0xf]
      %v303 = vld [vmem:[%s198 + $0x174] sm:$0xf]
      %v304 = vld [vmem:[%s198 + $0x178] sm:$0xf]
      %v305 = vld [vmem:[%s198 + $0x17c] sm:$0xf]
      %v306 = vld [vmem:[%s198 + $0x180] sm:$0xf]
      %v307 = vld [vmem:[%s198 + $0x184] sm:$0xf]
      %v308 = vld [vmem:[%s198 + $0x188] sm:$0xf]
      %v309 = vld [vmem:[%s198 + $0x18c] sm:$0xf]
      %v310 = vld [vmem:[%s198 + $0x190] sm:$0xf]
      %v311 = vld [vmem:[%s198 + $0x194] sm:$0xf]
      %v312 = vld [vmem:[%s198 + $0x198] sm:$0xf]
      %v313 = vld [vmem:[%s198 + $0x19c] sm:$0xf]
      %v314 = vld [vmem:[%s198 + $0x1a0] sm:$0xf]
      %v315 = vld [vmem:[%s198 + $0x1a4] sm:$0xf]
      %v316 = vld [vmem:[%s198 + $0x1a8] sm:$0xf]
      %v317 = vld [vmem:[%s198 + $0x1ac] sm:$0xf]
      %v318 = vld [vmem:[%s198 + $0x1b0] sm:$0xf]
      %v319 = vld [vmem:[%s198 + $0x1b4] sm:$0xf]
      %v320 = vld [vmem:[%s198 + $0x1b8] sm:$0xf]
      %v321 = vld [vmem:[%s198 + $0x1bc] sm:$0xf]
      %v322 = vld [vmem:[%s198 + $0x1c0] sm:$0xf]
      %v323 = vld [vmem:[%s198 + $0x1c4] sm:$0xf]
      %v324 = vld [vmem:[%s198 + $0x1c8] sm:$0xf]
      %v325 = vld [vmem:[%s198 + $0x1cc] sm:$0xf]
      %v326 = vld [vmem:[%s198 + $0x1d0] sm:$0xf]
      %v327 = vld [vmem:[%s198 + $0x1d4] sm:$0xf]
      %v328 = vld [vmem:[%s198 + $0x1d8] sm:$0xf]
      %v329 = vld [vmem:[%s198 + $0x1dc] sm:$0xf]
      %v330 = vld [vmem:[%s198 + $0x1e0] sm:$0xf]
      %v331 = vld [vmem:[%s198 + $0x1e4] sm:$0xf]
      %v332 = vld [vmem:[%s198 + $0x1e8] sm:$0xf]
      %v333 = vld [vmem:[%s198 + $0x1ec] sm:$0xf]
      %v334 = vld [vmem:[%s198 + $0x1f0] sm:$0xf]
      %v335 = vld [vmem:[%s198 + $0x1f4] sm:$0xf]
      %v336 = vld [vmem:[%s198 + $0x1f8] sm:$0xf]
      %v337 = vld [vmem:[%s198 + $0x1fc] sm:$0xf]
      %v338 = vunpack.c.l.bf16 %v210
      %v339 = vunpack.c.l.bf16 %v211
      %v340 = vunpack.c.l.bf16 %v212
      %v341 = vunpack.c.l.bf16 %v213
      %v342 = vunpack.c.l.bf16 %v214
      %v343 = vunpack.c.l.bf16 %v215
      %v344 = vunpack.c.l.bf16 %v216
      %v345 = vunpack.c.l.bf16 %v217
      %v346 = vunpack.c.l.bf16 %v218
      %v347 = vunpack.c.l.bf16 %v219
      %v348 = vunpack.c.l.bf16 %v220
      %v349 = vunpack.c.l.bf16 %v221
      %v350 = vunpack.c.l.bf16 %v222
      %v351 = vunpack.c.l.bf16 %v223
      %v352 = vunpack.c.l.bf16 %v224
      %v353 = vunpack.c.l.bf16 %v225
      %v354 = vunpack.c.l.bf16 %v226
      %v355 = vunpack.c.l.bf16 %v227
      %v356 = vunpack.c.l.bf16 %v228
      %v357 = vunpack.c.l.bf16 %v229
      %v358 = vunpack.c.l.bf16 %v230
      %v359 = vunpack.c.l.bf16 %v231
      %v360 = vunpack.c.l.bf16 %v232
      %v361 = vunpack.c.l.bf16 %v233
      %v362 = vunpack.c.l.bf16 %v234
      %v363 = vunpack.c.l.bf16 %v235
      %v364 = vunpack.c.l.bf16 %v236
      %v365 = vunpack.c.l.bf16 %v237
      %v366 = vunpack.c.l.bf16 %v238
      %v367 = vunpack.c.l.bf16 %v239
      %v368 = vunpack.c.l.bf16 %v240
      %v369 = vunpack.c.l.bf16 %v241
      %v370 = vunpack.c.l.bf16 %v242
      %v371 = vunpack.c.l.bf16 %v243
      %v372 = vunpack.c.l.bf16 %v244
      %v373 = vunpack.c.l.bf16 %v245
      %v374 = vunpack.c.l.bf16 %v246
      %v375 = vunpack.c.l.bf16 %v247
      %v376 = vunpack.c.l.bf16 %v248
      %v377 = vunpack.c.l.bf16 %v249
      %v378 = vunpack.c.l.bf16 %v250
      %v379 = vunpack.c.l.bf16 %v251
      %v380 = vunpack.c.l.bf16 %v252
      %v381 = vunpack.c.l.bf16 %v253
      %v382 = vunpack.c.l.bf16 %v254
      %v383 = vunpack.c.l.bf16 %v255
      %v384 = vunpack.c.l.bf16 %v256
      %v385 = vunpack.c.l.bf16 %v257
      %v386 = vunpack.c.l.bf16 %v258
      %v387 = vunpack.c.l.bf16 %v259
      %v388 = vunpack.c.l.bf16 %v260
      %v389 = vunpack.c.l.bf16 %v261
      %v390 = vunpack.c.l.bf16 %v262
      %v391 = vunpack.c.l.bf16 %v263
      %v392 = vunpack.c.l.bf16 %v264
      %v393 = vunpack.c.l.bf16 %v265
      %v394 = vunpack.c.l.bf16 %v266
      %v395 = vunpack.c.l.bf16 %v267
      %v396 = vunpack.c.l.bf16 %v268
      %v397 = vunpack.c.l.bf16 %v269
      %v398 = vunpack.c.l.bf16 %v270
      %v399 = vunpack.c.l.bf16 %v271
      %v400 = vunpack.c.l.bf16 %v272
      %v401 = vunpack.c.l.bf16 %v273
      %v402 = vunpack.c.l.bf16 %v274
      %v403 = vunpack.c.l.bf16 %v275
      %v404 = vunpack.c.l.bf16 %v276
      %v405 = vunpack.c.l.bf16 %v277
      %v406 = vunpack.c.l.bf16 %v278
      %v407 = vunpack.c.l.bf16 %v279
      %v408 = vunpack.c.l.bf16 %v280
      %v409 = vunpack.c.l.bf16 %v281
      %v410 = vunpack.c.l.bf16 %v282
      %v411 = vunpack.c.l.bf16 %v283
      %v412 = vunpack.c.l.bf16 %v284
      %v413 = vunpack.c.l.bf16 %v285
      %v414 = vunpack.c.l.bf16 %v286
      %v415 = vunpack.c.l.bf16 %v287
      %v416 = vunpack.c.l.bf16 %v288
      %v417 = vunpack.c.l.bf16 %v289
      %v418 = vunpack.c.l.bf16 %v290
      %v419 = vunpack.c.l.bf16 %v291
      %v420 = vunpack.c.l.bf16 %v292
      %v421 = vunpack.c.l.bf16 %v293
      %v422 = vunpack.c.l.bf16 %v294
      %v423 = vunpack.c.l.bf16 %v295
      %v424 = vunpack.c.l.bf16 %v296
      %v425 = vunpack.c.l.bf16 %v297
      %v426 = vunpack.c.l.bf16 %v298
      %v427 = vunpack.c.l.bf16 %v299
      %v428 = vunpack.c.l.bf16 %v300
      %v429 = vunpack.c.l.bf16 %v301
      %v430 = vunpack.c.l.bf16 %v302
      %v431 = vunpack.c.l.bf16 %v303
      %v432 = vunpack.c.l.bf16 %v304
      %v433 = vunpack.c.l.bf16 %v305
      %v434 = vunpack.c.l.bf16 %v306
      %v435 = vunpack.c.l.bf16 %v307
      %v436 = vunpack.c.l.bf16 %v308
      %v437 = vunpack.c.l.bf16 %v309
      %v438 = vunpack.c.l.bf16 %v310
      %v439 = vunpack.c.l.bf16 %v311
      %v440 = vunpack.c.l.bf16 %v312
      %v441 = vunpack.c.l.bf16 %v313
      %v442 = vunpack.c.l.bf16 %v314
      %v443 = vunpack.c.l.bf16 %v315
      %v444 = vunpack.c.l.bf16 %v316
      %v445 = vunpack.c.l.bf16 %v317
      %v446 = vunpack.c.l.bf16 %v318
      %v447 = vunpack.c.l.bf16 %v319
      %v448 = vunpack.c.l.bf16 %v320
      %v449 = vunpack.c.l.bf16 %v321
      %v450 = vunpack.c.l.bf16 %v322
      %v451 = vunpack.c.l.bf16 %v323
      %v452 = vunpack.c.l.bf16 %v324
      %v453 = vunpack.c.l.bf16 %v325
      %v454 = vunpack.c.l.bf16 %v326
      %v455 = vunpack.c.l.bf16 %v327
      %v456 = vunpack.c.l.bf16 %v328
      %v457 = vunpack.c.l.bf16 %v329
      %v458 = vunpack.c.l.bf16 %v330
      %v459 = vunpack.c.l.bf16 %v331
      %v460 = vunpack.c.l.bf16 %v332
      %v461 = vunpack.c.l.bf16 %v333
      %v462 = vunpack.c.l.bf16 %v334
      %v463 = vunpack.c.l.bf16 %v335
      %v464 = vunpack.c.l.bf16 %v336
      %v465 = vunpack.c.l.bf16 %v337
      %v466 = vld [vmem:[%s1] sm:$0x1]
      %v468 = vperm.slane %v466, 0
      %v470 = vmul.f32 %v338, %v468
      %v471 = vmul.f32 %v339, %v468
      %v472 = vmul.f32 %v340, %v468
      %v473 = vmul.f32 %v341, %v468
      %v474 = vmul.f32 %v342, %v468
      %v475 = vmul.f32 %v343, %v468
      %v476 = vmul.f32 %v344, %v468
      %v477 = vmul.f32 %v345, %v468
      %v478 = vmul.f32 %v346, %v468
      %v479 = vmul.f32 %v347, %v468
      %v480 = vmul.f32 %v348, %v468
      %v481 = vmul.f32 %v349, %v468
      %v482 = vmul.f32 %v350, %v468
      %v483 = vmul.f32 %v351, %v468
      %v484 = vmul.f32 %v352, %v468
      %v485 = vmul.f32 %v353, %v468
      %v486 = vmul.f32 %v354, %v468
      %v487 = vmul.f32 %v355, %v468
      %v488 = vmul.f32 %v356, %v468
      %v489 = vmul.f32 %v357, %v468
      %v490 = vmul.f32 %v358, %v468
      %v491 = vmul.f32 %v359, %v468
      %v492 = vmul.f32 %v360, %v468
      %v493 = vmul.f32 %v361, %v468
      %v494 = vmul.f32 %v362, %v468
      %v495 = vmul.f32 %v363, %v468
      %v496 = vmul.f32 %v364, %v468
      %v497 = vmul.f32 %v365, %v468
      %v498 = vmul.f32 %v366, %v468
      %v499 = vmul.f32 %v367, %v468
      %v500 = vmul.f32 %v368, %v468
      %v501 = vmul.f32 %v369, %v468
      %v502 = vmul.f32 %v370, %v468
      %v503 = vmul.f32 %v371, %v468
      %v504 = vmul.f32 %v372, %v468
      %v505 = vmul.f32 %v373, %v468
      %v506 = vmul.f32 %v374, %v468
      %v507 = vmul.f32 %v375, %v468
      %v508 = vmul.f32 %v376, %v468
      %v509 = vmul.f32 %v377, %v468
      %v510 = vmul.f32 %v378, %v468
      %v511 = vmul.f32 %v379, %v468
      %v512 = vmul.f32 %v380, %v468
      %v513 = vmul.f32 %v381, %v468
      %v514 = vmul.f32 %v382, %v468
      %v515 = vmul.f32 %v383, %v468
      %v516 = vmul.f32 %v384, %v468
      %v517 = vmul.f32 %v385, %v468
      %v518 = vmul.f32 %v386, %v468
      %v519 = vmul.f32 %v387, %v468
      %v520 = vmul.f32 %v388, %v468
      %v521 = vmul.f32 %v389, %v468
      %v522 = vmul.f32 %v390, %v468
      %v523 = vmul.f32 %v391, %v468
      %v524 = vmul.f32 %v392, %v468
      %v525 = vmul.f32 %v393, %v468
      %v526 = vmul.f32 %v394, %v468
      %v527 = vmul.f32 %v395, %v468
      %v528 = vmul.f32 %v396, %v468
      %v529 = vmul.f32 %v397, %v468
      %v530 = vmul.f32 %v398, %v468
      %v531 = vmul.f32 %v399, %v468
      %v532 = vmul.f32 %v400, %v468
      %v533 = vmul.f32 %v401, %v468
      %v534 = vmul.f32 %v402, %v468
      %v535 = vmul.f32 %v403, %v468
      %v536 = vmul.f32 %v404, %v468
      %v537 = vmul.f32 %v405, %v468
      %v538 = vmul.f32 %v406, %v468
      %v539 = vmul.f32 %v407, %v468
      %v540 = vmul.f32 %v408, %v468
      %v541 = vmul.f32 %v409, %v468
      %v542 = vmul.f32 %v410, %v468
      %v543 = vmul.f32 %v411, %v468
      %v544 = vmul.f32 %v412, %v468
      %v545 = vmul.f32 %v413, %v468
      %v546 = vmul.f32 %v414, %v468
      %v547 = vmul.f32 %v415, %v468
      %v548 = vmul.f32 %v416, %v468
      %v549 = vmul.f32 %v417, %v468
      %v550 = vmul.f32 %v418, %v468
      %v551 = vmul.f32 %v419, %v468
      %v552 = vmul.f32 %v420, %v468
      %v553 = vmul.f32 %v421, %v468
      %v554 = vmul.f32 %v422, %v468
      %v555 = vmul.f32 %v423, %v468
      %v556 = vmul.f32 %v424, %v468
      %v557 = vmul.f32 %v425, %v468
      %v558 = vmul.f32 %v426, %v468
      %v559 = vmul.f32 %v427, %v468
      %v560 = vmul.f32 %v428, %v468
      %v561 = vmul.f32 %v429, %v468
      %v562 = vmul.f32 %v430, %v468
      %v563 = vmul.f32 %v431, %v468
      %v564 = vmul.f32 %v432, %v468
      %v565 = vmul.f32 %v433, %v468
      %v566 = vmul.f32 %v434, %v468
      %v567 = vmul.f32 %v435, %v468
      %v568 = vmul.f32 %v436, %v468
      %v569 = vmul.f32 %v437, %v468
      %v570 = vmul.f32 %v438, %v468
      %v571 = vmul.f32 %v439, %v468
      %v572 = vmul.f32 %v440, %v468
      %v573 = vmul.f32 %v441, %v468
      %v574 = vmul.f32 %v442, %v468
      %v575 = vmul.f32 %v443, %v468
      %v576 = vmul.f32 %v444, %v468
      %v577 = vmul.f32 %v445, %v468
      %v578 = vmul.f32 %v446, %v468
      %v579 = vmul.f32 %v447, %v468
      %v580 = vmul.f32 %v448, %v468
      %v581 = vmul.f32 %v449, %v468
      %v582 = vmul.f32 %v450, %v468
      %v583 = vmul.f32 %v451, %v468
      %v584 = vmul.f32 %v452, %v468
      %v585 = vmul.f32 %v453, %v468
      %v586 = vmul.f32 %v454, %v468
      %v587 = vmul.f32 %v455, %v468
      %v588 = vmul.f32 %v456, %v468
      %v589 = vmul.f32 %v457, %v468
      %v590 = vmul.f32 %v458, %v468
      %v591 = vmul.f32 %v459, %v468
      %v592 = vmul.f32 %v460, %v468
      %v593 = vmul.f32 %v461, %v468
      %v594 = vmul.f32 %v462, %v468
      %v595 = vmul.f32 %v463, %v468
      %v596 = vmul.f32 %v464, %v468
      %v597 = vmul.f32 %v465, %v468
      %v598 = vld [vmem:[%s2] sm:$0x1]
      %v600 = vperm.slane %v598, 0
      %v602 = vadd.f32 %v470, %v600
      %v603 = vadd.f32 %v471, %v600
      %v604 = vadd.f32 %v472, %v600
      %v605 = vadd.f32 %v473, %v600
      %v606 = vadd.f32 %v474, %v600
      %v607 = vadd.f32 %v475, %v600
      %v608 = vadd.f32 %v476, %v600
      %v609 = vadd.f32 %v477, %v600
      %v610 = vadd.f32 %v478, %v600
      %v611 = vadd.f32 %v479, %v600
      %v612 = vadd.f32 %v480, %v600
      %v613 = vadd.f32 %v481, %v600
      %v614 = vadd.f32 %v482, %v600
      %v615 = vadd.f32 %v483, %v600
      %v616 = vadd.f32 %v484, %v600
      %v617 = vadd.f32 %v485, %v600
      %v618 = vadd.f32 %v486, %v600
      %v619 = vadd.f32 %v487, %v600
      %v620 = vadd.f32 %v488, %v600
      %v621 = vadd.f32 %v489, %v600
      %v622 = vadd.f32 %v490, %v600
      %v623 = vadd.f32 %v491, %v600
      %v624 = vadd.f32 %v492, %v600
      %v625 = vadd.f32 %v493, %v600
      %v626 = vadd.f32 %v494, %v600
      %v627 = vadd.f32 %v495, %v600
      %v628 = vadd.f32 %v496, %v600
      %v629 = vadd.f32 %v497, %v600
      %v630 = vadd.f32 %v498, %v600
      %v631 = vadd.f32 %v499, %v600
      %v632 = vadd.f32 %v500, %v600
      %v633 = vadd.f32 %v501, %v600
      %v634 = vadd.f32 %v502, %v600
      %v635 = vadd.f32 %v503, %v600
      %v636 = vadd.f32 %v504, %v600
      %v637 = vadd.f32 %v505, %v600
      %v638 = vadd.f32 %v506, %v600
      %v639 = vadd.f32 %v507, %v600
      %v640 = vadd.f32 %v508, %v600
      %v641 = vadd.f32 %v509, %v600
      %v642 = vadd.f32 %v510, %v600
      %v643 = vadd.f32 %v511, %v600
      %v644 = vadd.f32 %v512, %v600
      %v645 = vadd.f32 %v513, %v600
      %v646 = vadd.f32 %v514, %v600
      %v647 = vadd.f32 %v515, %v600
      %v648 = vadd.f32 %v516, %v600
      %v649 = vadd.f32 %v517, %v600
      %v650 = vadd.f32 %v518, %v600
      %v651 = vadd.f32 %v519, %v600
      %v652 = vadd.f32 %v520, %v600
      %v653 = vadd.f32 %v521, %v600
      %v654 = vadd.f32 %v522, %v600
      %v655 = vadd.f32 %v523, %v600
      %v656 = vadd.f32 %v524, %v600
      %v657 = vadd.f32 %v525, %v600
      %v658 = vadd.f32 %v526, %v600
      %v659 = vadd.f32 %v527, %v600
      %v660 = vadd.f32 %v528, %v600
      %v661 = vadd.f32 %v529, %v600
      %v662 = vadd.f32 %v530, %v600
      %v663 = vadd.f32 %v531, %v600
      %v664 = vadd.f32 %v532, %v600
      %v665 = vadd.f32 %v533, %v600
      %v666 = vadd.f32 %v534, %v600
      %v667 = vadd.f32 %v535, %v600
      %v668 = vadd.f32 %v536, %v600
      %v669 = vadd.f32 %v537, %v600
      %v670 = vadd.f32 %v538, %v600
      %v671 = vadd.f32 %v539, %v600
      %v672 = vadd.f32 %v540, %v600
      %v673 = vadd.f32 %v541, %v600
      %v674 = vadd.f32 %v542, %v600
      %v675 = vadd.f32 %v543, %v600
      %v676 = vadd.f32 %v544, %v600
      %v677 = vadd.f32 %v545, %v600
      %v678 = vadd.f32 %v546, %v600
      %v679 = vadd.f32 %v547, %v600
      %v680 = vadd.f32 %v548, %v600
      %v681 = vadd.f32 %v549, %v600
      %v682 = vadd.f32 %v550, %v600
      %v683 = vadd.f32 %v551, %v600
      %v684 = vadd.f32 %v552, %v600
      %v685 = vadd.f32 %v553, %v600
      %v686 = vadd.f32 %v554, %v600
      %v687 = vadd.f32 %v555, %v600
      %v688 = vadd.f32 %v556, %v600
      %v689 = vadd.f32 %v557, %v600
      %v690 = vadd.f32 %v558, %v600
      %v691 = vadd.f32 %v559, %v600
      %v692 = vadd.f32 %v560, %v600
      %v693 = vadd.f32 %v561, %v600
      %v694 = vadd.f32 %v562, %v600
      %v695 = vadd.f32 %v563, %v600
      %v696 = vadd.f32 %v564, %v600
      %v697 = vadd.f32 %v565, %v600
      %v698 = vadd.f32 %v566, %v600
      %v699 = vadd.f32 %v567, %v600
      %v700 = vadd.f32 %v568, %v600
      %v701 = vadd.f32 %v569, %v600
      %v702 = vadd.f32 %v570, %v600
      %v703 = vadd.f32 %v571, %v600
      %v704 = vadd.f32 %v572, %v600
      %v705 = vadd.f32 %v573, %v600
      %v706 = vadd.f32 %v574, %v600
      %v707 = vadd.f32 %v575, %v600
      %v708 = vadd.f32 %v576, %v600
      %v709 = vadd.f32 %v577, %v600
      %v710 = vadd.f32 %v578, %v600
      %v711 = vadd.f32 %v579, %v600
      %v712 = vadd.f32 %v580, %v600
      %v713 = vadd.f32 %v581, %v600
      %v714 = vadd.f32 %v582, %v600
      %v715 = vadd.f32 %v583, %v600
      %v716 = vadd.f32 %v584, %v600
      %v717 = vadd.f32 %v585, %v600
      %v718 = vadd.f32 %v586, %v600
      %v719 = vadd.f32 %v587, %v600
      %v720 = vadd.f32 %v588, %v600
      %v721 = vadd.f32 %v589, %v600
      %v722 = vadd.f32 %v590, %v600
      %v723 = vadd.f32 %v591, %v600
      %v724 = vadd.f32 %v592, %v600
      %v725 = vadd.f32 %v593, %v600
      %v726 = vadd.f32 %v594, %v600
      %v727 = vadd.f32 %v595, %v600
      %v728 = vadd.f32 %v596, %v600
      %v729 = vadd.f32 %v597, %v600
      %v730 = vmax.f32 %v602, 0.0
      %v731 = vmax.f32 %v603, 0.0
      %v732 = vmax.f32 %v604, 0.0
      %v733 = vmax.f32 %v605, 0.0
      %v734 = vmax.f32 %v606, 0.0
      %v735 = vmax.f32 %v607, 0.0
      %v736 = vmax.f32 %v608, 0.0
      %v737 = vmax.f32 %v609, 0.0
      %v738 = vmax.f32 %v610, 0.0
      %v739 = vmax.f32 %v611, 0.0
      %v740 = vmax.f32 %v612, 0.0
      %v741 = vmax.f32 %v613, 0.0
      %v742 = vmax.f32 %v614, 0.0
      %v743 = vmax.f32 %v615, 0.0
      %v744 = vmax.f32 %v616, 0.0
      %v745 = vmax.f32 %v617, 0.0
      %v746 = vmax.f32 %v618, 0.0
      %v747 = vmax.f32 %v619, 0.0
      %v748 = vmax.f32 %v620, 0.0
      %v749 = vmax.f32 %v621, 0.0
      %v750 = vmax.f32 %v622, 0.0
      %v751 = vmax.f32 %v623, 0.0
      %v752 = vmax.f32 %v624, 0.0
      %v753 = vmax.f32 %v625, 0.0
      %v754 = vmax.f32 %v626, 0.0
      %v755 = vmax.f32 %v627, 0.0
      %v756 = vmax.f32 %v628, 0.0
      %v757 = vmax.f32 %v629, 0.0
      %v758 = vmax.f32 %v630, 0.0
      %v759 = vmax.f32 %v631, 0.0
      %v760 = vmax.f32 %v632, 0.0
      %v761 = vmax.f32 %v633, 0.0
      %v762 = vmax.f32 %v634, 0.0
      %v763 = vmax.f32 %v635, 0.0
      %v764 = vmax.f32 %v636, 0.0
      %v765 = vmax.f32 %v637, 0.0
      %v766 = vmax.f32 %v638, 0.0
      %v767 = vmax.f32 %v639, 0.0
      %v768 = vmax.f32 %v640, 0.0
      %v769 = vmax.f32 %v641, 0.0
      %v770 = vmax.f32 %v642, 0.0
      %v771 = vmax.f32 %v643, 0.0
      %v772 = vmax.f32 %v644, 0.0
      %v773 = vmax.f32 %v645, 0.0
      %v774 = vmax.f32 %v646, 0.0
      %v775 = vmax.f32 %v647, 0.0
      %v776 = vmax.f32 %v648, 0.0
      %v777 = vmax.f32 %v649, 0.0
      %v778 = vmax.f32 %v650, 0.0
      %v779 = vmax.f32 %v651, 0.0
      %v780 = vmax.f32 %v652, 0.0
      %v781 = vmax.f32 %v653, 0.0
      %v782 = vmax.f32 %v654, 0.0
      %v783 = vmax.f32 %v655, 0.0
      %v784 = vmax.f32 %v656, 0.0
      %v785 = vmax.f32 %v657, 0.0
      %v786 = vmax.f32 %v658, 0.0
      %v787 = vmax.f32 %v659, 0.0
      %v788 = vmax.f32 %v660, 0.0
      %v789 = vmax.f32 %v661, 0.0
      %v790 = vmax.f32 %v662, 0.0
      %v791 = vmax.f32 %v663, 0.0
      %v792 = vmax.f32 %v664, 0.0
      %v793 = vmax.f32 %v665, 0.0
      %v794 = vmax.f32 %v666, 0.0
      %v795 = vmax.f32 %v667, 0.0
      %v796 = vmax.f32 %v668, 0.0
      %v797 = vmax.f32 %v669, 0.0
      %v798 = vmax.f32 %v670, 0.0
      %v799 = vmax.f32 %v671, 0.0
      %v800 = vmax.f32 %v672, 0.0
      %v801 = vmax.f32 %v673, 0.0
      %v802 = vmax.f32 %v674, 0.0
      %v803 = vmax.f32 %v675, 0.0
      %v804 = vmax.f32 %v676, 0.0
      %v805 = vmax.f32 %v677, 0.0
      %v806 = vmax.f32 %v678, 0.0
      %v807 = vmax.f32 %v679, 0.0
      %v808 = vmax.f32 %v680, 0.0
      %v809 = vmax.f32 %v681, 0.0
      %v810 = vmax.f32 %v682, 0.0
      %v811 = vmax.f32 %v683, 0.0
      %v812 = vmax.f32 %v684, 0.0
      %v813 = vmax.f32 %v685, 0.0
      %v814 = vmax.f32 %v686, 0.0
      %v815 = vmax.f32 %v687, 0.0
      %v816 = vmax.f32 %v688, 0.0
      %v817 = vmax.f32 %v689, 0.0
      %v818 = vmax.f32 %v690, 0.0
      %v819 = vmax.f32 %v691, 0.0
      %v820 = vmax.f32 %v692, 0.0
      %v821 = vmax.f32 %v693, 0.0
      %v822 = vmax.f32 %v694, 0.0
      %v823 = vmax.f32 %v695, 0.0
      %v824 = vmax.f32 %v696, 0.0
      %v825 = vmax.f32 %v697, 0.0
      %v826 = vmax.f32 %v698, 0.0
      %v827 = vmax.f32 %v699, 0.0
      %v828 = vmax.f32 %v700, 0.0
      %v829 = vmax.f32 %v701, 0.0
      %v830 = vmax.f32 %v702, 0.0
      %v831 = vmax.f32 %v703, 0.0
      %v832 = vmax.f32 %v704, 0.0
      %v833 = vmax.f32 %v705, 0.0
      %v834 = vmax.f32 %v706, 0.0
      %v835 = vmax.f32 %v707, 0.0
      %v836 = vmax.f32 %v708, 0.0
      %v837 = vmax.f32 %v709, 0.0
      %v838 = vmax.f32 %v710, 0.0
      %v839 = vmax.f32 %v711, 0.0
      %v840 = vmax.f32 %v712, 0.0
      %v841 = vmax.f32 %v713, 0.0
      %v842 = vmax.f32 %v714, 0.0
      %v843 = vmax.f32 %v715, 0.0
      %v844 = vmax.f32 %v716, 0.0
      %v845 = vmax.f32 %v717, 0.0
      %v846 = vmax.f32 %v718, 0.0
      %v847 = vmax.f32 %v719, 0.0
      %v848 = vmax.f32 %v720, 0.0
      %v849 = vmax.f32 %v721, 0.0
      %v850 = vmax.f32 %v722, 0.0
      %v851 = vmax.f32 %v723, 0.0
      %v852 = vmax.f32 %v724, 0.0
      %v853 = vmax.f32 %v725, 0.0
      %v854 = vmax.f32 %v726, 0.0
      %v855 = vmax.f32 %v727, 0.0
      %v856 = vmax.f32 %v728, 0.0
      %v857 = vmax.f32 %v729, 0.0
      %vm858 = vcmask 130048
      %859 = vst.msk [vmem:[%s208] sm:$0xff] %vm858, %v730
      %860 = vst.msk [vmem:[%s208 + $0x8] sm:$0xff] %vm858, %v731
      %861 = vst.msk [vmem:[%s208 + $0x10] sm:$0xff] %vm858, %v732
      %862 = vst.msk [vmem:[%s208 + $0x18] sm:$0xff] %vm858, %v733
      %863 = vst.msk [vmem:[%s208 + $0x20] sm:$0xff] %vm858, %v734
      %864 = vst.msk [vmem:[%s208 + $0x28] sm:$0xff] %vm858, %v735
      %865 = vst.msk [vmem:[%s208 + $0x30] sm:$0xff] %vm858, %v736
      %866 = vst.msk [vmem:[%s208 + $0x38] sm:$0xff] %vm858, %v737
      %867 = vst.msk [vmem:[%s208 + $0x40] sm:$0xff] %vm858, %v738
      %868 = vst.msk [vmem:[%s208 + $0x48] sm:$0xff] %vm858, %v739
      %869 = vst.msk [vmem:[%s208 + $0x50] sm:$0xff] %vm858, %v740
      %870 = vst.msk [vmem:[%s208 + $0x58] sm:$0xff] %vm858, %v741
      %871 = vst.msk [vmem:[%s208 + $0x60] sm:$0xff] %vm858, %v742
      %872 = vst.msk [vmem:[%s208 + $0x68] sm:$0xff] %vm858, %v743
      %873 = vst.msk [vmem:[%s208 + $0x70] sm:$0xff] %vm858, %v744
      %874 = vst.msk [vmem:[%s208 + $0x78] sm:$0xff] %vm858, %v745
      %875 = vst.msk [vmem:[%s208 + $0x80] sm:$0xff] %vm858, %v746
      %876 = vst.msk [vmem:[%s208 + $0x88] sm:$0xff] %vm858, %v747
      %877 = vst.msk [vmem:[%s208 + $0x90] sm:$0xff] %vm858, %v748
      %878 = vst.msk [vmem:[%s208 + $0x98] sm:$0xff] %vm858, %v749
      %879 = vst.msk [vmem:[%s208 + $0xa0] sm:$0xff] %vm858, %v750
      %880 = vst.msk [vmem:[%s208 + $0xa8] sm:$0xff] %vm858, %v751
      %881 = vst.msk [vmem:[%s208 + $0xb0] sm:$0xff] %vm858, %v752
      %882 = vst.msk [vmem:[%s208 + $0xb8] sm:$0xff] %vm858, %v753
      %883 = vst.msk [vmem:[%s208 + $0xc0] sm:$0xff] %vm858, %v754
      %884 = vst.msk [vmem:[%s208 + $0xc8] sm:$0xff] %vm858, %v755
      %885 = vst.msk [vmem:[%s208 + $0xd0] sm:$0xff] %vm858, %v756
      %886 = vst.msk [vmem:[%s208 + $0xd8] sm:$0xff] %vm858, %v757
      %887 = vst.msk [vmem:[%s208 + $0xe0] sm:$0xff] %vm858, %v758
      %888 = vst.msk [vmem:[%s208 + $0xe8] sm:$0xff] %vm858, %v759
      %889 = vst.msk [vmem:[%s208 + $0xf0] sm:$0xff] %vm858, %v760
      %890 = vst.msk [vmem:[%s208 + $0xf8] sm:$0xff] %vm858, %v761
      %891 = vst.msk [vmem:[%s208 + $0x100] sm:$0xff] %vm858, %v762
      %892 = vst.msk [vmem:[%s208 + $0x108] sm:$0xff] %vm858, %v763
      %893 = vst.msk [vmem:[%s208 + $0x110] sm:$0xff] %vm858, %v764
      %894 = vst.msk [vmem:[%s208 + $0x118] sm:$0xff] %vm858, %v765
      %895 = vst.msk [vmem:[%s208 + $0x120] sm:$0xff] %vm858, %v766
      %896 = vst.msk [vmem:[%s208 + $0x128] sm:$0xff] %vm858, %v767
      %897 = vst.msk [vmem:[%s208 + $0x130] sm:$0xff] %vm858, %v768
      %898 = vst.msk [vmem:[%s208 + $0x138] sm:$0xff] %vm858, %v769
      %899 = vst.msk [vmem:[%s208 + $0x140] sm:$0xff] %vm858, %v770
      %900 = vst.msk [vmem:[%s208 + $0x148] sm:$0xff] %vm858, %v771
      %901 = vst.msk [vmem:[%s208 + $0x150] sm:$0xff] %vm858, %v772
      %902 = vst.msk [vmem:[%s208 + $0x158] sm:$0xff] %vm858, %v773
      %903 = vst.msk [vmem:[%s208 + $0x160] sm:$0xff] %vm858, %v774
      %904 = vst.msk [vmem:[%s208 + $0x168] sm:$0xff] %vm858, %v775
      %905 = vst.msk [vmem:[%s208 + $0x170] sm:$0xff] %vm858, %v776
      %906 = vst.msk [vmem:[%s208 + $0x178] sm:$0xff] %vm858, %v777
      %907 = vst.msk [vmem:[%s208 + $0x180] sm:$0xff] %vm858, %v778
      %908 = vst.msk [vmem:[%s208 + $0x188] sm:$0xff] %vm858, %v779
      %909 = vst.msk [vmem:[%s208 + $0x190] sm:$0xff] %vm858, %v780
      %910 = vst.msk [vmem:[%s208 + $0x198] sm:$0xff] %vm858, %v781
      %911 = vst.msk [vmem:[%s208 + $0x1a0] sm:$0xff] %vm858, %v782
      %912 = vst.msk [vmem:[%s208 + $0x1a8] sm:$0xff] %vm858, %v783
      %913 = vst.msk [vmem:[%s208 + $0x1b0] sm:$0xff] %vm858, %v784
      %914 = vst.msk [vmem:[%s208 + $0x1b8] sm:$0xff] %vm858, %v785
      %915 = vst.msk [vmem:[%s208 + $0x1c0] sm:$0xff] %vm858, %v786
      %916 = vst.msk [vmem:[%s208 + $0x1c8] sm:$0xff] %vm858, %v787
      %917 = vst.msk [vmem:[%s208 + $0x1d0] sm:$0xff] %vm858, %v788
      %918 = vst.msk [vmem:[%s208 + $0x1d8] sm:$0xff] %vm858, %v789
      %919 = vst.msk [vmem:[%s208 + $0x1e0] sm:$0xff] %vm858, %v790
      %920 = vst.msk [vmem:[%s208 + $0x1e8] sm:$0xff] %vm858, %v791
      %921 = vst.msk [vmem:[%s208 + $0x1f0] sm:$0xff] %vm858, %v792
      %922 = vst.msk [vmem:[%s208 + $0x1f8] sm:$0xff] %vm858, %v793
      %923 = vst.msk [vmem:[%s208 + $0x200] sm:$0xff] %vm858, %v794
      %924 = vst.msk [vmem:[%s208 + $0x208] sm:$0xff] %vm858, %v795
      %925 = vst.msk [vmem:[%s208 + $0x210] sm:$0xff] %vm858, %v796
      %926 = vst.msk [vmem:[%s208 + $0x218] sm:$0xff] %vm858, %v797
      %927 = vst.msk [vmem:[%s208 + $0x220] sm:$0xff] %vm858, %v798
      %928 = vst.msk [vmem:[%s208 + $0x228] sm:$0xff] %vm858, %v799
      %929 = vst.msk [vmem:[%s208 + $0x230] sm:$0xff] %vm858, %v800
      %930 = vst.msk [vmem:[%s208 + $0x238] sm:$0xff] %vm858, %v801
      %931 = vst.msk [vmem:[%s208 + $0x240] sm:$0xff] %vm858, %v802
      %932 = vst.msk [vmem:[%s208 + $0x248] sm:$0xff] %vm858, %v803
      %933 = vst.msk [vmem:[%s208 + $0x250] sm:$0xff] %vm858, %v804
      %934 = vst.msk [vmem:[%s208 + $0x258] sm:$0xff] %vm858, %v805
      %935 = vst.msk [vmem:[%s208 + $0x260] sm:$0xff] %vm858, %v806
      %936 = vst.msk [vmem:[%s208 + $0x268] sm:$0xff] %vm858, %v807
      %937 = vst.msk [vmem:[%s208 + $0x270] sm:$0xff] %vm858, %v808
      %938 = vst.msk [vmem:[%s208 + $0x278] sm:$0xff] %vm858, %v809
      %939 = vst.msk [vmem:[%s208 + $0x280] sm:$0xff] %vm858, %v810
      %940 = vst.msk [vmem:[%s208 + $0x288] sm:$0xff] %vm858, %v811
      %941 = vst.msk [vmem:[%s208 + $0x290] sm:$0xff] %vm858, %v812
      %942 = vst.msk [vmem:[%s208 + $0x298] sm:$0xff] %vm858, %v813
      %943 = vst.msk [vmem:[%s208 + $0x2a0] sm:$0xff] %vm858, %v814
      %944 = vst.msk [vmem:[%s208 + $0x2a8] sm:$0xff] %vm858, %v815
      %945 = vst.msk [vmem:[%s208 + $0x2b0] sm:$0xff] %vm858, %v816
      %946 = vst.msk [vmem:[%s208 + $0x2b8] sm:$0xff] %vm858, %v817
      %947 = vst.msk [vmem:[%s208 + $0x2c0] sm:$0xff] %vm858, %v818
      %948 = vst.msk [vmem:[%s208 + $0x2c8] sm:$0xff] %vm858, %v819
      %949 = vst.msk [vmem:[%s208 + $0x2d0] sm:$0xff] %vm858, %v820
      %950 = vst.msk [vmem:[%s208 + $0x2d8] sm:$0xff] %vm858, %v821
      %951 = vst.msk [vmem:[%s208 + $0x2e0] sm:$0xff] %vm858, %v822
      %952 = vst.msk [vmem:[%s208 + $0x2e8] sm:$0xff] %vm858, %v823
      %953 = vst.msk [vmem:[%s208 + $0x2f0] sm:$0xff] %vm858, %v824
      %954 = vst.msk [vmem:[%s208 + $0x2f8] sm:$0xff] %vm858, %v825
      %955 = vst.msk [vmem:[%s208 + $0x300] sm:$0xff] %vm858, %v826
      %956 = vst.msk [vmem:[%s208 + $0x308] sm:$0xff] %vm858, %v827
      %957 = vst.msk [vmem:[%s208 + $0x310] sm:$0xff] %vm858, %v828
      %958 = vst.msk [vmem:[%s208 + $0x318] sm:$0xff] %vm858, %v829
      %959 = vst.msk [vmem:[%s208 + $0x320] sm:$0xff] %vm858, %v830
      %960 = vst.msk [vmem:[%s208 + $0x328] sm:$0xff] %vm858, %v831
      %961 = vst.msk [vmem:[%s208 + $0x330] sm:$0xff] %vm858, %v832
      %962 = vst.msk [vmem:[%s208 + $0x338] sm:$0xff] %vm858, %v833
      %963 = vst.msk [vmem:[%s208 + $0x340] sm:$0xff] %vm858, %v834
      %964 = vst.msk [vmem:[%s208 + $0x348] sm:$0xff] %vm858, %v835
      %965 = vst.msk [vmem:[%s208 + $0x350] sm:$0xff] %vm858, %v836
      %966 = vst.msk [vmem:[%s208 + $0x358] sm:$0xff] %vm858, %v837
      %967 = vst.msk [vmem:[%s208 + $0x360] sm:$0xff] %vm858, %v838
      %968 = vst.msk [vmem:[%s208 + $0x368] sm:$0xff] %vm858, %v839
      %969 = vst.msk [vmem:[%s208 + $0x370] sm:$0xff] %vm858, %v840
      %970 = vst.msk [vmem:[%s208 + $0x378] sm:$0xff] %vm858, %v841
      %971 = vst.msk [vmem:[%s208 + $0x380] sm:$0xff] %vm858, %v842
      %972 = vst.msk [vmem:[%s208 + $0x388] sm:$0xff] %vm858, %v843
      %973 = vst.msk [vmem:[%s208 + $0x390] sm:$0xff] %vm858, %v844
      %974 = vst.msk [vmem:[%s208 + $0x398] sm:$0xff] %vm858, %v845
      %975 = vst.msk [vmem:[%s208 + $0x3a0] sm:$0xff] %vm858, %v846
      %976 = vst.msk [vmem:[%s208 + $0x3a8] sm:$0xff] %vm858, %v847
      %977 = vst.msk [vmem:[%s208 + $0x3b0] sm:$0xff] %vm858, %v848
      %978 = vst.msk [vmem:[%s208 + $0x3b8] sm:$0xff] %vm858, %v849
      %979 = vst.msk [vmem:[%s208 + $0x3c0] sm:$0xff] %vm858, %v850
      %980 = vst.msk [vmem:[%s208 + $0x3c8] sm:$0xff] %vm858, %v851
      %981 = vst.msk [vmem:[%s208 + $0x3d0] sm:$0xff] %vm858, %v852
      %982 = vst.msk [vmem:[%s208 + $0x3d8] sm:$0xff] %vm858, %v853
      %983 = vst.msk [vmem:[%s208 + $0x3e0] sm:$0xff] %vm858, %v854
      %984 = vst.msk [vmem:[%s208 + $0x3e8] sm:$0xff] %vm858, %v855
      %985 = vst.msk [vmem:[%s208 + $0x3f0] sm:$0xff] %vm858, %v856
      %986 = vst.msk [vmem:[%s208 + $0x3f8] sm:$0xff] %vm858, %v857
      %s987 = smul.u32 128, %s19
      %p988 = scmp.lt.s32.totalorder %s18, 1
      %s989 = scalar_select %p988, %s18, 1
      %p990 = scmp.lt.s32.totalorder %s987, 127
      %s991 = scalar_select %p990, %s987, 127
      %s992 = smul.addr %s989, 128
      %s993 = sadd.s32 %s991, %s992
      %s994 = smul.addr %s993, 8
      %s995 = scalar_lea.vmem %s3, %s994
      // Predicated region
      $region33: #{decoder_block_forward.3} parent=31 // pred_check
        %p996 = pneg %p116
      $region34: #{decoder_block_forward.3} parent=31 // pred_check_branch
        %998 = sbr.rel (%p996) target = $region36
      $region35: #{decoder_block_forward.3} parent=31 // pred_region
        %s999 = smul.u32 128, %s19
      $region36: #{decoder_block_forward.3} parent=31 // pred_fallthru
        _
    $region32: #{decoder_block_forward.3} parent=5 // pred_fallthru
      _
    %p1000 = scmp.le.s32.totalorder 2, %s9
    // Predicated region
    $region37: #{decoder_block_forward.3} parent=5 // pred_check
      %p1001 = pneg %p1000
    $region38: #{decoder_block_forward.3} parent=5 // pred_check_branch
      %1003 = sbr.rel (%p1001) target = $region40
    $region39: #{decoder_block_forward.3} parent=5 // pred_region
      %s1004 = ssub.s32 %s9, 2
      // Predicated region
      $region41: #{decoder_block_forward.3} parent=39 // pred_check
        %p1005 = pneg %p122
      $region42: #{decoder_block_forward.3} parent=39 // pred_check_branch
        %1007 = sbr.rel (%p1005) target = $region44
      $region43: #{decoder_block_forward.3} parent=39 // pred_region
        %s1008 = smul.u32 128, %s21
        %p1009 = scmp.lt.s32.totalorder %s20, 1
        %s1010 = scalar_select %p1009, %s20, 1
        %p1011 = scmp.lt.s32.totalorder %s1008, 127
        %s1012 = scalar_select %p1011, %s1008, 127
        %s1013 = smul.addr %s1010, 128
        %s1014 = sadd.s32 %s1012, %s1013
        %s1015 = smul.addr %s1014, 8
        %s1016 = scalar_lea.vmem %s3, %s1015
      $region44: #{decoder_block_forward.3} parent=39 // pred_fallthru
        _
    $region40: #{decoder_block_forward.3} parent=5 // pred_fallthru
      _
  $region6: #{decoder_block_forward.3} parent=0 // loop_footer
    %s13 = sadd.s32 1, %s9
  $region7: #{decoder_block_forward.3} parent=0 // loop_footer_branch
    %8 = sbr.rel target = $region3
  $region8: #{decoder_block_forward.3} parent=0 // loop_exit
    _

// kernel: decoder_block_forward.2
$region0: #{decoder_block_forward.2}
  #allocation0 [shape = 'u32[]', space=smem, size = 0x4, offset = 0x4, fixed_abs, tag = 'smem constant byte address 0x4 - core index']
  #allocation1 [shape = 'u32[72,128]{1,0:T(1,128)}', space=vmem, size = 0x9000, scoped, tag = 'internal scratch']
  %s0 = inlined_call_operand.vmem [shape: bf16[2,18,18,33], index: 0, kind: input, shape index: {}]
  %s1 = inlined_call_operand.vmem [shape: bf16[4,4,33,16], index: 1, kind: input, shape index: {}]
  %s2 = inlined_call_operand.vmem [shape: f32[1,16], index: 2, kind: input, shape index: {}]
  %s3 = inlined_call_operand.vmem [shape: bf16[2,4,256,16], index: 3, kind: output, shape index: {0}]
  %s4 = inlined_call_operand.vmem [shape: f32[2,2,16], index: 4, kind: output, shape index: {1}]
  %5 = xla_tuple %s3, %s4
  %s6 = sld [smem:[#allocation0]]
  $region53: #{decoder_block_forward.2} parent=0
    _
  %s8 = ssub.s32 1, %s6
  %s9 = scalar_select 0, %s8, %s6
  loop: start=0, step=1, limit=4
  $region2: #{decoder_block_forward.2} parent=0 // loop_pre_header
    _
  $region3: #{decoder_block_forward.2} parent=0 // loop_header
    %s11 = sphi 0, %s15
    %p12 = scmp.ge.s32.totalorder %s11, 4
    %s21 = sphi 0, %s23
    %s24 = sphi 0, %s21
    %s25 = sphi 0, %s24
    %s41 = sphi 0, %s25
    %s45 = sphi 0, %s45
    %s47 = sphi 0, %s45
    %s48 = sphi 0, %s47
    %s62 = sphi 0, %s48
    %s66 = sphi 0, %s66
    %s68 = sphi 0, %s66
    %s69 = sphi 0, %s68
    %s83 = sphi 0, %s69
    %s89 = sphi 0, %s91
    %s92 = sphi 0, %s89
    %s93 = sphi 0, %s92
    %s109 = sphi 0, %s93
    %s115 = sphi 0, %s117
    %s118 = sphi 0, %s115
    %s119 = sphi 0, %s118
    %s135 = sphi 0, %s119
  $region4: #{decoder_block_forward.2} parent=0 // loop_header_branch
    %14 = sbr.rel (%p12) target = $region8
  $region5: #{decoder_block_forward.2} parent=0 // loop_body
    %s16 = ssub.s32 %s11, 1
    %s17 = ssub.s32 %s11, 2
    %s18 = sadd.s32 %s11, 1
    %s19 = ssub.s32 %s11, %s18
    %p20 = scmp.eq.s32.totalorder %s19, 0
    %s22 = sadd.s32 %s21, 1
    %s23 = scalar_select %p20, %s21, %s22
    %p26 = pneg %p20
    %p27 = scmp.eq.s32.totalorder %s11, 1
    %p28 = por %p26, %p27
    %p29 = scmp.ne.s32.totalorder %s21, %s24
    %p30 = scmp.eq.s32.totalorder %s11, 0
    %p31 = por %p29, %p30
    %p32 = scmp.ne.s32.totalorder %s21, %s24
    %p33 = scmp.eq.s32.totalorder %s16, 1
    %p34 = por %p32, %p33
    %p35 = scmp.ne.s32.totalorder %s24, %s25
    %p36 = scmp.eq.s32.totalorder %s16, 0
    %p37 = por %p35, %p36
    %p38 = scmp.ne.s32.totalorder %s24, %s25
    %p39 = scmp.eq.s32.totalorder %s17, 1
    %p40 = por %p38, %p39
    %p42 = scmp.ne.s32.totalorder %s25, %s41
    %p43 = scmp.eq.s32.totalorder %s17, 0
    %p44 = por %p42, %p43
    %s46 = sadd.s32 %s45, 1
    %p49 = scmp.eq.s32.totalorder %s11, 1
    %p50 = scmp.ne.s32.totalorder %s45, %s47
    %p51 = scmp.eq.s32.totalorder %s11, 0
    %p52 = por %p50, %p51
    %p53 = scmp.ne.s32.totalorder %s45, %s47
    %p54 = scmp.eq.s32.totalorder %s16, 1
    %p55 = por %p53, %p54
    %p56 = scmp.ne.s32.totalorder %s47, %s48
    %p57 = scmp.eq.s32.totalorder %s16, 0
    %p58 = por %p56, %p57
    %p59 = scmp.ne.s32.totalorder %s47, %s48
    %p60 = scmp.eq.s32.totalorder %s17, 1
    %p61 = por %p59, %p60
    %p63 = scmp.ne.s32.totalorder %s48, %s62
    %p64 = scmp.eq.s32.totalorder %s17, 0
    %p65 = por %p63, %p64
    %s67 = sadd.s32 %s66, 1
    %p70 = scmp.eq.s32.totalorder %s11, 1
    %p71 = scmp.ne.s32.totalorder %s66, %s68
    %p72 = scmp.eq.s32.totalorder %s11, 0
    %p73 = por %p71, %p72
    %p74 = scmp.ne.s32.totalorder %s66, %s68
    %p75 = scmp.eq.s32.totalorder %s16, 1
    %p76 = por %p74, %p75
    %p77 = scmp.ne.s32.totalorder %s68, %s69
    %p78 = scmp.eq.s32.totalorder %s16, 0
    %p79 = por %p77, %p78
    %p80 = scmp.ne.s32.totalorder %s68, %s69
    %p81 = scmp.eq.s32.totalorder %s17, 1
    %p82 = por %p80, %p81
    %p84 = scmp.ne.s32.totalorder %s69, %s83
    %p85 = scmp.eq.s32.totalorder %s17, 0
    %p86 = por %p84, %p85
    %s87 = ssub.s32 %s11, %s18
    %p88 = scmp.eq.s32.totalorder %s87, 0
    %s90 = sadd.s32 %s89, 1
    %s91 = scalar_select %p88, %s89, %s90
    %p94 = pneg %p88
    %p95 = scmp.eq.s32.totalorder %s11, 1
    %p96 = por %p94, %p95
    %p97 = scmp.ne.s32.totalorder %s89, %s92
    %p98 = scmp.eq.s32.totalorder %s11, 0
    %p99 = por %p97, %p98
    %p100 = scmp.ne.s32.totalorder %s89, %s92
    %p101 = scmp.eq.s32.totalorder %s16, 1
    %p102 = por %p100, %p101
    %p103 = scmp.ne.s32.totalorder %s92, %s93
    %p104 = scmp.eq.s32.totalorder %s16, 0
    %p105 = por %p103, %p104
    %p106 = scmp.ne.s32.totalorder %s92, %s93
    %p107 = scmp.eq.s32.totalorder %s17, 1
    %p108 = por %p106, %p107
    %p110 = scmp.ne.s32.totalorder %s93, %s109
    %p111 = scmp.eq.s32.totalorder %s17, 0
    %p112 = por %p110, %p111
    %s113 = ssub.s32 %s11, %s18
    %p114 = scmp.eq.s32.totalorder %s113, 0
    %s116 = sadd.s32 %s115, 1
    %s117 = scalar_select %p114, %s115, %s116
    %p120 = pneg %p114
    %p121 = scmp.eq.s32.totalorder %s11, 1
    %p122 = por %p120, %p121
    %p123 = scmp.ne.s32.totalorder %s115, %s118
    %p124 = scmp.eq.s32.totalorder %s11, 0
    %p125 = por %p123, %p124
    %p126 = scmp.ne.s32.totalorder %s115, %s118
    %p127 = scmp.eq.s32.totalorder %s16, 1
    %p128 = por %p126, %p127
    %p129 = scmp.ne.s32.totalorder %s118, %s119
    %p130 = scmp.eq.s32.totalorder %s16, 0
    %p131 = por %p129, %p130
    %p132 = scmp.ne.s32.totalorder %s118, %s119
    %p133 = scmp.eq.s32.totalorder %s17, 1
    %p134 = por %p132, %p133
    %p136 = scmp.ne.s32.totalorder %s119, %s135
    %p137 = scmp.eq.s32.totalorder %s17, 0
    %p138 = por %p136, %p137
    %p139 = scmp.le.s32.totalorder 1, %s11
    %p140 = scmp.lt.s32.totalorder %s11, 3
    %p141 = pnand %p139, %p140
    %p142 = pneg %p141
    // Predicated region
    $region9: #{decoder_block_forward.2} parent=5 // pred_check
      _
    $region10: #{decoder_block_forward.2} parent=5 // pred_check_branch
      %144 = sbr.rel (%p141) target = $region12
    $region11: #{decoder_block_forward.2} parent=5 // pred_region
      %s145 = ssub.s32 %s11, 1
      // Predicated region
      $region13: #{decoder_block_forward.2} parent=11 // pred_check
        %p146 = pneg %p58
      $region14: #{decoder_block_forward.2} parent=11 // pred_check_branch
        %148 = sbr.rel (%p146) target = $region16
      $region15: #{decoder_block_forward.2} parent=11 // pred_region
        _
      $region16: #{decoder_block_forward.2} parent=11 // pred_fallthru
        _
      // Predicated region
      $region17: #{decoder_block_forward.2} parent=11 // pred_check
        %p149 = pneg %p79
      $region18: #{decoder_block_forward.2} parent=11 // pred_check_branch
        %151 = sbr.rel (%p149) target = $region20
      $region19: #{decoder_block_forward.2} parent=11 // pred_region
        _
      $region20: #{decoder_block_forward.2} parent=11 // pred_fallthru
        _
    $region12: #{decoder_block_forward.2} parent=5 // pred_fallthru
      _
    %p152 = scmp.lt.s32.totalorder %s11, 2
    // Predicated region
    $region21: #{decoder_block_forward.2} parent=5 // pred_check
      %p153 = pneg %p152
    $region22: #{decoder_block_forward.2} parent=5 // pred_check_branch
      %155 = sbr.rel (%p153) target = $region24
    $region23: #{decoder_block_forward.2} parent=5 // pred_region
      // Predicated region
      $region25: #{decoder_block_forward.2} parent=23 // pred_check
        %p156 = pneg %p31
      $region26: #{decoder_block_forward.2} parent=23 // pred_check_branch
        %158 = sbr.rel (%p156) target = $region28
      $region27: #{decoder_block_forward.2} parent=23 // pred_region
        %p159 = scmp.lt.s32.totalorder %s11, 1
        %s160 = scalar_select %p159, %s11, 1
        %s161 = smul.addr %s160, 54
        %s162 = smul.addr %s161, 4
        %s163 = scalar_lea.vmem %s0, %s162
      $region28: #{decoder_block_forward.2} parent=23 // pred_fallthru
        _
    $region24: #{decoder_block_forward.2} parent=5 // pred_fallthru
      _
    %p164 = scmp.le.s32.totalorder 1, %s11
    %p165 = scmp.lt.s32.totalorder %s11, 3
    %p166 = pnand %p164, %p165
    %p167 = pneg %p166
    // Predicated region
    $region29: #{decoder_block_forward.2} parent=5 // pred_check
      _
    $region30: #{decoder_block_forward.2} parent=5 // pred_check_branch
      %169 = sbr.rel (%p166) target = $region32
    $region31: #{decoder_block_forward.2} parent=5 // pred_region
      %s170 = ssub.s32 %s11, 1
      %p171 = scmp.lt.s32.totalorder %s16, 1
      %s172 = scalar_select %p171, %s16, 1
      %s173 = smul.addr %s172, 54
      %s174 = smul.addr %s173, 4
      %s175 = scalar_lea.vmem %s0, %s174
      %p176 = pneg %p37
      %p177 = pneg %p34
      %p178 = pneg %p58
      %p179 = pneg %p55
      %p180 = pneg %p79
      %p181 = pneg %p76
      %p182 = pneg %p105
      %p183 = pneg %p102
      %p184 = scmp.lt.s32.totalorder %s16, 1
      %s185 = scalar_select %p184, %s16, 1
      %s186 = smul.addr %s185, 128
      %s187 = smul.addr %s186, 4
      %s188 = scalar_lea.vmem %s3, %s187
      %p189 = pneg %p131
      %p190 = pneg %p128
      %p191 = scmp.lt.s32.totalorder %s16, 1
      %s192 = scalar_select %p191, %s16, 1
      %s193 = smul.addr %s192, 2
      %s194 = scalar_lea.vmem %s4, %s193
      %p195 = scmp.lt.s32.totalorder %s16, 1
      %s196 = scalar_select %p195, %s16, 1
      %s197 = smul.addr %s196, 54
      %s198 = smul.addr %s197, 4
      %s199 = scalar_lea.vmem %s0, %s198
      %p200 = scmp.lt.s32.totalorder %s16, 1
      %s201 = scalar_select %p200, %s16, 1
      %s202 = smul.addr %s201, 128
      %s203 = smul.addr %s202, 4
      %s204 = scalar_lea.vmem %s3, %s203
      %p205 = scmp.lt.s32.totalorder %s16, 1
      %s206 = scalar_select %p205, %s16, 1
      %s207 = smul.addr %s206, 2
      %s208 = scalar_lea.vmem %s4, %s207
      %v210 = vld [vmem:[%s199] sm:$0xf]
      %v211 = vld [vmem:[%s199 + $0x4] sm:$0xf]
      %v212 = vld [vmem:[%s199 + $0xc] sm:$0xf]
      %v213 = vld [vmem:[%s199 + $0x10] sm:$0xf]
      %v214 = vld [vmem:[%s199 + $0x18] sm:$0xf]
      %v215 = vld [vmem:[%s199 + $0x1c] sm:$0xf]
      %v216 = vld [vmem:[%s199 + $0x24] sm:$0xf]
      %v217 = vld [vmem:[%s199 + $0x28] sm:$0xf]
      %v218 = vld [vmem:[%s199 + $0x30] sm:$0xf]
      %v219 = vld [vmem:[%s199 + $0x34] sm:$0xf]
      %v220 = vld [vmem:[%s199 + $0x3c] sm:$0xf]
      %v221 = vld [vmem:[%s199 + $0x40] sm:$0xf]
      %v222 = vld [vmem:[%s199 + $0x48] sm:$0xf]
      %v223 = vld [vmem:[%s199 + $0x4c] sm:$0xf]
      %v224 = vld [vmem:[%s199 + $0x54] sm:$0xf]
      %v225 = vld [vmem:[%s199 + $0x58] sm:$0xf]
      %v226 = vld [vmem:[%s199 + $0x60] sm:$0xf]
      %v227 = vld [vmem:[%s199 + $0x64] sm:$0xf]
      %v228 = vld [vmem:[%s199 + $0x6c] sm:$0xf]
      %v229 = vld [vmem:[%s199 + $0x70] sm:$0xf]
      %v230 = vld [vmem:[%s199 + $0x78] sm:$0xf]
      %v231 = vld [vmem:[%s199 + $0x7c] sm:$0xf]
      %v232 = vld [vmem:[%s199 + $0x84] sm:$0xf]
      %v233 = vld [vmem:[%s199 + $0x88] sm:$0xf]
      %v234 = vld [vmem:[%s199 + $0x90] sm:$0xf]
      %v235 = vld [vmem:[%s199 + $0x94] sm:$0xf]
      %v236 = vld [vmem:[%s199 + $0x9c] sm:$0xf]
      %v237 = vld [vmem:[%s199 + $0xa0] sm:$0xf]
      %v238 = vld [vmem:[%s199 + $0xa8] sm:$0xf]
      %v239 = vld [vmem:[%s199 + $0xac] sm:$0xf]
      %v240 = vld [vmem:[%s199 + $0xb4] sm:$0xf]
      %v241 = vld [vmem:[%s199 + $0xb8] sm:$0xf]
      %v242 = vld [vmem:[%s1] sm:$0xf]
      %v243 = vld [vmem:[%s1 + $0x4] sm:$0xf]
      %v244 = vld [vmem:[%s1 + $0x8] sm:$0xf]
      %v245 = vld [vmem:[%s1 + $0xc] sm:$0xf]
      %v246 = vld [vmem:[%s1 + $0x10] sm:$0x1]
      %v247 = vld [vmem:[%s199 + $0x8] sm:$0x1]
      %v248 = vld [vmem:[%s199 + $0x14] sm:$0x1]
      %v249 = vld [vmem:[%s199 + $0x20] sm:$0x1]
      %v250 = vld [vmem:[%s199 + $0x2c] sm:$0x1]
      %v251 = vld [vmem:[%s199 + $0x38] sm:$0x1]
      %v252 = vld [vmem:[%s199 + $0x44] sm:$0x1]
      %v253 = vld [vmem:[%s199 + $0x50] sm:$0x1]
      %v254 = vld [vmem:[%s199 + $0x5c] sm:$0x1]
      %v255 = vld [vmem:[%s199 + $0x68] sm:$0x1]
      %v256 = vld [vmem:[%s199 + $0x74] sm:$0x1]
      %v257 = vld [vmem:[%s199 + $0x80] sm:$0x1]
      %v258 = vld [vmem:[%s199 + $0x8c] sm:$0x1]
      %v259 = vld [vmem:[%s199 + $0x98] sm:$0x1]
      %v260 = vld [vmem:[%s199 + $0xa4] sm:$0x1]
      %v261 = vld [vmem:[%s199 + $0xb0] sm:$0x1]
      %v262 = vld [vmem:[%s199 + $0xbc] sm:$0x1]
      %vm263 = vsmask.f32 3328
      %vm264 = vsmask.f32 7440
      %vm265 = vmor %vm263, %vm264
      %v267 = vshrl.u32 %v210, 16
      %v269 = vrot.slane %v267, 4
      %v270 = vshll.u32 %v210, 16
      %v272 = vrot.slane %v270, 5
      %v273 = vor.u32 %v269, %v272
      %v274 = vrot.slane %v273, 4
      %v276 = vshll.u32 %v211, 16
      %v278 = vrot.slane %v276, 5
      %v279 = vsel %vm265, %v274, %v278
      %v280 = vshrl.u32 %v211, 16
      %v282 = vrot.slane %v280, 4
      %v283 = vor.u32 %v282, %v278
      %v284 = vrot.slane %v283, 4
      %v286 = vshll.u32 %v247, 16
      %v288 = vrot.slane %v286, 5
      %v289 = vsel %vm265, %v284, %v288
      %v291 = vshrl.u32 %v212, 16
      %v293 = vrot.slane %v291, 4
      %v294 = vshll.u32 %v212, 16
      %v296 = vrot.slane %v294, 5
      %v297 = vor.u32 %v293, %v296
      %v298 = vrot.slane %v297, 4
      %v300 = vshll.u32 %v213, 16
      %v302 = vrot.slane %v300, 5
      %v303 = vsel %vm265, %v298, %v302
      %v304 = vshrl.u32 %v213, 16
      %v306 = vrot.slane %v304, 4
      %v307 = vor.u32 %v306, %v302
      %v308 = vrot.slane %v307, 4
      %v310 = vshll.u32 %v248, 16
      %v312 = vrot.slane %v310, 5
      %v313 = vsel %vm265, %v308, %v312
      %v315 = vshrl.u32 %v214, 16
      %v317 = vrot.slane %v315, 4
      %v318 = vshll.u32 %v214, 16
      %v320 = vrot.slane %v318, 5
      %v321 = vor.u32 %v317, %v320
      %v322 = vrot.slane %v321, 4
      %v324 = vshll.u32 %v215, 16
      %v326 = vrot.slane %v324, 5
      %v327 = vsel %vm265, %v322, %v326
      %v328 = vshrl.u32 %v215, 16
      %v330 = vrot.slane %v328, 4
      %v331 = vor.u32 %v330, %v326
      %v332 = vrot.slane %v331, 4
      %v334 = vshll.u32 %v249, 16
      %v336 = vrot.slane %v334, 5
      %v337 = vsel %vm265, %v332, %v336
      %v339 = vshrl.u32 %v216, 16
      %v341 = vrot.slane %v339, 4
      %v342 = vshll.u32 %v216, 16
      %v344 = vrot.slane %v342, 5
      %v345 = vor.u32 %v341, %v344
      %v346 = vrot.slane %v345, 4
      %v348 = vshll.u32 %v217, 16
      %v350 = vrot.slane %v348, 5
      %v351 = vsel %vm265, %v346, %v350
      %v352 = vshrl.u32 %v217, 16
      %v354 = vrot.slane %v352, 4
      %v355 = vor.u32 %v354, %v350
      %v356 = vrot.slane %v355, 4
      %v358 = vshll.u32 %v250, 16
      %v360 = vrot.slane %v358, 5
      %v361 = vsel %vm265, %v356, %v360
      %v363 = vshrl.u32 %v218, 16
      %v365 = vrot.slane %v363, 4
      %v366 = vshll.u32 %v218, 16
      %v368 = vrot.slane %v366, 5
      %v369 = vor.u32 %v365, %v368
      %v370 = vrot.slane %v369, 4
      %v372 = vshll.u32 %v219, 16
      %v374 = vrot.slane %v372, 5
      %v375 = vsel %vm265, %v370, %v374
      %v376 = vshrl.u32 %v219, 16
      %v378 = vrot.slane %v376, 4
      %v379 = vor.u32 %v378, %v374
      %v380 = vrot.slane %v379, 4
      %v382 = vshll.u32 %v251, 16
      %v384 = vrot.slane %v382, 5
      %v385 = vsel %vm265, %v380, %v384
      %v387 = vshrl.u32 %v220, 16
      %v389 = vrot.slane %v387, 4
      %v390 = vshll.u32 %v220, 16
      %v392 = vrot.slane %v390, 5
      %v393 = vor.u32 %v389, %v392
      %v394 = vrot.slane %v393, 4
      %v396 = vshll.u32 %v221, 16
      %v398 = vrot.slane %v396, 5
      %v399 = vsel %vm265, %v394, %v398
      %v400 = vshrl.u32 %v221, 16
      %v402 = vrot.slane %v400, 4
      %v403 = vor.u32 %v402, %v398
      %v404 = vrot.slane %v403, 4
      %v406 = vshll.u32 %v252, 16
      %v408 = vrot.slane %v406, 5
      %v409 = vsel %vm265, %v404, %v408
      %v411 = vshrl.u32 %v222, 16
      %v413 = vrot.slane %v411, 4
      %v414 = vshll.u32 %v222, 16
      %v416 = vrot.slane %v414, 5
      %v417 = vor.u32 %v413, %v416
      %v418 = vrot.slane %v417, 4
      %v420 = vshll.u32 %v223, 16
      %v422 = vrot.slane %v420, 5
      %v423 = vsel %vm265, %v418, %v422
      %v424 = vshrl.u32 %v223, 16
      %v426 = vrot.slane %v424, 4
      %v427 = vor.u32 %v426, %v422
      %v428 = vrot.slane %v427, 4
      %v430 = vshll.u32 %v253, 16
      %v432 = vrot.slane %v430, 5
      %v433 = vsel %vm265, %v428, %v432
      %v435 = vshrl.u32 %v224, 16
      %v437 = vrot.slane %v435, 4
      %v438 = vshll.u32 %v224, 16
      %v440 = vrot.slane %v438, 5
      %v441 = vor.u32 %v437, %v440
      %v442 = vrot.slane %v441, 4
      %v444 = vshll.u32 %v225, 16
      %v446 = vrot.slane %v444, 5
      %v447 = vsel %vm265, %v442, %v446
      %v448 = vshrl.u32 %v225, 16
      %v450 = vrot.slane %v448, 4
      %v451 = vor.u32 %v450, %v446
      %v452 = vrot.slane %v451, 4
      %v454 = vshll.u32 %v254, 16
      %v456 = vrot.slane %v454, 5
      %v457 = vsel %vm265, %v452, %v456
      %v459 = vshrl.u32 %v226, 16
      %v461 = vrot.slane %v459, 4
      %v462 = vshll.u32 %v226, 16
      %v464 = vrot.slane %v462, 5
      %v465 = vor.u32 %v461, %v464
      %v466 = vrot.slane %v465, 4
      %v468 = vshll.u32 %v227, 16
      %v470 = vrot.slane %v468, 5
      %v471 = vsel %vm265, %v466, %v470
      %v472 = vshrl.u32 %v227, 16
      %v474 = vrot.slane %v472, 4
      %v475 = vor.u32 %v474, %v470
      %v476 = vrot.slane %v475, 4
      %v478 = vshll.u32 %v255, 16
      %v480 = vrot.slane %v478, 5
      %v481 = vsel %vm265, %v476, %v480
      %v483 = vshrl.u32 %v228, 16
      %v485 = vrot.slane %v483, 4
      %v486 = vshll.u32 %v228, 16
      %v488 = vrot.slane %v486, 5
      %v489 = vor.u32 %v485, %v488
      %v490 = vrot.slane %v489, 4
      %v492 = vshll.u32 %v229, 16
      %v494 = vrot.slane %v492, 5
      %v495 = vsel %vm265, %v490, %v494
      %v496 = vshrl.u32 %v229, 16
      %v498 = vrot.slane %v496, 4
      %v499 = vor.u32 %v498, %v494
      %v500 = vrot.slane %v499, 4
      %v502 = vshll.u32 %v256, 16
      %v504 = vrot.slane %v502, 5
      %v505 = vsel %vm265, %v500, %v504
      %v507 = vshrl.u32 %v230, 16
      %v509 = vrot.slane %v507, 4
      %v510 = vshll.u32 %v230, 16
      %v512 = vrot.slane %v510, 5
      %v513 = vor.u32 %v509, %v512
      %v514 = vrot.slane %v513, 4
      %v516 = vshll.u32 %v231, 16
      %v518 = vrot.slane %v516, 5
      %v519 = vsel %vm265, %v514, %v518
      %v520 = vshrl.u32 %v231, 16
      %v522 = vrot.slane %v520, 4
      %v523 = vor.u32 %v522, %v518
      %v524 = vrot.slane %v523, 4
      %v526 = vshll.u32 %v257, 16
      %v528 = vrot.slane %v526, 5
      %v529 = vsel %vm265, %v524, %v528
      %v531 = vshrl.u32 %v232, 16
      %v533 = vrot.slane %v531, 4
      %v534 = vshll.u32 %v232, 16
      %v536 = vrot.slane %v534, 5
      %v537 = vor.u32 %v533, %v536
      %v538 = vrot.slane %v537, 4
      %v540 = vshll.u32 %v233, 16
      %v542 = vrot.slane %v540, 5
      %v543 = vsel %vm265, %v538, %v542
      %v544 = vshrl.u32 %v233, 16
      %v546 = vrot.slane %v544, 4
      %v547 = vor.u32 %v546, %v542
      %v548 = vrot.slane %v547, 4
      %v550 = vshll.u32 %v258, 16
      %v552 = vrot.slane %v550, 5
      %v553 = vsel %vm265, %v548, %v552
      %v555 = vshrl.u32 %v234, 16
      %v557 = vrot.slane %v555, 4
      %v558 = vshll.u32 %v234, 16
      %v560 = vrot.slane %v558, 5
      %v561 = vor.u32 %v557, %v560
      %v562 = vrot.slane %v561, 4
      %v564 = vshll.u32 %v235, 16
      %v566 = vrot.slane %v564, 5
      %v567 = vsel %vm265, %v562, %v566
      %v568 = vshrl.u32 %v235, 16
      %v570 = vrot.slane %v568, 4
      %v571 = vor.u32 %v570, %v566
      %v572 = vrot.slane %v571, 4
      %v574 = vshll.u32 %v259, 16
      %v576 = vrot.slane %v574, 5
      %v577 = vsel %vm265, %v572, %v576
      %v579 = vshrl.u32 %v236, 16
      %v581 = vrot.slane %v579, 4
      %v582 = vshll.u32 %v236, 16
      %v584 = vrot.slane %v582, 5
      %v585 = vor.u32 %v581, %v584
      %v586 = vrot.slane %v585, 4
      %v588 = vshll.u32 %v237, 16
      %v590 = vrot.slane %v588, 5
      %v591 = vsel %vm265, %v586, %v590
      %v592 = vshrl.u32 %v237, 16
      %v594 = vrot.slane %v592, 4
      %v595 = vor.u32 %v594, %v590
      %v596 = vrot.slane %v595, 4
      %v598 = vshll.u32 %v260, 16
      %v600 = vrot.slane %v598, 5
      %v601 = vsel %vm265, %v596, %v600
      %v603 = vshrl.u32 %v238, 16
      %v605 = vrot.slane %v603, 4
      %v606 = vshll.u32 %v238, 16
      %v608 = vrot.slane %v606, 5
      %v609 = vor.u32 %v605, %v608
      %v610 = vrot.slane %v609, 4
      %v612 = vshll.u32 %v239, 16
      %v614 = vrot.slane %v612, 5
      %v615 = vsel %vm265, %v610, %v614
      %v616 = vshrl.u32 %v239, 16
      %v618 = vrot.slane %v616, 4
      %v619 = vor.u32 %v618, %v614
      %v620 = vrot.slane %v619, 4
      %v622 = vshll.u32 %v261, 16
      %v624 = vrot.slane %v622, 5
      %v625 = vsel %vm265, %v620, %v624
      %v627 = vshrl.u32 %v240, 16
      %v629 = vrot.slane %v627, 4
      %v630 = vshll.u32 %v240, 16
      %v632 = vrot.slane %v630, 5
      %v633 = vor.u32 %v629, %v632
      %v634 = vrot.slane %v633, 4
      %v636 = vshll.u32 %v241, 16
      %v638 = vrot.slane %v636, 5
      %v639 = vsel %vm265, %v634, %v638
      %v640 = vshrl.u32 %v241, 16
      %v642 = vrot.slane %v640, 4
      %v643 = vor.u32 %v642, %v638
      %v644 = vrot.slane %v643, 4
      %v646 = vshll.u32 %v262, 16
      %v648 = vrot.slane %v646, 5
      %v649 = vsel %vm265, %v644, %v648
      %s650 = scalar_lea.vmem %s1, 20
      %v651 = vld [vmem:[%s650] sm:$0xf]
      %v652 = vld [vmem:[%s650 + $0x4] sm:$0xf]
      %v653 = vld [vmem:[%s650 + $0x8] sm:$0xf]
      %v654 = vld [vmem:[%s650 + $0xc] sm:$0xf]
      %v655 = vld [vmem:[%s650 + $0x10] sm:$0x1]
      %v656 = vunpack.c.l.b16 %v279
      %v657 = vunpack.c.l.b16 %v289
      %v658 = vunpack.c.l.b16 %v303
      %v659 = vunpack.c.l.b16 %v313
      %v660 = vunpack.c.l.b16 %v327
      %v661 = vunpack.c.l.b16 %v337
      %v662 = vunpack.c.l.b16 %v351
      %v663 = vunpack.c.l.b16 %v361
      %v664 = vunpack.c.l.b16 %v375
      %v665 = vunpack.c.l.b16 %v385
      %v666 = vunpack.c.l.b16 %v399
      %v667 = vunpack.c.l.b16 %v409
      %v668 = vunpack.c.l.b16 %v423
      %v669 = vunpack.c.l.b16 %v433
      %v670 = vunpack.c.l.b16 %v447
      %v671 = vunpack.c.l.b16 %v457
      %v672 = vunpack.c.l.b16 %v471
      %v673 = vunpack.c.l.b16 %v481
      %v674 = vunpack.c.l.b16 %v495
      %v675 = vunpack.c.l.b16 %v505
      %v676 = vunpack.c.l.b16 %v519
      %v677 = vunpack.c.l.b16 %v529
      %v678 = vunpack.c.l.b16 %v543
      %v679 = vunpack.c.l.b16 %v553
      %v680 = vunpack.c.l.b16 %v567
      %v681 = vunpack.c.l.b16 %v577
      %v682 = vunpack.c.l.b16 %v591
      %v683 = vunpack.c.l.b16 %v601
      %v684 = vunpack.c.l.b16 %v615
      %v685 = vunpack.c.l.b16 %v625
      %v686 = vunpack.c.l.b16 %v639
      %v687 = vunpack.c.l.b16 %v649
      %v688 = vpack.c.b16 %v657, %v656
      %v689 = vpack.c.b16 %v659, %v658
      %v690 = vpack.c.b16 %v661, %v660
      %v691 = vpack.c.b16 %v663, %v662
      %v692 = vpack.c.b16 %v665, %v664
      %v693 = vpack.c.b16 %v667, %v666
      %v694 = vpack.c.b16 %v669, %v668
      %v695 = vpack.c.b16 %v671, %v670
      %v696 = vpack.c.b16 %v673, %v672
      %v697 = vpack.c.b16 %v675, %v674
      %v698 = vpack.c.b16 %v677, %v676
      %v699 = vpack.c.b16 %v679, %v678
      %v700 = vpack.c.b16 %v681, %v680
      %v701 = vpack.c.b16 %v683, %v682
      %v702 = vpack.c.b16 %v685, %v684
      %v703 = vpack.c.b16 %v687, %v686
      %v709 = vunpack.c.l.b16 %v651
      %v710 = vunpack.c.l.b16 %v652
      %v711 = vunpack.c.l.b16 %v653
      %v712 = vunpack.c.l.b16 %v654
      %v713 = vunpack.c.l.b16 %v655
      %v714 = vpack.c.b16 %v710, %v709
      %v715 = vpack.c.b16 %v712, %v711
      %v716 = vpack.c.b16 %v713, %v713
      %vm719 = vcmask 269312
      %v721 = vsel %vm719, %v688, 0
      %v724 = vsel %vm719, %v689, 0
      %v727 = vsel %vm719, %v690, 0
      %v730 = vsel %vm719, %v691, 0
      %v733 = vsel %vm719, %v692, 0
      %v736 = vsel %vm719, %v693, 0
      %v739 = vsel %vm719, %v694, 0
      %v742 = vsel %vm719, %v695, 0
      %v745 = vsel %vm719, %v696, 0
      %v748 = vsel %vm719, %v697, 0
      %v751 = vsel %vm719, %v698, 0
      %v754 = vsel %vm719, %v699, 0
      %v757 = vsel %vm719, %v700, 0
      %v760 = vsel %vm719, %v701, 0
      %v763 = vsel %vm719, %v702, 0
      %v766 = vsel %vm719, %v703, 0
      %vm768 = vcmask 1040384
      %v769 = vsel 0, 4294967295, 65535
      %v770 = vsel %vm768, %v769, 0
      %v772 = vand.u32 %v716, %v770
      %774 = vmatpush.bf16.msra.mxu0 0
      %775 = vmatpush.bf16.msra.mxu0 0
      %776 = vmatpush.bf16.msra.mxu0 0
      %777 = vmatpush.bf16.msra.mxu0 0
      %778 = vmatpush.bf16.msra.mxu0 0
      %779 = vmatpush.bf16.msra.mxu0 %v772
      %780 = vmatpush.bf16.msra.mxu0 %v715
      %781 = vmatpush.bf16.msra.mxu0 %v714
      %782 = vmatmul.bf16.gmra.mxu0 %v721
      %v783 = vpop.f32.mrf.mxu0
      %v784 = vadd.f32 0.0, %v783
      %v785 = vpop.f32.mrf.mxu0
      %v786 = vadd.f32 0.0, %v785
      %787 = vmatmul.bf16.gmra.mxu0 %v724
      %v788 = vpop.f32.mrf.mxu0
      %v789 = vadd.f32 0.0, %v788
      %v790 = vpop.f32.mrf.mxu0
      %v791 = vadd.f32 0.0, %v790
      %792 = vmatmul.bf16.gmra.mxu0 %v727
      %v793 = vpop.f32.mrf.mxu0
      %v794 = vadd.f32 0.0, %v793
      %v795 = vpop.f32.mrf.mxu0
      %v796 = vadd.f32 0.0, %v795
      %797 = vmatmul.bf16.gmra.mxu0 %v730
      %v798 = vpop.f32.mrf.mxu0
      %v799 = vadd.f32 0.0, %v798
      %v800 = vpop.f32.mrf.mxu0
      %v801 = vadd.f32 0.0, %v800
      %802 = vmatmul.bf16.gmra.mxu0 %v733
      %v803 = vpop.f32.mrf.mxu0
      %v804 = vadd.f32 0.0, %v803
      %v805 = vpop.f32.mrf.mxu0
      %v806 = vadd.f32 0.0, %v805
      %807 = vmatmul.bf16.gmra.mxu0 %v736
      %v808 = vpop.f32.mrf.mxu0
      %v809 = vadd.f32 0.0, %v808
      %v810 = vpop.f32.mrf.mxu0
      %v811 = vadd.f32 0.0, %v810
      %812 = vmatmul.bf16.gmra.mxu0 %v739
      %v813 = vpop.f32.mrf.mxu0
      %v814 = vadd.f32 0.0, %v813
      %v815 = vpop.f32.mrf.mxu0
      %v816 = vadd.f32 0.0, %v815
      %817 = vmatmul.bf16.gmra.mxu0 %v742
      %v818 = vpop.f32.mrf.mxu0
      %v819 = vadd.f32 0.0, %v818
      %v820 = vpop.f32.mrf.mxu0
      %v821 = vadd.f32 0.0, %v820
      %822 = vmatmul.bf16.gmra.mxu0 %v745
      %v823 = vpop.f32.mrf.mxu0
      %v824 = vadd.f32 0.0, %v823
      %v825 = vpop.f32.mrf.mxu0
      %v826 = vadd.f32 0.0, %v825
      %827 = vmatmul.bf16.gmra.mxu0 %v748
      %v828 = vpop.f32.mrf.mxu0
      %v829 = vadd.f32 0.0, %v828
      %v830 = vpop.f32.mrf.mxu0
      %v831 = vadd.f32 0.0, %v830
      %832 = vmatmul.bf16.gmra.mxu0 %v751
      %v833 = vpop.f32.mrf.mxu0
      %v834 = vadd.f32 0.0, %v833
      %v835 = vpop.f32.mrf.mxu0
      %v836 = vadd.f32 0.0, %v835
      %837 = vmatmul.bf16.gmra.mxu0 %v754
      %v838 = vpop.f32.mrf.mxu0
      %v839 = vadd.f32 0.0, %v838
      %v840 = vpop.f32.mrf.mxu0
      %v841 = vadd.f32 0.0, %v840
      %842 = vmatmul.bf16.gmra.mxu0 %v757
      %v843 = vpop.f32.mrf.mxu0
      %v844 = vadd.f32 0.0, %v843
      %v845 = vpop.f32.mrf.mxu0
      %v846 = vadd.f32 0.0, %v845
      %847 = vmatmul.bf16.gmra.mxu0 %v760
      %v848 = vpop.f32.mrf.mxu0
      %v849 = vadd.f32 0.0, %v848
      %v850 = vpop.f32.mrf.mxu0
      %v851 = vadd.f32 0.0, %v850
      %852 = vmatmul.bf16.gmra.mxu0 %v763
      %v853 = vpop.f32.mrf.mxu0
      %v854 = vadd.f32 0.0, %v853
      %v855 = vpop.f32.mrf.mxu0
      %v856 = vadd.f32 0.0, %v855
      %857 = vmatmul.bf16.gmra.mxu0 %v766
      %v858 = vpop.f32.mrf.mxu0
      %v859 = vadd.f32 0.0, %v858
      %v860 = vpop.f32.mrf.mxu0
      %v861 = vadd.f32 0.0, %v860
      %862 = vdwg.mxu0
      %v895 = vunpack.c.l.b16 %v210
      %v896 = vunpack.c.l.b16 %v211
      %v897 = vunpack.c.l.b16 %v212
      %v898 = vunpack.c.l.b16 %v213
      %v899 = vunpack.c.l.b16 %v214
      %v900 = vunpack.c.l.b16 %v215
      %v901 = vunpack.c.l.b16 %v216
      %v902 = vunpack.c.l.b16 %v217
      %v903 = vunpack.c.l.b16 %v218
      %v904 = vunpack.c.l.b16 %v219
      %v905 = vunpack.c.l.b16 %v220
      %v906 = vunpack.c.l.b16 %v221
      %v907 = vunpack.c.l.b16 %v222
      %v908 = vunpack.c.l.b16 %v223
      %v909 = vunpack.c.l.b16 %v224
      %v910 = vunpack.c.l.b16 %v225
      %v911 = vunpack.c.l.b16 %v226
      %v912 = vunpack.c.l.b16 %v227
      %v913 = vunpack.c.l.b16 %v228
      %v914 = vunpack.c.l.b16 %v229
      %v915 = vunpack.c.l.b16 %v230
      %v916 = vunpack.c.l.b16 %v231
      %v917 = vunpack.c.l.b16 %v232
      %v918 = vunpack.c.l.b16 %v233
      %v919 = vunpack.c.l.b16 %v234
      %v920 = vunpack.c.l.b16 %v235
      %v921 = vunpack.c.l.b16 %v236
      %v922 = vunpack.c.l.b16 %v237
      %v923 = vunpack.c.l.b16 %v238
      %v924 = vunpack.c.l.b16 %v239
      %v925 = vunpack.c.l.b16 %v240
      %v926 = vunpack.c.l.b16 %v241
      %v927 = vpack.c.b16 %v896, %v895
      %v928 = vpack.c.b16 %v898, %v897
      %v929 = vpack.c.b16 %v900, %v899
      %v930 = vpack.c.b16 %v902, %v901
      %v931 = vpack.c.b16 %v904, %v903
      %v932 = vpack.c.b16 %v906, %v905
      %v933 = vpack.c.b16 %v908, %v907
      %v934 = vpack.c.b16 %v910, %v909
      %v935 = vpack.c.b16 %v912, %v911
      %v936 = vpack.c.b16 %v914, %v913
      %v937 = vpack.c.b16 %v916, %v915
      %v938 = vpack.c.b16 %v918, %v917
      %v939 = vpack.c.b16 %v920, %v919
      %v940 = vpack.c.b16 %v922, %v921
      %v941 = vpack.c.b16 %v924, %v923
      %v942 = vpack.c.b16 %v926, %v925
      %v948 = vunpack.c.l.b16 %v242
      %v949 = vunpack.c.l.b16 %v243
      %v950 = vunpack.c.l.b16 %v244
      %v951 = vunpack.c.l.b16 %v245
      %v952 = vunpack.c.l.b16 %v246
      %v953 = vpack.c.b16 %v949, %v948
      %v954 = vpack.c.b16 %v951, %v950
      %v955 = vpack.c.b16 %v952, %v952
      %v959 = vsel %vm719, %v927, 0
      %v962 = vsel %vm719, %v928, 0
      %v965 = vsel %vm719, %v929, 0
      %v968 = vsel %vm719, %v930, 0
      %v971 = vsel %vm719, %v931, 0
      %v974 = vsel %vm719, %v932, 0
      %v977 = vsel %vm719, %v933, 0
      %v980 = vsel %vm719, %v934, 0
      %v983 = vsel %vm719, %v935, 0
      %v986 = vsel %vm719, %v936, 0
      %v989 = vsel %vm719, %v937, 0
      %v992 = vsel %vm719, %v938, 0
      %v995 = vsel %vm719, %v939, 0
      %v998 = vsel %vm719, %v940, 0
      %v1001 = vsel %vm719, %v941, 0
      %v1004 = vsel %vm719, %v942, 0
      %v1007 = vand.u32 %v955, %v770
      %1009 = vmatpush.bf16.msra.mxu0 0
      %1010 = vmatpush.bf16.msra.mxu0 0
      %1011 = vmatpush.bf16.msra.mxu0 0
      %1012 = vmatpush.bf16.msra.mxu0 0
      %1013 = vmatpush.bf16.msra.mxu0 0
      %1014 = vmatpush.bf16.msra.mxu0 %v1007
      %1015 = vmatpush.bf16.msra.mxu0 %v954
      %1016 = vmatpush.bf16.msra.mxu0 %v953
      %1017 = vmatmul.bf16.gmra.mxu0 %v959
      %v1018 = vpop.f32.mrf.mxu0
      %v1019 = vadd.f32 %v784, %v1018
      %v1020 = vpop.f32.mrf.mxu0
      %v1021 = vadd.f32 %v786, %v1020
      %1022 = vmatmul.bf16.gmra.mxu0 %v962
      %v1023 = vpop.f32.mrf.mxu0
      %v1024 = vadd.f32 %v789, %v1023
      %v1025 = vpop.f32.mrf.mxu0
      %v1026 = vadd.f32 %v791, %v1025
      %1027 = vmatmul.bf16.gmra.mxu0 %v965
      %v1028 = vpop.f32.mrf.mxu0
      %v1029 = vadd.f32 %v794, %v1028
      %v1030 = vpop.f32.mrf.mxu0
      %v1031 = vadd.f32 %v796, %v1030
      %1032 = vmatmul.bf16.gmra.mxu0 %v968
      %v1033 = vpop.f32.mrf.mxu0
      %v1034 = vadd.f32 %v799, %v1033
      %v1035 = vpop.f32.mrf.mxu0
      %v1036 = vadd.f32 %v801, %v1035
      %1037 = vmatmul.bf16.gmra.mxu0 %v971
      %v1038 = vpop.f32.mrf.mxu0
      %v1039 = vadd.f32 %v804, %v1038
      %v1040 = vpop.f32.mrf.mxu0
      %v1041 = vadd.f32 %v806, %v1040
      %1042 = vmatmul.bf16.gmra.mxu0 %v974
      %v1043 = vpop.f32.mrf.mxu0
      %v1044 = vadd.f32 %v809, %v1043
      %v1045 = vpop.f32.mrf.mxu0
      %v1046 = vadd.f32 %v811, %v1045
      %1047 = vmatmul.bf16.gmra.mxu0 %v977
      %v1048 = vpop.f32.mrf.mxu0
      %v1049 = vadd.f32 %v814, %v1048
      %v1050 = vpop.f32.mrf.mxu0
      %v1051 = vadd.f32 %v816, %v1050
      %1052 = vmatmul.bf16.gmra.mxu0 %v980
      %v1053 = vpop.f32.mrf.mxu0
      %v1054 = vadd.f32 %v819, %v1053
      %v1055 = vpop.f32.mrf.mxu0
      %v1056 = vadd.f32 %v821, %v1055
      %1057 = vmatmul.bf16.gmra.mxu0 %v983
      %v1058 = vpop.f32.mrf.mxu0
      %v1059 = vadd.f32 %v824, %v1058
      %v1060 = vpop.f32.mrf.mxu0
      %v1061 = vadd.f32 %v826, %v1060
      %1062 = vmatmul.bf16.gmra.mxu0 %v986
      %v1063 = vpop.f32.mrf.mxu0
      %v1064 = vadd.f32 %v829, %v1063
      %v1065 = vpop.f32.mrf.mxu0
      %v1066 = vadd.f32 %v831, %v1065
      %1067 = vmatmul.bf16.gmra.mxu0 %v989
      %v1068 = vpop.f32.mrf.mxu0
      %v1069 = vadd.f32 %v834, %v1068
      %v1070 = vpop.f32.mrf.mxu0
      %v1071 = vadd.f32 %v836, %v1070
      %1072 = vmatmul.bf16.gmra.mxu0 %v992
      %v1073 = vpop.f32.mrf.mxu0
      %v1074 = vadd.f32 %v839, %v1073
      %v1075 = vpop.f32.mrf.mxu0
      %v1076 = vadd.f32 %v841, %v1075
      %1077 = vmatmul.bf16.gmra.mxu0 %v995
      %v1078 = vpop.f32.mrf.mxu0
      %v1079 = vadd.f32 %v844, %v1078
      %v1080 = vpop.f32.mrf.mxu0
      %v1081 = vadd.f32 %v846, %v1080
      %1082 = vmatmul.bf16.gmra.mxu0 %v998
      %v1083 = vpop.f32.mrf.mxu0
      %v1084 = vadd.f32 %v849, %v1083
      %v1085 = vpop.f32.mrf.mxu0
      %v1086 = vadd.f32 %v851, %v1085
      %1087 = vmatmul.bf16.gmra.mxu0 %v1001
      %v1088 = vpop.f32.mrf.mxu0
      %v1089 = vadd.f32 %v854, %v1088
      %v1090 = vpop.f32.mrf.mxu0
      %v1091 = vadd.f32 %v856, %v1090
      %1092 = vmatmul.bf16.gmra.mxu0 %v1004
      %v1093 = vpop.f32.mrf.mxu0
      %v1094 = vadd.f32 %v859, %v1093
      %v1095 = vpop.f32.mrf.mxu0
      %v1096 = vadd.f32 %v861, %v1095
      %1097 = vdwg.mxu0
      %s1098 = scalar_lea.vmem %s199, 12
      %v1099 = vld [vmem:[%s1098] sm:$0xf]
      %v1100 = vld [vmem:[%s1098 + $0x4] sm:$0xf]
      %v1101 = vld [vmem:[%s1098 + $0xc] sm:$0xf]
      %v1102 = vld [vmem:[%s1098 + $0x10] sm:$0xf]
      %v1103 = vld [vmem:[%s1098 + $0x18] sm:$0xf]
      %v1104 = vld [vmem:[%s1098 + $0x1c] sm:$0xf]
      %v1105 = vld [vmem:[%s1098 + $0x24] sm:$0xf]
      %v1106 = vld [vmem:[%s1098 + $0x28] sm:$0xf]
      %v1107 = vld [vmem:[%s1098 + $0x30] sm:$0xf]
      %v1108 = vld [vmem:[%s1098 + $0x34] sm:$0xf]
      %v1109 = vld [vmem:[%s1098 + $0x3c] sm:$0xf]
      %v1110 = vld [vmem:[%s1098 + $0x40] sm:$0xf]
      %v1111 = vld [vmem:[%s1098 + $0x48] sm:$0xf]
      %v1112 = vld [vmem:[%s1098 + $0x4c] sm:$0xf]
      %v1113 = vld [vmem:[%s1098 + $0x54] sm:$0xf]
      %v1114 = vld [vmem:[%s1098 + $0x58] sm:$0xf]
      %v1115 = vld [vmem:[%s1098 + $0x60] sm:$0xf]
      %v1116 = vld [vmem:[%s1098 + $0x64] sm:$0xf]
      %v1117 = vld [vmem:[%s1098 + $0x6c] sm:$0xf]
      %v1118 = vld [vmem:[%s1098 + $0x70] sm:$0xf]
      %v1119 = vld [vmem:[%s1098 + $0x78] sm:$0xf]
      %v1120 = vld [vmem:[%s1098 + $0x7c] sm:$0xf]
      %v1121 = vld [vmem:[%s1098 + $0x84] sm:$0xf]
      %v1122 = vld [vmem:[%s1098 + $0x88] sm:$0xf]
      %v1123 = vld [vmem:[%s1098 + $0x90] sm:$0xf]
      %v1124 = vld [vmem:[%s1098 + $0x94] sm:$0xf]
      %v1125 = vld [vmem:[%s1098 + $0x9c] sm:$0xf]
      %v1126 = vld [vmem:[%s1098 + $0xa0] sm:$0xf]
      %v1127 = vld [vmem:[%s1098 + $0xa8] sm:$0xf]
      %v1128 = vld [vmem:[%s1098 + $0xac] sm:$0xf]
      %v1129 = vld [vmem:[%s1098 + $0xb4] sm:$0xf]
      %v1130 = vld [vmem:[%s1098 + $0xb8] sm:$0xf]
      %s1131 = scalar_lea.vmem %s1, 40
      %v1132 = vld [vmem:[%s1131] sm:$0xf]
      %v1133 = vld [vmem:[%s1131 + $0x4] sm:$0xf]
      %v1134 = vld [vmem:[%s1131 + $0x8] sm:$0xf]
      %v1135 = vld [vmem:[%s1131 + $0xc] sm:$0xf]
      %v1136 = vld [vmem:[%s1131 + $0x10] sm:$0x1]
      %v1169 = vunpack.c.l.b16 %v1099
      %v1170 = vunpack.c.l.b16 %v1100
      %v1171 = vunpack.c.l.b16 %v1101
      %v1172 = vunpack.c.l.b16 %v1102
      %v1173 = vunpack.c.l.b16 %v1103
      %v1174 = vunpack.c.l.b16 %v1104
      %v1175 = vunpack.c.l.b16 %v1105
      %v1176 = vunpack.c.l.b16 %v1106
      %v1177 = vunpack.c.l.b16 %v1107
      %v1178 = vunpack.c.l.b16 %v1108
      %v1179 = vunpack.c.l.b16 %v1109
      %v1180 = vunpack.c.l.b16 %v1110
      %v1181 = vunpack.c.l.b16 %v1111
      %v1182 = vunpack.c.l.b16 %v1112
      %v1183 = vunpack.c.l.b16 %v1113
      %v1184 = vunpack.c.l.b16 %v1114
      %v1185 = vunpack.c.l.b16 %v1115
      %v1186 = vunpack.c.l.b16 %v1116
      %v1187 = vunpack.c.l.b16 %v1117
      %v1188 = vunpack.c.l.b16 %v1118
      %v1189 = vunpack.c.l.b16 %v1119
      %v1190 = vunpack.c.l.b16 %v1120
      %v1191 = vunpack.c.l.b16 %v1121
      %v1192 = vunpack.c.l.b16 %v1122
      %v1193 = vunpack.c.l.b16 %v1123
      %v1194 = vunpack.c.l.b16 %v1124
      %v1195 = vunpack.c.l.b16 %v1125
      %v1196 = vunpack.c.l.b16 %v1126
      %v1197 = vunpack.c.l.b16 %v1127
      %v1198 = vunpack.c.l.b16 %v1128
      %v1199 = vunpack.c.l.b16 %v1129
      %v1200 = vunpack.c.l.b16 %v1130
      %v1201 = vpack.c.b16 %v1170, %v1169
      %v1202 = vpack.c.b16 %v1172, %v1171
      %v1203 = vpack.c.b16 %v1174, %v1173
      %v1204 = vpack.c.b16 %v1176, %v1175
      %v1205 = vpack.c.b16 %v1178, %v1177
      %v1206 = vpack.c.b16 %v1180, %v1179
      %v1207 = vpack.c.b16 %v1182, %v1181
      %v1208 = vpack.c.b16 %v1184, %v1183
      %v1209 = vpack.c.b16 %v1186, %v1185
      %v1210 = vpack.c.b16 %v1188, %v1187
      %v1211 = vpack.c.b16 %v1190, %v1189
      %v1212 = vpack.c.b16 %v1192, %v1191
      %v1213 = vpack.c.b16 %v1194, %v1193
      %v1214 = vpack.c.b16 %v1196, %v1195
      %v1215 = vpack.c.b16 %v1198, %v1197
      %v1216 = vpack.c.b16 %v1200, %v1199
      %v1222 = vunpack.c.l.b16 %v1132
      %v1223 = vunpack.c.l.b16 %v1133
      %v1224 = vunpack.c.l.b16 %v1134
      %v1225 = vunpack.c.l.b16 %v1135
      %v1226 = vunpack.c.l.b16 %v1136
      %v1227 = vpack.c.b16 %v1223, %v1222
      %v1228 = vpack.c.b16 %v1225, %v1224
      %v1229 = vpack.c.b16 %v1226, %v1226
      %v1233 = vsel %vm719, %v1201, 0
      %v1236 = vsel %vm719, %v1202, 0
      %v1239 = vsel %vm719, %v1203, 0
      %v1242 = vsel %vm719, %v1204, 0
      %v1245 = vsel %vm719, %v1205, 0
      %v1248 = vsel %vm719, %v1206, 0
      %v1251 = vsel %vm719, %v1207, 0
      %v1254 = vsel %vm719, %v1208, 0
      %v1257 = vsel %vm719, %v1209, 0
      %v1260 = vsel %vm719, %v1210, 0
      %v1263 = vsel %vm719, %v1211, 0
      %v1266 = vsel %vm719, %v1212, 0
      %v1269 = vsel %vm719, %v1213, 0
      %v1272 = vsel %vm719, %v1214, 0
      %v1275 = vsel %vm719, %v1215, 0
      %v1278 = vsel %vm719, %v1216, 0
      %v1281 = vand.u32 %v1229, %v770
      %1283 = vmatpush.bf16.msra.mxu0 0
      %1284 = vmatpush.bf16.msra.mxu0 0
      %1285 = vmatpush.bf16.msra.mxu0 0
      %1286 = vmatpush.bf16.msra.mxu0 0
      %1287 = vmatpush.bf16.msra.mxu0 0
      %1288 = vmatpush.bf16.msra.mxu0 %v1281
      %1289 = vmatpush.bf16.msra.mxu0 %v1228
      %1290 = vmatpush.bf16.msra.mxu0 %v1227
      %1291 = vmatmul.bf16.gmra.mxu0 %v1233
      %v1292 = vpop.f32.mrf.mxu0
      %v1293 = vadd.f32 0.0, %v1292
      %v1294 = vpop.f32.mrf.mxu0
      %v1295 = vadd.f32 0.0, %v1294
      %1296 = vmatmul.bf16.gmra.mxu0 %v1236
      %v1297 = vpop.f32.mrf.mxu0
      %v1298 = vadd.f32 0.0, %v1297
      %v1299 = vpop.f32.mrf.mxu0
      %v1300 = vadd.f32 0.0, %v1299
      %1301 = vmatmul.bf16.gmra.mxu0 %v1239
      %v1302 = vpop.f32.mrf.mxu0
      %v1303 = vadd.f32 0.0, %v1302
      %v1304 = vpop.f32.mrf.mxu0
      %v1305 = vadd.f32 0.0, %v1304
      %1306 = vmatmul.bf16.gmra.mxu0 %v1242
      %v1307 = vpop.f32.mrf.mxu0
      %v1308 = vadd.f32 0.0, %v1307
      %v1309 = vpop.f32.mrf.mxu0
      %v1310 = vadd.f32 0.0, %v1309
      %1311 = vmatmul.bf16.gmra.mxu0 %v1245
      %v1312 = vpop.f32.mrf.mxu0
      %v1313 = vadd.f32 0.0, %v1312
      %v1314 = vpop.f32.mrf.mxu0
      %v1315 = vadd.f32 0.0, %v1314
      %1316 = vmatmul.bf16.gmra.mxu0 %v1248
      %v1317 = vpop.f32.mrf.mxu0
      %v1318 = vadd.f32 0.0, %v1317
      %v1319 = vpop.f32.mrf.mxu0
      %v1320 = vadd.f32 0.0, %v1319
      %1321 = vmatmul.bf16.gmra.mxu0 %v1251
      %v1322 = vpop.f32.mrf.mxu0
      %v1323 = vadd.f32 0.0, %v1322
      %v1324 = vpop.f32.mrf.mxu0
      %v1325 = vadd.f32 0.0, %v1324
      %1326 = vmatmul.bf16.gmra.mxu0 %v1254
      %v1327 = vpop.f32.mrf.mxu0
      %v1328 = vadd.f32 0.0, %v1327
      %v1329 = vpop.f32.mrf.mxu0
      %v1330 = vadd.f32 0.0, %v1329
      %1331 = vmatmul.bf16.gmra.mxu0 %v1257
      %v1332 = vpop.f32.mrf.mxu0
      %v1333 = vadd.f32 0.0, %v1332
      %v1334 = vpop.f32.mrf.mxu0
      %v1335 = vadd.f32 0.0, %v1334
      %1336 = vmatmul.bf16.gmra.mxu0 %v1260
      %v1337 = vpop.f32.mrf.mxu0
      %v1338 = vadd.f32 0.0, %v1337
      %v1339 = vpop.f32.mrf.mxu0
      %v1340 = vadd.f32 0.0, %v1339
      %1341 = vmatmul.bf16.gmra.mxu0 %v1263
      %v1342 = vpop.f32.mrf.mxu0
      %v1343 = vadd.f32 0.0, %v1342
      %v1344 = vpop.f32.mrf.mxu0
      %v1345 = vadd.f32 0.0, %v1344
      %1346 = vmatmul.bf16.gmra.mxu0 %v1266
      %v1347 = vpop.f32.mrf.mxu0
      %v1348 = vadd.f32 0.0, %v1347
      %v1349 = vpop.f32.mrf.mxu0
      %v1350 = vadd.f32 0.0, %v1349
      %1351 = vmatmul.bf16.gmra.mxu0 %v1269
      %v1352 = vpop.f32.mrf.mxu0
      %v1353 = vadd.f32 0.0, %v1352
      %v1354 = vpop.f32.mrf.mxu0
      %v1355 = vadd.f32 0.0, %v1354
      %1356 = vmatmul.bf16.gmra.mxu0 %v1272
      %v1357 = vpop.f32.mrf.mxu0
      %v1358 = vadd.f32 0.0, %v1357
      %v1359 = vpop.f32.mrf.mxu0
      %v1360 = vadd.f32 0.0, %v1359
      %1361 = vmatmul.bf16.gmra.mxu0 %v1275
      %v1362 = vpop.f32.mrf.mxu0
      %v1363 = vadd.f32 0.0, %v1362
      %v1364 = vpop.f32.mrf.mxu0
      %v1365 = vadd.f32 0.0, %v1364
      %1366 = vmatmul.bf16.gmra.mxu0 %v1278
      %v1367 = vpop.f32.mrf.mxu0
      %v1368 = vadd.f32 0.0, %v1367
      %v1369 = vpop.f32.mrf.mxu0
      %v1370 = vadd.f32 0.0, %v1369
      %1371 = vdwg.mxu0
      %v1372 = vadd.f32 %v1019, %v1293
      %v1373 = vadd.f32 %v1021, %v1295
      %v1374 = vadd.f32 %v1024, %v1298
      %v1375 = vadd.f32 %v1026, %v1300
      %v1376 = vadd.f32 %v1029, %v1303
      %v1377 = vadd.f32 %v1031, %v1305
      %v1378 = vadd.f32 %v1034, %v1308
      %v1379 = vadd.f32 %v1036, %v1310
      %v1380 = vadd.f32 %v1039, %v1313
      %v1381 = vadd.f32 %v1041, %v1315
      %v1382 = vadd.f32 %v1044, %v1318
      %v1383 = vadd.f32 %v1046, %v1320
      %v1384 = vadd.f32 %v1049, %v1323
      %v1385 = vadd.f32 %v1051, %v1325
      %v1386 = vadd.f32 %v1054, %v1328
      %v1387 = vadd.f32 %v1056, %v1330
      %v1388 = vadd.f32 %v1059, %v1333
      %v1389 = vadd.f32 %v1061, %v1335
      %v1390 = vadd.f32 %v1064, %v1338
      %v1391 = vadd.f32 %v1066, %v1340
      %v1392 = vadd.f32 %v1069, %v1343
      %v1393 = vadd.f32 %v1071, %v1345
      %v1394 = vadd.f32 %v1074, %v1348
      %v1395 = vadd.f32 %v1076, %v1350
      %v1396 = vadd.f32 %v1079, %v1353
      %v1397 = vadd.f32 %v1081, %v1355
      %v1398 = vadd.f32 %v1084, %v1358
      %v1399 = vadd.f32 %v1086, %v1360
      %v1400 = vadd.f32 %v1089, %v1363
      %v1401 = vadd.f32 %v1091, %v1365
      %v1402 = vadd.f32 %v1094, %v1368
      %v1403 = vadd.f32 %v1096, %v1370
      %v1404 = vld [vmem:[%s1098] sm:$0xf]
      %v1405 = vld [vmem:[%s1098 + $0x4] sm:$0xf]
      %v1406 = vld [vmem:[%s1098 + $0x8] sm:$0x1]
      %v1407 = vld [vmem:[%s1098 + $0xc] sm:$0xf]
      %v1408 = vld [vmem:[%s1098 + $0x10] sm:$0xf]
      %v1409 = vld [vmem:[%s1098 + $0x14] sm:$0x1]
      %v1410 = vld [vmem:[%s1098 + $0x18] sm:$0xf]
      %v1411 = vld [vmem:[%s1098 + $0x1c] sm:$0xf]
      %v1412 = vld [vmem:[%s1098 + $0x20] sm:$0x1]
      %v1413 = vld [vmem:[%s1098 + $0x24] sm:$0xf]
      %v1414 = vld [vmem:[%s1098 + $0x28] sm:$0xf]
      %v1415 = vld [vmem:[%s1098 + $0x2c] sm:$0x1]
      %v1416 = vld [vmem:[%s1098 + $0x30] sm:$0xf]
      %v1417 = vld [vmem:[%s1098 + $0x34] sm:$0xf]
      %v1418 = vld [vmem:[%s1098 + $0x38] sm:$0x1]
      %v1419 = vld [vmem:[%s1098 + $0x3c] sm:$0xf]
      %v1420 = vld [vmem:[%s1098 + $0x40] sm:$0xf]
      %v1421 = vld [vmem:[%s1098 + $0x44] sm:$0x1]
      %v1422 = vld [vmem:[%s1098 + $0x48] sm:$0xf]
      %v1423 = vld [vmem:[%s1098 + $0x4c] sm:$0xf]
      %v1424 = vld [vmem:[%s1098 + $0x50] sm:$0x1]
      %v1425 = vld [vmem:[%s1098 + $0x54] sm:$0xf]
      %v1426 = vld [vmem:[%s1098 + $0x58] sm:$0xf]
      %v1427 = vld [vmem:[%s1098 + $0x5c] sm:$0x1]
      %v1428 = vld [vmem:[%s1098 + $0x60] sm:$0xf]
      %v1429 = vld [vmem:[%s1098 + $0x64] sm:$0xf]
      %v1430 = vld [vmem:[%s1098 + $0x68] sm:$0x1]
      %v1431 = vld [vmem:[%s1098 + $0x6c] sm:$0xf]
      %v1432 = vld [vmem:[%s1098 + $0x70] sm:$0xf]
      %v1433 = vld [vmem:[%s1098 + $0x74] sm:$0x1]
      %v1434 = vld [vmem:[%s1098 + $0x78] sm:$0xf]
      %v1435 = vld [vmem:[%s1098 + $0x7c] sm:$0xf]
      %v1436 = vld [vmem:[%s1098 + $0x80] sm:$0x1]
      %v1437 = vld [vmem:[%s1098 + $0x84] sm:$0xf]
      %v1438 = vld [vmem:[%s1098 + $0x88] sm:$0xf]
      %v1439 = vld [vmem:[%s1098 + $0x8c] sm:$0x1]
      %v1440 = vld [vmem:[%s1098 + $0x90] sm:$0xf]
      %v1441 = vld [vmem:[%s1098 + $0x94] sm:$0xf]
      %v1442 = vld [vmem:[%s1098 + $0x98] sm:$0x1]
      %v1443 = vld [vmem:[%s1098 + $0x9c] sm:$0xf]
      %v1444 = vld [vmem:[%s1098 + $0xa0] sm:$0xf]
      %v1445 = vld [vmem:[%s1098 + $0xa4] sm:$0x1]
      %v1446 = vld [vmem:[%s1098 + $0xa8] sm:$0xf]
      %v1447 = vld [vmem:[%s1098 + $0xac] sm:$0xf]
      %v1448 = vld [vmem:[%s1098 + $0xb0] sm:$0x1]
      %v1449 = vld [vmem:[%s1098 + $0xb4] sm:$0xf]
      %v1450 = vld [vmem:[%s1098 + $0xb8] sm:$0xf]
      %v1451 = vld [vmem:[%s1098 + $0xbc] sm:$0x1]
      %v1453 = vshrl.u32 %v1404, 16
      %v1455 = vrot.slane %v1453, 4
      %v1456 = vshll.u32 %v1404, 16
      %v1458 = vrot.slane %v1456, 5
      %v1459 = vor.u32 %v1455, %v1458
      %v1460 = vrot.slane %v1459, 4
      %v1462 = vshll.u32 %v1405, 16
      %v1464 = vrot.slane %v1462, 5
      %v1465 = vsel %vm265, %v1460, %v1464
      %v1466 = vshrl.u32 %v1405, 16
      %v1468 = vrot.slane %v1466, 4
      %v1469 = vor.u32 %v1468, %v1464
      %v1470 = vrot.slane %v1469, 4
      %v1472 = vshll.u32 %v1406, 16
      %v1474 = vrot.slane %v1472, 5
      %v1475 = vsel %vm265, %v1470, %v1474
      %v1477 = vshrl.u32 %v1407, 16
      %v1479 = vrot.slane %v1477, 4
      %v1480 = vshll.u32 %v1407, 16
      %v1482 = vrot.slane %v1480, 5
      %v1483 = vor.u32 %v1479, %v1482
      %v1484 = vrot.slane %v1483, 4
      %v1486 = vshll.u32 %v1408, 16
      %v1488 = vrot.slane %v1486, 5
      %v1489 = vsel %vm265, %v1484, %v1488
      %v1490 = vshrl.u32 %v1408, 16
      %v1492 = vrot.slane %v1490, 4
      %v1493 = vor.u32 %v1492, %v1488
      %v1494 = vrot.slane %v1493, 4
      %v1496 = vshll.u32 %v1409, 16
      %v1498 = vrot.slane %v1496, 5
      %v1499 = vsel %vm265, %v1494, %v1498
      %v1501 = vshrl.u32 %v1410, 16
      %v1503 = vrot.slane %v1501, 4
      %v1504 = vshll.u32 %v1410, 16
      %v1506 = vrot.slane %v1504, 5
      %v1507 = vor.u32 %v1503, %v1506
      %v1508 = vrot.slane %v1507, 4
      %v1510 = vshll.u32 %v1411, 16
      %v1512 = vrot.slane %v1510, 5
      %v1513 = vsel %vm265, %v1508, %v1512
      %v1514 = vshrl.u32 %v1411, 16
      %v1516 = vrot.slane %v1514, 4
      %v1517 = vor.u32 %v1516, %v1512
      %v1518 = vrot.slane %v1517, 4
      %v1520 = vshll.u32 %v1412, 16
      %v1522 = vrot.slane %v1520, 5
      %v1523 = vsel %vm265, %v1518, %v1522
      %v1525 = vshrl.u32 %v1413, 16
      %v1527 = vrot.slane %v1525, 4
      %v1528 = vshll.u32 %v1413, 16
      %v1530 = vrot.slane %v1528, 5
      %v1531 = vor.u32 %v1527, %v1530
      %v1532 = vrot.slane %v1531, 4
      %v1534 = vshll.u32 %v1414, 16
      %v1536 = vrot.slane %v1534, 5
      %v1537 = vsel %vm265, %v1532, %v1536
      %v1538 = vshrl.u32 %v1414, 16
      %v1540 = vrot.slane %v1538, 4
      %v1541 = vor.u32 %v1540, %v1536
      %v1542 = vrot.slane %v1541, 4
      %v1544 = vshll.u32 %v1415, 16
      %v1546 = vrot.slane %v1544, 5
      %v1547 = vsel %vm265, %v1542, %v1546
      %v1549 = vshrl.u32 %v1416, 16
      %v1551 = vrot.slane %v1549, 4
      %v1552 = vshll.u32 %v1416, 16
      %v1554 = vrot.slane %v1552, 5
      %v1555 = vor.u32 %v1551, %v1554
      %v1556 = vrot.slane %v1555, 4
      %v1558 = vshll.u32 %v1417, 16
      %v1560 = vrot.slane %v1558, 5
      %v1561 = vsel %vm265, %v1556, %v1560
      %v1562 = vshrl.u32 %v1417, 16
      %v1564 = vrot.slane %v1562, 4
      %v1565 = vor.u32 %v1564, %v1560
      %v1566 = vrot.slane %v1565, 4
      %v1568 = vshll.u32 %v1418, 16
      %v1570 = vrot.slane %v1568, 5
      %v1571 = vsel %vm265, %v1566, %v1570
      %v1573 = vshrl.u32 %v1419, 16
      %v1575 = vrot.slane %v1573, 4
      %v1576 = vshll.u32 %v1419, 16
      %v1578 = vrot.slane %v1576, 5
      %v1579 = vor.u32 %v1575, %v1578
      %v1580 = vrot.slane %v1579, 4
      %v1582 = vshll.u32 %v1420, 16
      %v1584 = vrot.slane %v1582, 5
      %v1585 = vsel %vm265, %v1580, %v1584
      %v1586 = vshrl.u32 %v1420, 16
      %v1588 = vrot.slane %v1586, 4
      %v1589 = vor.u32 %v1588, %v1584
      %v1590 = vrot.slane %v1589, 4
      %v1592 = vshll.u32 %v1421, 16
      %v1594 = vrot.slane %v1592, 5
      %v1595 = vsel %vm265, %v1590, %v1594
      %v1597 = vshrl.u32 %v1422, 16
      %v1599 = vrot.slane %v1597, 4
      %v1600 = vshll.u32 %v1422, 16
      %v1602 = vrot.slane %v1600, 5
      %v1603 = vor.u32 %v1599, %v1602
      %v1604 = vrot.slane %v1603, 4
      %v1606 = vshll.u32 %v1423, 16
      %v1608 = vrot.slane %v1606, 5
      %v1609 = vsel %vm265, %v1604, %v1608
      %v1610 = vshrl.u32 %v1423, 16
      %v1612 = vrot.slane %v1610, 4
      %v1613 = vor.u32 %v1612, %v1608
      %v1614 = vrot.slane %v1613, 4
      %v1616 = vshll.u32 %v1424, 16
      %v1618 = vrot.slane %v1616, 5
      %v1619 = vsel %vm265, %v1614, %v1618
      %v1621 = vshrl.u32 %v1425, 16
      %v1623 = vrot.slane %v1621, 4
      %v1624 = vshll.u32 %v1425, 16
      %v1626 = vrot.slane %v1624, 5
      %v1627 = vor.u32 %v1623, %v1626
      %v1628 = vrot.slane %v1627, 4
      %v1630 = vshll.u32 %v1426, 16
      %v1632 = vrot.slane %v1630, 5
      %v1633 = vsel %vm265, %v1628, %v1632
      %v1634 = vshrl.u32 %v1426, 16
      %v1636 = vrot.slane %v1634, 4
      %v1637 = vor.u32 %v1636, %v1632
      %v1638 = vrot.slane %v1637, 4
      %v1640 = vshll.u32 %v1427, 16
      %v1642 = vrot.slane %v1640, 5
      %v1643 = vsel %vm265, %v1638, %v1642
      %v1645 = vshrl.u32 %v1428, 16
      %v1647 = vrot.slane %v1645, 4
      %v1648 = vshll.u32 %v1428, 16
      %v1650 = vrot.slane %v1648, 5
      %v1651 = vor.u32 %v1647, %v1650
      %v1652 = vrot.slane %v1651, 4
      %v1654 = vshll.u32 %v1429, 16
      %v1656 = vrot.slane %v1654, 5
      %v1657 = vsel %vm265, %v1652, %v1656
      %v1658 = vshrl.u32 %v1429, 16
      %v1660 = vrot.slane %v1658, 4
      %v1661 = vor.u32 %v1660, %v1656
      %v1662 = vrot.slane %v1661, 4
      %v1664 = vshll.u32 %v1430, 16
      %v1666 = vrot.slane %v1664, 5
      %v1667 = vsel %vm265, %v1662, %v1666
      %v1669 = vshrl.u32 %v1431, 16
      %v1671 = vrot.slane %v1669, 4
      %v1672 = vshll.u32 %v1431, 16
      %v1674 = vrot.slane %v1672, 5
      %v1675 = vor.u32 %v1671, %v1674
      %v1676 = vrot.slane %v1675, 4
      %v1678 = vshll.u32 %v1432, 16
      %v1680 = vrot.slane %v1678, 5
      %v1681 = vsel %vm265, %v1676, %v1680
      %v1682 = vshrl.u32 %v1432, 16
      %v1684 = vrot.slane %v1682, 4
      %v1685 = vor.u32 %v1684, %v1680
      %v1686 = vrot.slane %v1685, 4
      %v1688 = vshll.u32 %v1433, 16
      %v1690 = vrot.slane %v1688, 5
      %v1691 = vsel %vm265, %v1686, %v1690
      %v1693 = vshrl.u32 %v1434, 16
      %v1695 = vrot.slane %v1693, 4
      %v1696 = vshll.u32 %v1434, 16
      %v1698 = vrot.slane %v1696, 5
      %v1699 = vor.u32 %v1695, %v1698
      %v1700 = vrot.slane %v1699, 4
      %v1702 = vshll.u32 %v1435, 16
      %v1704 = vrot.slane %v1702, 5
      %v1705 = vsel %vm265, %v1700, %v1704
      %v1706 = vshrl.u32 %v1435, 16
      %v1708 = vrot.slane %v1706, 4
      %v1709 = vor.u32 %v1708, %v1704
      %v1710 = vrot.slane %v1709, 4
      %v1712 = vshll.u32 %v1436, 16
      %v1714 = vrot.slane %v1712, 5
      %v1715 = vsel %vm265, %v1710, %v1714
      %v1717 = vshrl.u32 %v1437, 16
      %v1719 = vrot.slane %v1717, 4
      %v1720 = vshll.u32 %v1437, 16
      %v1722 = vrot.slane %v1720, 5
      %v1723 = vor.u32 %v1719, %v1722
      %v1724 = vrot.slane %v1723, 4
      %v1726 = vshll.u32 %v1438, 16
      %v1728 = vrot.slane %v1726, 5
      %v1729 = vsel %vm265, %v1724, %v1728
      %v1730 = vshrl.u32 %v1438, 16
      %v1732 = vrot.slane %v1730, 4
      %v1733 = vor.u32 %v1732, %v1728
      %v1734 = vrot.slane %v1733, 4
      %v1736 = vshll.u32 %v1439, 16
      %v1738 = vrot.slane %v1736, 5
      %v1739 = vsel %vm265, %v1734, %v1738
      %v1741 = vshrl.u32 %v1440, 16
      %v1743 = vrot.slane %v1741, 4
      %v1744 = vshll.u32 %v1440, 16
      %v1746 = vrot.slane %v1744, 5
      %v1747 = vor.u32 %v1743, %v1746
      %v1748 = vrot.slane %v1747, 4
      %v1750 = vshll.u32 %v1441, 16
      %v1752 = vrot.slane %v1750, 5
      %v1753 = vsel %vm265, %v1748, %v1752
      %v1754 = vshrl.u32 %v1441, 16
      %v1756 = vrot.slane %v1754, 4
      %v1757 = vor.u32 %v1756, %v1752
      %v1758 = vrot.slane %v1757, 4
      %v1760 = vshll.u32 %v1442, 16
      %v1762 = vrot.slane %v1760, 5
      %v1763 = vsel %vm265, %v1758, %v1762
      %v1765 = vshrl.u32 %v1443, 16
      %v1767 = vrot.slane %v1765, 4
      %v1768 = vshll.u32 %v1443, 16
      %v1770 = vrot.slane %v1768, 5
      %v1771 = vor.u32 %v1767, %v1770
      %v1772 = vrot.slane %v1771, 4
      %v1774 = vshll.u32 %v1444, 16
      %v1776 = vrot.slane %v1774, 5
      %v1777 = vsel %vm265, %v1772, %v1776
      %v1778 = vshrl.u32 %v1444, 16
      %v1780 = vrot.slane %v1778, 4
      %v1781 = vor.u32 %v1780, %v1776
      %v1782 = vrot.slane %v1781, 4
      %v1784 = vshll.u32 %v1445, 16
      %v1786 = vrot.slane %v1784, 5
      %v1787 = vsel %vm265, %v1782, %v1786
      %v1789 = vshrl.u32 %v1446, 16
      %v1791 = vrot.slane %v1789, 4
      %v1792 = vshll.u32 %v1446, 16
      %v1794 = vrot.slane %v1792, 5
      %v1795 = vor.u32 %v1791, %v1794
      %v1796 = vrot.slane %v1795, 4
      %v1798 = vshll.u32 %v1447, 16
      %v1800 = vrot.slane %v1798, 5
      %v1801 = vsel %vm265, %v1796, %v1800
      %v1802 = vshrl.u32 %v1447, 16
      %v1804 = vrot.slane %v1802, 4
      %v1805 = vor.u32 %v1804, %v1800
      %v1806 = vrot.slane %v1805, 4
      %v1808 = vshll.u32 %v1448, 16
      %v1810 = vrot.slane %v1808, 5
      %v1811 = vsel %vm265, %v1806, %v1810
      %v1813 = vshrl.u32 %v1449, 16
      %v1815 = vrot.slane %v1813, 4
      %v1816 = vshll.u32 %v1449, 16
      %v1818 = vrot.slane %v1816, 5
      %v1819 = vor.u32 %v1815, %v1818
      %v1820 = vrot.slane %v1819, 4
      %v1822 = vshll.u32 %v1450, 16
      %v1824 = vrot.slane %v1822, 5
      %v1825 = vsel %vm265, %v1820, %v1824
      %v1826 = vshrl.u32 %v1450, 16
      %v1828 = vrot.slane %v1826, 4
      %v1829 = vor.u32 %v1828, %v1824
      %v1830 = vrot.slane %v1829, 4
      %v1832 = vshll.u32 %v1451, 16
      %v1834 = vrot.slane %v1832, 5
      %v1835 = vsel %vm265, %v1830, %v1834
      %s1836 = scalar_lea.vmem %s1, 60
      %v1837 = vld [vmem:[%s1836] sm:$0xf]
      %v1838 = vld [vmem:[%s1836 + $0x4] sm:$0xf]
      %v1839 = vld [vmem:[%s1836 + $0x8] sm:$0xf]
      %v1840 = vld [vmem:[%s1836 + $0xc] sm:$0xf]
      %v1841 = vld [vmem:[%s1836 + $0x10] sm:$0x1]
      %v1842 = vunpack.c.l.b16 %v1465
      %v1843 = vunpack.c.l.b16 %v1475
      %v1844 = vunpack.c.l.b16 %v1489
      %v1845 = vunpack.c.l.b16 %v1499
      %v1846 = vunpack.c.l.b16 %v1513
      %v1847 = vunpack.c.l.b16 %v1523
      %v1848 = vunpack.c.l.b16 %v1537
      %v1849 = vunpack.c.l.b16 %v1547
      %v1850 = vunpack.c.l.b16 %v1561
      %v1851 = vunpack.c.l.b16 %v1571
      %v1852 = vunpack.c.l.b16 %v1585
      %v1853 = vunpack.c.l.b16 %v1595
      %v1854 = vunpack.c.l.b16 %v1609
      %v1855 = vunpack.c.l.b16 %v1619
      %v1856 = vunpack.c.l.b16 %v1633
      %v1857 = vunpack.c.l.b16 %v1643
      %v1858 = vunpack.c.l.b16 %v1657
      %v1859 = vunpack.c.l.b16 %v1667
      %v1860 = vunpack.c.l.b16 %v1681
      %v1861 = vunpack.c.l.b16 %v1691
      %v1862 = vunpack.c.l.b16 %v1705
      %v1863 = vunpack.c.l.b16 %v1715
      %v1864 = vunpack.c.l.b16 %v1729
      %v1865 = vunpack.c.l.b16 %v1739
      %v1866 = vunpack.c.l.b16 %v1753
      %v1867 = vunpack.c.l.b16 %v1763
      %v1868 = vunpack.c.l.b16 %v1777
      %v1869 = vunpack.c.l.b16 %v1787
      %v1870 = vunpack.c.l.b16 %v1801
      %v1871 = vunpack.c.l.b16 %v1811
      %v1872 = vunpack.c.l.b16 %v1825
      %v1873 = vunpack.c.l.b16 %v1835
      %v1874 = vpack.c.b16 %v1843, %v1842
      %v1875 = vpack.c.b16 %v1845, %v1844
      %v1876 = vpack.c.b16 %v1847, %v1846
      %v1877 = vpack.c.b16 %v1849, %v1848
      %v1878 = vpack.c.b16 %v1851, %v1850
      %v1879 = vpack.c.b16 %v1853, %v1852
      %v1880 = vpack.c.b16 %v1855, %v1854
      %v1881 = vpack.c.b16 %v1857, %v1856
      %v1882 = vpack.c.b16 %v1859, %v1858
      %v1883 = vpack.c.b16 %v1861, %v1860
      %v1884 = vpack.c.b16 %v1863, %v1862
      %v1885 = vpack.c.b16 %v1865, %v1864
      %v1886 = vpack.c.b16 %v1867, %v1866
      %v1887 = vpack.c.b16 %v1869, %v1868
      %v1888 = vpack.c.b16 %v1871, %v1870
      %v1889 = vpack.c.b16 %v1873, %v1872
      %v1895 = vunpack.c.l.b16 %v1837
      %v1896 = vunpack.c.l.b16 %v1838
      %v1897 = vunpack.c.l.b16 %v1839
      %v1898 = vunpack.c.l.b16 %v1840
      %v1899 = vunpack.c.l.b16 %v1841
      %v1900 = vpack.c.b16 %v1896, %v1895
      %v1901 = vpack.c.b16 %v1898, %v1897
      %v1902 = vpack.c.b16 %v1899, %v1899
      %v1906 = vsel %vm719, %v1874, 0
      %v1909 = vsel %vm719, %v1875, 0
      %v1912 = vsel %vm719, %v1876, 0
      %v1915 = vsel %vm719, %v1877, 0
      %v1918 = vsel %vm719, %v1878, 0
      %v1921 = vsel %vm719, %v1879, 0
      %v1924 = vsel %vm719, %v1880, 0
      %v1927 = vsel %vm719, %v1881, 0
      %v1930 = vsel %vm719, %v1882, 0
      %v1933 = vsel %vm719, %v1883, 0
      %v1936 = vsel %vm719, %v1884, 0
      %v1939 = vsel %vm719, %v1885, 0
      %v1942 = vsel %vm719, %v1886, 0
      %v1945 = vsel %vm719, %v1887, 0
      %v1948 = vsel %vm719, %v1888, 0
      %v1951 = vsel %vm719, %v1889, 0
      %v1954 = vand.u32 %v1902, %v770
      %1956 = vmatpush.bf16.msra.mxu0 0
      %1957 = vmatpush.bf16.msra.mxu0 0
      %1958 = vmatpush.bf16.msra.mxu0 0
      %1959 = vmatpush.bf16.msra.mxu0 0
      %1960 = vmatpush.bf16.msra.mxu0 0
      %1961 = vmatpush.bf16.msra.mxu0 %v1954
      %1962 = vmatpush.bf16.msra.mxu0 %v1901
      %1963 = vmatpush.bf16.msra.mxu0 %v1900
      %1964 = vmatmul.bf16.gmra.mxu0 %v1906
      %v1965 = vpop.f32.mrf.mxu0
      %v1966 = vadd.f32 0.0, %v1965
      %v1967 = vpop.f32.mrf.mxu0
      %v1968 = vadd.f32 0.0, %v1967
      %1969 = vmatmul.bf16.gmra.mxu0 %v1909
      %v1970 = vpop.f32.mrf.mxu0
      %v1971 = vadd.f32 0.0, %v1970
      %v1972 = vpop.f32.mrf.mxu0
      %v1973 = vadd.f32 0.0, %v1972
      %1974 = vmatmul.bf16.gmra.mxu0 %v1912
      %v1975 = vpop.f32.mrf.mxu0
      %v1976 = vadd.f32 0.0, %v1975
      %v1977 = vpop.f32.mrf.mxu0
      %v1978 = vadd.f32 0.0, %v1977
      %1979 = vmatmul.bf16.gmra.mxu0 %v1915
      %v1980 = vpop.f32.mrf.mxu0
      %v1981 = vadd.f32 0.0, %v1980
      %v1982 = vpop.f32.mrf.mxu0
      %v1983 = vadd.f32 0.0, %v1982
      %1984 = vmatmul.bf16.gmra.mxu0 %v1918
      %v1985 = vpop.f32.mrf.mxu0
      %v1986 = vadd.f32 0.0, %v1985
      %v1987 = vpop.f32.mrf.mxu0
      %v1988 = vadd.f32 0.0, %v1987
      %1989 = vmatmul.bf16.gmra.mxu0 %v1921
      %v1990 = vpop.f32.mrf.mxu0
      %v1991 = vadd.f32 0.0, %v1990
      %v1992 = vpop.f32.mrf.mxu0
      %v1993 = vadd.f32 0.0, %v1992
      %1994 = vmatmul.bf16.gmra.mxu0 %v1924
      %v1995 = vpop.f32.mrf.mxu0
      %v1996 = vadd.f32 0.0, %v1995
      %v1997 = vpop.f32.mrf.mxu0
      %v1998 = vadd.f32 0.0, %v1997
      %1999 = vmatmul.bf16.gmra.mxu0 %v1927
      %v2000 = vpop.f32.mrf.mxu0
      %v2001 = vadd.f32 0.0, %v2000
      %v2002 = vpop.f32.mrf.mxu0
      %v2003 = vadd.f32 0.0, %v2002
      %2004 = vmatmul.bf16.gmra.mxu0 %v1930
      %v2005 = vpop.f32.mrf.mxu0
      %v2006 = vadd.f32 0.0, %v2005
      %v2007 = vpop.f32.mrf.mxu0
      %v2008 = vadd.f32 0.0, %v2007
      %2009 = vmatmul.bf16.gmra.mxu0 %v1933
      %v2010 = vpop.f32.mrf.mxu0
      %v2011 = vadd.f32 0.0, %v2010
      %v2012 = vpop.f32.mrf.mxu0
      %v2013 = vadd.f32 0.0, %v2012
      %2014 = vmatmul.bf16.gmra.mxu0 %v1936
      %v2015 = vpop.f32.mrf.mxu0
      %v2016 = vadd.f32 0.0, %v2015
      %v2017 = vpop.f32.mrf.mxu0
      %v2018 = vadd.f32 0.0, %v2017
      %2019 = vmatmul.bf16.gmra.mxu0 %v1939
      %v2020 = vpop.f32.mrf.mxu0
      %v2021 = vadd.f32 0.0, %v2020
      %v2022 = vpop.f32.mrf.mxu0
      %v2023 = vadd.f32 0.0, %v2022
      %2024 = vmatmul.bf16.gmra.mxu0 %v1942
      %v2025 = vpop.f32.mrf.mxu0
      %v2026 = vadd.f32 0.0, %v2025
      %v2027 = vpop.f32.mrf.mxu0
      %v2028 = vadd.f32 0.0, %v2027
      %2029 = vmatmul.bf16.gmra.mxu0 %v1945
      %v2030 = vpop.f32.mrf.mxu0
      %v2031 = vadd.f32 0.0, %v2030
      %v2032 = vpop.f32.mrf.mxu0
      %v2033 = vadd.f32 0.0, %v2032
      %2034 = vmatmul.bf16.gmra.mxu0 %v1948
      %v2035 = vpop.f32.mrf.mxu0
      %v2036 = vadd.f32 0.0, %v2035
      %v2037 = vpop.f32.mrf.mxu0
      %v2038 = vadd.f32 0.0, %v2037
      %2039 = vmatmul.bf16.gmra.mxu0 %v1951
      %v2040 = vpop.f32.mrf.mxu0
      %v2041 = vadd.f32 0.0, %v2040
      %v2042 = vpop.f32.mrf.mxu0
      %v2043 = vadd.f32 0.0, %v2042
      %2044 = vdwg.mxu0
      %v2045 = vadd.f32 %v1372, %v1966
      %v2046 = vadd.f32 %v1373, %v1968
      %v2047 = vadd.f32 %v1374, %v1971
      %v2048 = vadd.f32 %v1375, %v1973
      %v2049 = vadd.f32 %v1376, %v1976
      %v2050 = vadd.f32 %v1377, %v1978
      %v2051 = vadd.f32 %v1378, %v1981
      %v2052 = vadd.f32 %v1379, %v1983
      %v2053 = vadd.f32 %v1380, %v1986
      %v2054 = vadd.f32 %v1381, %v1988
      %v2055 = vadd.f32 %v1382, %v1991
      %v2056 = vadd.f32 %v1383, %v1993
      %v2057 = vadd.f32 %v1384, %v1996
      %v2058 = vadd.f32 %v1385, %v1998
      %v2059 = vadd.f32 %v1386, %v2001
      %v2060 = vadd.f32 %v1387, %v2003
      %v2061 = vadd.f32 %v1388, %v2006
      %v2062 = vadd.f32 %v1389, %v2008
      %v2063 = vadd.f32 %v1390, %v2011
      %v2064 = vadd.f32 %v1391, %v2013
      %v2065 = vadd.f32 %v1392, %v2016
      %v2066 = vadd.f32 %v1393, %v2018
      %v2067 = vadd.f32 %v1394, %v2021
      %v2068 = vadd.f32 %v1395, %v2023
      %v2069 = vadd.f32 %v1396, %v2026
      %v2070 = vadd.f32 %v1397, %v2028
      %v2071 = vadd.f32 %v1398, %v2031
      %v2072 = vadd.f32 %v1399, %v2033
      %v2073 = vadd.f32 %v1400, %v2036
      %v2074 = vadd.f32 %v1401, %v2038
      %v2075 = vadd.f32 %v1402, %v2041
      %v2076 = vadd.f32 %v1403, %v2043
      %v2077 = vld [vmem:[%s2] sm:$0x1]
      %v2079 = vperm.slane %v2077, 0
      %v2081 = vadd.f32 %v2045, %v2079
      %v2082 = vadd.f32 %v2046, %v2079
      %v2083 = vadd.f32 %v2047, %v2079
      %v2084 = vadd.f32 %v2048, %v2079
      %v2085 = vadd.f32 %v2049, %v2079
      %v2086 = vadd.f32 %v2050, %v2079
      %v2087 = vadd.f32 %v2051, %v2079
      %v2088 = vadd.f32 %v2052, %v2079
      %v2089 = vadd.f32 %v2053, %v2079
      %v2090 = vadd.f32 %v2054, %v2079
      %v2091 = vadd.f32 %v2055, %v2079
      %v2092 = vadd.f32 %v2056, %v2079
      %v2093 = vadd.f32 %v2057, %v2079
      %v2094 = vadd.f32 %v2058, %v2079
      %v2095 = vadd.f32 %v2059, %v2079
      %v2096 = vadd.f32 %v2060, %v2079
      %v2097 = vadd.f32 %v2061, %v2079
      %v2098 = vadd.f32 %v2062, %v2079
      %v2099 = vadd.f32 %v2063, %v2079
      %v2100 = vadd.f32 %v2064, %v2079
      %v2101 = vadd.f32 %v2065, %v2079
      %v2102 = vadd.f32 %v2066, %v2079
      %v2103 = vadd.f32 %v2067, %v2079
      %v2104 = vadd.f32 %v2068, %v2079
      %v2105 = vadd.f32 %v2069, %v2079
      %v2106 = vadd.f32 %v2070, %v2079
      %v2107 = vadd.f32 %v2071, %v2079
      %v2108 = vadd.f32 %v2072, %v2079
      %v2109 = vadd.f32 %v2073, %v2079
      %v2110 = vadd.f32 %v2074, %v2079
      %v2111 = vadd.f32 %v2075, %v2079
      %v2112 = vadd.f32 %v2076, %v2079
      %v2113 = vpack.c.bf16 %v2081, %v2081
      %v2114 = vpack.c.bf16 %v2082, %v2082
      %v2115 = vpack.c.bf16 %v2083, %v2083
      %v2116 = vpack.c.bf16 %v2084, %v2084
      %v2117 = vpack.c.bf16 %v2085, %v2085
      %v2118 = vpack.c.bf16 %v2086, %v2086
      %v2119 = vpack.c.bf16 %v2087, %v2087
      %v2120 = vpack.c.bf16 %v2088, %v2088
      %v2121 = vpack.c.bf16 %v2089, %v2089
      %v2122 = vpack.c.bf16 %v2090, %v2090
      %v2123 = vpack.c.bf16 %v2091, %v2091
      %v2124 = vpack.c.bf16 %v2092, %v2092
      %v2125 = vpack.c.bf16 %v2093, %v2093
      %v2126 = vpack.c.bf16 %v2094, %v2094
      %v2127 = vpack.c.bf16 %v2095, %v2095
      %v2128 = vpack.c.bf16 %v2096, %v2096
      %v2129 = vpack.c.bf16 %v2097, %v2097
      %v2130 = vpack.c.bf16 %v2098, %v2098
      %v2131 = vpack.c.bf16 %v2099, %v2099
      %v2132 = vpack.c.bf16 %v2100, %v2100
      %v2133 = vpack.c.bf16 %v2101, %v2101
      %v2134 = vpack.c.bf16 %v2102, %v2102
      %v2135 = vpack.c.bf16 %v2103, %v2103
      %v2136 = vpack.c.bf16 %v2104, %v2104
      %v2137 = vpack.c.bf16 %v2105, %v2105
      %v2138 = vpack.c.bf16 %v2106, %v2106
      %v2139 = vpack.c.bf16 %v2107, %v2107
      %v2140 = vpack.c.bf16 %v2108, %v2108
      %v2141 = vpack.c.bf16 %v2109, %v2109
      %v2142 = vpack.c.bf16 %v2110, %v2110
      %v2143 = vpack.c.bf16 %v2111, %v2111
      %v2144 = vpack.c.bf16 %v2112, %v2112
      %vm2145 = vcmask 125952
      %2146 = vst.msk [vmem:[%s204] sm:$0xf] %vm2145, %v2113
      %2147 = vst.msk [vmem:[%s204 + $0x4] sm:$0xf] %vm2145, %v2114
      %2148 = vst.msk [vmem:[%s204 + $0x8] sm:$0xf] %vm2145, %v2115
      %2149 = vst.msk [vmem:[%s204 + $0xc] sm:$0xf] %vm2145, %v2116
      %2150 = vst.msk [vmem:[%s204 + $0x10] sm:$0xf] %vm2145, %v2117
      %2151 = vst.msk [vmem:[%s204 + $0x14] sm:$0xf] %vm2145, %v2118
      %2152 = vst.msk [vmem:[%s204 + $0x18] sm:$0xf] %vm2145, %v2119
      %2153 = vst.msk [vmem:[%s204 + $0x1c] sm:$0xf] %vm2145, %v2120
      %2154 = vst.msk [vmem:[%s204 + $0x20] sm:$0xf] %vm2145, %v2121
      %2155 = vst.msk [vmem:[%s204 + $0x24] sm:$0xf] %vm2145, %v2122
      %2156 = vst.msk [vmem:[%s204 + $0x28] sm:$0xf] %vm2145, %v2123
      %2157 = vst.msk [vmem:[%s204 + $0x2c] sm:$0xf] %vm2145, %v2124
      %2158 = vst.msk [vmem:[%s204 + $0x30] sm:$0xf] %vm2145, %v2125
      %2159 = vst.msk [vmem:[%s204 + $0x34] sm:$0xf] %vm2145, %v2126
      %2160 = vst.msk [vmem:[%s204 + $0x38] sm:$0xf] %vm2145, %v2127
      %2161 = vst.msk [vmem:[%s204 + $0x3c] sm:$0xf] %vm2145, %v2128
      %2162 = vst.msk [vmem:[%s204 + $0x40] sm:$0xf] %vm2145, %v2129
      %2163 = vst.msk [vmem:[%s204 + $0x44] sm:$0xf] %vm2145, %v2130
      %2164 = vst.msk [vmem:[%s204 + $0x48] sm:$0xf] %vm2145, %v2131
      %2165 = vst.msk [vmem:[%s204 + $0x4c] sm:$0xf] %vm2145, %v2132
      %2166 = vst.msk [vmem:[%s204 + $0x50] sm:$0xf] %vm2145, %v2133
      %2167 = vst.msk [vmem:[%s204 + $0x54] sm:$0xf] %vm2145, %v2134
      %2168 = vst.msk [vmem:[%s204 + $0x58] sm:$0xf] %vm2145, %v2135
      %2169 = vst.msk [vmem:[%s204 + $0x5c] sm:$0xf] %vm2145, %v2136
      %2170 = vst.msk [vmem:[%s204 + $0x60] sm:$0xf] %vm2145, %v2137
      %2171 = vst.msk [vmem:[%s204 + $0x64] sm:$0xf] %vm2145, %v2138
      %2172 = vst.msk [vmem:[%s204 + $0x68] sm:$0xf] %vm2145, %v2139
      %2173 = vst.msk [vmem:[%s204 + $0x6c] sm:$0xf] %vm2145, %v2140
      %2174 = vst.msk [vmem:[%s204 + $0x70] sm:$0xf] %vm2145, %v2141
      %2175 = vst.msk [vmem:[%s204 + $0x74] sm:$0xf] %vm2145, %v2142
      %2176 = vst.msk [vmem:[%s204 + $0x78] sm:$0xf] %vm2145, %v2143
      %2177 = vst.msk [vmem:[%s204 + $0x7c] sm:$0xf] %vm2145, %v2144
      %vm2178 = vcmask 130048
      %v2179 = vsel %vm2178, %v2081, 0.0
      %v2180 = vsel %vm2178, %v2082, 0.0
      %v2181 = vadd.f32 %v2179, %v2180
      %v2182 = vsel %vm2178, %v2083, 0.0
      %v2183 = vadd.f32 %v2181, %v2182
      %v2184 = vsel %vm2178, %v2084, 0.0
      %v2185 = vadd.f32 %v2183, %v2184
      %v2186 = vsel %vm2178, %v2085, 0.0
      %v2187 = vadd.f32 %v2185, %v2186
      %v2188 = vsel %vm2178, %v2086, 0.0
      %v2189 = vadd.f32 %v2187, %v2188
      %v2190 = vsel %vm2178, %v2087, 0.0
      %v2191 = vadd.f32 %v2189, %v2190
      %v2192 = vsel %vm2178, %v2088, 0.0
      %v2193 = vadd.f32 %v2191, %v2192
      %v2194 = vsel %vm2178, %v2089, 0.0
      %v2195 = vadd.f32 %v2193, %v2194
      %v2196 = vsel %vm2178, %v2090, 0.0
      %v2197 = vadd.f32 %v2195, %v2196
      %v2198 = vsel %vm2178, %v2091, 0.0
      %v2199 = vadd.f32 %v2197, %v2198
      %v2200 = vsel %vm2178, %v2092, 0.0
      %v2201 = vadd.f32 %v2199, %v2200
      %v2202 = vsel %vm2178, %v2093, 0.0
      %v2203 = vadd.f32 %v2201, %v2202
      %v2204 = vsel %vm2178, %v2094, 0.0
      %v2205 = vadd.f32 %v2203, %v2204
      %v2206 = vsel %vm2178, %v2095, 0.0
      %v2207 = vadd.f32 %v2205, %v2206
      %v2208 = vsel %vm2178, %v2096, 0.0
      %v2209 = vadd.f32 %v2207, %v2208
      %v2210 = vsel %vm2178, %v2097, 0.0
      %v2211 = vadd.f32 %v2209, %v2210
      %v2212 = vsel %vm2178, %v2098, 0.0
      %v2213 = vadd.f32 %v2211, %v2212
      %v2214 = vsel %vm2178, %v2099, 0.0
      %v2215 = vadd.f32 %v2213, %v2214
      %v2216 = vsel %vm2178, %v2100, 0.0
      %v2217 = vadd.f32 %v2215, %v2216
      %v2218 = vsel %vm2178, %v2101, 0.0
      %v2219 = vadd.f32 %v2217, %v2218
      %v2220 = vsel %vm2178, %v2102, 0.0
      %v2221 = vadd.f32 %v2219, %v2220
      %v2222 = vsel %vm2178, %v2103, 0.0
      %v2223 = vadd.f32 %v2221, %v2222
      %v2224 = vsel %vm2178, %v2104, 0.0
      %v2225 = vadd.f32 %v2223, %v2224
      %v2226 = vsel %vm2178, %v2105, 0.0
      %v2227 = vadd.f32 %v2225, %v2226
      %v2228 = vsel %vm2178, %v2106, 0.0
      %v2229 = vadd.f32 %v2227, %v2228
      %v2230 = vsel %vm2178, %v2107, 0.0
      %v2231 = vadd.f32 %v2229, %v2230
      %v2232 = vsel %vm2178, %v2108, 0.0
      %v2233 = vadd.f32 %v2231, %v2232
      %v2234 = vsel %vm2178, %v2109, 0.0
      %v2235 = vadd.f32 %v2233, %v2234
      %v2236 = vsel %vm2178, %v2110, 0.0
      %v2237 = vadd.f32 %v2235, %v2236
      %v2238 = vsel %vm2178, %v2111, 0.0
      %v2239 = vadd.f32 %v2237, %v2238
      %v2240 = vsel %vm2178, %v2112, 0.0
      %v2241 = vadd.f32 %v2239, %v2240
      %v2242 = vrot.slane %v2241, 4
      %v2243 = vadd.f32 %v2241, %v2242
      %v2244 = vrot.slane %v2243, 2
      %v2245 = vadd.f32 %v2243, %v2244
      %v2246 = vrot.slane %v2245, 1
      %v2247 = vadd.f32 %v2245, %v2246
      %v2248 = vadd.f32 %v2247, 0.0
      %v2249 = vmul.f32 %v2081, %v2081
      %v2250 = vmul.f32 %v2082, %v2082
      %v2251 = vmul.f32 %v2083, %v2083
      %v2252 = vmul.f32 %v2084, %v2084
      %v2253 = vmul.f32 %v2085, %v2085
      %v2254 = vmul.f32 %v2086, %v2086
      %v2255 = vmul.f32 %v2087, %v2087
      %v2256 = vmul.f32 %v2088, %v2088
      %v2257 = vmul.f32 %v2089, %v2089
      %v2258 = vmul.f32 %v2090, %v2090
      %v2259 = vmul.f32 %v2091, %v2091
      %v2260 = vmul.f32 %v2092, %v2092
      %v2261 = vmul.f32 %v2093, %v2093
      %v2262 = vmul.f32 %v2094, %v2094
      %v2263 = vmul.f32 %v2095, %v2095
      %v2264 = vmul.f32 %v2096, %v2096
      %v2265 = vmul.f32 %v2097, %v2097
      %v2266 = vmul.f32 %v2098, %v2098
      %v2267 = vmul.f32 %v2099, %v2099
      %v2268 = vmul.f32 %v2100, %v2100
      %v2269 = vmul.f32 %v2101, %v2101
      %v2270 = vmul.f32 %v2102, %v2102
      %v2271 = vmul.f32 %v2103, %v2103
      %v2272 = vmul.f32 %v2104, %v2104
      %v2273 = vmul.f32 %v2105, %v2105
      %v2274 = vmul.f32 %v2106, %v2106
      %v2275 = vmul.f32 %v2107, %v2107
      %v2276 = vmul.f32 %v2108, %v2108
      %v2277 = vmul.f32 %v2109, %v2109
      %v2278 = vmul.f32 %v2110, %v2110
      %v2279 = vmul.f32 %v2111, %v2111
      %v2280 = vmul.f32 %v2112, %v2112
      %v2281 = vsel %vm2178, %v2249, 0.0
      %v2282 = vsel %vm2178, %v2250, 0.0
      %v2283 = vadd.f32 %v2281, %v2282
      %v2284 = vsel %vm2178, %v2251, 0.0
      %v2285 = vadd.f32 %v2283, %v2284
      %v2286 = vsel %vm2178, %v2252, 0.0
      %v2287 = vadd.f32 %v2285, %v2286
      %v2288 = vsel %vm2178, %v2253, 0.0
      %v2289 = vadd.f32 %v2287, %v2288
      %v2290 = vsel %vm2178, %v2254, 0.0
      %v2291 = vadd.f32 %v2289, %v2290
      %v2292 = vsel %vm2178, %v2255, 0.0
      %v2293 = vadd.f32 %v2291, %v2292
      %v2294 = vsel %vm2178, %v2256, 0.0
      %v2295 = vadd.f32 %v2293, %v2294
      %v2296 = vsel %vm2178, %v2257, 0.0
      %v2297 = vadd.f32 %v2295, %v2296
      %v2298 = vsel %vm2178, %v2258, 0.0
      %v2299 = vadd.f32 %v2297, %v2298
      %v2300 = vsel %vm2178, %v2259, 0.0
      %v2301 = vadd.f32 %v2299, %v2300
      %v2302 = vsel %vm2178, %v2260, 0.0
      %v2303 = vadd.f32 %v2301, %v2302
      %v2304 = vsel %vm2178, %v2261, 0.0
      %v2305 = vadd.f32 %v2303, %v2304
      %v2306 = vsel %vm2178, %v2262, 0.0
      %v2307 = vadd.f32 %v2305, %v2306
      %v2308 = vsel %vm2178, %v2263, 0.0
      %v2309 = vadd.f32 %v2307, %v2308
      %v2310 = vsel %vm2178, %v2264, 0.0
      %v2311 = vadd.f32 %v2309, %v2310
      %v2312 = vsel %vm2178, %v2265, 0.0
      %v2313 = vadd.f32 %v2311, %v2312
      %v2314 = vsel %vm2178, %v2266, 0.0
      %v2315 = vadd.f32 %v2313, %v2314
      %v2316 = vsel %vm2178, %v2267, 0.0
      %v2317 = vadd.f32 %v2315, %v2316
      %v2318 = vsel %vm2178, %v2268, 0.0
      %v2319 = vadd.f32 %v2317, %v2318
      %v2320 = vsel %vm2178, %v2269, 0.0
      %v2321 = vadd.f32 %v2319, %v2320
      %v2322 = vsel %vm2178, %v2270, 0.0
      %v2323 = vadd.f32 %v2321, %v2322
      %v2324 = vsel %vm2178, %v2271, 0.0
      %v2325 = vadd.f32 %v2323, %v2324
      %v2326 = vsel %vm2178, %v2272, 0.0
      %v2327 = vadd.f32 %v2325, %v2326
      %v2328 = vsel %vm2178, %v2273, 0.0
      %v2329 = vadd.f32 %v2327, %v2328
      %v2330 = vsel %vm2178, %v2274, 0.0
      %v2331 = vadd.f32 %v2329, %v2330
      %v2332 = vsel %vm2178, %v2275, 0.0
      %v2333 = vadd.f32 %v2331, %v2332
      %v2334 = vsel %vm2178, %v2276, 0.0
      %v2335 = vadd.f32 %v2333, %v2334
      %v2336 = vsel %vm2178, %v2277, 0.0
      %v2337 = vadd.f32 %v2335, %v2336
      %v2338 = vsel %vm2178, %v2278, 0.0
      %v2339 = vadd.f32 %v2337, %v2338
      %v2340 = vsel %vm2178, %v2279, 0.0
      %v2341 = vadd.f32 %v2339, %v2340
      %v2342 = vsel %vm2178, %v2280, 0.0
      %v2343 = vadd.f32 %v2341, %v2342
      %v2344 = vrot.slane %v2343, 4
      %v2345 = vadd.f32 %v2343, %v2344
      %v2346 = vrot.slane %v2345, 2
      %v2347 = vadd.f32 %v2345, %v2346
      %v2348 = vrot.slane %v2347, 1
      %v2349 = vadd.f32 %v2347, %v2348
      %v2350 = vadd.f32 %v2349, 0.0
      %v2351 = vld [vmem:[%s199] sm:$0xf]
      %v2352 = vld [vmem:[%s199 + $0x4] sm:$0xf]
      %v2353 = vld [vmem:[%s199 + $0x8] sm:$0x1]
      %v2354 = vld [vmem:[%s199 + $0xc] sm:$0xf]
      %v2355 = vld [vmem:[%s199 + $0x10] sm:$0xf]
      %v2356 = vld [vmem:[%s199 + $0x14] sm:$0x1]
      %v2357 = vld [vmem:[%s199 + $0x18] sm:$0xf]
      %v2358 = vld [vmem:[%s199 + $0x1c] sm:$0xf]
      %v2359 = vld [vmem:[%s199 + $0x20] sm:$0x1]
      %v2360 = vld [vmem:[%s199 + $0x24] sm:$0xf]
      %v2361 = vld [vmem:[%s199 + $0x28] sm:$0xf]
      %v2362 = vld [vmem:[%s199 + $0x2c] sm:$0x1]
      %v2363 = vld [vmem:[%s199 + $0x30] sm:$0xf]
      %v2364 = vld [vmem:[%s199 + $0x34] sm:$0xf]
      %v2365 = vld [vmem:[%s199 + $0x38] sm:$0x1]
      %v2366 = vld [vmem:[%s199 + $0x3c] sm:$0xf]
      %v2367 = vld [vmem:[%s199 + $0x40] sm:$0xf]
      %v2368 = vld [vmem:[%s199 + $0x44] sm:$0x1]
      %v2369 = vld [vmem:[%s199 + $0x48] sm:$0xf]
      %v2370 = vld [vmem:[%s199 + $0x4c] sm:$0xf]
      %v2371 = vld [vmem:[%s199 + $0x50] sm:$0x1]
      %v2372 = vld [vmem:[%s199 + $0x54] sm:$0xf]
      %v2373 = vld [vmem:[%s199 + $0x58] sm:$0xf]
      %v2374 = vld [vmem:[%s199 + $0x5c] sm:$0x1]
      %v2375 = vld [vmem:[%s199 + $0x60] sm:$0xf]
      %v2376 = vld [vmem:[%s199 + $0x64] sm:$0xf]
      %v2377 = vld [vmem:[%s199 + $0x68] sm:$0x1]
      %v2378 = vld [vmem:[%s199 + $0x6c] sm:$0xf]
      %v2379 = vld [vmem:[%s199 + $0x70] sm:$0xf]
      %v2380 = vld [vmem:[%s199 + $0x74] sm:$0x1]
      %v2381 = vld [vmem:[%s199 + $0x78] sm:$0xf]
      %v2382 = vld [vmem:[%s199 + $0x7c] sm:$0xf]
      %v2383 = vld [vmem:[%s199 + $0x80] sm:$0x1]
      %v2384 = vld [vmem:[%s199 + $0x84] sm:$0xf]
      %v2385 = vld [vmem:[%s199 + $0x88] sm:$0xf]
      %v2386 = vld [vmem:[%s199 + $0x8c] sm:$0x1]
      %v2387 = vld [vmem:[%s199 + $0x90] sm:$0xf]
      %v2388 = vld [vmem:[%s199 + $0x94] sm:$0xf]
      %v2389 = vld [vmem:[%s199 + $0x98] sm:$0x1]
      %v2390 = vld [vmem:[%s199 + $0x9c] sm:$0xf]
      %v2391 = vld [vmem:[%s199 + $0xa0] sm:$0xf]
      %v2392 = vld [vmem:[%s199 + $0xa4] sm:$0x1]
      %v2393 = vld [vmem:[%s199 + $0xa8] sm:$0xf]
      %v2394 = vld [vmem:[%s199 + $0xac] sm:$0xf]
      %v2395 = vld [vmem:[%s199 + $0xb0] sm:$0x1]
      %v2396 = vld [vmem:[%s199 + $0xb4] sm:$0xf]
      %v2397 = vld [vmem:[%s199 + $0xb8] sm:$0xf]
      %v2398 = vld [vmem:[%s199 + $0xbc] sm:$0x1]
      %v2400 = vshrl.u32 %v2351, 16
      %v2402 = vrot.slane %v2400, 4
      %v2403 = vshll.u32 %v2351, 16
      %v2405 = vrot.slane %v2403, 5
      %v2406 = vor.u32 %v2402, %v2405
      %v2407 = vrot.slane %v2406, 4
      %v2409 = vshll.u32 %v2352, 16
      %v2411 = vrot.slane %v2409, 5
      %v2412 = vsel %vm265, %v2407, %v2411
      %v2413 = vshrl.u32 %v2352, 16
      %v2415 = vrot.slane %v2413, 4
      %v2416 = vor.u32 %v2415, %v2411
      %v2417 = vrot.slane %v2416, 4
      %v2419 = vshll.u32 %v2353, 16
      %v2421 = vrot.slane %v2419, 5
      %v2422 = vsel %vm265, %v2417, %v2421
      %v2424 = vshrl.u32 %v2354, 16
      %v2426 = vrot.slane %v2424, 4
      %v2427 = vshll.u32 %v2354, 16
      %v2429 = vrot.slane %v2427, 5
      %v2430 = vor.u32 %v2426, %v2429
      %v2431 = vrot.slane %v2430, 4
      %v2433 = vshll.u32 %v2355, 16
      %v2435 = vrot.slane %v2433, 5
      %v2436 = vsel %vm265, %v2431, %v2435
      %v2437 = vshrl.u32 %v2355, 16
      %v2439 = vrot.slane %v2437, 4
      %v2440 = vor.u32 %v2439, %v2435
      %v2441 = vrot.slane %v2440, 4
      %v2443 = vshll.u32 %v2356, 16
      %v2445 = vrot.slane %v2443, 5
      %v2446 = vsel %vm265, %v2441, %v2445
      %v2448 = vshrl.u32 %v2357, 16
      %v2450 = vrot.slane %v2448, 4
      %v2451 = vshll.u32 %v2357, 16
      %v2453 = vrot.slane %v2451, 5
      %v2454 = vor.u32 %v2450, %v2453
      %v2455 = vrot.slane %v2454, 4
      %v2457 = vshll.u32 %v2358, 16
      %v2459 = vrot.slane %v2457, 5
      %v2460 = vsel %vm265, %v2455, %v2459
      %v2461 = vshrl.u32 %v2358, 16
      %v2463 = vrot.slane %v2461, 4
      %v2464 = vor.u32 %v2463, %v2459
      %v2465 = vrot.slane %v2464, 4
      %v2467 = vshll.u32 %v2359, 16
      %v2469 = vrot.slane %v2467, 5
      %v2470 = vsel %vm265, %v2465, %v2469
      %v2472 = vshrl.u32 %v2360, 16
      %v2474 = vrot.slane %v2472, 4
      %v2475 = vshll.u32 %v2360, 16
      %v2477 = vrot.slane %v2475, 5
      %v2478 = vor.u32 %v2474, %v2477
      %v2479 = vrot.slane %v2478, 4
      %v2481 = vshll.u32 %v2361, 16
      %v2483 = vrot.slane %v2481, 5
      %v2484 = vsel %vm265, %v2479, %v2483
      %v2485 = vshrl.u32 %v2361, 16
      %v2487 = vrot.slane %v2485, 4
      %v2488 = vor.u32 %v2487, %v2483
      %v2489 = vrot.slane %v2488, 4
      %v2491 = vshll.u32 %v2362, 16
      %v2493 = vrot.slane %v2491, 5
      %v2494 = vsel %vm265, %v2489, %v2493
      %v2496 = vshrl.u32 %v2363, 16
      %v2498 = vrot.slane %v2496, 4
      %v2499 = vshll.u32 %v2363, 16
      %v2501 = vrot.slane %v2499, 5
      %v2502 = vor.u32 %v2498, %v2501
      %v2503 = vrot.slane %v2502, 4
      %v2505 = vshll.u32 %v2364, 16
      %v2507 = vrot.slane %v2505, 5
      %v2508 = vsel %vm265, %v2503, %v2507
      %v2509 = vshrl.u32 %v2364, 16
      %v2511 = vrot.slane %v2509, 4
      %v2512 = vor.u32 %v2511, %v2507
      %v2513 = vrot.slane %v2512, 4
      %v2515 = vshll.u32 %v2365, 16
      %v2517 = vrot.slane %v2515, 5
      %v2518 = vsel %vm265, %v2513, %v2517
      %v2520 = vshrl.u32 %v2366, 16
      %v2522 = vrot.slane %v2520, 4
      %v2523 = vshll.u32 %v2366, 16
      %v2525 = vrot.slane %v2523, 5
      %v2526 = vor.u32 %v2522, %v2525
      %v2527 = vrot.slane %v2526, 4
      %v2529 = vshll.u32 %v2367, 16
      %v2531 = vrot.slane %v2529, 5
      %v2532 = vsel %vm265, %v2527, %v2531
      %v2533 = vshrl.u32 %v2367, 16
      %v2535 = vrot.slane %v2533, 4
      %v2536 = vor.u32 %v2535, %v2531
      %v2537 = vrot.slane %v2536, 4
      %v2539 = vshll.u32 %v2368, 16
      %v2541 = vrot.slane %v2539, 5
      %v2542 = vsel %vm265, %v2537, %v2541
      %v2544 = vshrl.u32 %v2369, 16
      %v2546 = vrot.slane %v2544, 4
      %v2547 = vshll.u32 %v2369, 16
      %v2549 = vrot.slane %v2547, 5
      %v2550 = vor.u32 %v2546, %v2549
      %v2551 = vrot.slane %v2550, 4
      %v2553 = vshll.u32 %v2370, 16
      %v2555 = vrot.slane %v2553, 5
      %v2556 = vsel %vm265, %v2551, %v2555
      %v2557 = vshrl.u32 %v2370, 16
      %v2559 = vrot.slane %v2557, 4
      %v2560 = vor.u32 %v2559, %v2555
      %v2561 = vrot.slane %v2560, 4
      %v2563 = vshll.u32 %v2371, 16
      %v2565 = vrot.slane %v2563, 5
      %v2566 = vsel %vm265, %v2561, %v2565
      %v2568 = vshrl.u32 %v2372, 16
      %v2570 = vrot.slane %v2568, 4
      %v2571 = vshll.u32 %v2372, 16
      %v2573 = vrot.slane %v2571, 5
      %v2574 = vor.u32 %v2570, %v2573
      %v2575 = vrot.slane %v2574, 4
      %v2577 = vshll.u32 %v2373, 16
      %v2579 = vrot.slane %v2577, 5
      %v2580 = vsel %vm265, %v2575, %v2579
      %v2581 = vshrl.u32 %v2373, 16
      %v2583 = vrot.slane %v2581, 4
      %v2584 = vor.u32 %v2583, %v2579
      %v2585 = vrot.slane %v2584, 4
      %v2587 = vshll.u32 %v2374, 16
      %v2589 = vrot.slane %v2587, 5
      %v2590 = vsel %vm265, %v2585, %v2589
      %v2592 = vshrl.u32 %v2375, 16
      %v2594 = vrot.slane %v2592, 4
      %v2595 = vshll.u32 %v2375, 16
      %v2597 = vrot.slane %v2595, 5
      %v2598 = vor.u32 %v2594, %v2597
      %v2599 = vrot.slane %v2598, 4
      %v2601 = vshll.u32 %v2376, 16
      %v2603 = vrot.slane %v2601, 5
      %v2604 = vsel %vm265, %v2599, %v2603
      %v2605 = vshrl.u32 %v2376, 16
      %v2607 = vrot.slane %v2605, 4
      %v2608 = vor.u32 %v2607, %v2603
      %v2609 = vrot.slane %v2608, 4
      %v2611 = vshll.u32 %v2377, 16
      %v2613 = vrot.slane %v2611, 5
      %v2614 = vsel %vm265, %v2609, %v2613
      %v2616 = vshrl.u32 %v2378, 16
      %v2618 = vrot.slane %v2616, 4
      %v2619 = vshll.u32 %v2378, 16
      %v2621 = vrot.slane %v2619, 5
      %v2622 = vor.u32 %v2618, %v2621
      %v2623 = vrot.slane %v2622, 4
      %v2625 = vshll.u32 %v2379, 16
      %v2627 = vrot.slane %v2625, 5
      %v2628 = vsel %vm265, %v2623, %v2627
      %v2629 = vshrl.u32 %v2379, 16
      %v2631 = vrot.slane %v2629, 4
      %v2632 = vor.u32 %v2631, %v2627
      %v2633 = vrot.slane %v2632, 4
      %v2635 = vshll.u32 %v2380, 16
      %v2637 = vrot.slane %v2635, 5
      %v2638 = vsel %vm265, %v2633, %v2637
      %v2640 = vshrl.u32 %v2381, 16
      %v2642 = vrot.slane %v2640, 4
      %v2643 = vshll.u32 %v2381, 16
      %v2645 = vrot.slane %v2643, 5
      %v2646 = vor.u32 %v2642, %v2645
      %v2647 = vrot.slane %v2646, 4
      %v2649 = vshll.u32 %v2382, 16
      %v2651 = vrot.slane %v2649, 5
      %v2652 = vsel %vm265, %v2647, %v2651
      %v2653 = vshrl.u32 %v2382, 16
      %v2655 = vrot.slane %v2653, 4
      %v2656 = vor.u32 %v2655, %v2651
      %v2657 = vrot.slane %v2656, 4
      %v2659 = vshll.u32 %v2383, 16
      %v2661 = vrot.slane %v2659, 5
      %v2662 = vsel %vm265, %v2657, %v2661
      %v2664 = vshrl.u32 %v2384, 16
      %v2666 = vrot.slane %v2664, 4
      %v2667 = vshll.u32 %v2384, 16
      %v2669 = vrot.slane %v2667, 5
      %v2670 = vor.u32 %v2666, %v2669
      %v2671 = vrot.slane %v2670, 4
      %v2673 = vshll.u32 %v2385, 16
      %v2675 = vrot.slane %v2673, 5
      %v2676 = vsel %vm265, %v2671, %v2675
      %v2677 = vshrl.u32 %v2385, 16
      %v2679 = vrot.slane %v2677, 4
      %v2680 = vor.u32 %v2679, %v2675
      %v2681 = vrot.slane %v2680, 4
      %v2683 = vshll.u32 %v2386, 16
      %v2685 = vrot.slane %v2683, 5
      %v2686 = vsel %vm265, %v2681, %v2685
      %v2688 = vshrl.u32 %v2387, 16
      %v2690 = vrot.slane %v2688, 4
      %v2691 = vshll.u32 %v2387, 16
      %v2693 = vrot.slane %v2691, 5
      %v2694 = vor.u32 %v2690, %v2693
      %v2695 = vrot.slane %v2694, 4
      %v2697 = vshll.u32 %v2388, 16
      %v2699 = vrot.slane %v2697, 5
      %v2700 = vsel %vm265, %v2695, %v2699
      %v2701 = vshrl.u32 %v2388, 16
      %v2703 = vrot.slane %v2701, 4
      %v2704 = vor.u32 %v2703, %v2699
      %v2705 = vrot.slane %v2704, 4
      %v2707 = vshll.u32 %v2389, 16
      %v2709 = vrot.slane %v2707, 5
      %v2710 = vsel %vm265, %v2705, %v2709
      %v2712 = vshrl.u32 %v2390, 16
      %v2714 = vrot.slane %v2712, 4
      %v2715 = vshll.u32 %v2390, 16
      %v2717 = vrot.slane %v2715, 5
      %v2718 = vor.u32 %v2714, %v2717
      %v2719 = vrot.slane %v2718, 4
      %v2721 = vshll.u32 %v2391, 16
      %v2723 = vrot.slane %v2721, 5
      %v2724 = vsel %vm265, %v2719, %v2723
      %v2725 = vshrl.u32 %v2391, 16
      %v2727 = vrot.slane %v2725, 4
      %v2728 = vor.u32 %v2727, %v2723
      %v2729 = vrot.slane %v2728, 4
      %v2731 = vshll.u32 %v2392, 16
      %v2733 = vrot.slane %v2731, 5
      %v2734 = vsel %vm265, %v2729, %v2733
      %v2736 = vshrl.u32 %v2393, 16
      %v2738 = vrot.slane %v2736, 4
      %v2739 = vshll.u32 %v2393, 16
      %v2741 = vrot.slane %v2739, 5
      %v2742 = vor.u32 %v2738, %v2741
      %v2743 = vrot.slane %v2742, 4
      %v2745 = vshll.u32 %v2394, 16
      %v2747 = vrot.slane %v2745, 5
      %v2748 = vsel %vm265, %v2743, %v2747
      %v2749 = vshrl.u32 %v2394, 16
      %v2751 = vrot.slane %v2749, 4
      %v2752 = vor.u32 %v2751, %v2747
      %v2753 = vrot.slane %v2752, 4
      %v2755 = vshll.u32 %v2395, 16
      %v2757 = vrot.slane %v2755, 5
      %v2758 = vsel %vm265, %v2753, %v2757
      %v2760 = vshrl.u32 %v2396, 16
      %v2762 = vrot.slane %v2760, 4
      %v2763 = vshll.u32 %v2396, 16
      %v2765 = vrot.slane %v2763, 5
      %v2766 = vor.u32 %v2762, %v2765
      %v2767 = vrot.slane %v2766, 4
      %v2769 = vshll.u32 %v2397, 16
      %v2771 = vrot.slane %v2769, 5
      %v2772 = vsel %vm265, %v2767, %v2771
      %v2773 = vshrl.u32 %v2397, 16
      %v2775 = vrot.slane %v2773, 4
      %v2776 = vor.u32 %v2775, %v2771
      %v2777 = vrot.slane %v2776, 4
      %v2779 = vshll.u32 %v2398, 16
      %v2781 = vrot.slane %v2779, 5
      %v2782 = vsel %vm265, %v2777, %v2781
      %s2783 = scalar_lea.vmem %s1, 80
      %v2784 = vld [vmem:[%s2783] sm:$0xf]
      %v2785 = vld [vmem:[%s2783 + $0x4] sm:$0xf]
      %v2786 = vld [vmem:[%s2783 + $0x8] sm:$0xf]
      %v2787 = vld [vmem:[%s2783 + $0xc] sm:$0xf]
      %v2788 = vld [vmem:[%s2783 + $0x10] sm:$0x1]
      %v2789 = vld [vmem:[%s199] sm:$0xe]
      %v2790 = vld [vmem:[%s199 + $0xc] sm:$0xe]
      %v2791 = vld [vmem:[%s199 + $0x18] sm:$0xe]
      %v2792 = vld [vmem:[%s199 + $0x24] sm:$0xe]
      %v2793 = vld [vmem:[%s199 + $0x30] sm:$0xe]
      %v2794 = vld [vmem:[%s199 + $0x3c] sm:$0xe]
      %v2795 = vld [vmem:[%s199 + $0x48] sm:$0xe]
      %v2796 = vld [vmem:[%s199 + $0x54] sm:$0xe]
      %v2797 = vld [vmem:[%s199 + $0x60] sm:$0xe]
      %v2798 = vld [vmem:[%s199 + $0x6c] sm:$0xe]
      %v2799 = vld [vmem:[%s199 + $0x78] sm:$0xe]
      %v2800 = vld [vmem:[%s199 + $0x84] sm:$0xe]
      %v2801 = vld [vmem:[%s199 + $0x90] sm:$0xe]
      %v2802 = vld [vmem:[%s199 + $0x9c] sm:$0xe]
      %v2803 = vld [vmem:[%s199 + $0xa8] sm:$0xe]
      %v2804 = vld [vmem:[%s199 + $0xb4] sm:$0xe]
      %vm2853 = vcmask 1042432
      %vm2854 = vcmask 1046532
      %vm2855 = vmor %vm2853, %vm2854
      %v2856 = vrot.slane %v2789, 5
      %v2857 = vrot.slane %v2856, 4
      %v2858 = vrot.slane %v2352, 5
      %v2859 = vsel %vm2855, %v2857, %v2858
      %v2860 = vrot.slane %v2858, 4
      %v2861 = vrot.slane %v2353, 5
      %v2862 = vsel %vm2855, %v2860, %v2861
      %v2863 = vrot.slane %v2790, 5
      %v2864 = vrot.slane %v2863, 4
      %v2865 = vrot.slane %v2355, 5
      %v2866 = vsel %vm2855, %v2864, %v2865
      %v2867 = vrot.slane %v2865, 4
      %v2868 = vrot.slane %v2356, 5
      %v2869 = vsel %vm2855, %v2867, %v2868
      %v2870 = vrot.slane %v2791, 5
      %v2871 = vrot.slane %v2870, 4
      %v2872 = vrot.slane %v2358, 5
      %v2873 = vsel %vm2855, %v2871, %v2872
      %v2874 = vrot.slane %v2872, 4
      %v2875 = vrot.slane %v2359, 5
      %v2876 = vsel %vm2855, %v2874, %v2875
      %v2877 = vrot.slane %v2792, 5
      %v2878 = vrot.slane %v2877, 4
      %v2879 = vrot.slane %v2361, 5
      %v2880 = vsel %vm2855, %v2878, %v2879
      %v2881 = vrot.slane %v2879, 4
      %v2882 = vrot.slane %v2362, 5
      %v2883 = vsel %vm2855, %v2881, %v2882
      %v2884 = vrot.slane %v2793, 5
      %v2885 = vrot.slane %v2884, 4
      %v2886 = vrot.slane %v2364, 5
      %v2887 = vsel %vm2855, %v2885, %v2886
      %v2888 = vrot.slane %v2886, 4
      %v2889 = vrot.slane %v2365, 5
      %v2890 = vsel %vm2855, %v2888, %v2889
      %v2891 = vrot.slane %v2794, 5
      %v2892 = vrot.slane %v2891, 4
      %v2893 = vrot.slane %v2367, 5
      %v2894 = vsel %vm2855, %v2892, %v2893
      %v2895 = vrot.slane %v2893, 4
      %v2896 = vrot.slane %v2368, 5
      %v2897 = vsel %vm2855, %v2895, %v2896
      %v2898 = vrot.slane %v2795, 5
      %v2899 = vrot.slane %v2898, 4
      %v2900 = vrot.slane %v2370, 5
      %v2901 = vsel %vm2855, %v2899, %v2900
      %v2902 = vrot.slane %v2900, 4
      %v2903 = vrot.slane %v2371, 5
      %v2904 = vsel %vm2855, %v2902, %v2903
      %v2905 = vrot.slane %v2796, 5
      %v2906 = vrot.slane %v2905, 4
      %v2907 = vrot.slane %v2373, 5
      %v2908 = vsel %vm2855, %v2906, %v2907
      %v2909 = vrot.slane %v2907, 4
      %v2910 = vrot.slane %v2374, 5
      %v2911 = vsel %vm2855, %v2909, %v2910
      %v2912 = vrot.slane %v2797, 5
      %v2913 = vrot.slane %v2912, 4
      %v2914 = vrot.slane %v2376, 5
      %v2915 = vsel %vm2855, %v2913, %v2914
      %v2916 = vrot.slane %v2914, 4
      %v2917 = vrot.slane %v2377, 5
      %v2918 = vsel %vm2855, %v2916, %v2917
      %v2919 = vrot.slane %v2798, 5
      %v2920 = vrot.slane %v2919, 4
      %v2921 = vrot.slane %v2379, 5
      %v2922 = vsel %vm2855, %v2920, %v2921
      %v2923 = vrot.slane %v2921, 4
      %v2924 = vrot.slane %v2380, 5
      %v2925 = vsel %vm2855, %v2923, %v2924
      %v2926 = vrot.slane %v2799, 5
      %v2927 = vrot.slane %v2926, 4
      %v2928 = vrot.slane %v2382, 5
      %v2929 = vsel %vm2855, %v2927, %v2928
      %v2930 = vrot.slane %v2928, 4
      %v2931 = vrot.slane %v2383, 5
      %v2932 = vsel %vm2855, %v2930, %v2931
      %v2933 = vrot.slane %v2800, 5
      %v2934 = vrot.slane %v2933, 4
      %v2935 = vrot.slane %v2385, 5
      %v2936 = vsel %vm2855, %v2934, %v2935
      %v2937 = vrot.slane %v2935, 4
      %v2938 = vrot.slane %v2386, 5
      %v2939 = vsel %vm2855, %v2937, %v2938
      %v2940 = vrot.slane %v2801, 5
      %v2941 = vrot.slane %v2940, 4
      %v2942 = vrot.slane %v2388, 5
      %v2943 = vsel %vm2855, %v2941, %v2942
      %v2944 = vrot.slane %v2942, 4
      %v2945 = vrot.slane %v2389, 5
      %v2946 = vsel %vm2855, %v2944, %v2945
      %v2947 = vrot.slane %v2802, 5
      %v2948 = vrot.slane %v2947, 4
      %v2949 = vrot.slane %v2391, 5
      %v2950 = vsel %vm2855, %v2948, %v2949
      %v2951 = vrot.slane %v2949, 4
      %v2952 = vrot.slane %v2392, 5
      %v2953 = vsel %vm2855, %v2951, %v2952
      %v2954 = vrot.slane %v2803, 5
      %v2955 = vrot.slane %v2954, 4
      %v2956 = vrot.slane %v2394, 5
      %v2957 = vsel %vm2855, %v2955, %v2956
      %v2958 = vrot.slane %v2956, 4
      %v2959 = vrot.slane %v2395, 5
      %v2960 = vsel %vm2855, %v2958, %v2959
      %v2961 = vrot.slane %v2804, 5
      %v2962 = vrot.slane %v2961, 4
      %v2963 = vrot.slane %v2397, 5
      %v2964 = vsel %vm2855, %v2962, %v2963
      %v2965 = vrot.slane %v2963, 4
      %v2966 = vrot.slane %v2398, 5
      %v2967 = vsel %vm2855, %v2965, %v2966
      %s2968 = scalar_lea.vmem %s1, 100
      %v2969 = vld [vmem:[%s2968] sm:$0xf]
      %v2970 = vld [vmem:[%s2968 + $0x4] sm:$0xf]
      %v2971 = vld [vmem:[%s2968 + $0x8] sm:$0xf]
      %v2972 = vld [vmem:[%s2968 + $0xc] sm:$0xf]
      %v2973 = vld [vmem:[%s2968 + $0x10] sm:$0x1]
      %v2974 = vunpack.c.l.b16 %v2859
      %v2975 = vunpack.c.l.b16 %v2862
      %v2976 = vunpack.c.l.b16 %v2866
      %v2977 = vunpack.c.l.b16 %v2869
      %v2978 = vunpack.c.l.b16 %v2873
      %v2979 = vunpack.c.l.b16 %v2876
      %v2980 = vunpack.c.l.b16 %v2880
      %v2981 = vunpack.c.l.b16 %v2883
      %v2982 = vunpack.c.l.b16 %v2887
      %v2983 = vunpack.c.l.b16 %v2890
      %v2984 = vunpack.c.l.b16 %v2894
      %v2985 = vunpack.c.l.b16 %v2897
      %v2986 = vunpack.c.l.b16 %v2901
      %v2987 = vunpack.c.l.b16 %v2904
      %v2988 = vunpack.c.l.b16 %v2908
      %v2989 = vunpack.c.l.b16 %v2911
      %v2990 = vunpack.c.l.b16 %v2915
      %v2991 = vunpack.c.l.b16 %v2918
      %v2992 = vunpack.c.l.b16 %v2922
      %v2993 = vunpack.c.l.b16 %v2925
      %v2994 = vunpack.c.l.b16 %v2929
      %v2995 = vunpack.c.l.b16 %v2932
      %v2996 = vunpack.c.l.b16 %v2936
      %v2997 = vunpack.c.l.b16 %v2939
      %v2998 = vunpack.c.l.b16 %v2943
      %v2999 = vunpack.c.l.b16 %v2946
      %v3000 = vunpack.c.l.b16 %v2950
      %v3001 = vunpack.c.l.b16 %v2953
      %v3002 = vunpack.c.l.b16 %v2957
      %v3003 = vunpack.c.l.b16 %v2960
      %v3004 = vunpack.c.l.b16 %v2964
      %v3005 = vunpack.c.l.b16 %v2967
      %v3006 = vpack.c.b16 %v2975, %v2974
      %v3007 = vpack.c.b16 %v2977, %v2976
      %v3008 = vpack.c.b16 %v2979, %v2978
      %v3009 = vpack.c.b16 %v2981, %v2980
      %v3010 = vpack.c.b16 %v2983, %v2982
      %v3011 = vpack.c.b16 %v2985, %v2984
      %v3012 = vpack.c.b16 %v2987, %v2986
      %v3013 = vpack.c.b16 %v2989, %v2988
      %v3014 = vpack.c.b16 %v2991, %v2990
      %v3015 = vpack.c.b16 %v2993, %v2992
      %v3016 = vpack.c.b16 %v2995, %v2994
      %v3017 = vpack.c.b16 %v2997, %v2996
      %v3018 = vpack.c.b16 %v2999, %v2998
      %v3019 = vpack.c.b16 %v3001, %v3000
      %v3020 = vpack.c.b16 %v3003, %v3002
      %v3021 = vpack.c.b16 %v3005, %v3004
      %v3027 = vunpack.c.l.b16 %v2969
      %v3028 = vunpack.c.l.b16 %v2970
      %v3029 = vunpack.c.l.b16 %v2971
      %v3030 = vunpack.c.l.b16 %v2972
      %v3031 = vunpack.c.l.b16 %v2973
      %v3032 = vpack.c.b16 %v3028, %v3027
      %v3033 = vpack.c.b16 %v3030, %v3029
      %v3034 = vpack.c.b16 %v3031, %v3031
      %v3038 = vsel %vm719, %v3006, 0
      %v3041 = vsel %vm719, %v3007, 0
      %v3044 = vsel %vm719, %v3008, 0
      %v3047 = vsel %vm719, %v3009, 0
      %v3050 = vsel %vm719, %v3010, 0
      %v3053 = vsel %vm719, %v3011, 0
      %v3056 = vsel %vm719, %v3012, 0
      %v3059 = vsel %vm719, %v3013, 0
      %v3062 = vsel %vm719, %v3014, 0
      %v3065 = vsel %vm719, %v3015, 0
      %v3068 = vsel %vm719, %v3016, 0
      %v3071 = vsel %vm719, %v3017, 0
      %v3074 = vsel %vm719, %v3018, 0
      %v3077 = vsel %vm719, %v3019, 0
      %v3080 = vsel %vm719, %v3020, 0
      %v3083 = vsel %vm719, %v3021, 0
      %v3086 = vand.u32 %v3034, %v770
      %3088 = vmatpush.bf16.msra.mxu0 0
      %3089 = vmatpush.bf16.msra.mxu0 0
      %3090 = vmatpush.bf16.msra.mxu0 0
      %3091 = vmatpush.bf16.msra.mxu0 0
      %3092 = vmatpush.bf16.msra.mxu0 0
      %3093 = vmatpush.bf16.msra.mxu0 %v3086
      %3094 = vmatpush.bf16.msra.mxu0 %v3033
      %3095 = vmatpush.bf16.msra.mxu0 %v3032
      %3096 = vmatmul.bf16.gmra.mxu0 %v3038
      %v3097 = vpop.f32.mrf.mxu0
      %v3098 = vadd.f32 0.0, %v3097
      %v3099 = vpop.f32.mrf.mxu0
      %v3100 = vadd.f32 0.0, %v3099
      %3101 = vmatmul.bf16.gmra.mxu0 %v3041
      %v3102 = vpop.f32.mrf.mxu0
      %v3103 = vadd.f32 0.0, %v3102
      %v3104 = vpop.f32.mrf.mxu0
      %v3105 = vadd.f32 0.0, %v3104
      %3106 = vmatmul.bf16.gmra.mxu0 %v3044
      %v3107 = vpop.f32.mrf.mxu0
      %v3108 = vadd.f32 0.0, %v3107
      %v3109 = vpop.f32.mrf.mxu0
      %v3110 = vadd.f32 0.0, %v3109
      %3111 = vmatmul.bf16.gmra.mxu0 %v3047
      %v3112 = vpop.f32.mrf.mxu0
      %v3113 = vadd.f32 0.0, %v3112
      %v3114 = vpop.f32.mrf.mxu0
      %v3115 = vadd.f32 0.0, %v3114
      %3116 = vmatmul.bf16.gmra.mxu0 %v3050
      %v3117 = vpop.f32.mrf.mxu0
      %v3118 = vadd.f32 0.0, %v3117
      %v3119 = vpop.f32.mrf.mxu0
      %v3120 = vadd.f32 0.0, %v3119
      %3121 = vmatmul.bf16.gmra.mxu0 %v3053
      %v3122 = vpop.f32.mrf.mxu0
      %v3123 = vadd.f32 0.0, %v3122
      %v3124 = vpop.f32.mrf.mxu0
      %v3125 = vadd.f32 0.0, %v3124
      %3126 = vmatmul.bf16.gmra.mxu0 %v3056
      %v3127 = vpop.f32.mrf.mxu0
      %v3128 = vadd.f32 0.0, %v3127
      %v3129 = vpop.f32.mrf.mxu0
      %v3130 = vadd.f32 0.0, %v3129
      %3131 = vmatmul.bf16.gmra.mxu0 %v3059
      %v3132 = vpop.f32.mrf.mxu0
      %v3133 = vadd.f32 0.0, %v3132
      %v3134 = vpop.f32.mrf.mxu0
      %v3135 = vadd.f32 0.0, %v3134
      %3136 = vmatmul.bf16.gmra.mxu0 %v3062
      %v3137 = vpop.f32.mrf.mxu0
      %v3138 = vadd.f32 0.0, %v3137
      %v3139 = vpop.f32.mrf.mxu0
      %v3140 = vadd.f32 0.0, %v3139
      %3141 = vmatmul.bf16.gmra.mxu0 %v3065
      %v3142 = vpop.f32.mrf.mxu0
      %v3143 = vadd.f32 0.0, %v3142
      %v3144 = vpop.f32.mrf.mxu0
      %v3145 = vadd.f32 0.0, %v3144
      %3146 = vmatmul.bf16.gmra.mxu0 %v3068
      %v3147 = vpop.f32.mrf.mxu0
      %v3148 = vadd.f32 0.0, %v3147
      %v3149 = vpop.f32.mrf.mxu0
      %v3150 = vadd.f32 0.0, %v3149
      %3151 = vmatmul.bf16.gmra.mxu0 %v3071
      %v3152 = vpop.f32.mrf.mxu0
      %v3153 = vadd.f32 0.0, %v3152
      %v3154 = vpop.f32.mrf.mxu0
      %v3155 = vadd.f32 0.0, %v3154
      %3156 = vmatmul.bf16.gmra.mxu0 %v3074
      %v3157 = vpop.f32.mrf.mxu0
      %v3158 = vadd.f32 0.0, %v3157
      %v3159 = vpop.f32.mrf.mxu0
      %v3160 = vadd.f32 0.0, %v3159
      %3161 = vmatmul.bf16.gmra.mxu0 %v3077
      %v3162 = vpop.f32.mrf.mxu0
      %v3163 = vadd.f32 0.0, %v3162
      %v3164 = vpop.f32.mrf.mxu0
      %v3165 = vadd.f32 0.0, %v3164
      %3166 = vmatmul.bf16.gmra.mxu0 %v3080
      %v3167 = vpop.f32.mrf.mxu0
      %v3168 = vadd.f32 0.0, %v3167
      %v3169 = vpop.f32.mrf.mxu0
      %v3170 = vadd.f32 0.0, %v3169
      %3171 = vmatmul.bf16.gmra.mxu0 %v3083
      %v3172 = vpop.f32.mrf.mxu0
      %v3173 = vadd.f32 0.0, %v3172
      %v3174 = vpop.f32.mrf.mxu0
      %v3175 = vadd.f32 0.0, %v3174
      %3176 = vdwg.mxu0
      %v3177 = vunpack.c.l.b16 %v2412
      %v3178 = vunpack.c.l.b16 %v2422
      %v3179 = vunpack.c.l.b16 %v2436
      %v3180 = vunpack.c.l.b16 %v2446
      %v3181 = vunpack.c.l.b16 %v2460
      %v3182 = vunpack.c.l.b16 %v2470
      %v3183 = vunpack.c.l.b16 %v2484
      %v3184 = vunpack.c.l.b16 %v2494
      %v3185 = vunpack.c.l.b16 %v2508
      %v3186 = vunpack.c.l.b16 %v2518
      %v3187 = vunpack.c.l.b16 %v2532
      %v3188 = vunpack.c.l.b16 %v2542
      %v3189 = vunpack.c.l.b16 %v2556
      %v3190 = vunpack.c.l.b16 %v2566
      %v3191 = vunpack.c.l.b16 %v2580
      %v3192 = vunpack.c.l.b16 %v2590
      %v3193 = vunpack.c.l.b16 %v2604
      %v3194 = vunpack.c.l.b16 %v2614
      %v3195 = vunpack.c.l.b16 %v2628
      %v3196 = vunpack.c.l.b16 %v2638
      %v3197 = vunpack.c.l.b16 %v2652
      %v3198 = vunpack.c.l.b16 %v2662
      %v3199 = vunpack.c.l.b16 %v2676
      %v3200 = vunpack.c.l.b16 %v2686
      %v3201 = vunpack.c.l.b16 %v2700
      %v3202 = vunpack.c.l.b16 %v2710
      %v3203 = vunpack.c.l.b16 %v2724
      %v3204 = vunpack.c.l.b16 %v2734
      %v3205 = vunpack.c.l.b16 %v2748
      %v3206 = vunpack.c.l.b16 %v2758
      %v3207 = vunpack.c.l.b16 %v2772
      %v3208 = vunpack.c.l.b16 %v2782
      %v3209 = vpack.c.b16 %v3178, %v3177
      %v3210 = vpack.c.b16 %v3180, %v3179
      %v3211 = vpack.c.b16 %v3182, %v3181
      %v3212 = vpack.c.b16 %v3184, %v3183
      %v3213 = vpack.c.b16 %v3186, %v3185
      %v3214 = vpack.c.b16 %v3188, %v3187
      %v3215 = vpack.c.b16 %v3190, %v3189
      %v3216 = vpack.c.b16 %v3192, %v3191
      %v3217 = vpack.c.b16 %v3194, %v3193
      %v3218 = vpack.c.b16 %v3196, %v3195
      %v3219 = vpack.c.b16 %v3198, %v3197
      %v3220 = vpack.c.b16 %v3200, %v3199
      %v3221 = vpack.c.b16 %v3202, %v3201
      %v3222 = vpack.c.b16 %v3204, %v3203
      %v3223 = vpack.c.b16 %v3206, %v3205
      %v3224 = vpack.c.b16 %v3208, %v3207
      %v3230 = vunpack.c.l.b16 %v2784
      %v3231 = vunpack.c.l.b16 %v2785
      %v3232 = vunpack.c.l.b16 %v2786
      %v3233 = vunpack.c.l.b16 %v2787
      %v3234 = vunpack.c.l.b16 %v2788
      %v3235 = vpack.c.b16 %v3231, %v3230
      %v3236 = vpack.c.b16 %v3233, %v3232
      %v3237 = vpack.c.b16 %v3234, %v3234
      %v3241 = vsel %vm719, %v3209, 0
      %v3244 = vsel %vm719, %v3210, 0
      %v3247 = vsel %vm719, %v3211, 0
      %v3250 = vsel %vm719, %v3212, 0
      %v3253 = vsel %vm719, %v3213, 0
      %v3256 = vsel %vm719, %v3214, 0
      %v3259 = vsel %vm719, %v3215, 0
      %v3262 = vsel %vm719, %v3216, 0
      %v3265 = vsel %vm719, %v3217, 0
      %v3268 = vsel %vm719, %v3218, 0
      %v3271 = vsel %vm719, %v3219, 0
      %v3274 = vsel %vm719, %v3220, 0
      %v3277 = vsel %vm719, %v3221, 0
      %v3280 = vsel %vm719, %v3222, 0
      %v3283 = vsel %vm719, %v3223, 0
      %v3286 = vsel %vm719, %v3224, 0
      %v3289 = vand.u32 %v3237, %v770
      %3291 = vmatpush.bf16.msra.mxu0 0
      %3292 = vmatpush.bf16.msra.mxu0 0
      %3293 = vmatpush.bf16.msra.mxu0 0
      %3294 = vmatpush.bf16.msra.mxu0 0
      %3295 = vmatpush.bf16.msra.mxu0 0
      %3296 = vmatpush.bf16.msra.mxu0 %v3289
      %3297 = vmatpush.bf16.msra.mxu0 %v3236
      %3298 = vmatpush.bf16.msra.mxu0 %v3235
      %3299 = vmatmul.bf16.gmra.mxu0 %v3241
      %v3300 = vpop.f32.mrf.mxu0
      %v3301 = vadd.f32 %v3098, %v3300
      %v3302 = vpop.f32.mrf.mxu0
      %v3303 = vadd.f32 %v3100, %v3302
      %3304 = vmatmul.bf16.gmra.mxu0 %v3244
      %v3305 = vpop.f32.mrf.mxu0
      %v3306 = vadd.f32 %v3103, %v3305
      %v3307 = vpop.f32.mrf.mxu0
      %v3308 = vadd.f32 %v3105, %v3307
      %3309 = vmatmul.bf16.gmra.mxu0 %v3247
      %v3310 = vpop.f32.mrf.mxu0
      %v3311 = vadd.f32 %v3108, %v3310
      %v3312 = vpop.f32.mrf.mxu0
      %v3313 = vadd.f32 %v3110, %v3312
      %3314 = vmatmul.bf16.gmra.mxu0 %v3250
      %v3315 = vpop.f32.mrf.mxu0
      %v3316 = vadd.f32 %v3113, %v3315
      %v3317 = vpop.f32.mrf.mxu0
      %v3318 = vadd.f32 %v3115, %v3317
      %3319 = vmatmul.bf16.gmra.mxu0 %v3253
      %v3320 = vpop.f32.mrf.mxu0
      %v3321 = vadd.f32 %v3118, %v3320
      %v3322 = vpop.f32.mrf.mxu0
      %v3323 = vadd.f32 %v3120, %v3322
      %3324 = vmatmul.bf16.gmra.mxu0 %v3256
      %v3325 = vpop.f32.mrf.mxu0
      %v3326 = vadd.f32 %v3123, %v3325
      %v3327 = vpop.f32.mrf.mxu0
      %v3328 = vadd.f32 %v3125, %v3327
      %3329 = vmatmul.bf16.gmra.mxu0 %v3259
      %v3330 = vpop.f32.mrf.mxu0
      %v3331 = vadd.f32 %v3128, %v3330
      %v3332 = vpop.f32.mrf.mxu0
      %v3333 = vadd.f32 %v3130, %v3332
      %3334 = vmatmul.bf16.gmra.mxu0 %v3262
      %v3335 = vpop.f32.mrf.mxu0
      %v3336 = vadd.f32 %v3133, %v3335
      %v3337 = vpop.f32.mrf.mxu0
      %v3338 = vadd.f32 %v3135, %v3337
      %3339 = vmatmul.bf16.gmra.mxu0 %v3265
      %v3340 = vpop.f32.mrf.mxu0
      %v3341 = vadd.f32 %v3138, %v3340
      %v3342 = vpop.f32.mrf.mxu0
      %v3343 = vadd.f32 %v3140, %v3342
      %3344 = vmatmul.bf16.gmra.mxu0 %v3268
      %v3345 = vpop.f32.mrf.mxu0
      %v3346 = vadd.f32 %v3143, %v3345
      %v3347 = vpop.f32.mrf.mxu0
      %v3348 = vadd.f32 %v3145, %v3347
      %3349 = vmatmul.bf16.gmra.mxu0 %v3271
      %v3350 = vpop.f32.mrf.mxu0
      %v3351 = vadd.f32 %v3148, %v3350
      %v3352 = vpop.f32.mrf.mxu0
      %v3353 = vadd.f32 %v3150, %v3352
      %3354 = vmatmul.bf16.gmra.mxu0 %v3274
      %v3355 = vpop.f32.mrf.mxu0
      %v3356 = vadd.f32 %v3153, %v3355
      %v3357 = vpop.f32.mrf.mxu0
      %v3358 = vadd.f32 %v3155, %v3357
      %3359 = vmatmul.bf16.gmra.mxu0 %v3277
      %v3360 = vpop.f32.mrf.mxu0
      %v3361 = vadd.f32 %v3158, %v3360
      %v3362 = vpop.f32.mrf.mxu0
      %v3363 = vadd.f32 %v3160, %v3362
      %3364 = vmatmul.bf16.gmra.mxu0 %v3280
      %v3365 = vpop.f32.mrf.mxu0
      %v3366 = vadd.f32 %v3163, %v3365
      %v3367 = vpop.f32.mrf.mxu0
      %v3368 = vadd.f32 %v3165, %v3367
      %3369 = vmatmul.bf16.gmra.mxu0 %v3283
      %v3370 = vpop.f32.mrf.mxu0
      %v3371 = vadd.f32 %v3168, %v3370
      %v3372 = vpop.f32.mrf.mxu0
      %v3373 = vadd.f32 %v3170, %v3372
      %3374 = vmatmul.bf16.gmra.mxu0 %v3286
      %v3375 = vpop.f32.mrf.mxu0
      %v3376 = vadd.f32 %v3173, %v3375
      %v3377 = vpop.f32.mrf.mxu0
      %v3378 = vadd.f32 %v3175, %v3377
      %3379 = vdwg.mxu0
      %v3380 = vld [vmem:[%s1098] sm:$0xf]
      %v3381 = vld [vmem:[%s1098 + $0x4] sm:$0xf]
      %v3382 = vld [vmem:[%s1098 + $0x8] sm:$0x1]
      %v3383 = vld [vmem:[%s1098 + $0xc] sm:$0xf]
      %v3384 = vld [vmem:[%s1098 + $0x10] sm:$0xf]
      %v3385 = vld [vmem:[%s1098 + $0x14] sm:$0x1]
      %v3386 = vld [vmem:[%s1098 + $0x18] sm:$0xf]
      %v3387 = vld [vmem:[%s1098 + $0x1c] sm:$0xf]
      %v3388 = vld [vmem:[%s1098 + $0x20] sm:$0x1]
      %v3389 = vld [vmem:[%s1098 + $0x24] sm:$0xf]
      %v3390 = vld [vmem:[%s1098 + $0x28] sm:$0xf]
      %v3391 = vld [vmem:[%s1098 + $0x2c] sm:$0x1]
      %v3392 = vld [vmem:[%s1098 + $0x30] sm:$0xf]
      %v3393 = vld [vmem:[%s1098 + $0x34] sm:$0xf]
      %v3394 = vld [vmem:[%s1098 + $0x38] sm:$0x1]
      %v3395 = vld [vmem:[%s1098 + $0x3c] sm:$0xf]
      %v3396 = vld [vmem:[%s1098 + $0x40] sm:$0xf]
      %v3397 = vld [vmem:[%s1098 + $0x44] sm:$0x1]
      %v3398 = vld [vmem:[%s1098 + $0x48] sm:$0xf]
      %v3399 = vld [vmem:[%s1098 + $0x4c] sm:$0xf]
      %v3400 = vld [vmem:[%s1098 + $0x50] sm:$0x1]
      %v3401 = vld [vmem:[%s1098 + $0x54] sm:$0xf]
      %v3402 = vld [vmem:[%s1098 + $0x58] sm:$0xf]
      %v3403 = vld [vmem:[%s1098 + $0x5c] sm:$0x1]
      %v3404 = vld [vmem:[%s1098 + $0x60] sm:$0xf]
      %v3405 = vld [vmem:[%s1098 + $0x64] sm:$0xf]
      %v3406 = vld [vmem:[%s1098 + $0x68] sm:$0x1]
      %v3407 = vld [vmem:[%s1098 + $0x6c] sm:$0xf]
      %v3408 = vld [vmem:[%s1098 + $0x70] sm:$0xf]
      %v3409 = vld [vmem:[%s1098 + $0x74] sm:$0x1]
      %v3410 = vld [vmem:[%s1098 + $0x78] sm:$0xf]
      %v3411 = vld [vmem:[%s1098 + $0x7c] sm:$0xf]
      %v3412 = vld [vmem:[%s1098 + $0x80] sm:$0x1]
      %v3413 = vld [vmem:[%s1098 + $0x84] sm:$0xf]
      %v3414 = vld [vmem:[%s1098 + $0x88] sm:$0xf]
      %v3415 = vld [vmem:[%s1098 + $0x8c] sm:$0x1]
      %v3416 = vld [vmem:[%s1098 + $0x90] sm:$0xf]
      %v3417 = vld [vmem:[%s1098 + $0x94] sm:$0xf]
      %v3418 = vld [vmem:[%s1098 + $0x98] sm:$0x1]
      %v3419 = vld [vmem:[%s1098 + $0x9c] sm:$0xf]
      %v3420 = vld [vmem:[%s1098 + $0xa0] sm:$0xf]
      %v3421 = vld [vmem:[%s1098 + $0xa4] sm:$0x1]
      %v3422 = vld [vmem:[%s1098 + $0xa8] sm:$0xf]
      %v3423 = vld [vmem:[%s1098 + $0xac] sm:$0xf]
      %v3424 = vld [vmem:[%s1098 + $0xb0] sm:$0x1]
      %v3425 = vld [vmem:[%s1098 + $0xb4] sm:$0xf]
      %v3426 = vld [vmem:[%s1098 + $0xb8] sm:$0xf]
      %v3427 = vld [vmem:[%s1098 + $0xbc] sm:$0x1]
      %v3429 = vshrl.u32 %v3380, 16
      %v3431 = vrot.slane %v3429, 4
      %v3432 = vshll.u32 %v3380, 16
      %v3434 = vrot.slane %v3432, 5
      %v3435 = vor.u32 %v3431, %v3434
      %v3436 = vrot.slane %v3435, 4
      %v3438 = vshll.u32 %v3381, 16
      %v3440 = vrot.slane %v3438, 5
      %v3441 = vsel %vm265, %v3436, %v3440
      %v3442 = vshrl.u32 %v3381, 16
      %v3444 = vrot.slane %v3442, 4
      %v3445 = vor.u32 %v3444, %v3440
      %v3446 = vrot.slane %v3445, 4
      %v3448 = vshll.u32 %v3382, 16
      %v3450 = vrot.slane %v3448, 5
      %v3451 = vsel %vm265, %v3446, %v3450
      %v3453 = vshrl.u32 %v3383, 16
      %v3455 = vrot.slane %v3453, 4
      %v3456 = vshll.u32 %v3383, 16
      %v3458 = vrot.slane %v3456, 5
      %v3459 = vor.u32 %v3455, %v3458
      %v3460 = vrot.slane %v3459, 4
      %v3462 = vshll.u32 %v3384, 16
      %v3464 = vrot.slane %v3462, 5
      %v3465 = vsel %vm265, %v3460, %v3464
      %v3466 = vshrl.u32 %v3384, 16
      %v3468 = vrot.slane %v3466, 4
      %v3469 = vor.u32 %v3468, %v3464
      %v3470 = vrot.slane %v3469, 4
      %v3472 = vshll.u32 %v3385, 16
      %v3474 = vrot.slane %v3472, 5
      %v3475 = vsel %vm265, %v3470, %v3474
      %v3477 = vshrl.u32 %v3386, 16
      %v3479 = vrot.slane %v3477, 4
      %v3480 = vshll.u32 %v3386, 16
      %v3482 = vrot.slane %v3480, 5
      %v3483 = vor.u32 %v3479, %v3482
      %v3484 = vrot.slane %v3483, 4
      %v3486 = vshll.u32 %v3387, 16
      %v3488 = vrot.slane %v3486, 5
      %v3489 = vsel %vm265, %v3484, %v3488
      %v3490 = vshrl.u32 %v3387, 16
      %v3492 = vrot.slane %v3490, 4
      %v3493 = vor.u32 %v3492, %v3488
      %v3494 = vrot.slane %v3493, 4
      %v3496 = vshll.u32 %v3388, 16
      %v3498 = vrot.slane %v3496, 5
      %v3499 = vsel %vm265, %v3494, %v3498
      %v3501 = vshrl.u32 %v3389, 16
      %v3503 = vrot.slane %v3501, 4
      %v3504 = vshll.u32 %v3389, 16
      %v3506 = vrot.slane %v3504, 5
      %v3507 = vor.u32 %v3503, %v3506
      %v3508 = vrot.slane %v3507, 4
      %v3510 = vshll.u32 %v3390, 16
      %v3512 = vrot.slane %v3510, 5
      %v3513 = vsel %vm265, %v3508, %v3512
      %v3514 = vshrl.u32 %v3390, 16
      %v3516 = vrot.slane %v3514, 4
      %v3517 = vor.u32 %v3516, %v3512
      %v3518 = vrot.slane %v3517, 4
      %v3520 = vshll.u32 %v3391, 16
      %v3522 = vrot.slane %v3520, 5
      %v3523 = vsel %vm265, %v3518, %v3522
      %v3525 = vshrl.u32 %v3392, 16
      %v3527 = vrot.slane %v3525, 4
      %v3528 = vshll.u32 %v3392, 16
      %v3530 = vrot.slane %v3528, 5
      %v3531 = vor.u32 %v3527, %v3530
      %v3532 = vrot.slane %v3531, 4
      %v3534 = vshll.u32 %v3393, 16
      %v3536 = vrot.slane %v3534, 5
      %v3537 = vsel %vm265, %v3532, %v3536
      %v3538 = vshrl.u32 %v3393, 16
      %v3540 = vrot.slane %v3538, 4
      %v3541 = vor.u32 %v3540, %v3536
      %v3542 = vrot.slane %v3541, 4
      %v3544 = vshll.u32 %v3394, 16
      %v3546 = vrot.slane %v3544, 5
      %v3547 = vsel %vm265, %v3542, %v3546
      %v3549 = vshrl.u32 %v3395, 16
      %v3551 = vrot.slane %v3549, 4
      %v3552 = vshll.u32 %v3395, 16
      %v3554 = vrot.slane %v3552, 5
      %v3555 = vor.u32 %v3551, %v3554
      %v3556 = vrot.slane %v3555, 4
      %v3558 = vshll.u32 %v3396, 16
      %v3560 = vrot.slane %v3558, 5
      %v3561 = vsel %vm265, %v3556, %v3560
      %v3562 = vshrl.u32 %v3396, 16
      %v3564 = vrot.slane %v3562, 4
      %v3565 = vor.u32 %v3564, %v3560
      %v3566 = vrot.slane %v3565, 4
      %v3568 = vshll.u32 %v3397, 16
      %v3570 = vrot.slane %v3568, 5
      %v3571 = vsel %vm265, %v3566, %v3570
      %v3573 = vshrl.u32 %v3398, 16
      %v3575 = vrot.slane %v3573, 4
      %v3576 = vshll.u32 %v3398, 16
      %v3578 = vrot.slane %v3576, 5
      %v3579 = vor.u32 %v3575, %v3578
      %v3580 = vrot.slane %v3579, 4
      %v3582 = vshll.u32 %v3399, 16
      %v3584 = vrot.slane %v3582, 5
      %v3585 = vsel %vm265, %v3580, %v3584
      %v3586 = vshrl.u32 %v3399, 16
      %v3588 = vrot.slane %v3586, 4
      %v3589 = vor.u32 %v3588, %v3584
      %v3590 = vrot.slane %v3589, 4
      %v3592 = vshll.u32 %v3400, 16
      %v3594 = vrot.slane %v3592, 5
      %v3595 = vsel %vm265, %v3590, %v3594
      %v3597 = vshrl.u32 %v3401, 16
      %v3599 = vrot.slane %v3597, 4
      %v3600 = vshll.u32 %v3401, 16
      %v3602 = vrot.slane %v3600, 5
      %v3603 = vor.u32 %v3599, %v3602
      %v3604 = vrot.slane %v3603, 4
      %v3606 = vshll.u32 %v3402, 16
      %v3608 = vrot.slane %v3606, 5
      %v3609 = vsel %vm265, %v3604, %v3608
      %v3610 = vshrl.u32 %v3402, 16
      %v3612 = vrot.slane %v3610, 4
      %v3613 = vor.u32 %v3612, %v3608
      %v3614 = vrot.slane %v3613, 4
      %v3616 = vshll.u32 %v3403, 16
      %v3618 = vrot.slane %v3616, 5
      %v3619 = vsel %vm265, %v3614, %v3618
      %v3621 = vshrl.u32 %v3404, 16
      %v3623 = vrot.slane %v3621, 4
      %v3624 = vshll.u32 %v3404, 16
      %v3626 = vrot.slane %v3624, 5
      %v3627 = vor.u32 %v3623, %v3626
      %v3628 = vrot.slane %v3627, 4
      %v3630 = vshll.u32 %v3405, 16
      %v3632 = vrot.slane %v3630, 5
      %v3633 = vsel %vm265, %v3628, %v3632
      %v3634 = vshrl.u32 %v3405, 16
      %v3636 = vrot.slane %v3634, 4
      %v3637 = vor.u32 %v3636, %v3632
      %v3638 = vrot.slane %v3637, 4
      %v3640 = vshll.u32 %v3406, 16
      %v3642 = vrot.slane %v3640, 5
      %v3643 = vsel %vm265, %v3638, %v3642
      %v3645 = vshrl.u32 %v3407, 16
      %v3647 = vrot.slane %v3645, 4
      %v3648 = vshll.u32 %v3407, 16
      %v3650 = vrot.slane %v3648, 5
      %v3651 = vor.u32 %v3647, %v3650
      %v3652 = vrot.slane %v3651, 4
      %v3654 = vshll.u32 %v3408, 16
      %v3656 = vrot.slane %v3654, 5
      %v3657 = vsel %vm265, %v3652, %v3656
      %v3658 = vshrl.u32 %v3408, 16
      %v3660 = vrot.slane %v3658, 4
      %v3661 = vor.u32 %v3660, %v3656
      %v3662 = vrot.slane %v3661, 4
      %v3664 = vshll.u32 %v3409, 16
      %v3666 = vrot.slane %v3664, 5
      %v3667 = vsel %vm265, %v3662, %v3666
      %v3669 = vshrl.u32 %v3410, 16
      %v3671 = vrot.slane %v3669, 4
      %v3672 = vshll.u32 %v3410, 16
      %v3674 = vrot.slane %v3672, 5
      %v3675 = vor.u32 %v3671, %v3674
      %v3676 = vrot.slane %v3675, 4
      %v3678 = vshll.u32 %v3411, 16
      %v3680 = vrot.slane %v3678, 5
      %v3681 = vsel %vm265, %v3676, %v3680
      %v3682 = vshrl.u32 %v3411, 16
      %v3684 = vrot.slane %v3682, 4
      %v3685 = vor.u32 %v3684, %v3680
      %v3686 = vrot.slane %v3685, 4
      %v3688 = vshll.u32 %v3412, 16
      %v3690 = vrot.slane %v3688, 5
      %v3691 = vsel %vm265, %v3686, %v3690
      %v3693 = vshrl.u32 %v3413, 16
      %v3695 = vrot.slane %v3693, 4
      %v3696 = vshll.u32 %v3413, 16
      %v3698 = vrot.slane %v3696, 5
      %v3699 = vor.u32 %v3695, %v3698
      %v3700 = vrot.slane %v3699, 4
      %v3702 = vshll.u32 %v3414, 16
      %v3704 = vrot.slane %v3702, 5
      %v3705 = vsel %vm265, %v3700, %v3704
      %v3706 = vshrl.u32 %v3414, 16
      %v3708 = vrot.slane %v3706, 4
      %v3709 = vor.u32 %v3708, %v3704
      %v3710 = vrot.slane %v3709, 4
      %v3712 = vshll.u32 %v3415, 16
      %v3714 = vrot.slane %v3712, 5
      %v3715 = vsel %vm265, %v3710, %v3714
      %v3717 = vshrl.u32 %v3416, 16
      %v3719 = vrot.slane %v3717, 4
      %v3720 = vshll.u32 %v3416, 16
      %v3722 = vrot.slane %v3720, 5
      %v3723 = vor.u32 %v3719, %v3722
      %v3724 = vrot.slane %v3723, 4
      %v3726 = vshll.u32 %v3417, 16
      %v3728 = vrot.slane %v3726, 5
      %v3729 = vsel %vm265, %v3724, %v3728
      %v3730 = vshrl.u32 %v3417, 16
      %v3732 = vrot.slane %v3730, 4
      %v3733 = vor.u32 %v3732, %v3728
      %v3734 = vrot.slane %v3733, 4
      %v3736 = vshll.u32 %v3418, 16
      %v3738 = vrot.slane %v3736, 5
      %v3739 = vsel %vm265, %v3734, %v3738
      %v3741 = vshrl.u32 %v3419, 16
      %v3743 = vrot.slane %v3741, 4
      %v3744 = vshll.u32 %v3419, 16
      %v3746 = vrot.slane %v3744, 5
      %v3747 = vor.u32 %v3743, %v3746
      %v3748 = vrot.slane %v3747, 4
      %v3750 = vshll.u32 %v3420, 16
      %v3752 = vrot.slane %v3750, 5
      %v3753 = vsel %vm265, %v3748, %v3752
      %v3754 = vshrl.u32 %v3420, 16
      %v3756 = vrot.slane %v3754, 4
      %v3757 = vor.u32 %v3756, %v3752
      %v3758 = vrot.slane %v3757, 4
      %v3760 = vshll.u32 %v3421, 16
      %v3762 = vrot.slane %v3760, 5
      %v3763 = vsel %vm265, %v3758, %v3762
      %v3765 = vshrl.u32 %v3422, 16
      %v3767 = vrot.slane %v3765, 4
      %v3768 = vshll.u32 %v3422, 16
      %v3770 = vrot.slane %v3768, 5
      %v3771 = vor.u32 %v3767, %v3770
      %v3772 = vrot.slane %v3771, 4
      %v3774 = vshll.u32 %v3423, 16
      %v3776 = vrot.slane %v3774, 5
      %v3777 = vsel %vm265, %v3772, %v3776
      %v3778 = vshrl.u32 %v3423, 16
      %v3780 = vrot.slane %v3778, 4
      %v3781 = vor.u32 %v3780, %v3776
      %v3782 = vrot.slane %v3781, 4
      %v3784 = vshll.u32 %v3424, 16
      %v3786 = vrot.slane %v3784, 5
      %v3787 = vsel %vm265, %v3782, %v3786
      %v3789 = vshrl.u32 %v3425, 16
      %v3791 = vrot.slane %v3789, 4
      %v3792 = vshll.u32 %v3425, 16
      %v3794 = vrot.slane %v3792, 5
      %v3795 = vor.u32 %v3791, %v3794
      %v3796 = vrot.slane %v3795, 4
      %v3798 = vshll.u32 %v3426, 16
      %v3800 = vrot.slane %v3798, 5
      %v3801 = vsel %vm265, %v3796, %v3800
      %v3802 = vshrl.u32 %v3426, 16
      %v3804 = vrot.slane %v3802, 4
      %v3805 = vor.u32 %v3804, %v3800
      %v3806 = vrot.slane %v3805, 4
      %v3808 = vshll.u32 %v3427, 16
      %v3810 = vrot.slane %v3808, 5
      %v3811 = vsel %vm265, %v3806, %v3810
      %s3812 = scalar_lea.vmem %s1, 120
      %v3813 = vld [vmem:[%s3812] sm:$0xf]
      %v3814 = vld [vmem:[%s3812 + $0x4] sm:$0xf]
      %v3815 = vld [vmem:[%s3812 + $0x8] sm:$0xf]
      %v3816 = vld [vmem:[%s3812 + $0xc] sm:$0xf]
      %v3817 = vld [vmem:[%s3812 + $0x10] sm:$0x1]
      %v3818 = vunpack.c.l.b16 %v3441
      %v3819 = vunpack.c.l.b16 %v3451
      %v3820 = vunpack.c.l.b16 %v3465
      %v3821 = vunpack.c.l.b16 %v3475
      %v3822 = vunpack.c.l.b16 %v3489
      %v3823 = vunpack.c.l.b16 %v3499
      %v3824 = vunpack.c.l.b16 %v3513
      %v3825 = vunpack.c.l.b16 %v3523
      %v3826 = vunpack.c.l.b16 %v3537
      %v3827 = vunpack.c.l.b16 %v3547
      %v3828 = vunpack.c.l.b16 %v3561
      %v3829 = vunpack.c.l.b16 %v3571
      %v3830 = vunpack.c.l.b16 %v3585
      %v3831 = vunpack.c.l.b16 %v3595
      %v3832 = vunpack.c.l.b16 %v3609
      %v3833 = vunpack.c.l.b16 %v3619
      %v3834 = vunpack.c.l.b16 %v3633
      %v3835 = vunpack.c.l.b16 %v3643
      %v3836 = vunpack.c.l.b16 %v3657
      %v3837 = vunpack.c.l.b16 %v3667
      %v3838 = vunpack.c.l.b16 %v3681
      %v3839 = vunpack.c.l.b16 %v3691
      %v3840 = vunpack.c.l.b16 %v3705
      %v3841 = vunpack.c.l.b16 %v3715
      %v3842 = vunpack.c.l.b16 %v3729
      %v3843 = vunpack.c.l.b16 %v3739
      %v3844 = vunpack.c.l.b16 %v3753
      %v3845 = vunpack.c.l.b16 %v3763
      %v3846 = vunpack.c.l.b16 %v3777
      %v3847 = vunpack.c.l.b16 %v3787
      %v3848 = vunpack.c.l.b16 %v3801
      %v3849 = vunpack.c.l.b16 %v3811
      %v3850 = vpack.c.b16 %v3819, %v3818
      %v3851 = vpack.c.b16 %v3821, %v3820
      %v3852 = vpack.c.b16 %v3823, %v3822
      %v3853 = vpack.c.b16 %v3825, %v3824
      %v3854 = vpack.c.b16 %v3827, %v3826
      %v3855 = vpack.c.b16 %v3829, %v3828
      %v3856 = vpack.c.b16 %v3831, %v3830
      %v3857 = vpack.c.b16 %v3833, %v3832
      %v3858 = vpack.c.b16 %v3835, %v3834
      %v3859 = vpack.c.b16 %v3837, %v3836
      %v3860 = vpack.c.b16 %v3839, %v3838
      %v3861 = vpack.c.b16 %v3841, %v3840
      %v3862 = vpack.c.b16 %v3843, %v3842
      %v3863 = vpack.c.b16 %v3845, %v3844
      %v3864 = vpack.c.b16 %v3847, %v3846
      %v3865 = vpack.c.b16 %v3849, %v3848
      %v3871 = vunpack.c.l.b16 %v3813
      %v3872 = vunpack.c.l.b16 %v3814
      %v3873 = vunpack.c.l.b16 %v3815
      %v3874 = vunpack.c.l.b16 %v3816
      %v3875 = vunpack.c.l.b16 %v3817
      %v3876 = vpack.c.b16 %v3872, %v3871
      %v3877 = vpack.c.b16 %v3874, %v3873
      %v3878 = vpack.c.b16 %v3875, %v3875
      %v3882 = vsel %vm719, %v3850, 0
      %v3885 = vsel %vm719, %v3851, 0
      %v3888 = vsel %vm719, %v3852, 0
      %v3891 = vsel %vm719, %v3853, 0
      %v3894 = vsel %vm719, %v3854, 0
      %v3897 = vsel %vm719, %v3855, 0
      %v3900 = vsel %vm719, %v3856, 0
      %v3903 = vsel %vm719, %v3857, 0
      %v3906 = vsel %vm719, %v3858, 0
      %v3909 = vsel %vm719, %v3859, 0
      %v3912 = vsel %vm719, %v3860, 0
      %v3915 = vsel %vm719, %v3861, 0
      %v3918 = vsel %vm719, %v3862, 0
      %v3921 = vsel %vm719, %v3863, 0
      %v3924 = vsel %vm719, %v3864, 0
      %v3927 = vsel %vm719, %v3865, 0
      %v3930 = vand.u32 %v3878, %v770
      %3932 = vmatpush.bf16.msra.mxu0 0
      %3933 = vmatpush.bf16.msra.mxu0 0
      %3934 = vmatpush.bf16.msra.mxu0 0
      %3935 = vmatpush.bf16.msra.mxu0 0
      %3936 = vmatpush.bf16.msra.mxu0 0
      %3937 = vmatpush.bf16.msra.mxu0 %v3930
      %3938 = vmatpush.bf16.msra.mxu0 %v3877
      %3939 = vmatpush.bf16.msra.mxu0 %v3876
      %3940 = vmatmul.bf16.gmra.mxu0 %v3882
      %v3941 = vpop.f32.mrf.mxu0
      %v3942 = vadd.f32 0.0, %v3941
      %v3943 = vpop.f32.mrf.mxu0
      %v3944 = vadd.f32 0.0, %v3943
      %3945 = vmatmul.bf16.gmra.mxu0 %v3885
      %v3946 = vpop.f32.mrf.mxu0
      %v3947 = vadd.f32 0.0, %v3946
      %v3948 = vpop.f32.mrf.mxu0
      %v3949 = vadd.f32 0.0, %v3948
      %3950 = vmatmul.bf16.gmra.mxu0 %v3888
      %v3951 = vpop.f32.mrf.mxu0
      %v3952 = vadd.f32 0.0, %v3951
      %v3953 = vpop.f32.mrf.mxu0
      %v3954 = vadd.f32 0.0, %v3953
      %3955 = vmatmul.bf16.gmra.mxu0 %v3891
      %v3956 = vpop.f32.mrf.mxu0
      %v3957 = vadd.f32 0.0, %v3956
      %v3958 = vpop.f32.mrf.mxu0
      %v3959 = vadd.f32 0.0, %v3958
      %3960 = vmatmul.bf16.gmra.mxu0 %v3894
      %v3961 = vpop.f32.mrf.mxu0
      %v3962 = vadd.f32 0.0, %v3961
      %v3963 = vpop.f32.mrf.mxu0
      %v3964 = vadd.f32 0.0, %v3963
      %3965 = vmatmul.bf16.gmra.mxu0 %v3897
      %v3966 = vpop.f32.mrf.mxu0
      %v3967 = vadd.f32 0.0, %v3966
      %v3968 = vpop.f32.mrf.mxu0
      %v3969 = vadd.f32 0.0, %v3968
      %3970 = vmatmul.bf16.gmra.mxu0 %v3900
      %v3971 = vpop.f32.mrf.mxu0
      %v3972 = vadd.f32 0.0, %v3971
      %v3973 = vpop.f32.mrf.mxu0
      %v3974 = vadd.f32 0.0, %v3973
      %3975 = vmatmul.bf16.gmra.mxu0 %v3903
      %v3976 = vpop.f32.mrf.mxu0
      %v3977 = vadd.f32 0.0, %v3976
      %v3978 = vpop.f32.mrf.mxu0
      %v3979 = vadd.f32 0.0, %v3978
      %3980 = vmatmul.bf16.gmra.mxu0 %v3906
      %v3981 = vpop.f32.mrf.mxu0
      %v3982 = vadd.f32 0.0, %v3981
      %v3983 = vpop.f32.mrf.mxu0
      %v3984 = vadd.f32 0.0, %v3983
      %3985 = vmatmul.bf16.gmra.mxu0 %v3909
      %v3986 = vpop.f32.mrf.mxu0
      %v3987 = vadd.f32 0.0, %v3986
      %v3988 = vpop.f32.mrf.mxu0
      %v3989 = vadd.f32 0.0, %v3988
      %3990 = vmatmul.bf16.gmra.mxu0 %v3912
      %v3991 = vpop.f32.mrf.mxu0
      %v3992 = vadd.f32 0.0, %v3991
      %v3993 = vpop.f32.mrf.mxu0
      %v3994 = vadd.f32 0.0, %v3993
      %3995 = vmatmul.bf16.gmra.mxu0 %v3915
      %v3996 = vpop.f32.mrf.mxu0
      %v3997 = vadd.f32 0.0, %v3996
      %v3998 = vpop.f32.mrf.mxu0
      %v3999 = vadd.f32 0.0, %v3998
      %4000 = vmatmul.bf16.gmra.mxu0 %v3918
      %v4001 = vpop.f32.mrf.mxu0
      %v4002 = vadd.f32 0.0, %v4001
      %v4003 = vpop.f32.mrf.mxu0
      %v4004 = vadd.f32 0.0, %v4003
      %4005 = vmatmul.bf16.gmra.mxu0 %v3921
      %v4006 = vpop.f32.mrf.mxu0
      %v4007 = vadd.f32 0.0, %v4006
      %v4008 = vpop.f32.mrf.mxu0
      %v4009 = vadd.f32 0.0, %v4008
      %4010 = vmatmul.bf16.gmra.mxu0 %v3924
      %v4011 = vpop.f32.mrf.mxu0
      %v4012 = vadd.f32 0.0, %v4011
      %v4013 = vpop.f32.mrf.mxu0
      %v4014 = vadd.f32 0.0, %v4013
      %4015 = vmatmul.bf16.gmra.mxu0 %v3927
      %v4016 = vpop.f32.mrf.mxu0
      %v4017 = vadd.f32 0.0, %v4016
      %v4018 = vpop.f32.mrf.mxu0
      %v4019 = vadd.f32 0.0, %v4018
      %4020 = vdwg.mxu0
      %v4021 = vadd.f32 %v3301, %v3942
      %v4022 = vadd.f32 %v3303, %v3944
      %v4023 = vadd.f32 %v3306, %v3947
      %v4024 = vadd.f32 %v3308, %v3949
      %v4025 = vadd.f32 %v3311, %v3952
      %v4026 = vadd.f32 %v3313, %v3954
      %v4027 = vadd.f32 %v3316, %v3957
      %v4028 = vadd.f32 %v3318, %v3959
      %v4029 = vadd.f32 %v3321, %v3962
      %v4030 = vadd.f32 %v3323, %v3964
      %v4031 = vadd.f32 %v3326, %v3967
      %v4032 = vadd.f32 %v3328, %v3969
      %v4033 = vadd.f32 %v3331, %v3972
      %v4034 = vadd.f32 %v3333, %v3974
      %v4035 = vadd.f32 %v3336, %v3977
      %v4036 = vadd.f32 %v3338, %v3979
      %v4037 = vadd.f32 %v3341, %v3982
      %v4038 = vadd.f32 %v3343, %v3984
      %v4039 = vadd.f32 %v3346, %v3987
      %v4040 = vadd.f32 %v3348, %v3989
      %v4041 = vadd.f32 %v3351, %v3992
      %v4042 = vadd.f32 %v3353, %v3994
      %v4043 = vadd.f32 %v3356, %v3997
      %v4044 = vadd.f32 %v3358, %v3999
      %v4045 = vadd.f32 %v3361, %v4002
      %v4046 = vadd.f32 %v3363, %v4004
      %v4047 = vadd.f32 %v3366, %v4007
      %v4048 = vadd.f32 %v3368, %v4009
      %v4049 = vadd.f32 %v3371, %v4012
      %v4050 = vadd.f32 %v3373, %v4014
      %v4051 = vadd.f32 %v3376, %v4017
      %v4052 = vadd.f32 %v3378, %v4019
      %v4053 = vld [vmem:[%s1098] sm:$0xe]
      %v4054 = vld [vmem:[%s1098 + $0xc] sm:$0xe]
      %v4055 = vld [vmem:[%s1098 + $0x18] sm:$0xe]
      %v4056 = vld [vmem:[%s1098 + $0x24] sm:$0xe]
      %v4057 = vld [vmem:[%s1098 + $0x30] sm:$0xe]
      %v4058 = vld [vmem:[%s1098 + $0x3c] sm:$0xe]
      %v4059 = vld [vmem:[%s1098 + $0x48] sm:$0xe]
      %v4060 = vld [vmem:[%s1098 + $0x54] sm:$0xe]
      %v4061 = vld [vmem:[%s1098 + $0x60] sm:$0xe]
      %v4062 = vld [vmem:[%s1098 + $0x6c] sm:$0xe]
      %v4063 = vld [vmem:[%s1098 + $0x78] sm:$0xe]
      %v4064 = vld [vmem:[%s1098 + $0x84] sm:$0xe]
      %v4065 = vld [vmem:[%s1098 + $0x90] sm:$0xe]
      %v4066 = vld [vmem:[%s1098 + $0x9c] sm:$0xe]
      %v4067 = vld [vmem:[%s1098 + $0xa8] sm:$0xe]
      %v4068 = vld [vmem:[%s1098 + $0xb4] sm:$0xe]
      %v4117 = vrot.slane %v4053, 5
      %v4118 = vrot.slane %v4117, 4
      %v4119 = vrot.slane %v3381, 5
      %v4120 = vsel %vm2855, %v4118, %v4119
      %v4121 = vrot.slane %v4119, 4
      %v4122 = vrot.slane %v3382, 5
      %v4123 = vsel %vm2855, %v4121, %v4122
      %v4124 = vrot.slane %v4054, 5
      %v4125 = vrot.slane %v4124, 4
      %v4126 = vrot.slane %v3384, 5
      %v4127 = vsel %vm2855, %v4125, %v4126
      %v4128 = vrot.slane %v4126, 4
      %v4129 = vrot.slane %v3385, 5
      %v4130 = vsel %vm2855, %v4128, %v4129
      %v4131 = vrot.slane %v4055, 5
      %v4132 = vrot.slane %v4131, 4
      %v4133 = vrot.slane %v3387, 5
      %v4134 = vsel %vm2855, %v4132, %v4133
      %v4135 = vrot.slane %v4133, 4
      %v4136 = vrot.slane %v3388, 5
      %v4137 = vsel %vm2855, %v4135, %v4136
      %v4138 = vrot.slane %v4056, 5
      %v4139 = vrot.slane %v4138, 4
      %v4140 = vrot.slane %v3390, 5
      %v4141 = vsel %vm2855, %v4139, %v4140
      %v4142 = vrot.slane %v4140, 4
      %v4143 = vrot.slane %v3391, 5
      %v4144 = vsel %vm2855, %v4142, %v4143
      %v4145 = vrot.slane %v4057, 5
      %v4146 = vrot.slane %v4145, 4
      %v4147 = vrot.slane %v3393, 5
      %v4148 = vsel %vm2855, %v4146, %v4147
      %v4149 = vrot.slane %v4147, 4
      %v4150 = vrot.slane %v3394, 5
      %v4151 = vsel %vm2855, %v4149, %v4150
      %v4152 = vrot.slane %v4058, 5
      %v4153 = vrot.slane %v4152, 4
      %v4154 = vrot.slane %v3396, 5
      %v4155 = vsel %vm2855, %v4153, %v4154
      %v4156 = vrot.slane %v4154, 4
      %v4157 = vrot.slane %v3397, 5
      %v4158 = vsel %vm2855, %v4156, %v4157
      %v4159 = vrot.slane %v4059, 5
      %v4160 = vrot.slane %v4159, 4
      %v4161 = vrot.slane %v3399, 5
      %v4162 = vsel %vm2855, %v4160, %v4161
      %v4163 = vrot.slane %v4161, 4
      %v4164 = vrot.slane %v3400, 5
      %v4165 = vsel %vm2855, %v4163, %v4164
      %v4166 = vrot.slane %v4060, 5
      %v4167 = vrot.slane %v4166, 4
      %v4168 = vrot.slane %v3402, 5
      %v4169 = vsel %vm2855, %v4167, %v4168
      %v4170 = vrot.slane %v4168, 4
      %v4171 = vrot.slane %v3403, 5
      %v4172 = vsel %vm2855, %v4170, %v4171
      %v4173 = vrot.slane %v4061, 5
      %v4174 = vrot.slane %v4173, 4
      %v4175 = vrot.slane %v3405, 5
      %v4176 = vsel %vm2855, %v4174, %v4175
      %v4177 = vrot.slane %v4175, 4
      %v4178 = vrot.slane %v3406, 5
      %v4179 = vsel %vm2855, %v4177, %v4178
      %v4180 = vrot.slane %v4062, 5
      %v4181 = vrot.slane %v4180, 4
      %v4182 = vrot.slane %v3408, 5
      %v4183 = vsel %vm2855, %v4181, %v4182
      %v4184 = vrot.slane %v4182, 4
      %v4185 = vrot.slane %v3409, 5
      %v4186 = vsel %vm2855, %v4184, %v4185
      %v4187 = vrot.slane %v4063, 5
      %v4188 = vrot.slane %v4187, 4
      %v4189 = vrot.slane %v3411, 5
      %v4190 = vsel %vm2855, %v4188, %v4189
      %v4191 = vrot.slane %v4189, 4
      %v4192 = vrot.slane %v3412, 5
      %v4193 = vsel %vm2855, %v4191, %v4192
      %v4194 = vrot.slane %v4064, 5
      %v4195 = vrot.slane %v4194, 4
      %v4196 = vrot.slane %v3414, 5
      %v4197 = vsel %vm2855, %v4195, %v4196
      %v4198 = vrot.slane %v4196, 4
      %v4199 = vrot.slane %v3415, 5
      %v4200 = vsel %vm2855, %v4198, %v4199
      %v4201 = vrot.slane %v4065, 5
      %v4202 = vrot.slane %v4201, 4
      %v4203 = vrot.slane %v3417, 5
      %v4204 = vsel %vm2855, %v4202, %v4203
      %v4205 = vrot.slane %v4203, 4
      %v4206 = vrot.slane %v3418, 5
      %v4207 = vsel %vm2855, %v4205, %v4206
      %v4208 = vrot.slane %v4066, 5
      %v4209 = vrot.slane %v4208, 4
      %v4210 = vrot.slane %v3420, 5
      %v4211 = vsel %vm2855, %v4209, %v4210
      %v4212 = vrot.slane %v4210, 4
      %v4213 = vrot.slane %v3421, 5
      %v4214 = vsel %vm2855, %v4212, %v4213
      %v4215 = vrot.slane %v4067, 5
      %v4216 = vrot.slane %v4215, 4
      %v4217 = vrot.slane %v3423, 5
      %v4218 = vsel %vm2855, %v4216, %v4217
      %v4219 = vrot.slane %v4217, 4
      %v4220 = vrot.slane %v3424, 5
      %v4221 = vsel %vm2855, %v4219, %v4220
      %v4222 = vrot.slane %v4068, 5
      %v4223 = vrot.slane %v4222, 4
      %v4224 = vrot.slane %v3426, 5
      %v4225 = vsel %vm2855, %v4223, %v4224
      %v4226 = vrot.slane %v4224, 4
      %v4227 = vrot.slane %v3427, 5
      %v4228 = vsel %vm2855, %v4226, %v4227
      %s4229 = scalar_lea.vmem %s1, 140
      %v4230 = vld [vmem:[%s4229] sm:$0xf]
      %v4231 = vld [vmem:[%s4229 + $0x4] sm:$0xf]
      %v4232 = vld [vmem:[%s4229 + $0x8] sm:$0xf]
      %v4233 = vld [vmem:[%s4229 + $0xc] sm:$0xf]
      %v4234 = vld [vmem:[%s4229 + $0x10] sm:$0x1]
      %v4235 = vunpack.c.l.b16 %v4120
      %v4236 = vunpack.c.l.b16 %v4123
      %v4237 = vunpack.c.l.b16 %v4127
      %v4238 = vunpack.c.l.b16 %v4130
      %v4239 = vunpack.c.l.b16 %v4134
      %v4240 = vunpack.c.l.b16 %v4137
      %v4241 = vunpack.c.l.b16 %v4141
      %v4242 = vunpack.c.l.b16 %v4144
      %v4243 = vunpack.c.l.b16 %v4148
      %v4244 = vunpack.c.l.b16 %v4151
      %v4245 = vunpack.c.l.b16 %v4155
      %v4246 = vunpack.c.l.b16 %v4158
      %v4247 = vunpack.c.l.b16 %v4162
      %v4248 = vunpack.c.l.b16 %v4165
      %v4249 = vunpack.c.l.b16 %v4169
      %v4250 = vunpack.c.l.b16 %v4172
      %v4251 = vunpack.c.l.b16 %v4176
      %v4252 = vunpack.c.l.b16 %v4179
      %v4253 = vunpack.c.l.b16 %v4183
      %v4254 = vunpack.c.l.b16 %v4186
      %v4255 = vunpack.c.l.b16 %v4190
      %v4256 = vunpack.c.l.b16 %v4193
      %v4257 = vunpack.c.l.b16 %v4197
      %v4258 = vunpack.c.l.b16 %v4200
      %v4259 = vunpack.c.l.b16 %v4204
      %v4260 = vunpack.c.l.b16 %v4207
      %v4261 = vunpack.c.l.b16 %v4211
      %v4262 = vunpack.c.l.b16 %v4214
      %v4263 = vunpack.c.l.b16 %v4218
      %v4264 = vunpack.c.l.b16 %v4221
      %v4265 = vunpack.c.l.b16 %v4225
      %v4266 = vunpack.c.l.b16 %v4228
      %v4267 = vpack.c.b16 %v4236, %v4235
      %v4268 = vpack.c.b16 %v4238, %v4237
      %v4269 = vpack.c.b16 %v4240, %v4239
      %v4270 = vpack.c.b16 %v4242, %v4241
      %v4271 = vpack.c.b16 %v4244, %v4243
      %v4272 = vpack.c.b16 %v4246, %v4245
      %v4273 = vpack.c.b16 %v4248, %v4247
      %v4274 = vpack.c.b16 %v4250, %v4249
      %v4275 = vpack.c.b16 %v4252, %v4251
      %v4276 = vpack.c.b16 %v4254, %v4253
      %v4277 = vpack.c.b16 %v4256, %v4255
      %v4278 = vpack.c.b16 %v4258, %v4257
      %v4279 = vpack.c.b16 %v4260, %v4259
      %v4280 = vpack.c.b16 %v4262, %v4261
      %v4281 = vpack.c.b16 %v4264, %v4263
      %v4282 = vpack.c.b16 %v4266, %v4265
      %v4288 = vunpack.c.l.b16 %v4230
      %v4289 = vunpack.c.l.b16 %v4231
      %v4290 = vunpack.c.l.b16 %v4232
      %v4291 = vunpack.c.l.b16 %v4233
      %v4292 = vunpack.c.l.b16 %v4234
      %v4293 = vpack.c.b16 %v4289, %v4288
      %v4294 = vpack.c.b16 %v4291, %v4290
      %v4295 = vpack.c.b16 %v4292, %v4292
      %v4299 = vsel %vm719, %v4267, 0
      %v4302 = vsel %vm719, %v4268, 0
      %v4305 = vsel %vm719, %v4269, 0
      %v4308 = vsel %vm719, %v4270, 0
      %v4311 = vsel %vm719, %v4271, 0
      %v4314 = vsel %vm719, %v4272, 0
      %v4317 = vsel %vm719, %v4273, 0
      %v4320 = vsel %vm719, %v4274, 0
      %v4323 = vsel %vm719, %v4275, 0
      %v4326 = vsel %vm719, %v4276, 0
      %v4329 = vsel %vm719, %v4277, 0
      %v4332 = vsel %vm719, %v4278, 0
      %v4335 = vsel %vm719, %v4279, 0
      %v4338 = vsel %vm719, %v4280, 0
      %v4341 = vsel %vm719, %v4281, 0
      %v4344 = vsel %vm719, %v4282, 0
      %v4347 = vand.u32 %v4295, %v770
      %4349 = vmatpush.bf16.msra.mxu0 0
      %4350 = vmatpush.bf16.msra.mxu0 0
      %4351 = vmatpush.bf16.msra.mxu0 0
      %4352 = vmatpush.bf16.msra.mxu0 0
      %4353 = vmatpush.bf16.msra.mxu0 0
      %4354 = vmatpush.bf16.msra.mxu0 %v4347
      %4355 = vmatpush.bf16.msra.mxu0 %v4294
      %4356 = vmatpush.bf16.msra.mxu0 %v4293
      %4357 = vmatmul.bf16.gmra.mxu0 %v4299
      %v4358 = vpop.f32.mrf.mxu0
      %v4359 = vadd.f32 0.0, %v4358
      %v4360 = vpop.f32.mrf.mxu0
      %v4361 = vadd.f32 0.0, %v4360
      %4362 = vmatmul.bf16.gmra.mxu0 %v4302
      %v4363 = vpop.f32.mrf.mxu0
      %v4364 = vadd.f32 0.0, %v4363
      %v4365 = vpop.f32.mrf.mxu0
      %v4366 = vadd.f32 0.0, %v4365
      %4367 = vmatmul.bf16.gmra.mxu0 %v4305
      %v4368 = vpop.f32.mrf.mxu0
      %v4369 = vadd.f32 0.0, %v4368
      %v4370 = vpop.f32.mrf.mxu0
      %v4371 = vadd.f32 0.0, %v4370
      %4372 = vmatmul.bf16.gmra.mxu0 %v4308
      %v4373 = vpop.f32.mrf.mxu0
      %v4374 = vadd.f32 0.0, %v4373
      %v4375 = vpop.f32.mrf.mxu0
      %v4376 = vadd.f32 0.0, %v4375
      %4377 = vmatmul.bf16.gmra.mxu0 %v4311
      %v4378 = vpop.f32.mrf.mxu0
      %v4379 = vadd.f32 0.0, %v4378
      %v4380 = vpop.f32.mrf.mxu0
      %v4381 = vadd.f32 0.0, %v4380
      %4382 = vmatmul.bf16.gmra.mxu0 %v4314
      %v4383 = vpop.f32.mrf.mxu0
      %v4384 = vadd.f32 0.0, %v4383
      %v4385 = vpop.f32.mrf.mxu0
      %v4386 = vadd.f32 0.0, %v4385
      %4387 = vmatmul.bf16.gmra.mxu0 %v4317
      %v4388 = vpop.f32.mrf.mxu0
      %v4389 = vadd.f32 0.0, %v4388
      %v4390 = vpop.f32.mrf.mxu0
      %v4391 = vadd.f32 0.0, %v4390
      %4392 = vmatmul.bf16.gmra.mxu0 %v4320
      %v4393 = vpop.f32.mrf.mxu0
      %v4394 = vadd.f32 0.0, %v4393
      %v4395 = vpop.f32.mrf.mxu0
      %v4396 = vadd.f32 0.0, %v4395
      %4397 = vmatmul.bf16.gmra.mxu0 %v4323
      %v4398 = vpop.f32.mrf.mxu0
      %v4399 = vadd.f32 0.0, %v4398
      %v4400 = vpop.f32.mrf.mxu0
      %v4401 = vadd.f32 0.0, %v4400
      %4402 = vmatmul.bf16.gmra.mxu0 %v4326
      %v4403 = vpop.f32.mrf.mxu0
      %v4404 = vadd.f32 0.0, %v4403
      %v4405 = vpop.f32.mrf.mxu0
      %v4406 = vadd.f32 0.0, %v4405
      %4407 = vmatmul.bf16.gmra.mxu0 %v4329
      %v4408 = vpop.f32.mrf.mxu0
      %v4409 = vadd.f32 0.0, %v4408
      %v4410 = vpop.f32.mrf.mxu0
      %v4411 = vadd.f32 0.0, %v4410
      %4412 = vmatmul.bf16.gmra.mxu0 %v4332
      %v4413 = vpop.f32.mrf.mxu0
      %v4414 = vadd.f32 0.0, %v4413
      %v4415 = vpop.f32.mrf.mxu0
      %v4416 = vadd.f32 0.0, %v4415
      %4417 = vmatmul.bf16.gmra.mxu0 %v4335
      %v4418 = vpop.f32.mrf.mxu0
      %v4419 = vadd.f32 0.0, %v4418
      %v4420 = vpop.f32.mrf.mxu0
      %v4421 = vadd.f32 0.0, %v4420
      %4422 = vmatmul.bf16.gmra.mxu0 %v4338
      %v4423 = vpop.f32.mrf.mxu0
      %v4424 = vadd.f32 0.0, %v4423
      %v4425 = vpop.f32.mrf.mxu0
      %v4426 = vadd.f32 0.0, %v4425
      %4427 = vmatmul.bf16.gmra.mxu0 %v4341
      %v4428 = vpop.f32.mrf.mxu0
      %v4429 = vadd.f32 0.0, %v4428
      %v4430 = vpop.f32.mrf.mxu0
      %v4431 = vadd.f32 0.0, %v4430
      %4432 = vmatmul.bf16.gmra.mxu0 %v4344
      %v4433 = vpop.f32.mrf.mxu0
      %v4434 = vadd.f32 0.0, %v4433
      %v4435 = vpop.f32.mrf.mxu0
      %v4436 = vadd.f32 0.0, %v4435
      %4437 = vdwg.mxu0
      %v4438 = vadd.f32 %v4021, %v4359
      %v4439 = vadd.f32 %v4022, %v4361
      %v4440 = vadd.f32 %v4023, %v4364
      %v4441 = vadd.f32 %v4024, %v4366
      %v4442 = vadd.f32 %v4025, %v4369
      %v4443 = vadd.f32 %v4026, %v4371
      %v4444 = vadd.f32 %v4027, %v4374
      %v4445 = vadd.f32 %v4028, %v4376
      %v4446 = vadd.f32 %v4029, %v4379
      %v4447 = vadd.f32 %v4030, %v4381
      %v4448 = vadd.f32 %v4031, %v4384
      %v4449 = vadd.f32 %v4032, %v4386
      %v4450 = vadd.f32 %v4033, %v4389
      %v4451 = vadd.f32 %v4034, %v4391
      %v4452 = vadd.f32 %v4035, %v4394
      %v4453 = vadd.f32 %v4036, %v4396
      %v4454 = vadd.f32 %v4037, %v4399
      %v4455 = vadd.f32 %v4038, %v4401
      %v4456 = vadd.f32 %v4039, %v4404
      %v4457 = vadd.f32 %v4040, %v4406
      %v4458 = vadd.f32 %v4041, %v4409
      %v4459 = vadd.f32 %v4042, %v4411
      %v4460 = vadd.f32 %v4043, %v4414
      %v4461 = vadd.f32 %v4044, %v4416
      %v4462 = vadd.f32 %v4045, %v4419
      %v4463 = vadd.f32 %v4046, %v4421
      %v4464 = vadd.f32 %v4047, %v4424
      %v4465 = vadd.f32 %v4048, %v4426
      %v4466 = vadd.f32 %v4049, %v4429
      %v4467 = vadd.f32 %v4050, %v4431
      %v4468 = vadd.f32 %v4051, %v4434
      %v4469 = vadd.f32 %v4052, %v4436
      %v4470 = vld [vmem:[%s2] sm:$0x1]
      %v4472 = vperm.slane %v4470, 0
      %v4474 = vadd.f32 %v4438, %v4472
      %v4475 = vadd.f32 %v4439, %v4472
      %v4476 = vadd.f32 %v4440, %v4472
      %v4477 = vadd.f32 %v4441, %v4472
      %v4478 = vadd.f32 %v4442, %v4472
      %v4479 = vadd.f32 %v4443, %v4472
      %v4480 = vadd.f32 %v4444, %v4472
      %v4481 = vadd.f32 %v4445, %v4472
      %v4482 = vadd.f32 %v4446, %v4472
      %v4483 = vadd.f32 %v4447, %v4472
      %v4484 = vadd.f32 %v4448, %v4472
      %v4485 = vadd.f32 %v4449, %v4472
      %v4486 = vadd.f32 %v4450, %v4472
      %v4487 = vadd.f32 %v4451, %v4472
      %v4488 = vadd.f32 %v4452, %v4472
      %v4489 = vadd.f32 %v4453, %v4472
      %v4490 = vadd.f32 %v4454, %v4472
      %v4491 = vadd.f32 %v4455, %v4472
      %v4492 = vadd.f32 %v4456, %v4472
      %v4493 = vadd.f32 %v4457, %v4472
      %v4494 = vadd.f32 %v4458, %v4472
      %v4495 = vadd.f32 %v4459, %v4472
      %v4496 = vadd.f32 %v4460, %v4472
      %v4497 = vadd.f32 %v4461, %v4472
      %v4498 = vadd.f32 %v4462, %v4472
      %v4499 = vadd.f32 %v4463, %v4472
      %v4500 = vadd.f32 %v4464, %v4472
      %v4501 = vadd.f32 %v4465, %v4472
      %v4502 = vadd.f32 %v4466, %v4472
      %v4503 = vadd.f32 %v4467, %v4472
      %v4504 = vadd.f32 %v4468, %v4472
      %v4505 = vadd.f32 %v4469, %v4472
      %v4506 = vpack.c.bf16 %v4474, %v4474
      %v4507 = vpack.c.bf16 %v4475, %v4475
      %v4508 = vpack.c.bf16 %v4476, %v4476
      %v4509 = vpack.c.bf16 %v4477, %v4477
      %v4510 = vpack.c.bf16 %v4478, %v4478
      %v4511 = vpack.c.bf16 %v4479, %v4479
      %v4512 = vpack.c.bf16 %v4480, %v4480
      %v4513 = vpack.c.bf16 %v4481, %v4481
      %v4514 = vpack.c.bf16 %v4482, %v4482
      %v4515 = vpack.c.bf16 %v4483, %v4483
      %v4516 = vpack.c.bf16 %v4484, %v4484
      %v4517 = vpack.c.bf16 %v4485, %v4485
      %v4518 = vpack.c.bf16 %v4486, %v4486
      %v4519 = vpack.c.bf16 %v4487, %v4487
      %v4520 = vpack.c.bf16 %v4488, %v4488
      %v4521 = vpack.c.bf16 %v4489, %v4489
      %v4522 = vpack.c.bf16 %v4490, %v4490
      %v4523 = vpack.c.bf16 %v4491, %v4491
      %v4524 = vpack.c.bf16 %v4492, %v4492
      %v4525 = vpack.c.bf16 %v4493, %v4493
      %v4526 = vpack.c.bf16 %v4494, %v4494
      %v4527 = vpack.c.bf16 %v4495, %v4495
      %v4528 = vpack.c.bf16 %v4496, %v4496
      %v4529 = vpack.c.bf16 %v4497, %v4497
      %v4530 = vpack.c.bf16 %v4498, %v4498
      %v4531 = vpack.c.bf16 %v4499, %v4499
      %v4532 = vpack.c.bf16 %v4500, %v4500
      %v4533 = vpack.c.bf16 %v4501, %v4501
      %v4534 = vpack.c.bf16 %v4502, %v4502
      %v4535 = vpack.c.bf16 %v4503, %v4503
      %v4536 = vpack.c.bf16 %v4504, %v4504
      %v4537 = vpack.c.bf16 %v4505, %v4505
      %s4538 = scalar_lea.vmem %s204, 128
      %4539 = vst.msk [vmem:[%s4538] sm:$0xf] %vm2145, %v4506
      %4540 = vst.msk [vmem:[%s4538 + $0x4] sm:$0xf] %vm2145, %v4507
      %4541 = vst.msk [vmem:[%s4538 + $0x8] sm:$0xf] %vm2145, %v4508
      %4542 = vst.msk [vmem:[%s4538 + $0xc] sm:$0xf] %vm2145, %v4509
      %4543 = vst.msk [vmem:[%s4538 + $0x10] sm:$0xf] %vm2145, %v4510
      %4544 = vst.msk [vmem:[%s4538 + $0x14] sm:$0xf] %vm2145, %v4511
      %4545 = vst.msk [vmem:[%s4538 + $0x18] sm:$0xf] %vm2145, %v4512
      %4546 = vst.msk [vmem:[%s4538 + $0x1c] sm:$0xf] %vm2145, %v4513
      %4547 = vst.msk [vmem:[%s4538 + $0x20] sm:$0xf] %vm2145, %v4514
      %4548 = vst.msk [vmem:[%s4538 + $0x24] sm:$0xf] %vm2145, %v4515
      %4549 = vst.msk [vmem:[%s4538 + $0x28] sm:$0xf] %vm2145, %v4516
      %4550 = vst.msk [vmem:[%s4538 + $0x2c] sm:$0xf] %vm2145, %v4517
      %4551 = vst.msk [vmem:[%s4538 + $0x30] sm:$0xf] %vm2145, %v4518
      %4552 = vst.msk [vmem:[%s4538 + $0x34] sm:$0xf] %vm2145, %v4519
      %4553 = vst.msk [vmem:[%s4538 + $0x38] sm:$0xf] %vm2145, %v4520
      %4554 = vst.msk [vmem:[%s4538 + $0x3c] sm:$0xf] %vm2145, %v4521
      %4555 = vst.msk [vmem:[%s4538 + $0x40] sm:$0xf] %vm2145, %v4522
      %4556 = vst.msk [vmem:[%s4538 + $0x44] sm:$0xf] %vm2145, %v4523
      %4557 = vst.msk [vmem:[%s4538 + $0x48] sm:$0xf] %vm2145, %v4524
      %4558 = vst.msk [vmem:[%s4538 + $0x4c] sm:$0xf] %vm2145, %v4525
      %4559 = vst.msk [vmem:[%s4538 + $0x50] sm:$0xf] %vm2145, %v4526
      %4560 = vst.msk [vmem:[%s4538 + $0x54] sm:$0xf] %vm2145, %v4527
      %4561 = vst.msk [vmem:[%s4538 + $0x58] sm:$0xf] %vm2145, %v4528
      %4562 = vst.msk [vmem:[%s4538 + $0x5c] sm:$0xf] %vm2145, %v4529
      %4563 = vst.msk [vmem:[%s4538 + $0x60] sm:$0xf] %vm2145, %v4530
      %4564 = vst.msk [vmem:[%s4538 + $0x64] sm:$0xf] %vm2145, %v4531
      %4565 = vst.msk [vmem:[%s4538 + $0x68] sm:$0xf] %vm2145, %v4532
      %4566 = vst.msk [vmem:[%s4538 + $0x6c] sm:$0xf] %vm2145, %v4533
      %4567 = vst.msk [vmem:[%s4538 + $0x70] sm:$0xf] %vm2145, %v4534
      %4568 = vst.msk [vmem:[%s4538 + $0x74] sm:$0xf] %vm2145, %v4535
      %4569 = vst.msk [vmem:[%s4538 + $0x78] sm:$0xf] %vm2145, %v4536
      %4570 = vst.msk [vmem:[%s4538 + $0x7c] sm:$0xf] %vm2145, %v4537
      %v4571 = vsel %vm2178, %v4474, 0.0
      %v4572 = vsel %vm2178, %v4475, 0.0
      %v4573 = vadd.f32 %v4571, %v4572
      %v4574 = vsel %vm2178, %v4476, 0.0
      %v4575 = vadd.f32 %v4573, %v4574
      %v4576 = vsel %vm2178, %v4477, 0.0
      %v4577 = vadd.f32 %v4575, %v4576
      %v4578 = vsel %vm2178, %v4478, 0.0
      %v4579 = vadd.f32 %v4577, %v4578
      %v4580 = vsel %vm2178, %v4479, 0.0
      %v4581 = vadd.f32 %v4579, %v4580
      %v4582 = vsel %vm2178, %v4480, 0.0
      %v4583 = vadd.f32 %v4581, %v4582
      %v4584 = vsel %vm2178, %v4481, 0.0
      %v4585 = vadd.f32 %v4583, %v4584
      %v4586 = vsel %vm2178, %v4482, 0.0
      %v4587 = vadd.f32 %v4585, %v4586
      %v4588 = vsel %vm2178, %v4483, 0.0
      %v4589 = vadd.f32 %v4587, %v4588
      %v4590 = vsel %vm2178, %v4484, 0.0
      %v4591 = vadd.f32 %v4589, %v4590
      %v4592 = vsel %vm2178, %v4485, 0.0
      %v4593 = vadd.f32 %v4591, %v4592
      %v4594 = vsel %vm2178, %v4486, 0.0
      %v4595 = vadd.f32 %v4593, %v4594
      %v4596 = vsel %vm2178, %v4487, 0.0
      %v4597 = vadd.f32 %v4595, %v4596
      %v4598 = vsel %vm2178, %v4488, 0.0
      %v4599 = vadd.f32 %v4597, %v4598
      %v4600 = vsel %vm2178, %v4489, 0.0
      %v4601 = vadd.f32 %v4599, %v4600
      %v4602 = vsel %vm2178, %v4490, 0.0
      %v4603 = vadd.f32 %v4601, %v4602
      %v4604 = vsel %vm2178, %v4491, 0.0
      %v4605 = vadd.f32 %v4603, %v4604
      %v4606 = vsel %vm2178, %v4492, 0.0
      %v4607 = vadd.f32 %v4605, %v4606
      %v4608 = vsel %vm2178, %v4493, 0.0
      %v4609 = vadd.f32 %v4607, %v4608
      %v4610 = vsel %vm2178, %v4494, 0.0
      %v4611 = vadd.f32 %v4609, %v4610
      %v4612 = vsel %vm2178, %v4495, 0.0
      %v4613 = vadd.f32 %v4611, %v4612
      %v4614 = vsel %vm2178, %v4496, 0.0
      %v4615 = vadd.f32 %v4613, %v4614
      %v4616 = vsel %vm2178, %v4497, 0.0
      %v4617 = vadd.f32 %v4615, %v4616
      %v4618 = vsel %vm2178, %v4498, 0.0
      %v4619 = vadd.f32 %v4617, %v4618
      %v4620 = vsel %vm2178, %v4499, 0.0
      %v4621 = vadd.f32 %v4619, %v4620
      %v4622 = vsel %vm2178, %v4500, 0.0
      %v4623 = vadd.f32 %v4621, %v4622
      %v4624 = vsel %vm2178, %v4501, 0.0
      %v4625 = vadd.f32 %v4623, %v4624
      %v4626 = vsel %vm2178, %v4502, 0.0
      %v4627 = vadd.f32 %v4625, %v4626
      %v4628 = vsel %vm2178, %v4503, 0.0
      %v4629 = vadd.f32 %v4627, %v4628
      %v4630 = vsel %vm2178, %v4504, 0.0
      %v4631 = vadd.f32 %v4629, %v4630
      %v4632 = vsel %vm2178, %v4505, 0.0
      %v4633 = vadd.f32 %v4631, %v4632
      %v4634 = vrot.slane %v4633, 4
      %v4635 = vadd.f32 %v4633, %v4634
      %v4636 = vrot.slane %v4635, 2
      %v4637 = vadd.f32 %v4635, %v4636
      %v4638 = vrot.slane %v4637, 1
      %v4639 = vadd.f32 %v4637, %v4638
      %v4640 = vadd.f32 %v2248, %v4639
      %v4641 = vmul.f32 %v4474, %v4474
      %v4642 = vmul.f32 %v4475, %v4475
      %v4643 = vmul.f32 %v4476, %v4476
      %v4644 = vmul.f32 %v4477, %v4477
      %v4645 = vmul.f32 %v4478, %v4478
      %v4646 = vmul.f32 %v4479, %v4479
      %v4647 = vmul.f32 %v4480, %v4480
      %v4648 = vmul.f32 %v4481, %v4481
      %v4649 = vmul.f32 %v4482, %v4482
      %v4650 = vmul.f32 %v4483, %v4483
      %v4651 = vmul.f32 %v4484, %v4484
      %v4652 = vmul.f32 %v4485, %v4485
      %v4653 = vmul.f32 %v4486, %v4486
      %v4654 = vmul.f32 %v4487, %v4487
      %v4655 = vmul.f32 %v4488, %v4488
      %v4656 = vmul.f32 %v4489, %v4489
      %v4657 = vmul.f32 %v4490, %v4490
      %v4658 = vmul.f32 %v4491, %v4491
      %v4659 = vmul.f32 %v4492, %v4492
      %v4660 = vmul.f32 %v4493, %v4493
      %v4661 = vmul.f32 %v4494, %v4494
      %v4662 = vmul.f32 %v4495, %v4495
      %v4663 = vmul.f32 %v4496, %v4496
      %v4664 = vmul.f32 %v4497, %v4497
      %v4665 = vmul.f32 %v4498, %v4498
      %v4666 = vmul.f32 %v4499, %v4499
      %v4667 = vmul.f32 %v4500, %v4500
      %v4668 = vmul.f32 %v4501, %v4501
      %v4669 = vmul.f32 %v4502, %v4502
      %v4670 = vmul.f32 %v4503, %v4503
      %v4671 = vmul.f32 %v4504, %v4504
      %v4672 = vmul.f32 %v4505, %v4505
      %v4673 = vsel %vm2178, %v4641, 0.0
      %v4674 = vsel %vm2178, %v4642, 0.0
      %v4675 = vadd.f32 %v4673, %v4674
      %v4676 = vsel %vm2178, %v4643, 0.0
      %v4677 = vadd.f32 %v4675, %v4676
      %v4678 = vsel %vm2178, %v4644, 0.0
      %v4679 = vadd.f32 %v4677, %v4678
      %v4680 = vsel %vm2178, %v4645, 0.0
      %v4681 = vadd.f32 %v4679, %v4680
      %v4682 = vsel %vm2178, %v4646, 0.0
      %v4683 = vadd.f32 %v4681, %v4682
      %v4684 = vsel %vm2178, %v4647, 0.0
      %v4685 = vadd.f32 %v4683, %v4684
      %v4686 = vsel %vm2178, %v4648, 0.0
      %v4687 = vadd.f32 %v4685, %v4686
      %v4688 = vsel %vm2178, %v4649, 0.0
      %v4689 = vadd.f32 %v4687, %v4688
      %v4690 = vsel %vm2178, %v4650, 0.0
      %v4691 = vadd.f32 %v4689, %v4690
      %v4692 = vsel %vm2178, %v4651, 0.0
      %v4693 = vadd.f32 %v4691, %v4692
      %v4694 = vsel %vm2178, %v4652, 0.0
      %v4695 = vadd.f32 %v4693, %v4694
      %v4696 = vsel %vm2178, %v4653, 0.0
      %v4697 = vadd.f32 %v4695, %v4696
      %v4698 = vsel %vm2178, %v4654, 0.0
      %v4699 = vadd.f32 %v4697, %v4698
      %v4700 = vsel %vm2178, %v4655, 0.0
      %v4701 = vadd.f32 %v4699, %v4700
      %v4702 = vsel %vm2178, %v4656, 0.0
      %v4703 = vadd.f32 %v4701, %v4702
      %v4704 = vsel %vm2178, %v4657, 0.0
      %v4705 = vadd.f32 %v4703, %v4704
      %v4706 = vsel %vm2178, %v4658, 0.0
      %v4707 = vadd.f32 %v4705, %v4706
      %v4708 = vsel %vm2178, %v4659, 0.0
      %v4709 = vadd.f32 %v4707, %v4708
      %v4710 = vsel %vm2178, %v4660, 0.0
      %v4711 = vadd.f32 %v4709, %v4710
      %v4712 = vsel %vm2178, %v4661, 0.0
      %v4713 = vadd.f32 %v4711, %v4712
      %v4714 = vsel %vm2178, %v4662, 0.0
      %v4715 = vadd.f32 %v4713, %v4714
      %v4716 = vsel %vm2178, %v4663, 0.0
      %v4717 = vadd.f32 %v4715, %v4716
      %v4718 = vsel %vm2178, %v4664, 0.0
      %v4719 = vadd.f32 %v4717, %v4718
      %v4720 = vsel %vm2178, %v4665, 0.0
      %v4721 = vadd.f32 %v4719, %v4720
      %v4722 = vsel %vm2178, %v4666, 0.0
      %v4723 = vadd.f32 %v4721, %v4722
      %v4724 = vsel %vm2178, %v4667, 0.0
      %v4725 = vadd.f32 %v4723, %v4724
      %v4726 = vsel %vm2178, %v4668, 0.0
      %v4727 = vadd.f32 %v4725, %v4726
      %v4728 = vsel %vm2178, %v4669, 0.0
      %v4729 = vadd.f32 %v4727, %v4728
      %v4730 = vsel %vm2178, %v4670, 0.0
      %v4731 = vadd.f32 %v4729, %v4730
      %v4732 = vsel %vm2178, %v4671, 0.0
      %v4733 = vadd.f32 %v4731, %v4732
      %v4734 = vsel %vm2178, %v4672, 0.0
      %v4735 = vadd.f32 %v4733, %v4734
      %v4736 = vrot.slane %v4735, 4
      %v4737 = vadd.f32 %v4735, %v4736
      %v4738 = vrot.slane %v4737, 2
      %v4739 = vadd.f32 %v4737, %v4738
      %v4740 = vrot.slane %v4739, 1
      %v4741 = vadd.f32 %v4739, %v4740
      %v4742 = vadd.f32 %v2350, %v4741
      %v4743 = vld [vmem:[%s1098] sm:$0xf]
      %v4744 = vld [vmem:[%s1098 + $0x4] sm:$0xf]
      %v4745 = vld [vmem:[%s1098 + $0xc] sm:$0xf]
      %v4746 = vld [vmem:[%s1098 + $0x10] sm:$0xf]
      %v4747 = vld [vmem:[%s1098 + $0x18] sm:$0xf]
      %v4748 = vld [vmem:[%s1098 + $0x1c] sm:$0xf]
      %v4749 = vld [vmem:[%s1098 + $0x24] sm:$0xf]
      %v4750 = vld [vmem:[%s1098 + $0x28] sm:$0xf]
      %v4751 = vld [vmem:[%s1098 + $0x30] sm:$0xf]
      %v4752 = vld [vmem:[%s1098 + $0x34] sm:$0xf]
      %v4753 = vld [vmem:[%s1098 + $0x3c] sm:$0xf]
      %v4754 = vld [vmem:[%s1098 + $0x40] sm:$0xf]
      %v4755 = vld [vmem:[%s1098 + $0x48] sm:$0xf]
      %v4756 = vld [vmem:[%s1098 + $0x4c] sm:$0xf]
      %v4757 = vld [vmem:[%s1098 + $0x54] sm:$0xf]
      %v4758 = vld [vmem:[%s1098 + $0x58] sm:$0xf]
      %v4759 = vld [vmem:[%s1098 + $0x60] sm:$0xf]
      %v4760 = vld [vmem:[%s1098 + $0x64] sm:$0xf]
      %v4761 = vld [vmem:[%s1098 + $0x6c] sm:$0xf]
      %v4762 = vld [vmem:[%s1098 + $0x70] sm:$0xf]
      %v4763 = vld [vmem:[%s1098 + $0x78] sm:$0xf]
      %v4764 = vld [vmem:[%s1098 + $0x7c] sm:$0xf]
      %v4765 = vld [vmem:[%s1098 + $0x84] sm:$0xf]
      %v4766 = vld [vmem:[%s1098 + $0x88] sm:$0xf]
      %v4767 = vld [vmem:[%s1098 + $0x90] sm:$0xf]
      %v4768 = vld [vmem:[%s1098 + $0x94] sm:$0xf]
      %v4769 = vld [vmem:[%s1098 + $0x9c] sm:$0xf]
      %v4770 = vld [vmem:[%s1098 + $0xa0] sm:$0xf]
      %v4771 = vld [vmem:[%s1098 + $0xa8] sm:$0xf]
      %v4772 = vld [vmem:[%s1098 + $0xac] sm:$0xf]
      %v4773 = vld [vmem:[%s1098 + $0xb4] sm:$0xf]
      %v4774 = vld [vmem:[%s1098 + $0xb8] sm:$0xf]
      %s4775 = scalar_lea.vmem %s1, 160
      %v4776 = vld [vmem:[%s4775] sm:$0xf]
      %v4777 = vld [vmem:[%s4775 + $0x4] sm:$0xf]
      %v4778 = vld [vmem:[%s4775 + $0x8] sm:$0xf]
      %v4779 = vld [vmem:[%s4775 + $0xc] sm:$0xf]
      %v4780 = vld [vmem:[%s4775 + $0x10] sm:$0x1]
      %v4781 = vld [vmem:[%s1098 + $0x8] sm:$0x1]
      %v4782 = vld [vmem:[%s1098 + $0x14] sm:$0x1]
      %v4783 = vld [vmem:[%s1098 + $0x20] sm:$0x1]
      %v4784 = vld [vmem:[%s1098 + $0x2c] sm:$0x1]
      %v4785 = vld [vmem:[%s1098 + $0x38] sm:$0x1]
      %v4786 = vld [vmem:[%s1098 + $0x44] sm:$0x1]
      %v4787 = vld [vmem:[%s1098 + $0x50] sm:$0x1]
      %v4788 = vld [vmem:[%s1098 + $0x5c] sm:$0x1]
      %v4789 = vld [vmem:[%s1098 + $0x68] sm:$0x1]
      %v4790 = vld [vmem:[%s1098 + $0x74] sm:$0x1]
      %v4791 = vld [vmem:[%s1098 + $0x80] sm:$0x1]
      %v4792 = vld [vmem:[%s1098 + $0x8c] sm:$0x1]
      %v4793 = vld [vmem:[%s1098 + $0x98] sm:$0x1]
      %v4794 = vld [vmem:[%s1098 + $0xa4] sm:$0x1]
      %v4795 = vld [vmem:[%s1098 + $0xb0] sm:$0x1]
      %v4796 = vld [vmem:[%s1098 + $0xbc] sm:$0x1]
      %v4798 = vshrl.u32 %v4743, 16
      %v4800 = vrot.slane %v4798, 4
      %v4801 = vshll.u32 %v4743, 16
      %v4803 = vrot.slane %v4801, 5
      %v4804 = vor.u32 %v4800, %v4803
      %v4805 = vrot.slane %v4804, 4
      %v4807 = vshll.u32 %v4744, 16
      %v4809 = vrot.slane %v4807, 5
      %v4810 = vsel %vm265, %v4805, %v4809
      %v4811 = vshrl.u32 %v4744, 16
      %v4813 = vrot.slane %v4811, 4
      %v4814 = vor.u32 %v4813, %v4809
      %v4815 = vrot.slane %v4814, 4
      %v4817 = vshll.u32 %v4781, 16
      %v4819 = vrot.slane %v4817, 5
      %v4820 = vsel %vm265, %v4815, %v4819
      %v4822 = vshrl.u32 %v4745, 16
      %v4824 = vrot.slane %v4822, 4
      %v4825 = vshll.u32 %v4745, 16
      %v4827 = vrot.slane %v4825, 5
      %v4828 = vor.u32 %v4824, %v4827
      %v4829 = vrot.slane %v4828, 4
      %v4831 = vshll.u32 %v4746, 16
      %v4833 = vrot.slane %v4831, 5
      %v4834 = vsel %vm265, %v4829, %v4833
      %v4835 = vshrl.u32 %v4746, 16
      %v4837 = vrot.slane %v4835, 4
      %v4838 = vor.u32 %v4837, %v4833
      %v4839 = vrot.slane %v4838, 4
      %v4841 = vshll.u32 %v4782, 16
      %v4843 = vrot.slane %v4841, 5
      %v4844 = vsel %vm265, %v4839, %v4843
      %v4846 = vshrl.u32 %v4747, 16
      %v4848 = vrot.slane %v4846, 4
      %v4849 = vshll.u32 %v4747, 16
      %v4851 = vrot.slane %v4849, 5
      %v4852 = vor.u32 %v4848, %v4851
      %v4853 = vrot.slane %v4852, 4
      %v4855 = vshll.u32 %v4748, 16
      %v4857 = vrot.slane %v4855, 5
      %v4858 = vsel %vm265, %v4853, %v4857
      %v4859 = vshrl.u32 %v4748, 16
      %v4861 = vrot.slane %v4859, 4
      %v4862 = vor.u32 %v4861, %v4857
      %v4863 = vrot.slane %v4862, 4
      %v4865 = vshll.u32 %v4783, 16
      %v4867 = vrot.slane %v4865, 5
      %v4868 = vsel %vm265, %v4863, %v4867
      %v4870 = vshrl.u32 %v4749, 16
      %v4872 = vrot.slane %v4870, 4
      %v4873 = vshll.u32 %v4749, 16
      %v4875 = vrot.slane %v4873, 5
      %v4876 = vor.u32 %v4872, %v4875
      %v4877 = vrot.slane %v4876, 4
      %v4879 = vshll.u32 %v4750, 16
      %v4881 = vrot.slane %v4879, 5
      %v4882 = vsel %vm265, %v4877, %v4881
      %v4883 = vshrl.u32 %v4750, 16
      %v4885 = vrot.slane %v4883, 4
      %v4886 = vor.u32 %v4885, %v4881
      %v4887 = vrot.slane %v4886, 4
      %v4889 = vshll.u32 %v4784, 16
      %v4891 = vrot.slane %v4889, 5
      %v4892 = vsel %vm265, %v4887, %v4891
      %v4894 = vshrl.u32 %v4751, 16
      %v4896 = vrot.slane %v4894, 4
      %v4897 = vshll.u32 %v4751, 16
      %v4899 = vrot.slane %v4897, 5
      %v4900 = vor.u32 %v4896, %v4899
      %v4901 = vrot.slane %v4900, 4
      %v4903 = vshll.u32 %v4752, 16
      %v4905 = vrot.slane %v4903, 5
      %v4906 = vsel %vm265, %v4901, %v4905
      %v4907 = vshrl.u32 %v4752, 16
      %v4909 = vrot.slane %v4907, 4
      %v4910 = vor.u32 %v4909, %v4905
      %v4911 = vrot.slane %v4910, 4
      %v4913 = vshll.u32 %v4785, 16
      %v4915 = vrot.slane %v4913, 5
      %v4916 = vsel %vm265, %v4911, %v4915
      %v4918 = vshrl.u32 %v4753, 16
      %v4920 = vrot.slane %v4918, 4
      %v4921 = vshll.u32 %v4753, 16
      %v4923 = vrot.slane %v4921, 5
      %v4924 = vor.u32 %v4920, %v4923
      %v4925 = vrot.slane %v4924, 4
      %v4927 = vshll.u32 %v4754, 16
      %v4929 = vrot.slane %v4927, 5
      %v4930 = vsel %vm265, %v4925, %v4929
      %v4931 = vshrl.u32 %v4754, 16
      %v4933 = vrot.slane %v4931, 4
      %v4934 = vor.u32 %v4933, %v4929
      %v4935 = vrot.slane %v4934, 4
      %v4937 = vshll.u32 %v4786, 16
      %v4939 = vrot.slane %v4937, 5
      %v4940 = vsel %vm265, %v4935, %v4939
      %v4942 = vshrl.u32 %v4755, 16
      %v4944 = vrot.slane %v4942, 4
      %v4945 = vshll.u32 %v4755, 16
      %v4947 = vrot.slane %v4945, 5
      %v4948 = vor.u32 %v4944, %v4947
      %v4949 = vrot.slane %v4948, 4
      %v4951 = vshll.u32 %v4756, 16
      %v4953 = vrot.slane %v4951, 5
      %v4954 = vsel %vm265, %v4949, %v4953
      %v4955 = vshrl.u32 %v4756, 16
      %v4957 = vrot.slane %v4955, 4
      %v4958 = vor.u32 %v4957, %v4953
      %v4959 = vrot.slane %v4958, 4
      %v4961 = vshll.u32 %v4787, 16
      %v4963 = vrot.slane %v4961, 5
      %v4964 = vsel %vm265, %v4959, %v4963
      %v4966 = vshrl.u32 %v4757, 16
      %v4968 = vrot.slane %v4966, 4
      %v4969 = vshll.u32 %v4757, 16
      %v4971 = vrot.slane %v4969, 5
      %v4972 = vor.u32 %v4968, %v4971
      %v4973 = vrot.slane %v4972, 4
      %v4975 = vshll.u32 %v4758, 16
      %v4977 = vrot.slane %v4975, 5
      %v4978 = vsel %vm265, %v4973, %v4977
      %v4979 = vshrl.u32 %v4758, 16
      %v4981 = vrot.slane %v4979, 4
      %v4982 = vor.u32 %v4981, %v4977
      %v4983 = vrot.slane %v4982, 4
      %v4985 = vshll.u32 %v4788, 16
      %v4987 = vrot.slane %v4985, 5
      %v4988 = vsel %vm265, %v4983, %v4987
      %v4990 = vshrl.u32 %v4759, 16
      %v4992 = vrot.slane %v4990, 4
      %v4993 = vshll.u32 %v4759, 16
      %v4995 = vrot.slane %v4993, 5
      %v4996 = vor.u32 %v4992, %v4995
      %v4997 = vrot.slane %v4996, 4
      %v4999 = vshll.u32 %v4760, 16
      %v5001 = vrot.slane %v4999, 5
      %v5002 = vsel %vm265, %v4997, %v5001
      %v5003 = vshrl.u32 %v4760, 16
      %v5005 = vrot.slane %v5003, 4
      %v5006 = vor.u32 %v5005, %v5001
      %v5007 = vrot.slane %v5006, 4
      %v5009 = vshll.u32 %v4789, 16
      %v5011 = vrot.slane %v5009, 5
      %v5012 = vsel %vm265, %v5007, %v5011
      %v5014 = vshrl.u32 %v4761, 16
      %v5016 = vrot.slane %v5014, 4
      %v5017 = vshll.u32 %v4761, 16
      %v5019 = vrot.slane %v5017, 5
      %v5020 = vor.u32 %v5016, %v5019
      %v5021 = vrot.slane %v5020, 4
      %v5023 = vshll.u32 %v4762, 16
      %v5025 = vrot.slane %v5023, 5
      %v5026 = vsel %vm265, %v5021, %v5025
      %v5027 = vshrl.u32 %v4762, 16
      %v5029 = vrot.slane %v5027, 4
      %v5030 = vor.u32 %v5029, %v5025
      %v5031 = vrot.slane %v5030, 4
      %v5033 = vshll.u32 %v4790, 16
      %v5035 = vrot.slane %v5033, 5
      %v5036 = vsel %vm265, %v5031, %v5035
      %v5038 = vshrl.u32 %v4763, 16
      %v5040 = vrot.slane %v5038, 4
      %v5041 = vshll.u32 %v4763, 16
      %v5043 = vrot.slane %v5041, 5
      %v5044 = vor.u32 %v5040, %v5043
      %v5045 = vrot.slane %v5044, 4
      %v5047 = vshll.u32 %v4764, 16
      %v5049 = vrot.slane %v5047, 5
      %v5050 = vsel %vm265, %v5045, %v5049
      %v5051 = vshrl.u32 %v4764, 16
      %v5053 = vrot.slane %v5051, 4
      %v5054 = vor.u32 %v5053, %v5049
      %v5055 = vrot.slane %v5054, 4
      %v5057 = vshll.u32 %v4791, 16
      %v5059 = vrot.slane %v5057, 5
      %v5060 = vsel %vm265, %v5055, %v5059
      %v5062 = vshrl.u32 %v4765, 16
      %v5064 = vrot.slane %v5062, 4
      %v5065 = vshll.u32 %v4765, 16
      %v5067 = vrot.slane %v5065, 5
      %v5068 = vor.u32 %v5064, %v5067
      %v5069 = vrot.slane %v5068, 4
      %v5071 = vshll.u32 %v4766, 16
      %v5073 = vrot.slane %v5071, 5
      %v5074 = vsel %vm265, %v5069, %v5073
      %v5075 = vshrl.u32 %v4766, 16
      %v5077 = vrot.slane %v5075, 4
      %v5078 = vor.u32 %v5077, %v5073
      %v5079 = vrot.slane %v5078, 4
      %v5081 = vshll.u32 %v4792, 16
      %v5083 = vrot.slane %v5081, 5
      %v5084 = vsel %vm265, %v5079, %v5083
      %v5086 = vshrl.u32 %v4767, 16
      %v5088 = vrot.slane %v5086, 4
      %v5089 = vshll.u32 %v4767, 16
      %v5091 = vrot.slane %v5089, 5
      %v5092 = vor.u32 %v5088, %v5091
      %v5093 = vrot.slane %v5092, 4
      %v5095 = vshll.u32 %v4768, 16
      %v5097 = vrot.slane %v5095, 5
      %v5098 = vsel %vm265, %v5093, %v5097
      %v5099 = vshrl.u32 %v4768, 16
      %v5101 = vrot.slane %v5099, 4
      %v5102 = vor.u32 %v5101, %v5097
      %v5103 = vrot.slane %v5102, 4
      %v5105 = vshll.u32 %v4793, 16
      %v5107 = vrot.slane %v5105, 5
      %v5108 = vsel %vm265, %v5103, %v5107
      %v5110 = vshrl.u32 %v4769, 16
      %v5112 = vrot.slane %v5110, 4
      %v5113 = vshll.u32 %v4769, 16
      %v5115 = vrot.slane %v5113, 5
      %v5116 = vor.u32 %v5112, %v5115
      %v5117 = vrot.slane %v5116, 4
      %v5119 = vshll.u32 %v4770, 16
      %v5121 = vrot.slane %v5119, 5
      %v5122 = vsel %vm265, %v5117, %v5121
      %v5123 = vshrl.u32 %v4770, 16
      %v5125 = vrot.slane %v5123, 4
      %v5126 = vor.u32 %v5125, %v5121
      %v5127 = vrot.slane %v5126, 4
      %v5129 = vshll.u32 %v4794, 16
      %v5131 = vrot.slane %v5129, 5
      %v5132 = vsel %vm265, %v5127, %v5131
      %v5134 = vshrl.u32 %v4771, 16
      %v5136 = vrot.slane %v5134, 4
      %v5137 = vshll.u32 %v4771, 16
      %v5139 = vrot.slane %v5137, 5
      %v5140 = vor.u32 %v5136, %v5139
      %v5141 = vrot.slane %v5140, 4
      %v5143 = vshll.u32 %v4772, 16
      %v5145 = vrot.slane %v5143, 5
      %v5146 = vsel %vm265, %v5141, %v5145
      %v5147 = vshrl.u32 %v4772, 16
      %v5149 = vrot.slane %v5147, 4
      %v5150 = vor.u32 %v5149, %v5145
      %v5151 = vrot.slane %v5150, 4
      %v5153 = vshll.u32 %v4795, 16
      %v5155 = vrot.slane %v5153, 5
      %v5156 = vsel %vm265, %v5151, %v5155
      %v5158 = vshrl.u32 %v4773, 16
      %v5160 = vrot.slane %v5158, 4
      %v5161 = vshll.u32 %v4773, 16
      %v5163 = vrot.slane %v5161, 5
      %v5164 = vor.u32 %v5160, %v5163
      %v5165 = vrot.slane %v5164, 4
      %v5167 = vshll.u32 %v4774, 16
      %v5169 = vrot.slane %v5167, 5
      %v5170 = vsel %vm265, %v5165, %v5169
      %v5171 = vshrl.u32 %v4774, 16
      %v5173 = vrot.slane %v5171, 4
      %v5174 = vor.u32 %v5173, %v5169
      %v5175 = vrot.slane %v5174, 4
      %v5177 = vshll.u32 %v4796, 16
      %v5179 = vrot.slane %v5177, 5
      %v5180 = vsel %vm265, %v5175, %v5179
      %s5181 = scalar_lea.vmem %s1, 180
      %v5182 = vld [vmem:[%s5181] sm:$0xf]
      %v5183 = vld [vmem:[%s5181 + $0x4] sm:$0xf]
      %v5184 = vld [vmem:[%s5181 + $0x8] sm:$0xf]
      %v5185 = vld [vmem:[%s5181 + $0xc] sm:$0xf]
      %v5186 = vld [vmem:[%s5181 + $0x10] sm:$0x1]
      %v5187 = vunpack.c.l.b16 %v4810
      %v5188 = vunpack.c.l.b16 %v4820
      %v5189 = vunpack.c.l.b16 %v4834
      %v5190 = vunpack.c.l.b16 %v4844
      %v5191 = vunpack.c.l.b16 %v4858
      %v5192 = vunpack.c.l.b16 %v4868
      %v5193 = vunpack.c.l.b16 %v4882
      %v5194 = vunpack.c.l.b16 %v4892
      %v5195 = vunpack.c.l.b16 %v4906
      %v5196 = vunpack.c.l.b16 %v4916
      %v5197 = vunpack.c.l.b16 %v4930
      %v5198 = vunpack.c.l.b16 %v4940
      %v5199 = vunpack.c.l.b16 %v4954
      %v5200 = vunpack.c.l.b16 %v4964
      %v5201 = vunpack.c.l.b16 %v4978
      %v5202 = vunpack.c.l.b16 %v4988
      %v5203 = vunpack.c.l.b16 %v5002
      %v5204 = vunpack.c.l.b16 %v5012
      %v5205 = vunpack.c.l.b16 %v5026
      %v5206 = vunpack.c.l.b16 %v5036
      %v5207 = vunpack.c.l.b16 %v5050
      %v5208 = vunpack.c.l.b16 %v5060
      %v5209 = vunpack.c.l.b16 %v5074
      %v5210 = vunpack.c.l.b16 %v5084
      %v5211 = vunpack.c.l.b16 %v5098
      %v5212 = vunpack.c.l.b16 %v5108
      %v5213 = vunpack.c.l.b16 %v5122
      %v5214 = vunpack.c.l.b16 %v5132
      %v5215 = vunpack.c.l.b16 %v5146
      %v5216 = vunpack.c.l.b16 %v5156
      %v5217 = vunpack.c.l.b16 %v5170
      %v5218 = vunpack.c.l.b16 %v5180
      %v5219 = vpack.c.b16 %v5188, %v5187
      %v5220 = vpack.c.b16 %v5190, %v5189
      %v5221 = vpack.c.b16 %v5192, %v5191
      %v5222 = vpack.c.b16 %v5194, %v5193
      %v5223 = vpack.c.b16 %v5196, %v5195
      %v5224 = vpack.c.b16 %v5198, %v5197
      %v5225 = vpack.c.b16 %v5200, %v5199
      %v5226 = vpack.c.b16 %v5202, %v5201
      %v5227 = vpack.c.b16 %v5204, %v5203
      %v5228 = vpack.c.b16 %v5206, %v5205
      %v5229 = vpack.c.b16 %v5208, %v5207
      %v5230 = vpack.c.b16 %v5210, %v5209
      %v5231 = vpack.c.b16 %v5212, %v5211
      %v5232 = vpack.c.b16 %v5214, %v5213
      %v5233 = vpack.c.b16 %v5216, %v5215
      %v5234 = vpack.c.b16 %v5218, %v5217
      %v5240 = vunpack.c.l.b16 %v5182
      %v5241 = vunpack.c.l.b16 %v5183
      %v5242 = vunpack.c.l.b16 %v5184
      %v5243 = vunpack.c.l.b16 %v5185
      %v5244 = vunpack.c.l.b16 %v5186
      %v5245 = vpack.c.b16 %v5241, %v5240
      %v5246 = vpack.c.b16 %v5243, %v5242
      %v5247 = vpack.c.b16 %v5244, %v5244
      %v5251 = vsel %vm719, %v5219, 0
      %v5254 = vsel %vm719, %v5220, 0
      %v5257 = vsel %vm719, %v5221, 0
      %v5260 = vsel %vm719, %v5222, 0
      %v5263 = vsel %vm719, %v5223, 0
      %v5266 = vsel %vm719, %v5224, 0
      %v5269 = vsel %vm719, %v5225, 0
      %v5272 = vsel %vm719, %v5226, 0
      %v5275 = vsel %vm719, %v5227, 0
      %v5278 = vsel %vm719, %v5228, 0
      %v5281 = vsel %vm719, %v5229, 0
      %v5284 = vsel %vm719, %v5230, 0
      %v5287 = vsel %vm719, %v5231, 0
      %v5290 = vsel %vm719, %v5232, 0
      %v5293 = vsel %vm719, %v5233, 0
      %v5296 = vsel %vm719, %v5234, 0
      %v5299 = vand.u32 %v5247, %v770
      %5301 = vmatpush.bf16.msra.mxu0 0
      %5302 = vmatpush.bf16.msra.mxu0 0
      %5303 = vmatpush.bf16.msra.mxu0 0
      %5304 = vmatpush.bf16.msra.mxu0 0
      %5305 = vmatpush.bf16.msra.mxu0 0
      %5306 = vmatpush.bf16.msra.mxu0 %v5299
      %5307 = vmatpush.bf16.msra.mxu0 %v5246
      %5308 = vmatpush.bf16.msra.mxu0 %v5245
      %5309 = vmatmul.bf16.gmra.mxu0 %v5251
      %v5310 = vpop.f32.mrf.mxu0
      %v5311 = vadd.f32 0.0, %v5310
      %v5312 = vpop.f32.mrf.mxu0
      %v5313 = vadd.f32 0.0, %v5312
      %5314 = vmatmul.bf16.gmra.mxu0 %v5254
      %v5315 = vpop.f32.mrf.mxu0
      %v5316 = vadd.f32 0.0, %v5315
      %v5317 = vpop.f32.mrf.mxu0
      %v5318 = vadd.f32 0.0, %v5317
      %5319 = vmatmul.bf16.gmra.mxu0 %v5257
      %v5320 = vpop.f32.mrf.mxu0
      %v5321 = vadd.f32 0.0, %v5320
      %v5322 = vpop.f32.mrf.mxu0
      %v5323 = vadd.f32 0.0, %v5322
      %5324 = vmatmul.bf16.gmra.mxu0 %v5260
      %v5325 = vpop.f32.mrf.mxu0
      %v5326 = vadd.f32 0.0, %v5325
      %v5327 = vpop.f32.mrf.mxu0
      %v5328 = vadd.f32 0.0, %v5327
      %5329 = vmatmul.bf16.gmra.mxu0 %v5263
      %v5330 = vpop.f32.mrf.mxu0
      %v5331 = vadd.f32 0.0, %v5330
      %v5332 = vpop.f32.mrf.mxu0
      %v5333 = vadd.f32 0.0, %v5332
      %5334 = vmatmul.bf16.gmra.mxu0 %v5266
      %v5335 = vpop.f32.mrf.mxu0
      %v5336 = vadd.f32 0.0, %v5335
      %v5337 = vpop.f32.mrf.mxu0
      %v5338 = vadd.f32 0.0, %v5337
      %5339 = vmatmul.bf16.gmra.mxu0 %v5269
      %v5340 = vpop.f32.mrf.mxu0
      %v5341 = vadd.f32 0.0, %v5340
      %v5342 = vpop.f32.mrf.mxu0
      %v5343 = vadd.f32 0.0, %v5342
      %5344 = vmatmul.bf16.gmra.mxu0 %v5272
      %v5345 = vpop.f32.mrf.mxu0
      %v5346 = vadd.f32 0.0, %v5345
      %v5347 = vpop.f32.mrf.mxu0
      %v5348 = vadd.f32 0.0, %v5347
      %5349 = vmatmul.bf16.gmra.mxu0 %v5275
      %v5350 = vpop.f32.mrf.mxu0
      %v5351 = vadd.f32 0.0, %v5350
      %v5352 = vpop.f32.mrf.mxu0
      %v5353 = vadd.f32 0.0, %v5352
      %5354 = vmatmul.bf16.gmra.mxu0 %v5278
      %v5355 = vpop.f32.mrf.mxu0
      %v5356 = vadd.f32 0.0, %v5355
      %v5357 = vpop.f32.mrf.mxu0
      %v5358 = vadd.f32 0.0, %v5357
      %5359 = vmatmul.bf16.gmra.mxu0 %v5281
      %v5360 = vpop.f32.mrf.mxu0
      %v5361 = vadd.f32 0.0, %v5360
      %v5362 = vpop.f32.mrf.mxu0
      %v5363 = vadd.f32 0.0, %v5362
      %5364 = vmatmul.bf16.gmra.mxu0 %v5284
      %v5365 = vpop.f32.mrf.mxu0
      %v5366 = vadd.f32 0.0, %v5365
      %v5367 = vpop.f32.mrf.mxu0
      %v5368 = vadd.f32 0.0, %v5367
      %5369 = vmatmul.bf16.gmra.mxu0 %v5287
      %v5370 = vpop.f32.mrf.mxu0
      %v5371 = vadd.f32 0.0, %v5370
      %v5372 = vpop.f32.mrf.mxu0
      %v5373 = vadd.f32 0.0, %v5372
      %5374 = vmatmul.bf16.gmra.mxu0 %v5290
      %v5375 = vpop.f32.mrf.mxu0
      %v5376 = vadd.f32 0.0, %v5375
      %v5377 = vpop.f32.mrf.mxu0
      %v5378 = vadd.f32 0.0, %v5377
      %5379 = vmatmul.bf16.gmra.mxu0 %v5293
      %v5380 = vpop.f32.mrf.mxu0
      %v5381 = vadd.f32 0.0, %v5380
      %v5382 = vpop.f32.mrf.mxu0
      %v5383 = vadd.f32 0.0, %v5382
      %5384 = vmatmul.bf16.gmra.mxu0 %v5296
      %v5385 = vpop.f32.mrf.mxu0
      %v5386 = vadd.f32 0.0, %v5385
      %v5387 = vpop.f32.mrf.mxu0
      %v5388 = vadd.f32 0.0, %v5387
      %5389 = vdwg.mxu0
      %v5422 = vunpack.c.l.b16 %v4743
      %v5423 = vunpack.c.l.b16 %v4744
      %v5424 = vunpack.c.l.b16 %v4745
      %v5425 = vunpack.c.l.b16 %v4746
      %v5426 = vunpack.c.l.b16 %v4747
      %v5427 = vunpack.c.l.b16 %v4748
      %v5428 = vunpack.c.l.b16 %v4749
      %v5429 = vunpack.c.l.b16 %v4750
      %v5430 = vunpack.c.l.b16 %v4751
      %v5431 = vunpack.c.l.b16 %v4752
      %v5432 = vunpack.c.l.b16 %v4753
      %v5433 = vunpack.c.l.b16 %v4754
      %v5434 = vunpack.c.l.b16 %v4755
      %v5435 = vunpack.c.l.b16 %v4756
      %v5436 = vunpack.c.l.b16 %v4757
      %v5437 = vunpack.c.l.b16 %v4758
      %v5438 = vunpack.c.l.b16 %v4759
      %v5439 = vunpack.c.l.b16 %v4760
      %v5440 = vunpack.c.l.b16 %v4761
      %v5441 = vunpack.c.l.b16 %v4762
      %v5442 = vunpack.c.l.b16 %v4763
      %v5443 = vunpack.c.l.b16 %v4764
      %v5444 = vunpack.c.l.b16 %v4765
      %v5445 = vunpack.c.l.b16 %v4766
      %v5446 = vunpack.c.l.b16 %v4767
      %v5447 = vunpack.c.l.b16 %v4768
      %v5448 = vunpack.c.l.b16 %v4769
      %v5449 = vunpack.c.l.b16 %v4770
      %v5450 = vunpack.c.l.b16 %v4771
      %v5451 = vunpack.c.l.b16 %v4772
      %v5452 = vunpack.c.l.b16 %v4773
      %v5453 = vunpack.c.l.b16 %v4774
      %v5454 = vpack.c.b16 %v5423, %v5422
      %v5455 = vpack.c.b16 %v5425, %v5424
      %v5456 = vpack.c.b16 %v5427, %v5426
      %v5457 = vpack.c.b16 %v5429, %v5428
      %v5458 = vpack.c.b16 %v5431, %v5430
      %v5459 = vpack.c.b16 %v5433, %v5432
      %v5460 = vpack.c.b16 %v5435, %v5434
      %v5461 = vpack.c.b16 %v5437, %v5436
      %v5462 = vpack.c.b16 %v5439, %v5438
      %v5463 = vpack.c.b16 %v5441, %v5440
      %v5464 = vpack.c.b16 %v5443, %v5442
      %v5465 = vpack.c.b16 %v5445, %v5444
      %v5466 = vpack.c.b16 %v5447, %v5446
      %v5467 = vpack.c.b16 %v5449, %v5448
      %v5468 = vpack.c.b16 %v5451, %v5450
      %v5469 = vpack.c.b16 %v5453, %v5452
      %v5475 = vunpack.c.l.b16 %v4776
      %v5476 = vunpack.c.l.b16 %v4777
      %v5477 = vunpack.c.l.b16 %v4778
      %v5478 = vunpack.c.l.b16 %v4779
      %v5479 = vunpack.c.l.b16 %v4780
      %v5480 = vpack.c.b16 %v5476, %v5475
      %v5481 = vpack.c.b16 %v5478, %v5477
      %v5482 = vpack.c.b16 %v5479, %v5479
      %v5486 = vsel %vm719, %v5454, 0
      %v5489 = vsel %vm719, %v5455, 0
      %v5492 = vsel %vm719, %v5456, 0
      %v5495 = vsel %vm719, %v5457, 0
      %v5498 = vsel %vm719, %v5458, 0
      %v5501 = vsel %vm719, %v5459, 0
      %v5504 = vsel %vm719, %v5460, 0
      %v5507 = vsel %vm719, %v5461, 0
      %v5510 = vsel %vm719, %v5462, 0
      %v5513 = vsel %vm719, %v5463, 0
      %v5516 = vsel %vm719, %v5464, 0
      %v5519 = vsel %vm719, %v5465, 0
      %v5522 = vsel %vm719, %v5466, 0
      %v5525 = vsel %vm719, %v5467, 0
      %v5528 = vsel %vm719, %v5468, 0
      %v5531 = vsel %vm719, %v5469, 0
      %v5534 = vand.u32 %v5482, %v770
      %5536 = vmatpush.bf16.msra.mxu0 0
      %5537 = vmatpush.bf16.msra.mxu0 0
      %5538 = vmatpush.bf16.msra.mxu0 0
      %5539 = vmatpush.bf16.msra.mxu0 0
      %5540 = vmatpush.bf16.msra.mxu0 0
      %5541 = vmatpush.bf16.msra.mxu0 %v5534
      %5542 = vmatpush.bf16.msra.mxu0 %v5481
      %5543 = vmatpush.bf16.msra.mxu0 %v5480
      %5544 = vmatmul.bf16.gmra.mxu0 %v5486
      %v5545 = vpop.f32.mrf.mxu0
      %v5546 = vadd.f32 %v5311, %v5545
      %v5547 = vpop.f32.mrf.mxu0
      %v5548 = vadd.f32 %v5313, %v5547
      %5549 = vmatmul.bf16.gmra.mxu0 %v5489
      %v5550 = vpop.f32.mrf.mxu0
      %v5551 = vadd.f32 %v5316, %v5550
      %v5552 = vpop.f32.mrf.mxu0
      %v5553 = vadd.f32 %v5318, %v5552
      %5554 = vmatmul.bf16.gmra.mxu0 %v5492
      %v5555 = vpop.f32.mrf.mxu0
      %v5556 = vadd.f32 %v5321, %v5555
      %v5557 = vpop.f32.mrf.mxu0
      %v5558 = vadd.f32 %v5323, %v5557
      %5559 = vmatmul.bf16.gmra.mxu0 %v5495
      %v5560 = vpop.f32.mrf.mxu0
      %v5561 = vadd.f32 %v5326, %v5560
      %v5562 = vpop.f32.mrf.mxu0
      %v5563 = vadd.f32 %v5328, %v5562
      %5564 = vmatmul.bf16.gmra.mxu0 %v5498
      %v5565 = vpop.f32.mrf.mxu0
      %v5566 = vadd.f32 %v5331, %v5565
      %v5567 = vpop.f32.mrf.mxu0
      %v5568 = vadd.f32 %v5333, %v5567
      %5569 = vmatmul.bf16.gmra.mxu0 %v5501
      %v5570 = vpop.f32.mrf.mxu0
      %v5571 = vadd.f32 %v5336, %v5570
      %v5572 = vpop.f32.mrf.mxu0
      %v5573 = vadd.f32 %v5338, %v5572
      %5574 = vmatmul.bf16.gmra.mxu0 %v5504
      %v5575 = vpop.f32.mrf.mxu0
      %v5576 = vadd.f32 %v5341, %v5575
      %v5577 = vpop.f32.mrf.mxu0
      %v5578 = vadd.f32 %v5343, %v5577
      %5579 = vmatmul.bf16.gmra.mxu0 %v5507
      %v5580 = vpop.f32.mrf.mxu0
      %v5581 = vadd.f32 %v5346, %v5580
      %v5582 = vpop.f32.mrf.mxu0
      %v5583 = vadd.f32 %v5348, %v5582
      %5584 = vmatmul.bf16.gmra.mxu0 %v5510
      %v5585 = vpop.f32.mrf.mxu0
      %v5586 = vadd.f32 %v5351, %v5585
      %v5587 = vpop.f32.mrf.mxu0
      %v5588 = vadd.f32 %v5353, %v5587
      %5589 = vmatmul.bf16.gmra.mxu0 %v5513
      %v5590 = vpop.f32.mrf.mxu0
      %v5591 = vadd.f32 %v5356, %v5590
      %v5592 = vpop.f32.mrf.mxu0
      %v5593 = vadd.f32 %v5358, %v5592
      %5594 = vmatmul.bf16.gmra.mxu0 %v5516
      %v5595 = vpop.f32.mrf.mxu0
      %v5596 = vadd.f32 %v5361, %v5595
      %v5597 = vpop.f32.mrf.mxu0
      %v5598 = vadd.f32 %v5363, %v5597
      %5599 = vmatmul.bf16.gmra.mxu0 %v5519
      %v5600 = vpop.f32.mrf.mxu0
      %v5601 = vadd.f32 %v5366, %v5600
      %v5602 = vpop.f32.mrf.mxu0
      %v5603 = vadd.f32 %v5368, %v5602
      %5604 = vmatmul.bf16.gmra.mxu0 %v5522
      %v5605 = vpop.f32.mrf.mxu0
      %v5606 = vadd.f32 %v5371, %v5605
      %v5607 = vpop.f32.mrf.mxu0
      %v5608 = vadd.f32 %v5373, %v5607
      %5609 = vmatmul.bf16.gmra.mxu0 %v5525
      %v5610 = vpop.f32.mrf.mxu0
      %v5611 = vadd.f32 %v5376, %v5610
      %v5612 = vpop.f32.mrf.mxu0
      %v5613 = vadd.f32 %v5378, %v5612
      %5614 = vmatmul.bf16.gmra.mxu0 %v5528
      %v5615 = vpop.f32.mrf.mxu0
      %v5616 = vadd.f32 %v5381, %v5615
      %v5617 = vpop.f32.mrf.mxu0
      %v5618 = vadd.f32 %v5383, %v5617
      %5619 = vmatmul.bf16.gmra.mxu0 %v5531
      %v5620 = vpop.f32.mrf.mxu0
      %v5621 = vadd.f32 %v5386, %v5620
      %v5622 = vpop.f32.mrf.mxu0
      %v5623 = vadd.f32 %v5388, %v5622
      %5624 = vdwg.mxu0
      %s5625 = scalar_lea.vmem %s199, 24
      %v5626 = vld [vmem:[%s5625] sm:$0xf]
      %v5627 = vld [vmem:[%s5625 + $0x4] sm:$0xf]
      %v5628 = vld [vmem:[%s5625 + $0xc] sm:$0xf]
      %v5629 = vld [vmem:[%s5625 + $0x10] sm:$0xf]
      %v5630 = vld [vmem:[%s5625 + $0x18] sm:$0xf]
      %v5631 = vld [vmem:[%s5625 + $0x1c] sm:$0xf]
      %v5632 = vld [vmem:[%s5625 + $0x24] sm:$0xf]
      %v5633 = vld [vmem:[%s5625 + $0x28] sm:$0xf]
      %v5634 = vld [vmem:[%s5625 + $0x30] sm:$0xf]
      %v5635 = vld [vmem:[%s5625 + $0x34] sm:$0xf]
      %v5636 = vld [vmem:[%s5625 + $0x3c] sm:$0xf]
      %v5637 = vld [vmem:[%s5625 + $0x40] sm:$0xf]
      %v5638 = vld [vmem:[%s5625 + $0x48] sm:$0xf]
      %v5639 = vld [vmem:[%s5625 + $0x4c] sm:$0xf]
      %v5640 = vld [vmem:[%s5625 + $0x54] sm:$0xf]
      %v5641 = vld [vmem:[%s5625 + $0x58] sm:$0xf]
      %v5642 = vld [vmem:[%s5625 + $0x60] sm:$0xf]
      %v5643 = vld [vmem:[%s5625 + $0x64] sm:$0xf]
      %v5644 = vld [vmem:[%s5625 + $0x6c] sm:$0xf]
      %v5645 = vld [vmem:[%s5625 + $0x70] sm:$0xf]
      %v5646 = vld [vmem:[%s5625 + $0x78] sm:$0xf]
      %v5647 = vld [vmem:[%s5625 + $0x7c] sm:$0xf]
      %v5648 = vld [vmem:[%s5625 + $0x84] sm:$0xf]
      %v5649 = vld [vmem:[%s5625 + $0x88] sm:$0xf]
      %v5650 = vld [vmem:[%s5625 + $0x90] sm:$0xf]
      %v5651 = vld [vmem:[%s5625 + $0x94] sm:$0xf]
      %v5652 = vld [vmem:[%s5625 + $0x9c] sm:$0xf]
      %v5653 = vld [vmem:[%s5625 + $0xa0] sm:$0xf]
      %v5654 = vld [vmem:[%s5625 + $0xa8] sm:$0xf]
      %v5655 = vld [vmem:[%s5625 + $0xac] sm:$0xf]
      %v5656 = vld [vmem:[%s5625 + $0xb4] sm:$0xf]
      %v5657 = vld [vmem:[%s5625 + $0xb8] sm:$0xf]
      %s5658 = scalar_lea.vmem %s1, 200
      %v5659 = vld [vmem:[%s5658] sm:$0xf]
      %v5660 = vld [vmem:[%s5658 + $0x4] sm:$0xf]
      %v5661 = vld [vmem:[%s5658 + $0x8] sm:$0xf]
      %v5662 = vld [vmem:[%s5658 + $0xc] sm:$0xf]
      %v5663 = vld [vmem:[%s5658 + $0x10] sm:$0x1]
      %v5696 = vunpack.c.l.b16 %v5626
      %v5697 = vunpack.c.l.b16 %v5627
      %v5698 = vunpack.c.l.b16 %v5628
      %v5699 = vunpack.c.l.b16 %v5629
      %v5700 = vunpack.c.l.b16 %v5630
      %v5701 = vunpack.c.l.b16 %v5631
      %v5702 = vunpack.c.l.b16 %v5632
      %v5703 = vunpack.c.l.b16 %v5633
      %v5704 = vunpack.c.l.b16 %v5634
      %v5705 = vunpack.c.l.b16 %v5635
      %v5706 = vunpack.c.l.b16 %v5636
      %v5707 = vunpack.c.l.b16 %v5637
      %v5708 = vunpack.c.l.b16 %v5638
      %v5709 = vunpack.c.l.b16 %v5639
      %v5710 = vunpack.c.l.b16 %v5640
      %v5711 = vunpack.c.l.b16 %v5641
      %v5712 = vunpack.c.l.b16 %v5642
      %v5713 = vunpack.c.l.b16 %v5643
      %v5714 = vunpack.c.l.b16 %v5644
      %v5715 = vunpack.c.l.b16 %v5645
      %v5716 = vunpack.c.l.b16 %v5646
      %v5717 = vunpack.c.l.b16 %v5647
      %v5718 = vunpack.c.l.b16 %v5648
      %v5719 = vunpack.c.l.b16 %v5649
      %v5720 = vunpack.c.l.b16 %v5650
      %v5721 = vunpack.c.l.b16 %v5651
      %v5722 = vunpack.c.l.b16 %v5652
      %v5723 = vunpack.c.l.b16 %v5653
      %v5724 = vunpack.c.l.b16 %v5654
      %v5725 = vunpack.c.l.b16 %v5655
      %v5726 = vunpack.c.l.b16 %v5656
      %v5727 = vunpack.c.l.b16 %v5657
      %v5728 = vpack.c.b16 %v5697, %v5696
      %v5729 = vpack.c.b16 %v5699, %v5698
      %v5730 = vpack.c.b16 %v5701, %v5700
      %v5731 = vpack.c.b16 %v5703, %v5702
      %v5732 = vpack.c.b16 %v5705, %v5704
      %v5733 = vpack.c.b16 %v5707, %v5706
      %v5734 = vpack.c.b16 %v5709, %v5708
      %v5735 = vpack.c.b16 %v5711, %v5710
      %v5736 = vpack.c.b16 %v5713, %v5712
      %v5737 = vpack.c.b16 %v5715, %v5714
      %v5738 = vpack.c.b16 %v5717, %v5716
      %v5739 = vpack.c.b16 %v5719, %v5718
      %v5740 = vpack.c.b16 %v5721, %v5720
      %v5741 = vpack.c.b16 %v5723, %v5722
      %v5742 = vpack.c.b16 %v5725, %v5724
      %v5743 = vpack.c.b16 %v5727, %v5726
      %v5749 = vunpack.c.l.b16 %v5659
      %v5750 = vunpack.c.l.b16 %v5660
      %v5751 = vunpack.c.l.b16 %v5661
      %v5752 = vunpack.c.l.b16 %v5662
      %v5753 = vunpack.c.l.b16 %v5663
      %v5754 = vpack.c.b16 %v5750, %v5749
      %v5755 = vpack.c.b16 %v5752, %v5751
      %v5756 = vpack.c.b16 %v5753, %v5753
      %v5760 = vsel %vm719, %v5728, 0
      %v5763 = vsel %vm719, %v5729, 0
      %v5766 = vsel %vm719, %v5730, 0
      %v5769 = vsel %vm719, %v5731, 0
      %v5772 = vsel %vm719, %v5732, 0
      %v5775 = vsel %vm719, %v5733, 0
      %v5778 = vsel %vm719, %v5734, 0
      %v5781 = vsel %vm719, %v5735, 0
      %v5784 = vsel %vm719, %v5736, 0
      %v5787 = vsel %vm719, %v5737, 0
      %v5790 = vsel %vm719, %v5738, 0
      %v5793 = vsel %vm719, %v5739, 0
      %v5796 = vsel %vm719, %v5740, 0
      %v5799 = vsel %vm719, %v5741, 0
      %v5802 = vsel %vm719, %v5742, 0
      %v5805 = vsel %vm719, %v5743, 0
      %v5808 = vand.u32 %v5756, %v770
      %5810 = vmatpush.bf16.msra.mxu0 0
      %5811 = vmatpush.bf16.msra.mxu0 0
      %5812 = vmatpush.bf16.msra.mxu0 0
      %5813 = vmatpush.bf16.msra.mxu0 0
      %5814 = vmatpush.bf16.msra.mxu0 0
      %5815 = vmatpush.bf16.msra.mxu0 %v5808
      %5816 = vmatpush.bf16.msra.mxu0 %v5755
      %5817 = vmatpush.bf16.msra.mxu0 %v5754
      %5818 = vmatmul.bf16.gmra.mxu0 %v5760
      %v5819 = vpop.f32.mrf.mxu0
      %v5820 = vadd.f32 0.0, %v5819
      %v5821 = vpop.f32.mrf.mxu0
      %v5822 = vadd.f32 0.0, %v5821
      %5823 = vmatmul.bf16.gmra.mxu0 %v5763
      %v5824 = vpop.f32.mrf.mxu0
      %v5825 = vadd.f32 0.0, %v5824
      %v5826 = vpop.f32.mrf.mxu0
      %v5827 = vadd.f32 0.0, %v5826
      %5828 = vmatmul.bf16.gmra.mxu0 %v5766
      %v5829 = vpop.f32.mrf.mxu0
      %v5830 = vadd.f32 0.0, %v5829
      %v5831 = vpop.f32.mrf.mxu0
      %v5832 = vadd.f32 0.0, %v5831
      %5833 = vmatmul.bf16.gmra.mxu0 %v5769
      %v5834 = vpop.f32.mrf.mxu0
      %v5835 = vadd.f32 0.0, %v5834
      %v5836 = vpop.f32.mrf.mxu0
      %v5837 = vadd.f32 0.0, %v5836
      %5838 = vmatmul.bf16.gmra.mxu0 %v5772
      %v5839 = vpop.f32.mrf.mxu0
      %v5840 = vadd.f32 0.0, %v5839
      %v5841 = vpop.f32.mrf.mxu0
      %v5842 = vadd.f32 0.0, %v5841
      %5843 = vmatmul.bf16.gmra.mxu0 %v5775
      %v5844 = vpop.f32.mrf.mxu0
      %v5845 = vadd.f32 0.0, %v5844
      %v5846 = vpop.f32.mrf.mxu0
      %v5847 = vadd.f32 0.0, %v5846
      %5848 = vmatmul.bf16.gmra.mxu0 %v5778
      %v5849 = vpop.f32.mrf.mxu0
      %v5850 = vadd.f32 0.0, %v5849
      %v5851 = vpop.f32.mrf.mxu0
      %v5852 = vadd.f32 0.0, %v5851
      %5853 = vmatmul.bf16.gmra.mxu0 %v5781
      %v5854 = vpop.f32.mrf.mxu0
      %v5855 = vadd.f32 0.0, %v5854
      %v5856 = vpop.f32.mrf.mxu0
      %v5857 = vadd.f32 0.0, %v5856
      %5858 = vmatmul.bf16.gmra.mxu0 %v5784
      %v5859 = vpop.f32.mrf.mxu0
      %v5860 = vadd.f32 0.0, %v5859
      %v5861 = vpop.f32.mrf.mxu0
      %v5862 = vadd.f32 0.0, %v5861
      %5863 = vmatmul.bf16.gmra.mxu0 %v5787
      %v5864 = vpop.f32.mrf.mxu0
      %v5865 = vadd.f32 0.0, %v5864
      %v5866 = vpop.f32.mrf.mxu0
      %v5867 = vadd.f32 0.0, %v5866
      %5868 = vmatmul.bf16.gmra.mxu0 %v5790
      %v5869 = vpop.f32.mrf.mxu0
      %v5870 = vadd.f32 0.0, %v5869
      %v5871 = vpop.f32.mrf.mxu0
      %v5872 = vadd.f32 0.0, %v5871
      %5873 = vmatmul.bf16.gmra.mxu0 %v5793
      %v5874 = vpop.f32.mrf.mxu0
      %v5875 = vadd.f32 0.0, %v5874
      %v5876 = vpop.f32.mrf.mxu0
      %v5877 = vadd.f32 0.0, %v5876
      %5878 = vmatmul.bf16.gmra.mxu0 %v5796
      %v5879 = vpop.f32.mrf.mxu0
      %v5880 = vadd.f32 0.0, %v5879
      %v5881 = vpop.f32.mrf.mxu0
      %v5882 = vadd.f32 0.0, %v5881
      %5883 = vmatmul.bf16.gmra.mxu0 %v5799
      %v5884 = vpop.f32.mrf.mxu0
      %v5885 = vadd.f32 0.0, %v5884
      %v5886 = vpop.f32.mrf.mxu0
      %v5887 = vadd.f32 0.0, %v5886
      %5888 = vmatmul.bf16.gmra.mxu0 %v5802
      %v5889 = vpop.f32.mrf.mxu0
      %v5890 = vadd.f32 0.0, %v5889
      %v5891 = vpop.f32.mrf.mxu0
      %v5892 = vadd.f32 0.0, %v5891
      %5893 = vmatmul.bf16.gmra.mxu0 %v5805
      %v5894 = vpop.f32.mrf.mxu0
      %v5895 = vadd.f32 0.0, %v5894
      %v5896 = vpop.f32.mrf.mxu0
      %v5897 = vadd.f32 0.0, %v5896
      %5898 = vdwg.mxu0
      %v5899 = vadd.f32 %v5546, %v5820
      %v5900 = vadd.f32 %v5548, %v5822
      %v5901 = vadd.f32 %v5551, %v5825
      %v5902 = vadd.f32 %v5553, %v5827
      %v5903 = vadd.f32 %v5556, %v5830
      %v5904 = vadd.f32 %v5558, %v5832
      %v5905 = vadd.f32 %v5561, %v5835
      %v5906 = vadd.f32 %v5563, %v5837
      %v5907 = vadd.f32 %v5566, %v5840
      %v5908 = vadd.f32 %v5568, %v5842
      %v5909 = vadd.f32 %v5571, %v5845
      %v5910 = vadd.f32 %v5573, %v5847
      %v5911 = vadd.f32 %v5576, %v5850
      %v5912 = vadd.f32 %v5578, %v5852
      %v5913 = vadd.f32 %v5581, %v5855
      %v5914 = vadd.f32 %v5583, %v5857
      %v5915 = vadd.f32 %v5586, %v5860
      %v5916 = vadd.f32 %v5588, %v5862
      %v5917 = vadd.f32 %v5591, %v5865
      %v5918 = vadd.f32 %v5593, %v5867
      %v5919 = vadd.f32 %v5596, %v5870
      %v5920 = vadd.f32 %v5598, %v5872
      %v5921 = vadd.f32 %v5601, %v5875
      %v5922 = vadd.f32 %v5603, %v5877
      %v5923 = vadd.f32 %v5606, %v5880
      %v5924 = vadd.f32 %v5608, %v5882
      %v5925 = vadd.f32 %v5611, %v5885
      %v5926 = vadd.f32 %v5613, %v5887
      %v5927 = vadd.f32 %v5616, %v5890
      %v5928 = vadd.f32 %v5618, %v5892
      %v5929 = vadd.f32 %v5621, %v5895
      %v5930 = vadd.f32 %v5623, %v5897
      %v5931 = vld [vmem:[%s5625] sm:$0xf]
      %v5932 = vld [vmem:[%s5625 + $0x4] sm:$0xf]
      %v5933 = vld [vmem:[%s5625 + $0x8] sm:$0x1]
      %v5934 = vld [vmem:[%s5625 + $0xc] sm:$0xf]
      %v5935 = vld [vmem:[%s5625 + $0x10] sm:$0xf]
      %v5936 = vld [vmem:[%s5625 + $0x14] sm:$0x1]
      %v5937 = vld [vmem:[%s5625 + $0x18] sm:$0xf]
      %v5938 = vld [vmem:[%s5625 + $0x1c] sm:$0xf]
      %v5939 = vld [vmem:[%s5625 + $0x20] sm:$0x1]
      %v5940 = vld [vmem:[%s5625 + $0x24] sm:$0xf]
      %v5941 = vld [vmem:[%s5625 + $0x28] sm:$0xf]
      %v5942 = vld [vmem:[%s5625 + $0x2c] sm:$0x1]
      %v5943 = vld [vmem:[%s5625 + $0x30] sm:$0xf]
      %v5944 = vld [vmem:[%s5625 + $0x34] sm:$0xf]
      %v5945 = vld [vmem:[%s5625 + $0x38] sm:$0x1]
      %v5946 = vld [vmem:[%s5625 + $0x3c] sm:$0xf]
      %v5947 = vld [vmem:[%s5625 + $0x40] sm:$0xf]
      %v5948 = vld [vmem:[%s5625 + $0x44] sm:$0x1]
      %v5949 = vld [vmem:[%s5625 + $0x48] sm:$0xf]
      %v5950 = vld [vmem:[%s5625 + $0x4c] sm:$0xf]
      %v5951 = vld [vmem:[%s5625 + $0x50] sm:$0x1]
      %v5952 = vld [vmem:[%s5625 + $0x54] sm:$0xf]
      %v5953 = vld [vmem:[%s5625 + $0x58] sm:$0xf]
      %v5954 = vld [vmem:[%s5625 + $0x5c] sm:$0x1]
      %v5955 = vld [vmem:[%s5625 + $0x60] sm:$0xf]
      %v5956 = vld [vmem:[%s5625 + $0x64] sm:$0xf]
      %v5957 = vld [vmem:[%s5625 + $0x68] sm:$0x1]
      %v5958 = vld [vmem:[%s5625 + $0x6c] sm:$0xf]
      %v5959 = vld [vmem:[%s5625 + $0x70] sm:$0xf]
      %v5960 = vld [vmem:[%s5625 + $0x74] sm:$0x1]
      %v5961 = vld [vmem:[%s5625 + $0x78] sm:$0xf]
      %v5962 = vld [vmem:[%s5625 + $0x7c] sm:$0xf]
      %v5963 = vld [vmem:[%s5625 + $0x80] sm:$0x1]
      %v5964 = vld [vmem:[%s5625 + $0x84] sm:$0xf]
      %v5965 = vld [vmem:[%s5625 + $0x88] sm:$0xf]
      %v5966 = vld [vmem:[%s5625 + $0x8c] sm:$0x1]
      %v5967 = vld [vmem:[%s5625 + $0x90] sm:$0xf]
      %v5968 = vld [vmem:[%s5625 + $0x94] sm:$0xf]
      %v5969 = vld [vmem:[%s5625 + $0x98] sm:$0x1]
      %v5970 = vld [vmem:[%s5625 + $0x9c] sm:$0xf]
      %v5971 = vld [vmem:[%s5625 + $0xa0] sm:$0xf]
      %v5972 = vld [vmem:[%s5625 + $0xa4] sm:$0x1]
      %v5973 = vld [vmem:[%s5625 + $0xa8] sm:$0xf]
      %v5974 = vld [vmem:[%s5625 + $0xac] sm:$0xf]
      %v5975 = vld [vmem:[%s5625 + $0xb0] sm:$0x1]
      %v5976 = vld [vmem:[%s5625 + $0xb4] sm:$0xf]
      %v5977 = vld [vmem:[%s5625 + $0xb8] sm:$0xf]
      %v5978 = vld [vmem:[%s5625 + $0xbc] sm:$0x1]
      %v5980 = vshrl.u32 %v5931, 16
      %v5982 = vrot.slane %v5980, 4
      %v5983 = vshll.u32 %v5931, 16
      %v5985 = vrot.slane %v5983, 5
      %v5986 = vor.u32 %v5982, %v5985
      %v5987 = vrot.slane %v5986, 4
      %v5989 = vshll.u32 %v5932, 16
      %v5991 = vrot.slane %v5989, 5
      %v5992 = vsel %vm265, %v5987, %v5991
      %v5993 = vshrl.u32 %v5932, 16
      %v5995 = vrot.slane %v5993, 4
      %v5996 = vor.u32 %v5995, %v5991
      %v5997 = vrot.slane %v5996, 4
      %v5999 = vshll.u32 %v5933, 16
      %v6001 = vrot.slane %v5999, 5
      %v6002 = vsel %vm265, %v5997, %v6001
      %v6004 = vshrl.u32 %v5934, 16
      %v6006 = vrot.slane %v6004, 4
      %v6007 = vshll.u32 %v5934, 16
      %v6009 = vrot.slane %v6007, 5
      %v6010 = vor.u32 %v6006, %v6009
      %v6011 = vrot.slane %v6010, 4
      %v6013 = vshll.u32 %v5935, 16
      %v6015 = vrot.slane %v6013, 5
      %v6016 = vsel %vm265, %v6011, %v6015
      %v6017 = vshrl.u32 %v5935, 16
      %v6019 = vrot.slane %v6017, 4
      %v6020 = vor.u32 %v6019, %v6015
      %v6021 = vrot.slane %v6020, 4
      %v6023 = vshll.u32 %v5936, 16
      %v6025 = vrot.slane %v6023, 5
      %v6026 = vsel %vm265, %v6021, %v6025
      %v6028 = vshrl.u32 %v5937, 16
      %v6030 = vrot.slane %v6028, 4
      %v6031 = vshll.u32 %v5937, 16
      %v6033 = vrot.slane %v6031, 5
      %v6034 = vor.u32 %v6030, %v6033
      %v6035 = vrot.slane %v6034, 4
      %v6037 = vshll.u32 %v5938, 16
      %v6039 = vrot.slane %v6037, 5
      %v6040 = vsel %vm265, %v6035, %v6039
      %v6041 = vshrl.u32 %v5938, 16
      %v6043 = vrot.slane %v6041, 4
      %v6044 = vor.u32 %v6043, %v6039
      %v6045 = vrot.slane %v6044, 4
      %v6047 = vshll.u32 %v5939, 16
      %v6049 = vrot.slane %v6047, 5
      %v6050 = vsel %vm265, %v6045, %v6049
      %v6052 = vshrl.u32 %v5940, 16
      %v6054 = vrot.slane %v6052, 4
      %v6055 = vshll.u32 %v5940, 16
      %v6057 = vrot.slane %v6055, 5
      %v6058 = vor.u32 %v6054, %v6057
      %v6059 = vrot.slane %v6058, 4
      %v6061 = vshll.u32 %v5941, 16
      %v6063 = vrot.slane %v6061, 5
      %v6064 = vsel %vm265, %v6059, %v6063
      %v6065 = vshrl.u32 %v5941, 16
      %v6067 = vrot.slane %v6065, 4
      %v6068 = vor.u32 %v6067, %v6063
      %v6069 = vrot.slane %v6068, 4
      %v6071 = vshll.u32 %v5942, 16
      %v6073 = vrot.slane %v6071, 5
      %v6074 = vsel %vm265, %v6069, %v6073
      %v6076 = vshrl.u32 %v5943, 16
      %v6078 = vrot.slane %v6076, 4
      %v6079 = vshll.u32 %v5943, 16
      %v6081 = vrot.slane %v6079, 5
      %v6082 = vor.u32 %v6078, %v6081
      %v6083 = vrot.slane %v6082, 4
      %v6085 = vshll.u32 %v5944, 16
      %v6087 = vrot.slane %v6085, 5
      %v6088 = vsel %vm265, %v6083, %v6087
      %v6089 = vshrl.u32 %v5944, 16
      %v6091 = vrot.slane %v6089, 4
      %v6092 = vor.u32 %v6091, %v6087
      %v6093 = vrot.slane %v6092, 4
      %v6095 = vshll.u32 %v5945, 16
      %v6097 = vrot.slane %v6095, 5
      %v6098 = vsel %vm265, %v6093, %v6097
      %v6100 = vshrl.u32 %v5946, 16
      %v6102 = vrot.slane %v6100, 4
      %v6103 = vshll.u32 %v5946, 16
      %v6105 = vrot.slane %v6103, 5
      %v6106 = vor.u32 %v6102, %v6105
      %v6107 = vrot.slane %v6106, 4
      %v6109 = vshll.u32 %v5947, 16
      %v6111 = vrot.slane %v6109, 5
      %v6112 = vsel %vm265, %v6107, %v6111
      %v6113 = vshrl.u32 %v5947, 16
      %v6115 = vrot.slane %v6113, 4
      %v6116 = vor.u32 %v6115, %v6111
      %v6117 = vrot.slane %v6116, 4
      %v6119 = vshll.u32 %v5948, 16
      %v6121 = vrot.slane %v6119, 5
      %v6122 = vsel %vm265, %v6117, %v6121
      %v6124 = vshrl.u32 %v5949, 16
      %v6126 = vrot.slane %v6124, 4
      %v6127 = vshll.u32 %v5949, 16
      %v6129 = vrot.slane %v6127, 5
      %v6130 = vor.u32 %v6126, %v6129
      %v6131 = vrot.slane %v6130, 4
      %v6133 = vshll.u32 %v5950, 16
      %v6135 = vrot.slane %v6133, 5
      %v6136 = vsel %vm265, %v6131, %v6135
      %v6137 = vshrl.u32 %v5950, 16
      %v6139 = vrot.slane %v6137, 4
      %v6140 = vor.u32 %v6139, %v6135
      %v6141 = vrot.slane %v6140, 4
      %v6143 = vshll.u32 %v5951, 16
      %v6145 = vrot.slane %v6143, 5
      %v6146 = vsel %vm265, %v6141, %v6145
      %v6148 = vshrl.u32 %v5952, 16
      %v6150 = vrot.slane %v6148, 4
      %v6151 = vshll.u32 %v5952, 16
      %v6153 = vrot.slane %v6151, 5
      %v6154 = vor.u32 %v6150, %v6153
      %v6155 = vrot.slane %v6154, 4
      %v6157 = vshll.u32 %v5953, 16
      %v6159 = vrot.slane %v6157, 5
      %v6160 = vsel %vm265, %v6155, %v6159
      %v6161 = vshrl.u32 %v5953, 16
      %v6163 = vrot.slane %v6161, 4
      %v6164 = vor.u32 %v6163, %v6159
      %v6165 = vrot.slane %v6164, 4
      %v6167 = vshll.u32 %v5954, 16
      %v6169 = vrot.slane %v6167, 5
      %v6170 = vsel %vm265, %v6165, %v6169
      %v6172 = vshrl.u32 %v5955, 16
      %v6174 = vrot.slane %v6172, 4
      %v6175 = vshll.u32 %v5955, 16
      %v6177 = vrot.slane %v6175, 5
      %v6178 = vor.u32 %v6174, %v6177
      %v6179 = vrot.slane %v6178, 4
      %v6181 = vshll.u32 %v5956, 16
      %v6183 = vrot.slane %v6181, 5
      %v6184 = vsel %vm265, %v6179, %v6183
      %v6185 = vshrl.u32 %v5956, 16
      %v6187 = vrot.slane %v6185, 4
      %v6188 = vor.u32 %v6187, %v6183
      %v6189 = vrot.slane %v6188, 4
      %v6191 = vshll.u32 %v5957, 16
      %v6193 = vrot.slane %v6191, 5
      %v6194 = vsel %vm265, %v6189, %v6193
      %v6196 = vshrl.u32 %v5958, 16
      %v6198 = vrot.slane %v6196, 4
      %v6199 = vshll.u32 %v5958, 16
      %v6201 = vrot.slane %v6199, 5
      %v6202 = vor.u32 %v6198, %v6201
      %v6203 = vrot.slane %v6202, 4
      %v6205 = vshll.u32 %v5959, 16
      %v6207 = vrot.slane %v6205, 5
      %v6208 = vsel %vm265, %v6203, %v6207
      %v6209 = vshrl.u32 %v5959, 16
      %v6211 = vrot.slane %v6209, 4
      %v6212 = vor.u32 %v6211, %v6207
      %v6213 = vrot.slane %v6212, 4
      %v6215 = vshll.u32 %v5960, 16
      %v6217 = vrot.slane %v6215, 5
      %v6218 = vsel %vm265, %v6213, %v6217
      %v6220 = vshrl.u32 %v5961, 16
      %v6222 = vrot.slane %v6220, 4
      %v6223 = vshll.u32 %v5961, 16
      %v6225 = vrot.slane %v6223, 5
      %v6226 = vor.u32 %v6222, %v6225
      %v6227 = vrot.slane %v6226, 4
      %v6229 = vshll.u32 %v5962, 16
      %v6231 = vrot.slane %v6229, 5
      %v6232 = vsel %vm265, %v6227, %v6231
      %v6233 = vshrl.u32 %v5962, 16
      %v6235 = vrot.slane %v6233, 4
      %v6236 = vor.u32 %v6235, %v6231
      %v6237 = vrot.slane %v6236, 4
      %v6239 = vshll.u32 %v5963, 16
      %v6241 = vrot.slane %v6239, 5
      %v6242 = vsel %vm265, %v6237, %v6241
      %v6244 = vshrl.u32 %v5964, 16
      %v6246 = vrot.slane %v6244, 4
      %v6247 = vshll.u32 %v5964, 16
      %v6249 = vrot.slane %v6247, 5
      %v6250 = vor.u32 %v6246, %v6249
      %v6251 = vrot.slane %v6250, 4
      %v6253 = vshll.u32 %v5965, 16
      %v6255 = vrot.slane %v6253, 5
      %v6256 = vsel %vm265, %v6251, %v6255
      %v6257 = vshrl.u32 %v5965, 16
      %v6259 = vrot.slane %v6257, 4
      %v6260 = vor.u32 %v6259, %v6255
      %v6261 = vrot.slane %v6260, 4
      %v6263 = vshll.u32 %v5966, 16
      %v6265 = vrot.slane %v6263, 5
      %v6266 = vsel %vm265, %v6261, %v6265
      %v6268 = vshrl.u32 %v5967, 16
      %v6270 = vrot.slane %v6268, 4
      %v6271 = vshll.u32 %v5967, 16
      %v6273 = vrot.slane %v6271, 5
      %v6274 = vor.u32 %v6270, %v6273
      %v6275 = vrot.slane %v6274, 4
      %v6277 = vshll.u32 %v5968, 16
      %v6279 = vrot.slane %v6277, 5
      %v6280 = vsel %vm265, %v6275, %v6279
      %v6281 = vshrl.u32 %v5968, 16
      %v6283 = vrot.slane %v6281, 4
      %v6284 = vor.u32 %v6283, %v6279
      %v6285 = vrot.slane %v6284, 4
      %v6287 = vshll.u32 %v5969, 16
      %v6289 = vrot.slane %v6287, 5
      %v6290 = vsel %vm265, %v6285, %v6289
      %v6292 = vshrl.u32 %v5970, 16
      %v6294 = vrot.slane %v6292, 4
      %v6295 = vshll.u32 %v5970, 16
      %v6297 = vrot.slane %v6295, 5
      %v6298 = vor.u32 %v6294, %v6297
      %v6299 = vrot.slane %v6298, 4
      %v6301 = vshll.u32 %v5971, 16
      %v6303 = vrot.slane %v6301, 5
      %v6304 = vsel %vm265, %v6299, %v6303
      %v6305 = vshrl.u32 %v5971, 16
      %v6307 = vrot.slane %v6305, 4
      %v6308 = vor.u32 %v6307, %v6303
      %v6309 = vrot.slane %v6308, 4
      %v6311 = vshll.u32 %v5972, 16
      %v6313 = vrot.slane %v6311, 5
      %v6314 = vsel %vm265, %v6309, %v6313
      %v6316 = vshrl.u32 %v5973, 16
      %v6318 = vrot.slane %v6316, 4
      %v6319 = vshll.u32 %v5973, 16
      %v6321 = vrot.slane %v6319, 5
      %v6322 = vor.u32 %v6318, %v6321
      %v6323 = vrot.slane %v6322, 4
      %v6325 = vshll.u32 %v5974, 16
      %v6327 = vrot.slane %v6325, 5
      %v6328 = vsel %vm265, %v6323, %v6327
      %v6329 = vshrl.u32 %v5974, 16
      %v6331 = vrot.slane %v6329, 4
      %v6332 = vor.u32 %v6331, %v6327
      %v6333 = vrot.slane %v6332, 4
      %v6335 = vshll.u32 %v5975, 16
      %v6337 = vrot.slane %v6335, 5
      %v6338 = vsel %vm265, %v6333, %v6337
      %v6340 = vshrl.u32 %v5976, 16
      %v6342 = vrot.slane %v6340, 4
      %v6343 = vshll.u32 %v5976, 16
      %v6345 = vrot.slane %v6343, 5
      %v6346 = vor.u32 %v6342, %v6345
      %v6347 = vrot.slane %v6346, 4
      %v6349 = vshll.u32 %v5977, 16
      %v6351 = vrot.slane %v6349, 5
      %v6352 = vsel %vm265, %v6347, %v6351
      %v6353 = vshrl.u32 %v5977, 16
      %v6355 = vrot.slane %v6353, 4
      %v6356 = vor.u32 %v6355, %v6351
      %v6357 = vrot.slane %v6356, 4
      %v6359 = vshll.u32 %v5978, 16
      %v6361 = vrot.slane %v6359, 5
      %v6362 = vsel %vm265, %v6357, %v6361
      %s6363 = scalar_lea.vmem %s1, 220
      %v6364 = vld [vmem:[%s6363] sm:$0xf]
      %v6365 = vld [vmem:[%s6363 + $0x4] sm:$0xf]
      %v6366 = vld [vmem:[%s6363 + $0x8] sm:$0xf]
      %v6367 = vld [vmem:[%s6363 + $0xc] sm:$0xf]
      %v6368 = vld [vmem:[%s6363 + $0x10] sm:$0x1]
      %v6369 = vunpack.c.l.b16 %v5992
      %v6370 = vunpack.c.l.b16 %v6002
      %v6371 = vunpack.c.l.b16 %v6016
      %v6372 = vunpack.c.l.b16 %v6026
      %v6373 = vunpack.c.l.b16 %v6040
      %v6374 = vunpack.c.l.b16 %v6050
      %v6375 = vunpack.c.l.b16 %v6064
      %v6376 = vunpack.c.l.b16 %v6074
      %v6377 = vunpack.c.l.b16 %v6088
      %v6378 = vunpack.c.l.b16 %v6098
      %v6379 = vunpack.c.l.b16 %v6112
      %v6380 = vunpack.c.l.b16 %v6122
      %v6381 = vunpack.c.l.b16 %v6136
      %v6382 = vunpack.c.l.b16 %v6146
      %v6383 = vunpack.c.l.b16 %v6160
      %v6384 = vunpack.c.l.b16 %v6170
      %v6385 = vunpack.c.l.b16 %v6184
      %v6386 = vunpack.c.l.b16 %v6194
      %v6387 = vunpack.c.l.b16 %v6208
      %v6388 = vunpack.c.l.b16 %v6218
      %v6389 = vunpack.c.l.b16 %v6232
      %v6390 = vunpack.c.l.b16 %v6242
      %v6391 = vunpack.c.l.b16 %v6256
      %v6392 = vunpack.c.l.b16 %v6266
      %v6393 = vunpack.c.l.b16 %v6280
      %v6394 = vunpack.c.l.b16 %v6290
      %v6395 = vunpack.c.l.b16 %v6304
      %v6396 = vunpack.c.l.b16 %v6314
      %v6397 = vunpack.c.l.b16 %v6328
      %v6398 = vunpack.c.l.b16 %v6338
      %v6399 = vunpack.c.l.b16 %v6352
      %v6400 = vunpack.c.l.b16 %v6362
      %v6401 = vpack.c.b16 %v6370, %v6369
      %v6402 = vpack.c.b16 %v6372, %v6371
      %v6403 = vpack.c.b16 %v6374, %v6373
      %v6404 = vpack.c.b16 %v6376, %v6375
      %v6405 = vpack.c.b16 %v6378, %v6377
      %v6406 = vpack.c.b16 %v6380, %v6379
      %v6407 = vpack.c.b16 %v6382, %v6381
      %v6408 = vpack.c.b16 %v6384, %v6383
      %v6409 = vpack.c.b16 %v6386, %v6385
      %v6410 = vpack.c.b16 %v6388, %v6387
      %v6411 = vpack.c.b16 %v6390, %v6389
      %v6412 = vpack.c.b16 %v6392, %v6391
      %v6413 = vpack.c.b16 %v6394, %v6393
      %v6414 = vpack.c.b16 %v6396, %v6395
      %v6415 = vpack.c.b16 %v6398, %v6397
      %v6416 = vpack.c.b16 %v6400, %v6399
      %v6422 = vunpack.c.l.b16 %v6364
      %v6423 = vunpack.c.l.b16 %v6365
      %v6424 = vunpack.c.l.b16 %v6366
      %v6425 = vunpack.c.l.b16 %v6367
      %v6426 = vunpack.c.l.b16 %v6368
      %v6427 = vpack.c.b16 %v6423, %v6422
      %v6428 = vpack.c.b16 %v6425, %v6424
      %v6429 = vpack.c.b16 %v6426, %v6426
      %v6433 = vsel %vm719, %v6401, 0
      %v6436 = vsel %vm719, %v6402, 0
      %v6439 = vsel %vm719, %v6403, 0
      %v6442 = vsel %vm719, %v6404, 0
      %v6445 = vsel %vm719, %v6405, 0
      %v6448 = vsel %vm719, %v6406, 0
      %v6451 = vsel %vm719, %v6407, 0
      %v6454 = vsel %vm719, %v6408, 0
      %v6457 = vsel %vm719, %v6409, 0
      %v6460 = vsel %vm719, %v6410, 0
      %v6463 = vsel %vm719, %v6411, 0
      %v6466 = vsel %vm719, %v6412, 0
      %v6469 = vsel %vm719, %v6413, 0
      %v6472 = vsel %vm719, %v6414, 0
      %v6475 = vsel %vm719, %v6415, 0
      %v6478 = vsel %vm719, %v6416, 0
      %v6481 = vand.u32 %v6429, %v770
      %6483 = vmatpush.bf16.msra.mxu0 0
      %6484 = vmatpush.bf16.msra.mxu0 0
      %6485 = vmatpush.bf16.msra.mxu0 0
      %6486 = vmatpush.bf16.msra.mxu0 0
      %6487 = vmatpush.bf16.msra.mxu0 0
      %6488 = vmatpush.bf16.msra.mxu0 %v6481
      %6489 = vmatpush.bf16.msra.mxu0 %v6428
      %6490 = vmatpush.bf16.msra.mxu0 %v6427
      %6491 = vmatmul.bf16.gmra.mxu0 %v6433
      %v6492 = vpop.f32.mrf.mxu0
      %v6493 = vadd.f32 0.0, %v6492
      %v6494 = vpop.f32.mrf.mxu0
      %v6495 = vadd.f32 0.0, %v6494
      %6496 = vmatmul.bf16.gmra.mxu0 %v6436
      %v6497 = vpop.f32.mrf.mxu0
      %v6498 = vadd.f32 0.0, %v6497
      %v6499 = vpop.f32.mrf.mxu0
      %v6500 = vadd.f32 0.0, %v6499
      %6501 = vmatmul.bf16.gmra.mxu0 %v6439
      %v6502 = vpop.f32.mrf.mxu0
      %v6503 = vadd.f32 0.0, %v6502
      %v6504 = vpop.f32.mrf.mxu0
      %v6505 = vadd.f32 0.0, %v6504
      %6506 = vmatmul.bf16.gmra.mxu0 %v6442
      %v6507 = vpop.f32.mrf.mxu0
      %v6508 = vadd.f32 0.0, %v6507
      %v6509 = vpop.f32.mrf.mxu0
      %v6510 = vadd.f32 0.0, %v6509
      %6511 = vmatmul.bf16.gmra.mxu0 %v6445
      %v6512 = vpop.f32.mrf.mxu0
      %v6513 = vadd.f32 0.0, %v6512
      %v6514 = vpop.f32.mrf.mxu0
      %v6515 = vadd.f32 0.0, %v6514
      %6516 = vmatmul.bf16.gmra.mxu0 %v6448
      %v6517 = vpop.f32.mrf.mxu0
      %v6518 = vadd.f32 0.0, %v6517
      %v6519 = vpop.f32.mrf.mxu0
      %v6520 = vadd.f32 0.0, %v6519
      %6521 = vmatmul.bf16.gmra.mxu0 %v6451
      %v6522 = vpop.f32.mrf.mxu0
      %v6523 = vadd.f32 0.0, %v6522
      %v6524 = vpop.f32.mrf.mxu0
      %v6525 = vadd.f32 0.0, %v6524
      %6526 = vmatmul.bf16.gmra.mxu0 %v6454
      %v6527 = vpop.f32.mrf.mxu0
      %v6528 = vadd.f32 0.0, %v6527
      %v6529 = vpop.f32.mrf.mxu0
      %v6530 = vadd.f32 0.0, %v6529
      %6531 = vmatmul.bf16.gmra.mxu0 %v6457
      %v6532 = vpop.f32.mrf.mxu0
      %v6533 = vadd.f32 0.0, %v6532
      %v6534 = vpop.f32.mrf.mxu0
      %v6535 = vadd.f32 0.0, %v6534
      %6536 = vmatmul.bf16.gmra.mxu0 %v6460
      %v6537 = vpop.f32.mrf.mxu0
      %v6538 = vadd.f32 0.0, %v6537
      %v6539 = vpop.f32.mrf.mxu0
      %v6540 = vadd.f32 0.0, %v6539
      %6541 = vmatmul.bf16.gmra.mxu0 %v6463
      %v6542 = vpop.f32.mrf.mxu0
      %v6543 = vadd.f32 0.0, %v6542
      %v6544 = vpop.f32.mrf.mxu0
      %v6545 = vadd.f32 0.0, %v6544
      %6546 = vmatmul.bf16.gmra.mxu0 %v6466
      %v6547 = vpop.f32.mrf.mxu0
      %v6548 = vadd.f32 0.0, %v6547
      %v6549 = vpop.f32.mrf.mxu0
      %v6550 = vadd.f32 0.0, %v6549
      %6551 = vmatmul.bf16.gmra.mxu0 %v6469
      %v6552 = vpop.f32.mrf.mxu0
      %v6553 = vadd.f32 0.0, %v6552
      %v6554 = vpop.f32.mrf.mxu0
      %v6555 = vadd.f32 0.0, %v6554
      %6556 = vmatmul.bf16.gmra.mxu0 %v6472
      %v6557 = vpop.f32.mrf.mxu0
      %v6558 = vadd.f32 0.0, %v6557
      %v6559 = vpop.f32.mrf.mxu0
      %v6560 = vadd.f32 0.0, %v6559
      %6561 = vmatmul.bf16.gmra.mxu0 %v6475
      %v6562 = vpop.f32.mrf.mxu0
      %v6563 = vadd.f32 0.0, %v6562
      %v6564 = vpop.f32.mrf.mxu0
      %v6565 = vadd.f32 0.0, %v6564
      %6566 = vmatmul.bf16.gmra.mxu0 %v6478
      %v6567 = vpop.f32.mrf.mxu0
      %v6568 = vadd.f32 0.0, %v6567
      %v6569 = vpop.f32.mrf.mxu0
      %v6570 = vadd.f32 0.0, %v6569
      %6571 = vdwg.mxu0
      %v6572 = vadd.f32 %v5899, %v6493
      %v6573 = vadd.f32 %v5900, %v6495
      %v6574 = vadd.f32 %v5901, %v6498
      %v6575 = vadd.f32 %v5902, %v6500
      %v6576 = vadd.f32 %v5903, %v6503
      %v6577 = vadd.f32 %v5904, %v6505
      %v6578 = vadd.f32 %v5905, %v6508
      %v6579 = vadd.f32 %v5906, %v6510
      %v6580 = vadd.f32 %v5907, %v6513
      %v6581 = vadd.f32 %v5908, %v6515
      %v6582 = vadd.f32 %v5909, %v6518
      %v6583 = vadd.f32 %v5910, %v6520
      %v6584 = vadd.f32 %v5911, %v6523
      %v6585 = vadd.f32 %v5912, %v6525
      %v6586 = vadd.f32 %v5913, %v6528
      %v6587 = vadd.f32 %v5914, %v6530
      %v6588 = vadd.f32 %v5915, %v6533
      %v6589 = vadd.f32 %v5916, %v6535
      %v6590 = vadd.f32 %v5917, %v6538
      %v6591 = vadd.f32 %v5918, %v6540
      %v6592 = vadd.f32 %v5919, %v6543
      %v6593 = vadd.f32 %v5920, %v6545
      %v6594 = vadd.f32 %v5921, %v6548
      %v6595 = vadd.f32 %v5922, %v6550
      %v6596 = vadd.f32 %v5923, %v6553
      %v6597 = vadd.f32 %v5924, %v6555
      %v6598 = vadd.f32 %v5925, %v6558
      %v6599 = vadd.f32 %v5926, %v6560
      %v6600 = vadd.f32 %v5927, %v6563
      %v6601 = vadd.f32 %v5928, %v6565
      %v6602 = vadd.f32 %v5929, %v6568
      %v6603 = vadd.f32 %v5930, %v6570
      %v6604 = vld [vmem:[%s2] sm:$0x1]
      %v6606 = vperm.slane %v6604, 0
      %v6608 = vadd.f32 %v6572, %v6606
      %v6609 = vadd.f32 %v6573, %v6606
      %v6610 = vadd.f32 %v6574, %v6606
      %v6611 = vadd.f32 %v6575, %v6606
      %v6612 = vadd.f32 %v6576, %v6606
      %v6613 = vadd.f32 %v6577, %v6606
      %v6614 = vadd.f32 %v6578, %v6606
      %v6615 = vadd.f32 %v6579, %v6606
      %v6616 = vadd.f32 %v6580, %v6606
      %v6617 = vadd.f32 %v6581, %v6606
      %v6618 = vadd.f32 %v6582, %v6606
      %v6619 = vadd.f32 %v6583, %v6606
      %v6620 = vadd.f32 %v6584, %v6606
      %v6621 = vadd.f32 %v6585, %v6606
      %v6622 = vadd.f32 %v6586, %v6606
      %v6623 = vadd.f32 %v6587, %v6606
      %v6624 = vadd.f32 %v6588, %v6606
      %v6625 = vadd.f32 %v6589, %v6606
      %v6626 = vadd.f32 %v6590, %v6606
      %v6627 = vadd.f32 %v6591, %v6606
      %v6628 = vadd.f32 %v6592, %v6606
      %v6629 = vadd.f32 %v6593, %v6606
      %v6630 = vadd.f32 %v6594, %v6606
      %v6631 = vadd.f32 %v6595, %v6606
      %v6632 = vadd.f32 %v6596, %v6606
      %v6633 = vadd.f32 %v6597, %v6606
      %v6634 = vadd.f32 %v6598, %v6606
      %v6635 = vadd.f32 %v6599, %v6606
      %v6636 = vadd.f32 %v6600, %v6606
      %v6637 = vadd.f32 %v6601, %v6606
      %v6638 = vadd.f32 %v6602, %v6606
      %v6639 = vadd.f32 %v6603, %v6606
      %v6640 = vpack.c.bf16 %v6608, %v6608
      %v6641 = vpack.c.bf16 %v6609, %v6609
      %v6642 = vpack.c.bf16 %v6610, %v6610
      %v6643 = vpack.c.bf16 %v6611, %v6611
      %v6644 = vpack.c.bf16 %v6612, %v6612
      %v6645 = vpack.c.bf16 %v6613, %v6613
      %v6646 = vpack.c.bf16 %v6614, %v6614
      %v6647 = vpack.c.bf16 %v6615, %v6615
      %v6648 = vpack.c.bf16 %v6616, %v6616
      %v6649 = vpack.c.bf16 %v6617, %v6617
      %v6650 = vpack.c.bf16 %v6618, %v6618
      %v6651 = vpack.c.bf16 %v6619, %v6619
      %v6652 = vpack.c.bf16 %v6620, %v6620
      %v6653 = vpack.c.bf16 %v6621, %v6621
      %v6654 = vpack.c.bf16 %v6622, %v6622
      %v6655 = vpack.c.bf16 %v6623, %v6623
      %v6656 = vpack.c.bf16 %v6624, %v6624
      %v6657 = vpack.c.bf16 %v6625, %v6625
      %v6658 = vpack.c.bf16 %v6626, %v6626
      %v6659 = vpack.c.bf16 %v6627, %v6627
      %v6660 = vpack.c.bf16 %v6628, %v6628
      %v6661 = vpack.c.bf16 %v6629, %v6629
      %v6662 = vpack.c.bf16 %v6630, %v6630
      %v6663 = vpack.c.bf16 %v6631, %v6631
      %v6664 = vpack.c.bf16 %v6632, %v6632
      %v6665 = vpack.c.bf16 %v6633, %v6633
      %v6666 = vpack.c.bf16 %v6634, %v6634
      %v6667 = vpack.c.bf16 %v6635, %v6635
      %v6668 = vpack.c.bf16 %v6636, %v6636
      %v6669 = vpack.c.bf16 %v6637, %v6637
      %v6670 = vpack.c.bf16 %v6638, %v6638
      %v6671 = vpack.c.bf16 %v6639, %v6639
      %s6672 = scalar_lea.vmem %s204, 256
      %6673 = vst.msk [vmem:[%s6672] sm:$0xf] %vm2145, %v6640
      %6674 = vst.msk [vmem:[%s6672 + $0x4] sm:$0xf] %vm2145, %v6641
      %6675 = vst.msk [vmem:[%s6672 + $0x8] sm:$0xf] %vm2145, %v6642
      %6676 = vst.msk [vmem:[%s6672 + $0xc] sm:$0xf] %vm2145, %v6643
      %6677 = vst.msk [vmem:[%s6672 + $0x10] sm:$0xf] %vm2145, %v6644
      %6678 = vst.msk [vmem:[%s6672 + $0x14] sm:$0xf] %vm2145, %v6645
      %6679 = vst.msk [vmem:[%s6672 + $0x18] sm:$0xf] %vm2145, %v6646
      %6680 = vst.msk [vmem:[%s6672 + $0x1c] sm:$0xf] %vm2145, %v6647
      %6681 = vst.msk [vmem:[%s6672 + $0x20] sm:$0xf] %vm2145, %v6648
      %6682 = vst.msk [vmem:[%s6672 + $0x24] sm:$0xf] %vm2145, %v6649
      %6683 = vst.msk [vmem:[%s6672 + $0x28] sm:$0xf] %vm2145, %v6650
      %6684 = vst.msk [vmem:[%s6672 + $0x2c] sm:$0xf] %vm2145, %v6651
      %6685 = vst.msk [vmem:[%s6672 + $0x30] sm:$0xf] %vm2145, %v6652
      %6686 = vst.msk [vmem:[%s6672 + $0x34] sm:$0xf] %vm2145, %v6653
      %6687 = vst.msk [vmem:[%s6672 + $0x38] sm:$0xf] %vm2145, %v6654
      %6688 = vst.msk [vmem:[%s6672 + $0x3c] sm:$0xf] %vm2145, %v6655
      %6689 = vst.msk [vmem:[%s6672 + $0x40] sm:$0xf] %vm2145, %v6656
      %6690 = vst.msk [vmem:[%s6672 + $0x44] sm:$0xf] %vm2145, %v6657
      %6691 = vst.msk [vmem:[%s6672 + $0x48] sm:$0xf] %vm2145, %v6658
      %6692 = vst.msk [vmem:[%s6672 + $0x4c] sm:$0xf] %vm2145, %v6659
      %6693 = vst.msk [vmem:[%s6672 + $0x50] sm:$0xf] %vm2145, %v6660
      %6694 = vst.msk [vmem:[%s6672 + $0x54] sm:$0xf] %vm2145, %v6661
      %6695 = vst.msk [vmem:[%s6672 + $0x58] sm:$0xf] %vm2145, %v6662
      %6696 = vst.msk [vmem:[%s6672 + $0x5c] sm:$0xf] %vm2145, %v6663
      %6697 = vst.msk [vmem:[%s6672 + $0x60] sm:$0xf] %vm2145, %v6664
      %6698 = vst.msk [vmem:[%s6672 + $0x64] sm:$0xf] %vm2145, %v6665
      %6699 = vst.msk [vmem:[%s6672 + $0x68] sm:$0xf] %vm2145, %v6666
      %6700 = vst.msk [vmem:[%s6672 + $0x6c] sm:$0xf] %vm2145, %v6667
      %6701 = vst.msk [vmem:[%s6672 + $0x70] sm:$0xf] %vm2145, %v6668
      %6702 = vst.msk [vmem:[%s6672 + $0x74] sm:$0xf] %vm2145, %v6669
      %6703 = vst.msk [vmem:[%s6672 + $0x78] sm:$0xf] %vm2145, %v6670
      %6704 = vst.msk [vmem:[%s6672 + $0x7c] sm:$0xf] %vm2145, %v6671
      %v6705 = vsel %vm2178, %v6608, 0.0
      %v6706 = vsel %vm2178, %v6609, 0.0
      %v6707 = vadd.f32 %v6705, %v6706
      %v6708 = vsel %vm2178, %v6610, 0.0
      %v6709 = vadd.f32 %v6707, %v6708
      %v6710 = vsel %vm2178, %v6611, 0.0
      %v6711 = vadd.f32 %v6709, %v6710
      %v6712 = vsel %vm2178, %v6612, 0.0
      %v6713 = vadd.f32 %v6711, %v6712
      %v6714 = vsel %vm2178, %v6613, 0.0
      %v6715 = vadd.f32 %v6713, %v6714
      %v6716 = vsel %vm2178, %v6614, 0.0
      %v6717 = vadd.f32 %v6715, %v6716
      %v6718 = vsel %vm2178, %v6615, 0.0
      %v6719 = vadd.f32 %v6717, %v6718
      %v6720 = vsel %vm2178, %v6616, 0.0
      %v6721 = vadd.f32 %v6719, %v6720
      %v6722 = vsel %vm2178, %v6617, 0.0
      %v6723 = vadd.f32 %v6721, %v6722
      %v6724 = vsel %vm2178, %v6618, 0.0
      %v6725 = vadd.f32 %v6723, %v6724
      %v6726 = vsel %vm2178, %v6619, 0.0
      %v6727 = vadd.f32 %v6725, %v6726
      %v6728 = vsel %vm2178, %v6620, 0.0
      %v6729 = vadd.f32 %v6727, %v6728
      %v6730 = vsel %vm2178, %v6621, 0.0
      %v6731 = vadd.f32 %v6729, %v6730
      %v6732 = vsel %vm2178, %v6622, 0.0
      %v6733 = vadd.f32 %v6731, %v6732
      %v6734 = vsel %vm2178, %v6623, 0.0
      %v6735 = vadd.f32 %v6733, %v6734
      %v6736 = vsel %vm2178, %v6624, 0.0
      %v6737 = vadd.f32 %v6735, %v6736
      %v6738 = vsel %vm2178, %v6625, 0.0
      %v6739 = vadd.f32 %v6737, %v6738
      %v6740 = vsel %vm2178, %v6626, 0.0
      %v6741 = vadd.f32 %v6739, %v6740
      %v6742 = vsel %vm2178, %v6627, 0.0
      %v6743 = vadd.f32 %v6741, %v6742
      %v6744 = vsel %vm2178, %v6628, 0.0
      %v6745 = vadd.f32 %v6743, %v6744
      %v6746 = vsel %vm2178, %v6629, 0.0
      %v6747 = vadd.f32 %v6745, %v6746
      %v6748 = vsel %vm2178, %v6630, 0.0
      %v6749 = vadd.f32 %v6747, %v6748
      %v6750 = vsel %vm2178, %v6631, 0.0
      %v6751 = vadd.f32 %v6749, %v6750
      %v6752 = vsel %vm2178, %v6632, 0.0
      %v6753 = vadd.f32 %v6751, %v6752
      %v6754 = vsel %vm2178, %v6633, 0.0
      %v6755 = vadd.f32 %v6753, %v6754
      %v6756 = vsel %vm2178, %v6634, 0.0
      %v6757 = vadd.f32 %v6755, %v6756
      %v6758 = vsel %vm2178, %v6635, 0.0
      %v6759 = vadd.f32 %v6757, %v6758
      %v6760 = vsel %vm2178, %v6636, 0.0
      %v6761 = vadd.f32 %v6759, %v6760
      %v6762 = vsel %vm2178, %v6637, 0.0
      %v6763 = vadd.f32 %v6761, %v6762
      %v6764 = vsel %vm2178, %v6638, 0.0
      %v6765 = vadd.f32 %v6763, %v6764
      %v6766 = vsel %vm2178, %v6639, 0.0
      %v6767 = vadd.f32 %v6765, %v6766
      %v6768 = vrot.slane %v6767, 4
      %v6769 = vadd.f32 %v6767, %v6768
      %v6770 = vrot.slane %v6769, 2
      %v6771 = vadd.f32 %v6769, %v6770
      %v6772 = vrot.slane %v6771, 1
      %v6773 = vadd.f32 %v6771, %v6772
      %v6774 = vadd.f32 %v4640, %v6773
      %v6775 = vmul.f32 %v6608, %v6608
      %v6776 = vmul.f32 %v6609, %v6609
      %v6777 = vmul.f32 %v6610, %v6610
      %v6778 = vmul.f32 %v6611, %v6611
      %v6779 = vmul.f32 %v6612, %v6612
      %v6780 = vmul.f32 %v6613, %v6613
      %v6781 = vmul.f32 %v6614, %v6614
      %v6782 = vmul.f32 %v6615, %v6615
      %v6783 = vmul.f32 %v6616, %v6616
      %v6784 = vmul.f32 %v6617, %v6617
      %v6785 = vmul.f32 %v6618, %v6618
      %v6786 = vmul.f32 %v6619, %v6619
      %v6787 = vmul.f32 %v6620, %v6620
      %v6788 = vmul.f32 %v6621, %v6621
      %v6789 = vmul.f32 %v6622, %v6622
      %v6790 = vmul.f32 %v6623, %v6623
      %v6791 = vmul.f32 %v6624, %v6624
      %v6792 = vmul.f32 %v6625, %v6625
      %v6793 = vmul.f32 %v6626, %v6626
      %v6794 = vmul.f32 %v6627, %v6627
      %v6795 = vmul.f32 %v6628, %v6628
      %v6796 = vmul.f32 %v6629, %v6629
      %v6797 = vmul.f32 %v6630, %v6630
      %v6798 = vmul.f32 %v6631, %v6631
      %v6799 = vmul.f32 %v6632, %v6632
      %v6800 = vmul.f32 %v6633, %v6633
      %v6801 = vmul.f32 %v6634, %v6634
      %v6802 = vmul.f32 %v6635, %v6635
      %v6803 = vmul.f32 %v6636, %v6636
      %v6804 = vmul.f32 %v6637, %v6637
      %v6805 = vmul.f32 %v6638, %v6638
      %v6806 = vmul.f32 %v6639, %v6639
      %v6807 = vsel %vm2178, %v6775, 0.0
      %v6808 = vsel %vm2178, %v6776, 0.0
      %v6809 = vadd.f32 %v6807, %v6808
      %v6810 = vsel %vm2178, %v6777, 0.0
      %v6811 = vadd.f32 %v6809, %v6810
      %v6812 = vsel %vm2178, %v6778, 0.0
      %v6813 = vadd.f32 %v6811, %v6812
      %v6814 = vsel %vm2178, %v6779, 0.0
      %v6815 = vadd.f32 %v6813, %v6814
      %v6816 = vsel %vm2178, %v6780, 0.0
      %v6817 = vadd.f32 %v6815, %v6816
      %v6818 = vsel %vm2178, %v6781, 0.0
      %v6819 = vadd.f32 %v6817, %v6818
      %v6820 = vsel %vm2178, %v6782, 0.0
      %v6821 = vadd.f32 %v6819, %v6820
      %v6822 = vsel %vm2178, %v6783, 0.0
      %v6823 = vadd.f32 %v6821, %v6822
      %v6824 = vsel %vm2178, %v6784, 0.0
      %v6825 = vadd.f32 %v6823, %v6824
      %v6826 = vsel %vm2178, %v6785, 0.0
      %v6827 = vadd.f32 %v6825, %v6826
      %v6828 = vsel %vm2178, %v6786, 0.0
      %v6829 = vadd.f32 %v6827, %v6828
      %v6830 = vsel %vm2178, %v6787, 0.0
      %v6831 = vadd.f32 %v6829, %v6830
      %v6832 = vsel %vm2178, %v6788, 0.0
      %v6833 = vadd.f32 %v6831, %v6832
      %v6834 = vsel %vm2178, %v6789, 0.0
      %v6835 = vadd.f32 %v6833, %v6834
      %v6836 = vsel %vm2178, %v6790, 0.0
      %v6837 = vadd.f32 %v6835, %v6836
      %v6838 = vsel %vm2178, %v6791, 0.0
      %v6839 = vadd.f32 %v6837, %v6838
      %v6840 = vsel %vm2178, %v6792, 0.0
      %v6841 = vadd.f32 %v6839, %v6840
      %v6842 = vsel %vm2178, %v6793, 0.0
      %v6843 = vadd.f32 %v6841, %v6842
      %v6844 = vsel %vm2178, %v6794, 0.0
      %v6845 = vadd.f32 %v6843, %v6844
      %v6846 = vsel %vm2178, %v6795, 0.0
      %v6847 = vadd.f32 %v6845, %v6846
      %v6848 = vsel %vm2178, %v6796, 0.0
      %v6849 = vadd.f32 %v6847, %v6848
      %v6850 = vsel %vm2178, %v6797, 0.0
      %v6851 = vadd.f32 %v6849, %v6850
      %v6852 = vsel %vm2178, %v6798, 0.0
      %v6853 = vadd.f32 %v6851, %v6852
      %v6854 = vsel %vm2178, %v6799, 0.0
      %v6855 = vadd.f32 %v6853, %v6854
      %v6856 = vsel %vm2178, %v6800, 0.0
      %v6857 = vadd.f32 %v6855, %v6856
      %v6858 = vsel %vm2178, %v6801, 0.0
      %v6859 = vadd.f32 %v6857, %v6858
      %v6860 = vsel %vm2178, %v6802, 0.0
      %v6861 = vadd.f32 %v6859, %v6860
      %v6862 = vsel %vm2178, %v6803, 0.0
      %v6863 = vadd.f32 %v6861, %v6862
      %v6864 = vsel %vm2178, %v6804, 0.0
      %v6865 = vadd.f32 %v6863, %v6864
      %v6866 = vsel %vm2178, %v6805, 0.0
      %v6867 = vadd.f32 %v6865, %v6866
      %v6868 = vsel %vm2178, %v6806, 0.0
      %v6869 = vadd.f32 %v6867, %v6868
      %v6870 = vrot.slane %v6869, 4
      %v6871 = vadd.f32 %v6869, %v6870
      %v6872 = vrot.slane %v6871, 2
      %v6873 = vadd.f32 %v6871, %v6872
      %v6874 = vrot.slane %v6873, 1
      %v6875 = vadd.f32 %v6873, %v6874
      %v6876 = vadd.f32 %v4742, %v6875
      %v6877 = vld [vmem:[%s1098] sm:$0xf]
      %v6878 = vld [vmem:[%s1098 + $0x4] sm:$0xf]
      %v6879 = vld [vmem:[%s1098 + $0x8] sm:$0x1]
      %v6880 = vld [vmem:[%s1098 + $0xc] sm:$0xf]
      %v6881 = vld [vmem:[%s1098 + $0x10] sm:$0xf]
      %v6882 = vld [vmem:[%s1098 + $0x14] sm:$0x1]
      %v6883 = vld [vmem:[%s1098 + $0x18] sm:$0xf]
      %v6884 = vld [vmem:[%s1098 + $0x1c] sm:$0xf]
      %v6885 = vld [vmem:[%s1098 + $0x20] sm:$0x1]
      %v6886 = vld [vmem:[%s1098 + $0x24] sm:$0xf]
      %v6887 = vld [vmem:[%s1098 + $0x28] sm:$0xf]
      %v6888 = vld [vmem:[%s1098 + $0x2c] sm:$0x1]
      %v6889 = vld [vmem:[%s1098 + $0x30] sm:$0xf]
      %v6890 = vld [vmem:[%s1098 + $0x34] sm:$0xf]
      %v6891 = vld [vmem:[%s1098 + $0x38] sm:$0x1]
      %v6892 = vld [vmem:[%s1098 + $0x3c] sm:$0xf]
      %v6893 = vld [vmem:[%s1098 + $0x40] sm:$0xf]
      %v6894 = vld [vmem:[%s1098 + $0x44] sm:$0x1]
      %v6895 = vld [vmem:[%s1098 + $0x48] sm:$0xf]
      %v6896 = vld [vmem:[%s1098 + $0x4c] sm:$0xf]
      %v6897 = vld [vmem:[%s1098 + $0x50] sm:$0x1]
      %v6898 = vld [vmem:[%s1098 + $0x54] sm:$0xf]
      %v6899 = vld [vmem:[%s1098 + $0x58] sm:$0xf]
      %v6900 = vld [vmem:[%s1098 + $0x5c] sm:$0x1]
      %v6901 = vld [vmem:[%s1098 + $0x60] sm:$0xf]
      %v6902 = vld [vmem:[%s1098 + $0x64] sm:$0xf]
      %v6903 = vld [vmem:[%s1098 + $0x68] sm:$0x1]
      %v6904 = vld [vmem:[%s1098 + $0x6c] sm:$0xf]
      %v6905 = vld [vmem:[%s1098 + $0x70] sm:$0xf]
      %v6906 = vld [vmem:[%s1098 + $0x74] sm:$0x1]
      %v6907 = vld [vmem:[%s1098 + $0x78] sm:$0xf]
      %v6908 = vld [vmem:[%s1098 + $0x7c] sm:$0xf]
      %v6909 = vld [vmem:[%s1098 + $0x80] sm:$0x1]
      %v6910 = vld [vmem:[%s1098 + $0x84] sm:$0xf]
      %v6911 = vld [vmem:[%s1098 + $0x88] sm:$0xf]
      %v6912 = vld [vmem:[%s1098 + $0x8c] sm:$0x1]
      %v6913 = vld [vmem:[%s1098 + $0x90] sm:$0xf]
      %v6914 = vld [vmem:[%s1098 + $0x94] sm:$0xf]
      %v6915 = vld [vmem:[%s1098 + $0x98] sm:$0x1]
      %v6916 = vld [vmem:[%s1098 + $0x9c] sm:$0xf]
      %v6917 = vld [vmem:[%s1098 + $0xa0] sm:$0xf]
      %v6918 = vld [vmem:[%s1098 + $0xa4] sm:$0x1]
      %v6919 = vld [vmem:[%s1098 + $0xa8] sm:$0xf]
      %v6920 = vld [vmem:[%s1098 + $0xac] sm:$0xf]
      %v6921 = vld [vmem:[%s1098 + $0xb0] sm:$0x1]
      %v6922 = vld [vmem:[%s1098 + $0xb4] sm:$0xf]
      %v6923 = vld [vmem:[%s1098 + $0xb8] sm:$0xf]
      %v6924 = vld [vmem:[%s1098 + $0xbc] sm:$0x1]
      %v6926 = vshrl.u32 %v6877, 16
      %v6928 = vrot.slane %v6926, 4
      %v6929 = vshll.u32 %v6877, 16
      %v6931 = vrot.slane %v6929, 5
      %v6932 = vor.u32 %v6928, %v6931
      %v6933 = vrot.slane %v6932, 4
      %v6935 = vshll.u32 %v6878, 16
      %v6937 = vrot.slane %v6935, 5
      %v6938 = vsel %vm265, %v6933, %v6937
      %v6939 = vshrl.u32 %v6878, 16
      %v6941 = vrot.slane %v6939, 4
      %v6942 = vor.u32 %v6941, %v6937
      %v6943 = vrot.slane %v6942, 4
      %v6945 = vshll.u32 %v6879, 16
      %v6947 = vrot.slane %v6945, 5
      %v6948 = vsel %vm265, %v6943, %v6947
      %v6950 = vshrl.u32 %v6880, 16
      %v6952 = vrot.slane %v6950, 4
      %v6953 = vshll.u32 %v6880, 16
      %v6955 = vrot.slane %v6953, 5
      %v6956 = vor.u32 %v6952, %v6955
      %v6957 = vrot.slane %v6956, 4
      %v6959 = vshll.u32 %v6881, 16
      %v6961 = vrot.slane %v6959, 5
      %v6962 = vsel %vm265, %v6957, %v6961
      %v6963 = vshrl.u32 %v6881, 16
      %v6965 = vrot.slane %v6963, 4
      %v6966 = vor.u32 %v6965, %v6961
      %v6967 = vrot.slane %v6966, 4
      %v6969 = vshll.u32 %v6882, 16
      %v6971 = vrot.slane %v6969, 5
      %v6972 = vsel %vm265, %v6967, %v6971
      %v6974 = vshrl.u32 %v6883, 16
      %v6976 = vrot.slane %v6974, 4
      %v6977 = vshll.u32 %v6883, 16
      %v6979 = vrot.slane %v6977, 5
      %v6980 = vor.u32 %v6976, %v6979
      %v6981 = vrot.slane %v6980, 4
      %v6983 = vshll.u32 %v6884, 16
      %v6985 = vrot.slane %v6983, 5
      %v6986 = vsel %vm265, %v6981, %v6985
      %v6987 = vshrl.u32 %v6884, 16
      %v6989 = vrot.slane %v6987, 4
      %v6990 = vor.u32 %v6989, %v6985
      %v6991 = vrot.slane %v6990, 4
      %v6993 = vshll.u32 %v6885, 16
      %v6995 = vrot.slane %v6993, 5
      %v6996 = vsel %vm265, %v6991, %v6995
      %v6998 = vshrl.u32 %v6886, 16
      %v7000 = vrot.slane %v6998, 4
      %v7001 = vshll.u32 %v6886, 16
      %v7003 = vrot.slane %v7001, 5
      %v7004 = vor.u32 %v7000, %v7003
      %v7005 = vrot.slane %v7004, 4
      %v7007 = vshll.u32 %v6887, 16
      %v7009 = vrot.slane %v7007, 5
      %v7010 = vsel %vm265, %v7005, %v7009
      %v7011 = vshrl.u32 %v6887, 16
      %v7013 = vrot.slane %v7011, 4
      %v7014 = vor.u32 %v7013, %v7009
      %v7015 = vrot.slane %v7014, 4
      %v7017 = vshll.u32 %v6888, 16
      %v7019 = vrot.slane %v7017, 5
      %v7020 = vsel %vm265, %v7015, %v7019
      %v7022 = vshrl.u32 %v6889, 16
      %v7024 = vrot.slane %v7022, 4
      %v7025 = vshll.u32 %v6889, 16
      %v7027 = vrot.slane %v7025, 5
      %v7028 = vor.u32 %v7024, %v7027
      %v7029 = vrot.slane %v7028, 4
      %v7031 = vshll.u32 %v6890, 16
      %v7033 = vrot.slane %v7031, 5
      %v7034 = vsel %vm265, %v7029, %v7033
      %v7035 = vshrl.u32 %v6890, 16
      %v7037 = vrot.slane %v7035, 4
      %v7038 = vor.u32 %v7037, %v7033
      %v7039 = vrot.slane %v7038, 4
      %v7041 = vshll.u32 %v6891, 16
      %v7043 = vrot.slane %v7041, 5
      %v7044 = vsel %vm265, %v7039, %v7043
      %v7046 = vshrl.u32 %v6892, 16
      %v7048 = vrot.slane %v7046, 4
      %v7049 = vshll.u32 %v6892, 16
      %v7051 = vrot.slane %v7049, 5
      %v7052 = vor.u32 %v7048, %v7051
      %v7053 = vrot.slane %v7052, 4
      %v7055 = vshll.u32 %v6893, 16
      %v7057 = vrot.slane %v7055, 5
      %v7058 = vsel %vm265, %v7053, %v7057
      %v7059 = vshrl.u32 %v6893, 16
      %v7061 = vrot.slane %v7059, 4
      %v7062 = vor.u32 %v7061, %v7057
      %v7063 = vrot.slane %v7062, 4
      %v7065 = vshll.u32 %v6894, 16
      %v7067 = vrot.slane %v7065, 5
      %v7068 = vsel %vm265, %v7063, %v7067
      %v7070 = vshrl.u32 %v6895, 16
      %v7072 = vrot.slane %v7070, 4
      %v7073 = vshll.u32 %v6895, 16
      %v7075 = vrot.slane %v7073, 5
      %v7076 = vor.u32 %v7072, %v7075
      %v7077 = vrot.slane %v7076, 4
      %v7079 = vshll.u32 %v6896, 16
      %v7081 = vrot.slane %v7079, 5
      %v7082 = vsel %vm265, %v7077, %v7081
      %v7083 = vshrl.u32 %v6896, 16
      %v7085 = vrot.slane %v7083, 4
      %v7086 = vor.u32 %v7085, %v7081
      %v7087 = vrot.slane %v7086, 4
      %v7089 = vshll.u32 %v6897, 16
      %v7091 = vrot.slane %v7089, 5
      %v7092 = vsel %vm265, %v7087, %v7091
      %v7094 = vshrl.u32 %v6898, 16
      %v7096 = vrot.slane %v7094, 4
      %v7097 = vshll.u32 %v6898, 16
      %v7099 = vrot.slane %v7097, 5
      %v7100 = vor.u32 %v7096, %v7099
      %v7101 = vrot.slane %v7100, 4
      %v7103 = vshll.u32 %v6899, 16
      %v7105 = vrot.slane %v7103, 5
      %v7106 = vsel %vm265, %v7101, %v7105
      %v7107 = vshrl.u32 %v6899, 16
      %v7109 = vrot.slane %v7107, 4
      %v7110 = vor.u32 %v7109, %v7105
      %v7111 = vrot.slane %v7110, 4
      %v7113 = vshll.u32 %v6900, 16
      %v7115 = vrot.slane %v7113, 5
      %v7116 = vsel %vm265, %v7111, %v7115
      %v7118 = vshrl.u32 %v6901, 16
      %v7120 = vrot.slane %v7118, 4
      %v7121 = vshll.u32 %v6901, 16
      %v7123 = vrot.slane %v7121, 5
      %v7124 = vor.u32 %v7120, %v7123
      %v7125 = vrot.slane %v7124, 4
      %v7127 = vshll.u32 %v6902, 16
      %v7129 = vrot.slane %v7127, 5
      %v7130 = vsel %vm265, %v7125, %v7129
      %v7131 = vshrl.u32 %v6902, 16
      %v7133 = vrot.slane %v7131, 4
      %v7134 = vor.u32 %v7133, %v7129
      %v7135 = vrot.slane %v7134, 4
      %v7137 = vshll.u32 %v6903, 16
      %v7139 = vrot.slane %v7137, 5
      %v7140 = vsel %vm265, %v7135, %v7139
      %v7142 = vshrl.u32 %v6904, 16
      %v7144 = vrot.slane %v7142, 4
      %v7145 = vshll.u32 %v6904, 16
      %v7147 = vrot.slane %v7145, 5
      %v7148 = vor.u32 %v7144, %v7147
      %v7149 = vrot.slane %v7148, 4
      %v7151 = vshll.u32 %v6905, 16
      %v7153 = vrot.slane %v7151, 5
      %v7154 = vsel %vm265, %v7149, %v7153
      %v7155 = vshrl.u32 %v6905, 16
      %v7157 = vrot.slane %v7155, 4
      %v7158 = vor.u32 %v7157, %v7153
      %v7159 = vrot.slane %v7158, 4
      %v7161 = vshll.u32 %v6906, 16
      %v7163 = vrot.slane %v7161, 5
      %v7164 = vsel %vm265, %v7159, %v7163
      %v7166 = vshrl.u32 %v6907, 16
      %v7168 = vrot.slane %v7166, 4
      %v7169 = vshll.u32 %v6907, 16
      %v7171 = vrot.slane %v7169, 5
      %v7172 = vor.u32 %v7168, %v7171
      %v7173 = vrot.slane %v7172, 4
      %v7175 = vshll.u32 %v6908, 16
      %v7177 = vrot.slane %v7175, 5
      %v7178 = vsel %vm265, %v7173, %v7177
      %v7179 = vshrl.u32 %v6908, 16
      %v7181 = vrot.slane %v7179, 4
      %v7182 = vor.u32 %v7181, %v7177
      %v7183 = vrot.slane %v7182, 4
      %v7185 = vshll.u32 %v6909, 16
      %v7187 = vrot.slane %v7185, 5
      %v7188 = vsel %vm265, %v7183, %v7187
      %v7190 = vshrl.u32 %v6910, 16
      %v7192 = vrot.slane %v7190, 4
      %v7193 = vshll.u32 %v6910, 16
      %v7195 = vrot.slane %v7193, 5
      %v7196 = vor.u32 %v7192, %v7195
      %v7197 = vrot.slane %v7196, 4
      %v7199 = vshll.u32 %v6911, 16
      %v7201 = vrot.slane %v7199, 5
      %v7202 = vsel %vm265, %v7197, %v7201
      %v7203 = vshrl.u32 %v6911, 16
      %v7205 = vrot.slane %v7203, 4
      %v7206 = vor.u32 %v7205, %v7201
      %v7207 = vrot.slane %v7206, 4
      %v7209 = vshll.u32 %v6912, 16
      %v7211 = vrot.slane %v7209, 5
      %v7212 = vsel %vm265, %v7207, %v7211
      %v7214 = vshrl.u32 %v6913, 16
      %v7216 = vrot.slane %v7214, 4
      %v7217 = vshll.u32 %v6913, 16
      %v7219 = vrot.slane %v7217, 5
      %v7220 = vor.u32 %v7216, %v7219
      %v7221 = vrot.slane %v7220, 4
      %v7223 = vshll.u32 %v6914, 16
      %v7225 = vrot.slane %v7223, 5
      %v7226 = vsel %vm265, %v7221, %v7225
      %v7227 = vshrl.u32 %v6914, 16
      %v7229 = vrot.slane %v7227, 4
      %v7230 = vor.u32 %v7229, %v7225
      %v7231 = vrot.slane %v7230, 4
      %v7233 = vshll.u32 %v6915, 16
      %v7235 = vrot.slane %v7233, 5
      %v7236 = vsel %vm265, %v7231, %v7235
      %v7238 = vshrl.u32 %v6916, 16
      %v7240 = vrot.slane %v7238, 4
      %v7241 = vshll.u32 %v6916, 16
      %v7243 = vrot.slane %v7241, 5
      %v7244 = vor.u32 %v7240, %v7243
      %v7245 = vrot.slane %v7244, 4
      %v7247 = vshll.u32 %v6917, 16
      %v7249 = vrot.slane %v7247, 5
      %v7250 = vsel %vm265, %v7245, %v7249
      %v7251 = vshrl.u32 %v6917, 16
      %v7253 = vrot.slane %v7251, 4
      %v7254 = vor.u32 %v7253, %v7249
      %v7255 = vrot.slane %v7254, 4
      %v7257 = vshll.u32 %v6918, 16
      %v7259 = vrot.slane %v7257, 5
      %v7260 = vsel %vm265, %v7255, %v7259
      %v7262 = vshrl.u32 %v6919, 16
      %v7264 = vrot.slane %v7262, 4
      %v7265 = vshll.u32 %v6919, 16
      %v7267 = vrot.slane %v7265, 5
      %v7268 = vor.u32 %v7264, %v7267
      %v7269 = vrot.slane %v7268, 4
      %v7271 = vshll.u32 %v6920, 16
      %v7273 = vrot.slane %v7271, 5
      %v7274 = vsel %vm265, %v7269, %v7273
      %v7275 = vshrl.u32 %v6920, 16
      %v7277 = vrot.slane %v7275, 4
      %v7278 = vor.u32 %v7277, %v7273
      %v7279 = vrot.slane %v7278, 4
      %v7281 = vshll.u32 %v6921, 16
      %v7283 = vrot.slane %v7281, 5
      %v7284 = vsel %vm265, %v7279, %v7283
      %v7286 = vshrl.u32 %v6922, 16
      %v7288 = vrot.slane %v7286, 4
      %v7289 = vshll.u32 %v6922, 16
      %v7291 = vrot.slane %v7289, 5
      %v7292 = vor.u32 %v7288, %v7291
      %v7293 = vrot.slane %v7292, 4
      %v7295 = vshll.u32 %v6923, 16
      %v7297 = vrot.slane %v7295, 5
      %v7298 = vsel %vm265, %v7293, %v7297
      %v7299 = vshrl.u32 %v6923, 16
      %v7301 = vrot.slane %v7299, 4
      %v7302 = vor.u32 %v7301, %v7297
      %v7303 = vrot.slane %v7302, 4
      %v7305 = vshll.u32 %v6924, 16
      %v7307 = vrot.slane %v7305, 5
      %v7308 = vsel %vm265, %v7303, %v7307
      %s7309 = scalar_lea.vmem %s1, 240
      %v7310 = vld [vmem:[%s7309] sm:$0xf]
      %v7311 = vld [vmem:[%s7309 + $0x4] sm:$0xf]
      %v7312 = vld [vmem:[%s7309 + $0x8] sm:$0xf]
      %v7313 = vld [vmem:[%s7309 + $0xc] sm:$0xf]
      %v7314 = vld [vmem:[%s7309 + $0x10] sm:$0x1]
      %v7315 = vld [vmem:[%s1098] sm:$0xe]
      %v7316 = vld [vmem:[%s1098 + $0xc] sm:$0xe]
      %v7317 = vld [vmem:[%s1098 + $0x18] sm:$0xe]
      %v7318 = vld [vmem:[%s1098 + $0x24] sm:$0xe]
      %v7319 = vld [vmem:[%s1098 + $0x30] sm:$0xe]
      %v7320 = vld [vmem:[%s1098 + $0x3c] sm:$0xe]
      %v7321 = vld [vmem:[%s1098 + $0x48] sm:$0xe]
      %v7322 = vld [vmem:[%s1098 + $0x54] sm:$0xe]
      %v7323 = vld [vmem:[%s1098 + $0x60] sm:$0xe]
      %v7324 = vld [vmem:[%s1098 + $0x6c] sm:$0xe]
      %v7325 = vld [vmem:[%s1098 + $0x78] sm:$0xe]
      %v7326 = vld [vmem:[%s1098 + $0x84] sm:$0xe]
      %v7327 = vld [vmem:[%s1098 + $0x90] sm:$0xe]
      %v7328 = vld [vmem:[%s1098 + $0x9c] sm:$0xe]
      %v7329 = vld [vmem:[%s1098 + $0xa8] sm:$0xe]
      %v7330 = vld [vmem:[%s1098 + $0xb4] sm:$0xe]
      %v7379 = vrot.slane %v7315, 5
      %v7380 = vrot.slane %v7379, 4
      %v7381 = vrot.slane %v6878, 5
      %v7382 = vsel %vm2855, %v7380, %v7381
      %v7383 = vrot.slane %v7381, 4
      %v7384 = vrot.slane %v6879, 5
      %v7385 = vsel %vm2855, %v7383, %v7384
      %v7386 = vrot.slane %v7316, 5
      %v7387 = vrot.slane %v7386, 4
      %v7388 = vrot.slane %v6881, 5
      %v7389 = vsel %vm2855, %v7387, %v7388
      %v7390 = vrot.slane %v7388, 4
      %v7391 = vrot.slane %v6882, 5
      %v7392 = vsel %vm2855, %v7390, %v7391
      %v7393 = vrot.slane %v7317, 5
      %v7394 = vrot.slane %v7393, 4
      %v7395 = vrot.slane %v6884, 5
      %v7396 = vsel %vm2855, %v7394, %v7395
      %v7397 = vrot.slane %v7395, 4
      %v7398 = vrot.slane %v6885, 5
      %v7399 = vsel %vm2855, %v7397, %v7398
      %v7400 = vrot.slane %v7318, 5
      %v7401 = vrot.slane %v7400, 4
      %v7402 = vrot.slane %v6887, 5
      %v7403 = vsel %vm2855, %v7401, %v7402
      %v7404 = vrot.slane %v7402, 4
      %v7405 = vrot.slane %v6888, 5
      %v7406 = vsel %vm2855, %v7404, %v7405
      %v7407 = vrot.slane %v7319, 5
      %v7408 = vrot.slane %v7407, 4
      %v7409 = vrot.slane %v6890, 5
      %v7410 = vsel %vm2855, %v7408, %v7409
      %v7411 = vrot.slane %v7409, 4
      %v7412 = vrot.slane %v6891, 5
      %v7413 = vsel %vm2855, %v7411, %v7412
      %v7414 = vrot.slane %v7320, 5
      %v7415 = vrot.slane %v7414, 4
      %v7416 = vrot.slane %v6893, 5
      %v7417 = vsel %vm2855, %v7415, %v7416
      %v7418 = vrot.slane %v7416, 4
      %v7419 = vrot.slane %v6894, 5
      %v7420 = vsel %vm2855, %v7418, %v7419
      %v7421 = vrot.slane %v7321, 5
      %v7422 = vrot.slane %v7421, 4
      %v7423 = vrot.slane %v6896, 5
      %v7424 = vsel %vm2855, %v7422, %v7423
      %v7425 = vrot.slane %v7423, 4
      %v7426 = vrot.slane %v6897, 5
      %v7427 = vsel %vm2855, %v7425, %v7426
      %v7428 = vrot.slane %v7322, 5
      %v7429 = vrot.slane %v7428, 4
      %v7430 = vrot.slane %v6899, 5
      %v7431 = vsel %vm2855, %v7429, %v7430
      %v7432 = vrot.slane %v7430, 4
      %v7433 = vrot.slane %v6900, 5
      %v7434 = vsel %vm2855, %v7432, %v7433
      %v7435 = vrot.slane %v7323, 5
      %v7436 = vrot.slane %v7435, 4
      %v7437 = vrot.slane %v6902, 5
      %v7438 = vsel %vm2855, %v7436, %v7437
      %v7439 = vrot.slane %v7437, 4
      %v7440 = vrot.slane %v6903, 5
      %v7441 = vsel %vm2855, %v7439, %v7440
      %v7442 = vrot.slane %v7324, 5
      %v7443 = vrot.slane %v7442, 4
      %v7444 = vrot.slane %v6905, 5
      %v7445 = vsel %vm2855, %v7443, %v7444
      %v7446 = vrot.slane %v7444, 4
      %v7447 = vrot.slane %v6906, 5
      %v7448 = vsel %vm2855, %v7446, %v7447
      %v7449 = vrot.slane %v7325, 5
      %v7450 = vrot.slane %v7449, 4
      %v7451 = vrot.slane %v6908, 5
      %v7452 = vsel %vm2855, %v7450, %v7451
      %v7453 = vrot.slane %v7451, 4
      %v7454 = vrot.slane %v6909, 5
      %v7455 = vsel %vm2855, %v7453, %v7454
      %v7456 = vrot.slane %v7326, 5
      %v7457 = vrot.slane %v7456, 4
      %v7458 = vrot.slane %v6911, 5
      %v7459 = vsel %vm2855, %v7457, %v7458
      %v7460 = vrot.slane %v7458, 4
      %v7461 = vrot.slane %v6912, 5
      %v7462 = vsel %vm2855, %v7460, %v7461
      %v7463 = vrot.slane %v7327, 5
      %v7464 = vrot.slane %v7463, 4
      %v7465 = vrot.slane %v6914, 5
      %v7466 = vsel %vm2855, %v7464, %v7465
      %v7467 = vrot.slane %v7465, 4
      %v7468 = vrot.slane %v6915, 5
      %v7469 = vsel %vm2855, %v7467, %v7468
      %v7470 = vrot.slane %v7328, 5
      %v7471 = vrot.slane %v7470, 4
      %v7472 = vrot.slane %v6917, 5
      %v7473 = vsel %vm2855, %v7471, %v7472
      %v7474 = vrot.slane %v7472, 4
      %v7475 = vrot.slane %v6918, 5
      %v7476 = vsel %vm2855, %v7474, %v7475
      %v7477 = vrot.slane %v7329, 5
      %v7478 = vrot.slane %v7477, 4
      %v7479 = vrot.slane %v6920, 5
      %v7480 = vsel %vm2855, %v7478, %v7479
      %v7481 = vrot.slane %v7479, 4
      %v7482 = vrot.slane %v6921, 5
      %v7483 = vsel %vm2855, %v7481, %v7482
      %v7484 = vrot.slane %v7330, 5
      %v7485 = vrot.slane %v7484, 4
      %v7486 = vrot.slane %v6923, 5
      %v7487 = vsel %vm2855, %v7485, %v7486
      %v7488 = vrot.slane %v7486, 4
      %v7489 = vrot.slane %v6924, 5
      %v7490 = vsel %vm2855, %v7488, %v7489
      %s7491 = scalar_lea.vmem %s1, 260
      %v7492 = vld [vmem:[%s7491] sm:$0xf]
      %v7493 = vld [vmem:[%s7491 + $0x4] sm:$0xf]
      %v7494 = vld [vmem:[%s7491 + $0x8] sm:$0xf]
      %v7495 = vld [vmem:[%s7491 + $0xc] sm:$0xf]
      %v7496 = vld [vmem:[%s7491 + $0x10] sm:$0x1]
      %v7497 = vunpack.c.l.b16 %v7382
      %v7498 = vunpack.c.l.b16 %v7385
      %v7499 = vunpack.c.l.b16 %v7389
      %v7500 = vunpack.c.l.b16 %v7392
      %v7501 = vunpack.c.l.b16 %v7396
      %v7502 = vunpack.c.l.b16 %v7399
      %v7503 = vunpack.c.l.b16 %v7403
      %v7504 = vunpack.c.l.b16 %v7406
      %v7505 = vunpack.c.l.b16 %v7410
      %v7506 = vunpack.c.l.b16 %v7413
      %v7507 = vunpack.c.l.b16 %v7417
      %v7508 = vunpack.c.l.b16 %v7420
      %v7509 = vunpack.c.l.b16 %v7424
      %v7510 = vunpack.c.l.b16 %v7427
      %v7511 = vunpack.c.l.b16 %v7431
      %v7512 = vunpack.c.l.b16 %v7434
      %v7513 = vunpack.c.l.b16 %v7438
      %v7514 = vunpack.c.l.b16 %v7441
      %v7515 = vunpack.c.l.b16 %v7445
      %v7516 = vunpack.c.l.b16 %v7448
      %v7517 = vunpack.c.l.b16 %v7452
      %v7518 = vunpack.c.l.b16 %v7455
      %v7519 = vunpack.c.l.b16 %v7459
      %v7520 = vunpack.c.l.b16 %v7462
      %v7521 = vunpack.c.l.b16 %v7466
      %v7522 = vunpack.c.l.b16 %v7469
      %v7523 = vunpack.c.l.b16 %v7473
      %v7524 = vunpack.c.l.b16 %v7476
      %v7525 = vunpack.c.l.b16 %v7480
      %v7526 = vunpack.c.l.b16 %v7483
      %v7527 = vunpack.c.l.b16 %v7487
      %v7528 = vunpack.c.l.b16 %v7490
      %v7529 = vpack.c.b16 %v7498, %v7497
      %v7530 = vpack.c.b16 %v7500, %v7499
      %v7531 = vpack.c.b16 %v7502, %v7501
      %v7532 = vpack.c.b16 %v7504, %v7503
      %v7533 = vpack.c.b16 %v7506, %v7505
      %v7534 = vpack.c.b16 %v7508, %v7507
      %v7535 = vpack.c.b16 %v7510, %v7509
      %v7536 = vpack.c.b16 %v7512, %v7511
      %v7537 = vpack.c.b16 %v7514, %v7513
      %v7538 = vpack.c.b16 %v7516, %v7515
      %v7539 = vpack.c.b16 %v7518, %v7517
      %v7540 = vpack.c.b16 %v7520, %v7519
      %v7541 = vpack.c.b16 %v7522, %v7521
      %v7542 = vpack.c.b16 %v7524, %v7523
      %v7543 = vpack.c.b16 %v7526, %v7525
      %v7544 = vpack.c.b16 %v7528, %v7527
      %v7550 = vunpack.c.l.b16 %v7492
      %v7551 = vunpack.c.l.b16 %v7493
      %v7552 = vunpack.c.l.b16 %v7494
      %v7553 = vunpack.c.l.b16 %v7495
      %v7554 = vunpack.c.l.b16 %v7496
      %v7555 = vpack.c.b16 %v7551, %v7550
      %v7556 = vpack.c.b16 %v7553, %v7552
      %v7557 = vpack.c.b16 %v7554, %v7554
      %v7561 = vsel %vm719, %v7529, 0
      %v7564 = vsel %vm719, %v7530, 0
      %v7567 = vsel %vm719, %v7531, 0
      %v7570 = vsel %vm719, %v7532, 0
      %v7573 = vsel %vm719, %v7533, 0
      %v7576 = vsel %vm719, %v7534, 0
      %v7579 = vsel %vm719, %v7535, 0
      %v7582 = vsel %vm719, %v7536, 0
      %v7585 = vsel %vm719, %v7537, 0
      %v7588 = vsel %vm719, %v7538, 0
      %v7591 = vsel %vm719, %v7539, 0
      %v7594 = vsel %vm719, %v7540, 0
      %v7597 = vsel %vm719, %v7541, 0
      %v7600 = vsel %vm719, %v7542, 0
      %v7603 = vsel %vm719, %v7543, 0
      %v7606 = vsel %vm719, %v7544, 0
      %v7609 = vand.u32 %v7557, %v770
      %7611 = vmatpush.bf16.msra.mxu0 0
      %7612 = vmatpush.bf16.msra.mxu0 0
      %7613 = vmatpush.bf16.msra.mxu0 0
      %7614 = vmatpush.bf16.msra.mxu0 0
      %7615 = vmatpush.bf16.msra.mxu0 0
      %7616 = vmatpush.bf16.msra.mxu0 %v7609
      %7617 = vmatpush.bf16.msra.mxu0 %v7556
      %7618 = vmatpush.bf16.msra.mxu0 %v7555
      %7619 = vmatmul.bf16.gmra.mxu0 %v7561
      %v7620 = vpop.f32.mrf.mxu0
      %v7621 = vadd.f32 0.0, %v7620
      %v7622 = vpop.f32.mrf.mxu0
      %v7623 = vadd.f32 0.0, %v7622
      %7624 = vmatmul.bf16.gmra.mxu0 %v7564
      %v7625 = vpop.f32.mrf.mxu0
      %v7626 = vadd.f32 0.0, %v7625
      %v7627 = vpop.f32.mrf.mxu0
      %v7628 = vadd.f32 0.0, %v7627
      %7629 = vmatmul.bf16.gmra.mxu0 %v7567
      %v7630 = vpop.f32.mrf.mxu0
      %v7631 = vadd.f32 0.0, %v7630
      %v7632 = vpop.f32.mrf.mxu0
      %v7633 = vadd.f32 0.0, %v7632
      %7634 = vmatmul.bf16.gmra.mxu0 %v7570
      %v7635 = vpop.f32.mrf.mxu0
      %v7636 = vadd.f32 0.0, %v7635
      %v7637 = vpop.f32.mrf.mxu0
      %v7638 = vadd.f32 0.0, %v7637
      %7639 = vmatmul.bf16.gmra.mxu0 %v7573
      %v7640 = vpop.f32.mrf.mxu0
      %v7641 = vadd.f32 0.0, %v7640
      %v7642 = vpop.f32.mrf.mxu0
      %v7643 = vadd.f32 0.0, %v7642
      %7644 = vmatmul.bf16.gmra.mxu0 %v7576
      %v7645 = vpop.f32.mrf.mxu0
      %v7646 = vadd.f32 0.0, %v7645
      %v7647 = vpop.f32.mrf.mxu0
      %v7648 = vadd.f32 0.0, %v7647
      %7649 = vmatmul.bf16.gmra.mxu0 %v7579
      %v7650 = vpop.f32.mrf.mxu0
      %v7651 = vadd.f32 0.0, %v7650
      %v7652 = vpop.f32.mrf.mxu0
      %v7653 = vadd.f32 0.0, %v7652
      %7654 = vmatmul.bf16.gmra.mxu0 %v7582
      %v7655 = vpop.f32.mrf.mxu0
      %v7656 = vadd.f32 0.0, %v7655
      %v7657 = vpop.f32.mrf.mxu0
      %v7658 = vadd.f32 0.0, %v7657
      %7659 = vmatmul.bf16.gmra.mxu0 %v7585
      %v7660 = vpop.f32.mrf.mxu0
      %v7661 = vadd.f32 0.0, %v7660
      %v7662 = vpop.f32.mrf.mxu0
      %v7663 = vadd.f32 0.0, %v7662
      %7664 = vmatmul.bf16.gmra.mxu0 %v7588
      %v7665 = vpop.f32.mrf.mxu0
      %v7666 = vadd.f32 0.0, %v7665
      %v7667 = vpop.f32.mrf.mxu0
      %v7668 = vadd.f32 0.0, %v7667
      %7669 = vmatmul.bf16.gmra.mxu0 %v7591
      %v7670 = vpop.f32.mrf.mxu0
      %v7671 = vadd.f32 0.0, %v7670
      %v7672 = vpop.f32.mrf.mxu0
      %v7673 = vadd.f32 0.0, %v7672
      %7674 = vmatmul.bf16.gmra.mxu0 %v7594
      %v7675 = vpop.f32.mrf.mxu0
      %v7676 = vadd.f32 0.0, %v7675
      %v7677 = vpop.f32.mrf.mxu0
      %v7678 = vadd.f32 0.0, %v7677
      %7679 = vmatmul.bf16.gmra.mxu0 %v7597
      %v7680 = vpop.f32.mrf.mxu0
      %v7681 = vadd.f32 0.0, %v7680
      %v7682 = vpop.f32.mrf.mxu0
      %v7683 = vadd.f32 0.0, %v7682
      %7684 = vmatmul.bf16.gmra.mxu0 %v7600
      %v7685 = vpop.f32.mrf.mxu0
      %v7686 = vadd.f32 0.0, %v7685
      %v7687 = vpop.f32.mrf.mxu0
      %v7688 = vadd.f32 0.0, %v7687
      %7689 = vmatmul.bf16.gmra.mxu0 %v7603
      %v7690 = vpop.f32.mrf.mxu0
      %v7691 = vadd.f32 0.0, %v7690
      %v7692 = vpop.f32.mrf.mxu0
      %v7693 = vadd.f32 0.0, %v7692
      %7694 = vmatmul.bf16.gmra.mxu0 %v7606
      %v7695 = vpop.f32.mrf.mxu0
      %v7696 = vadd.f32 0.0, %v7695
      %v7697 = vpop.f32.mrf.mxu0
      %v7698 = vadd.f32 0.0, %v7697
      %7699 = vdwg.mxu0
      %v7700 = vunpack.c.l.b16 %v6938
      %v7701 = vunpack.c.l.b16 %v6948
      %v7702 = vunpack.c.l.b16 %v6962
      %v7703 = vunpack.c.l.b16 %v6972
      %v7704 = vunpack.c.l.b16 %v6986
      %v7705 = vunpack.c.l.b16 %v6996
      %v7706 = vunpack.c.l.b16 %v7010
      %v7707 = vunpack.c.l.b16 %v7020
      %v7708 = vunpack.c.l.b16 %v7034
      %v7709 = vunpack.c.l.b16 %v7044
      %v7710 = vunpack.c.l.b16 %v7058
      %v7711 = vunpack.c.l.b16 %v7068
      %v7712 = vunpack.c.l.b16 %v7082
      %v7713 = vunpack.c.l.b16 %v7092
      %v7714 = vunpack.c.l.b16 %v7106
      %v7715 = vunpack.c.l.b16 %v7116
      %v7716 = vunpack.c.l.b16 %v7130
      %v7717 = vunpack.c.l.b16 %v7140
      %v7718 = vunpack.c.l.b16 %v7154
      %v7719 = vunpack.c.l.b16 %v7164
      %v7720 = vunpack.c.l.b16 %v7178
      %v7721 = vunpack.c.l.b16 %v7188
      %v7722 = vunpack.c.l.b16 %v7202
      %v7723 = vunpack.c.l.b16 %v7212
      %v7724 = vunpack.c.l.b16 %v7226
      %v7725 = vunpack.c.l.b16 %v7236
      %v7726 = vunpack.c.l.b16 %v7250
      %v7727 = vunpack.c.l.b16 %v7260
      %v7728 = vunpack.c.l.b16 %v7274
      %v7729 = vunpack.c.l.b16 %v7284
      %v7730 = vunpack.c.l.b16 %v7298
      %v7731 = vunpack.c.l.b16 %v7308
      %v7732 = vpack.c.b16 %v7701, %v7700
      %v7733 = vpack.c.b16 %v7703, %v7702
      %v7734 = vpack.c.b16 %v7705, %v7704
      %v7735 = vpack.c.b16 %v7707, %v7706
      %v7736 = vpack.c.b16 %v7709, %v7708
      %v7737 = vpack.c.b16 %v7711, %v7710
      %v7738 = vpack.c.b16 %v7713, %v7712
      %v7739 = vpack.c.b16 %v7715, %v7714
      %v7740 = vpack.c.b16 %v7717, %v7716
      %v7741 = vpack.c.b16 %v7719, %v7718
      %v7742 = vpack.c.b16 %v7721, %v7720
      %v7743 = vpack.c.b16 %v7723, %v7722
      %v7744 = vpack.c.b16 %v7725, %v7724
      %v7745 = vpack.c.b16 %v7727, %v7726
      %v7746 = vpack.c.b16 %v7729, %v7728
      %v7747 = vpack.c.b16 %v7731, %v7730
      %v7753 = vunpack.c.l.b16 %v7310
      %v7754 = vunpack.c.l.b16 %v7311
      %v7755 = vunpack.c.l.b16 %v7312
      %v7756 = vunpack.c.l.b16 %v7313
      %v7757 = vunpack.c.l.b16 %v7314
      %v7758 = vpack.c.b16 %v7754, %v7753
      %v7759 = vpack.c.b16 %v7756, %v7755
      %v7760 = vpack.c.b16 %v7757, %v7757
      %v7764 = vsel %vm719, %v7732, 0
      %v7767 = vsel %vm719, %v7733, 0
      %v7770 = vsel %vm719, %v7734, 0
      %v7773 = vsel %vm719, %v7735, 0
      %v7776 = vsel %vm719, %v7736, 0
      %v7779 = vsel %vm719, %v7737, 0
      %v7782 = vsel %vm719, %v7738, 0
      %v7785 = vsel %vm719, %v7739, 0
      %v7788 = vsel %vm719, %v7740, 0
      %v7791 = vsel %vm719, %v7741, 0
      %v7794 = vsel %vm719, %v7742, 0
      %v7797 = vsel %vm719, %v7743, 0
      %v7800 = vsel %vm719, %v7744, 0
      %v7803 = vsel %vm719, %v7745, 0
      %v7806 = vsel %vm719, %v7746, 0
      %v7809 = vsel %vm719, %v7747, 0
      %v7812 = vand.u32 %v7760, %v770
      %7814 = vmatpush.bf16.msra.mxu0 0
      %7815 = vmatpush.bf16.msra.mxu0 0
      %7816 = vmatpush.bf16.msra.mxu0 0
      %7817 = vmatpush.bf16.msra.mxu0 0
      %7818 = vmatpush.bf16.msra.mxu0 0
      %7819 = vmatpush.bf16.msra.mxu0 %v7812
      %7820 = vmatpush.bf16.msra.mxu0 %v7759
      %7821 = vmatpush.bf16.msra.mxu0 %v7758
      %7822 = vmatmul.bf16.gmra.mxu0 %v7764
      %v7823 = vpop.f32.mrf.mxu0
      %v7824 = vadd.f32 %v7621, %v7823
      %v7825 = vpop.f32.mrf.mxu0
      %v7826 = vadd.f32 %v7623, %v7825
      %7827 = vmatmul.bf16.gmra.mxu0 %v7767
      %v7828 = vpop.f32.mrf.mxu0
      %v7829 = vadd.f32 %v7626, %v7828
      %v7830 = vpop.f32.mrf.mxu0
      %v7831 = vadd.f32 %v7628, %v7830
      %7832 = vmatmul.bf16.gmra.mxu0 %v7770
      %v7833 = vpop.f32.mrf.mxu0
      %v7834 = vadd.f32 %v7631, %v7833
      %v7835 = vpop.f32.mrf.mxu0
      %v7836 = vadd.f32 %v7633, %v7835
      %7837 = vmatmul.bf16.gmra.mxu0 %v7773
      %v7838 = vpop.f32.mrf.mxu0
      %v7839 = vadd.f32 %v7636, %v7838
      %v7840 = vpop.f32.mrf.mxu0
      %v7841 = vadd.f32 %v7638, %v7840
      %7842 = vmatmul.bf16.gmra.mxu0 %v7776
      %v7843 = vpop.f32.mrf.mxu0
      %v7844 = vadd.f32 %v7641, %v7843
      %v7845 = vpop.f32.mrf.mxu0
      %v7846 = vadd.f32 %v7643, %v7845
      %7847 = vmatmul.bf16.gmra.mxu0 %v7779
      %v7848 = vpop.f32.mrf.mxu0
      %v7849 = vadd.f32 %v7646, %v7848
      %v7850 = vpop.f32.mrf.mxu0
      %v7851 = vadd.f32 %v7648, %v7850
      %7852 = vmatmul.bf16.gmra.mxu0 %v7782
      %v7853 = vpop.f32.mrf.mxu0
      %v7854 = vadd.f32 %v7651, %v7853
      %v7855 = vpop.f32.mrf.mxu0
      %v7856 = vadd.f32 %v7653, %v7855
      %7857 = vmatmul.bf16.gmra.mxu0 %v7785
      %v7858 = vpop.f32.mrf.mxu0
      %v7859 = vadd.f32 %v7656, %v7858
      %v7860 = vpop.f32.mrf.mxu0
      %v7861 = vadd.f32 %v7658, %v7860
      %7862 = vmatmul.bf16.gmra.mxu0 %v7788
      %v7863 = vpop.f32.mrf.mxu0
      %v7864 = vadd.f32 %v7661, %v7863
      %v7865 = vpop.f32.mrf.mxu0
      %v7866 = vadd.f32 %v7663, %v7865
      %7867 = vmatmul.bf16.gmra.mxu0 %v7791
      %v7868 = vpop.f32.mrf.mxu0
      %v7869 = vadd.f32 %v7666, %v7868
      %v7870 = vpop.f32.mrf.mxu0
      %v7871 = vadd.f32 %v7668, %v7870
      %7872 = vmatmul.bf16.gmra.mxu0 %v7794
      %v7873 = vpop.f32.mrf.mxu0
      %v7874 = vadd.f32 %v7671, %v7873
      %v7875 = vpop.f32.mrf.mxu0
      %v7876 = vadd.f32 %v7673, %v7875
      %7877 = vmatmul.bf16.gmra.mxu0 %v7797
      %v7878 = vpop.f32.mrf.mxu0
      %v7879 = vadd.f32 %v7676, %v7878
      %v7880 = vpop.f32.mrf.mxu0
      %v7881 = vadd.f32 %v7678, %v7880
      %7882 = vmatmul.bf16.gmra.mxu0 %v7800
      %v7883 = vpop.f32.mrf.mxu0
      %v7884 = vadd.f32 %v7681, %v7883
      %v7885 = vpop.f32.mrf.mxu0
      %v7886 = vadd.f32 %v7683, %v7885
      %7887 = vmatmul.bf16.gmra.mxu0 %v7803
      %v7888 = vpop.f32.mrf.mxu0
      %v7889 = vadd.f32 %v7686, %v7888
      %v7890 = vpop.f32.mrf.mxu0
      %v7891 = vadd.f32 %v7688, %v7890
      %7892 = vmatmul.bf16.gmra.mxu0 %v7806
      %v7893 = vpop.f32.mrf.mxu0
      %v7894 = vadd.f32 %v7691, %v7893
      %v7895 = vpop.f32.mrf.mxu0
      %v7896 = vadd.f32 %v7693, %v7895
      %7897 = vmatmul.bf16.gmra.mxu0 %v7809
      %v7898 = vpop.f32.mrf.mxu0
      %v7899 = vadd.f32 %v7696, %v7898
      %v7900 = vpop.f32.mrf.mxu0
      %v7901 = vadd.f32 %v7698, %v7900
      %7902 = vdwg.mxu0
      %v7903 = vld [vmem:[%s5625] sm:$0xf]
      %v7904 = vld [vmem:[%s5625 + $0x4] sm:$0xf]
      %v7905 = vld [vmem:[%s5625 + $0x8] sm:$0x1]
      %v7906 = vld [vmem:[%s5625 + $0xc] sm:$0xf]
      %v7907 = vld [vmem:[%s5625 + $0x10] sm:$0xf]
      %v7908 = vld [vmem:[%s5625 + $0x14] sm:$0x1]
      %v7909 = vld [vmem:[%s5625 + $0x18] sm:$0xf]
      %v7910 = vld [vmem:[%s5625 + $0x1c] sm:$0xf]
      %v7911 = vld [vmem:[%s5625 + $0x20] sm:$0x1]
      %v7912 = vld [vmem:[%s5625 + $0x24] sm:$0xf]
      %v7913 = vld [vmem:[%s5625 + $0x28] sm:$0xf]
      %v7914 = vld [vmem:[%s5625 + $0x2c] sm:$0x1]
      %v7915 = vld [vmem:[%s5625 + $0x30] sm:$0xf]
      %v7916 = vld [vmem:[%s5625 + $0x34] sm:$0xf]
      %v7917 = vld [vmem:[%s5625 + $0x38] sm:$0x1]
      %v7918 = vld [vmem:[%s5625 + $0x3c] sm:$0xf]
      %v7919 = vld [vmem:[%s5625 + $0x40] sm:$0xf]
      %v7920 = vld [vmem:[%s5625 + $0x44] sm:$0x1]
      %v7921 = vld [vmem:[%s5625 + $0x48] sm:$0xf]
      %v7922 = vld [vmem:[%s5625 + $0x4c] sm:$0xf]
      %v7923 = vld [vmem:[%s5625 + $0x50] sm:$0x1]
      %v7924 = vld [vmem:[%s5625 + $0x54] sm:$0xf]
      %v7925 = vld [vmem:[%s5625 + $0x58] sm:$0xf]
      %v7926 = vld [vmem:[%s5625 + $0x5c] sm:$0x1]
      %v7927 = vld [vmem:[%s5625 + $0x60] sm:$0xf]
      %v7928 = vld [vmem:[%s5625 + $0x64] sm:$0xf]
      %v7929 = vld [vmem:[%s5625 + $0x68] sm:$0x1]
      %v7930 = vld [vmem:[%s5625 + $0x6c] sm:$0xf]
      %v7931 = vld [vmem:[%s5625 + $0x70] sm:$0xf]
      %v7932 = vld [vmem:[%s5625 + $0x74] sm:$0x1]
      %v7933 = vld [vmem:[%s5625 + $0x78] sm:$0xf]
      %v7934 = vld [vmem:[%s5625 + $0x7c] sm:$0xf]
      %v7935 = vld [vmem:[%s5625 + $0x80] sm:$0x1]
      %v7936 = vld [vmem:[%s5625 + $0x84] sm:$0xf]
      %v7937 = vld [vmem:[%s5625 + $0x88] sm:$0xf]
      %v7938 = vld [vmem:[%s5625 + $0x8c] sm:$0x1]
      %v7939 = vld [vmem:[%s5625 + $0x90] sm:$0xf]
      %v7940 = vld [vmem:[%s5625 + $0x94] sm:$0xf]
      %v7941 = vld [vmem:[%s5625 + $0x98] sm:$0x1]
      %v7942 = vld [vmem:[%s5625 + $0x9c] sm:$0xf]
      %v7943 = vld [vmem:[%s5625 + $0xa0] sm:$0xf]
      %v7944 = vld [vmem:[%s5625 + $0xa4] sm:$0x1]
      %v7945 = vld [vmem:[%s5625 + $0xa8] sm:$0xf]
      %v7946 = vld [vmem:[%s5625 + $0xac] sm:$0xf]
      %v7947 = vld [vmem:[%s5625 + $0xb0] sm:$0x1]
      %v7948 = vld [vmem:[%s5625 + $0xb4] sm:$0xf]
      %v7949 = vld [vmem:[%s5625 + $0xb8] sm:$0xf]
      %v7950 = vld [vmem:[%s5625 + $0xbc] sm:$0x1]
      %v7952 = vshrl.u32 %v7903, 16
      %v7954 = vrot.slane %v7952, 4
      %v7955 = vshll.u32 %v7903, 16
      %v7957 = vrot.slane %v7955, 5
      %v7958 = vor.u32 %v7954, %v7957
      %v7959 = vrot.slane %v7958, 4
      %v7961 = vshll.u32 %v7904, 16
      %v7963 = vrot.slane %v7961, 5
      %v7964 = vsel %vm265, %v7959, %v7963
      %v7965 = vshrl.u32 %v7904, 16
      %v7967 = vrot.slane %v7965, 4
      %v7968 = vor.u32 %v7967, %v7963
      %v7969 = vrot.slane %v7968, 4
      %v7971 = vshll.u32 %v7905, 16
      %v7973 = vrot.slane %v7971, 5
      %v7974 = vsel %vm265, %v7969, %v7973
      %v7976 = vshrl.u32 %v7906, 16
      %v7978 = vrot.slane %v7976, 4
      %v7979 = vshll.u32 %v7906, 16
      %v7981 = vrot.slane %v7979, 5
      %v7982 = vor.u32 %v7978, %v7981
      %v7983 = vrot.slane %v7982, 4
      %v7985 = vshll.u32 %v7907, 16
      %v7987 = vrot.slane %v7985, 5
      %v7988 = vsel %vm265, %v7983, %v7987
      %v7989 = vshrl.u32 %v7907, 16
      %v7991 = vrot.slane %v7989, 4
      %v7992 = vor.u32 %v7991, %v7987
      %v7993 = vrot.slane %v7992, 4
      %v7995 = vshll.u32 %v7908, 16
      %v7997 = vrot.slane %v7995, 5
      %v7998 = vsel %vm265, %v7993, %v7997
      %v8000 = vshrl.u32 %v7909, 16
      %v8002 = vrot.slane %v8000, 4
      %v8003 = vshll.u32 %v7909, 16
      %v8005 = vrot.slane %v8003, 5
      %v8006 = vor.u32 %v8002, %v8005
      %v8007 = vrot.slane %v8006, 4
      %v8009 = vshll.u32 %v7910, 16
      %v8011 = vrot.slane %v8009, 5
      %v8012 = vsel %vm265, %v8007, %v8011
      %v8013 = vshrl.u32 %v7910, 16
      %v8015 = vrot.slane %v8013, 4
      %v8016 = vor.u32 %v8015, %v8011
      %v8017 = vrot.slane %v8016, 4
      %v8019 = vshll.u32 %v7911, 16
      %v8021 = vrot.slane %v8019, 5
      %v8022 = vsel %vm265, %v8017, %v8021
      %v8024 = vshrl.u32 %v7912, 16
      %v8026 = vrot.slane %v8024, 4
      %v8027 = vshll.u32 %v7912, 16
      %v8029 = vrot.slane %v8027, 5
      %v8030 = vor.u32 %v8026, %v8029
      %v8031 = vrot.slane %v8030, 4
      %v8033 = vshll.u32 %v7913, 16
      %v8035 = vrot.slane %v8033, 5
      %v8036 = vsel %vm265, %v8031, %v8035
      %v8037 = vshrl.u32 %v7913, 16
      %v8039 = vrot.slane %v8037, 4
      %v8040 = vor.u32 %v8039, %v8035
      %v8041 = vrot.slane %v8040, 4
      %v8043 = vshll.u32 %v7914, 16
      %v8045 = vrot.slane %v8043, 5
      %v8046 = vsel %vm265, %v8041, %v8045
      %v8048 = vshrl.u32 %v7915, 16
      %v8050 = vrot.slane %v8048, 4
      %v8051 = vshll.u32 %v7915, 16
      %v8053 = vrot.slane %v8051, 5
      %v8054 = vor.u32 %v8050, %v8053
      %v8055 = vrot.slane %v8054, 4
      %v8057 = vshll.u32 %v7916, 16
      %v8059 = vrot.slane %v8057, 5
      %v8060 = vsel %vm265, %v8055, %v8059
      %v8061 = vshrl.u32 %v7916, 16
      %v8063 = vrot.slane %v8061, 4
      %v8064 = vor.u32 %v8063, %v8059
      %v8065 = vrot.slane %v8064, 4
      %v8067 = vshll.u32 %v7917, 16
      %v8069 = vrot.slane %v8067, 5
      %v8070 = vsel %vm265, %v8065, %v8069
      %v8072 = vshrl.u32 %v7918, 16
      %v8074 = vrot.slane %v8072, 4
      %v8075 = vshll.u32 %v7918, 16
      %v8077 = vrot.slane %v8075, 5
      %v8078 = vor.u32 %v8074, %v8077
      %v8079 = vrot.slane %v8078, 4
      %v8081 = vshll.u32 %v7919, 16
      %v8083 = vrot.slane %v8081, 5
      %v8084 = vsel %vm265, %v8079, %v8083
      %v8085 = vshrl.u32 %v7919, 16
      %v8087 = vrot.slane %v8085, 4
      %v8088 = vor.u32 %v8087, %v8083
      %v8089 = vrot.slane %v8088, 4
      %v8091 = vshll.u32 %v7920, 16
      %v8093 = vrot.slane %v8091, 5
      %v8094 = vsel %vm265, %v8089, %v8093
      %v8096 = vshrl.u32 %v7921, 16
      %v8098 = vrot.slane %v8096, 4
      %v8099 = vshll.u32 %v7921, 16
      %v8101 = vrot.slane %v8099, 5
      %v8102 = vor.u32 %v8098, %v8101
      %v8103 = vrot.slane %v8102, 4
      %v8105 = vshll.u32 %v7922, 16
      %v8107 = vrot.slane %v8105, 5
      %v8108 = vsel %vm265, %v8103, %v8107
      %v8109 = vshrl.u32 %v7922, 16
      %v8111 = vrot.slane %v8109, 4
      %v8112 = vor.u32 %v8111, %v8107
      %v8113 = vrot.slane %v8112, 4
      %v8115 = vshll.u32 %v7923, 16
      %v8117 = vrot.slane %v8115, 5
      %v8118 = vsel %vm265, %v8113, %v8117
      %v8120 = vshrl.u32 %v7924, 16
      %v8122 = vrot.slane %v8120, 4
      %v8123 = vshll.u32 %v7924, 16
      %v8125 = vrot.slane %v8123, 5
      %v8126 = vor.u32 %v8122, %v8125
      %v8127 = vrot.slane %v8126, 4
      %v8129 = vshll.u32 %v7925, 16
      %v8131 = vrot.slane %v8129, 5
      %v8132 = vsel %vm265, %v8127, %v8131
      %v8133 = vshrl.u32 %v7925, 16
      %v8135 = vrot.slane %v8133, 4
      %v8136 = vor.u32 %v8135, %v8131
      %v8137 = vrot.slane %v8136, 4
      %v8139 = vshll.u32 %v7926, 16
      %v8141 = vrot.slane %v8139, 5
      %v8142 = vsel %vm265, %v8137, %v8141
      %v8144 = vshrl.u32 %v7927, 16
      %v8146 = vrot.slane %v8144, 4
      %v8147 = vshll.u32 %v7927, 16
      %v8149 = vrot.slane %v8147, 5
      %v8150 = vor.u32 %v8146, %v8149
      %v8151 = vrot.slane %v8150, 4
      %v8153 = vshll.u32 %v7928, 16
      %v8155 = vrot.slane %v8153, 5
      %v8156 = vsel %vm265, %v8151, %v8155
      %v8157 = vshrl.u32 %v7928, 16
      %v8159 = vrot.slane %v8157, 4
      %v8160 = vor.u32 %v8159, %v8155
      %v8161 = vrot.slane %v8160, 4
      %v8163 = vshll.u32 %v7929, 16
      %v8165 = vrot.slane %v8163, 5
      %v8166 = vsel %vm265, %v8161, %v8165
      %v8168 = vshrl.u32 %v7930, 16
      %v8170 = vrot.slane %v8168, 4
      %v8171 = vshll.u32 %v7930, 16
      %v8173 = vrot.slane %v8171, 5
      %v8174 = vor.u32 %v8170, %v8173
      %v8175 = vrot.slane %v8174, 4
      %v8177 = vshll.u32 %v7931, 16
      %v8179 = vrot.slane %v8177, 5
      %v8180 = vsel %vm265, %v8175, %v8179
      %v8181 = vshrl.u32 %v7931, 16
      %v8183 = vrot.slane %v8181, 4
      %v8184 = vor.u32 %v8183, %v8179
      %v8185 = vrot.slane %v8184, 4
      %v8187 = vshll.u32 %v7932, 16
      %v8189 = vrot.slane %v8187, 5
      %v8190 = vsel %vm265, %v8185, %v8189
      %v8192 = vshrl.u32 %v7933, 16
      %v8194 = vrot.slane %v8192, 4
      %v8195 = vshll.u32 %v7933, 16
      %v8197 = vrot.slane %v8195, 5
      %v8198 = vor.u32 %v8194, %v8197
      %v8199 = vrot.slane %v8198, 4
      %v8201 = vshll.u32 %v7934, 16
      %v8203 = vrot.slane %v8201, 5
      %v8204 = vsel %vm265, %v8199, %v8203
      %v8205 = vshrl.u32 %v7934, 16
      %v8207 = vrot.slane %v8205, 4
      %v8208 = vor.u32 %v8207, %v8203
      %v8209 = vrot.slane %v8208, 4
      %v8211 = vshll.u32 %v7935, 16
      %v8213 = vrot.slane %v8211, 5
      %v8214 = vsel %vm265, %v8209, %v8213
      %v8216 = vshrl.u32 %v7936, 16
      %v8218 = vrot.slane %v8216, 4
      %v8219 = vshll.u32 %v7936, 16
      %v8221 = vrot.slane %v8219, 5
      %v8222 = vor.u32 %v8218, %v8221
      %v8223 = vrot.slane %v8222, 4
      %v8225 = vshll.u32 %v7937, 16
      %v8227 = vrot.slane %v8225, 5
      %v8228 = vsel %vm265, %v8223, %v8227
      %v8229 = vshrl.u32 %v7937, 16
      %v8231 = vrot.slane %v8229, 4
      %v8232 = vor.u32 %v8231, %v8227
      %v8233 = vrot.slane %v8232, 4
      %v8235 = vshll.u32 %v7938, 16
      %v8237 = vrot.slane %v8235, 5
      %v8238 = vsel %vm265, %v8233, %v8237
      %v8240 = vshrl.u32 %v7939, 16
      %v8242 = vrot.slane %v8240, 4
      %v8243 = vshll.u32 %v7939, 16
      %v8245 = vrot.slane %v8243, 5
      %v8246 = vor.u32 %v8242, %v8245
      %v8247 = vrot.slane %v8246, 4
      %v8249 = vshll.u32 %v7940, 16
      %v8251 = vrot.slane %v8249, 5
      %v8252 = vsel %vm265, %v8247, %v8251
      %v8253 = vshrl.u32 %v7940, 16
      %v8255 = vrot.slane %v8253, 4
      %v8256 = vor.u32 %v8255, %v8251
      %v8257 = vrot.slane %v8256, 4
      %v8259 = vshll.u32 %v7941, 16
      %v8261 = vrot.slane %v8259, 5
      %v8262 = vsel %vm265, %v8257, %v8261
      %v8264 = vshrl.u32 %v7942, 16
      %v8266 = vrot.slane %v8264, 4
      %v8267 = vshll.u32 %v7942, 16
      %v8269 = vrot.slane %v8267, 5
      %v8270 = vor.u32 %v8266, %v8269
      %v8271 = vrot.slane %v8270, 4
      %v8273 = vshll.u32 %v7943, 16
      %v8275 = vrot.slane %v8273, 5
      %v8276 = vsel %vm265, %v8271, %v8275
      %v8277 = vshrl.u32 %v7943, 16
      %v8279 = vrot.slane %v8277, 4
      %v8280 = vor.u32 %v8279, %v8275
      %v8281 = vrot.slane %v8280, 4
      %v8283 = vshll.u32 %v7944, 16
      %v8285 = vrot.slane %v8283, 5
      %v8286 = vsel %vm265, %v8281, %v8285
      %v8288 = vshrl.u32 %v7945, 16
      %v8290 = vrot.slane %v8288, 4
      %v8291 = vshll.u32 %v7945, 16
      %v8293 = vrot.slane %v8291, 5
      %v8294 = vor.u32 %v8290, %v8293
      %v8295 = vrot.slane %v8294, 4
      %v8297 = vshll.u32 %v7946, 16
      %v8299 = vrot.slane %v8297, 5
      %v8300 = vsel %vm265, %v8295, %v8299
      %v8301 = vshrl.u32 %v7946, 16
      %v8303 = vrot.slane %v8301, 4
      %v8304 = vor.u32 %v8303, %v8299
      %v8305 = vrot.slane %v8304, 4
      %v8307 = vshll.u32 %v7947, 16
      %v8309 = vrot.slane %v8307, 5
      %v8310 = vsel %vm265, %v8305, %v8309
      %v8312 = vshrl.u32 %v7948, 16
      %v8314 = vrot.slane %v8312, 4
      %v8315 = vshll.u32 %v7948, 16
      %v8317 = vrot.slane %v8315, 5
      %v8318 = vor.u32 %v8314, %v8317
      %v8319 = vrot.slane %v8318, 4
      %v8321 = vshll.u32 %v7949, 16
      %v8323 = vrot.slane %v8321, 5
      %v8324 = vsel %vm265, %v8319, %v8323
      %v8325 = vshrl.u32 %v7949, 16
      %v8327 = vrot.slane %v8325, 4
      %v8328 = vor.u32 %v8327, %v8323
      %v8329 = vrot.slane %v8328, 4
      %v8331 = vshll.u32 %v7950, 16
      %v8333 = vrot.slane %v8331, 5
      %v8334 = vsel %vm265, %v8329, %v8333
      %s8335 = scalar_lea.vmem %s1, 280
      %v8336 = vld [vmem:[%s8335] sm:$0xf]
      %v8337 = vld [vmem:[%s8335 + $0x4] sm:$0xf]
      %v8338 = vld [vmem:[%s8335 + $0x8] sm:$0xf]
      %v8339 = vld [vmem:[%s8335 + $0xc] sm:$0xf]
      %v8340 = vld [vmem:[%s8335 + $0x10] sm:$0x1]
      %v8341 = vunpack.c.l.b16 %v7964
      %v8342 = vunpack.c.l.b16 %v7974
      %v8343 = vunpack.c.l.b16 %v7988
      %v8344 = vunpack.c.l.b16 %v7998
      %v8345 = vunpack.c.l.b16 %v8012
      %v8346 = vunpack.c.l.b16 %v8022
      %v8347 = vunpack.c.l.b16 %v8036
      %v8348 = vunpack.c.l.b16 %v8046
      %v8349 = vunpack.c.l.b16 %v8060
      %v8350 = vunpack.c.l.b16 %v8070
      %v8351 = vunpack.c.l.b16 %v8084
      %v8352 = vunpack.c.l.b16 %v8094
      %v8353 = vunpack.c.l.b16 %v8108
      %v8354 = vunpack.c.l.b16 %v8118
      %v8355 = vunpack.c.l.b16 %v8132
      %v8356 = vunpack.c.l.b16 %v8142
      %v8357 = vunpack.c.l.b16 %v8156
      %v8358 = vunpack.c.l.b16 %v8166
      %v8359 = vunpack.c.l.b16 %v8180
      %v8360 = vunpack.c.l.b16 %v8190
      %v8361 = vunpack.c.l.b16 %v8204
      %v8362 = vunpack.c.l.b16 %v8214
      %v8363 = vunpack.c.l.b16 %v8228
      %v8364 = vunpack.c.l.b16 %v8238
      %v8365 = vunpack.c.l.b16 %v8252
      %v8366 = vunpack.c.l.b16 %v8262
      %v8367 = vunpack.c.l.b16 %v8276
      %v8368 = vunpack.c.l.b16 %v8286
      %v8369 = vunpack.c.l.b16 %v8300
      %v8370 = vunpack.c.l.b16 %v8310
      %v8371 = vunpack.c.l.b16 %v8324
      %v8372 = vunpack.c.l.b16 %v8334
      %v8373 = vpack.c.b16 %v8342, %v8341
      %v8374 = vpack.c.b16 %v8344, %v8343
      %v8375 = vpack.c.b16 %v8346, %v8345
      %v8376 = vpack.c.b16 %v8348, %v8347
      %v8377 = vpack.c.b16 %v8350, %v8349
      %v8378 = vpack.c.b16 %v8352, %v8351
      %v8379 = vpack.c.b16 %v8354, %v8353
      %v8380 = vpack.c.b16 %v8356, %v8355
      %v8381 = vpack.c.b16 %v8358, %v8357
      %v8382 = vpack.c.b16 %v8360, %v8359
      %v8383 = vpack.c.b16 %v8362, %v8361
      %v8384 = vpack.c.b16 %v8364, %v8363
      %v8385 = vpack.c.b16 %v8366, %v8365
      %v8386 = vpack.c.b16 %v8368, %v8367
      %v8387 = vpack.c.b16 %v8370, %v8369
      %v8388 = vpack.c.b16 %v8372, %v8371
      %v8394 = vunpack.c.l.b16 %v8336
      %v8395 = vunpack.c.l.b16 %v8337
      %v8396 = vunpack.c.l.b16 %v8338
      %v8397 = vunpack.c.l.b16 %v8339
      %v8398 = vunpack.c.l.b16 %v8340
      %v8399 = vpack.c.b16 %v8395, %v8394
      %v8400 = vpack.c.b16 %v8397, %v8396
      %v8401 = vpack.c.b16 %v8398, %v8398
      %v8405 = vsel %vm719, %v8373, 0
      %v8408 = vsel %vm719, %v8374, 0
      %v8411 = vsel %vm719, %v8375, 0
      %v8414 = vsel %vm719, %v8376, 0
      %v8417 = vsel %vm719, %v8377, 0
      %v8420 = vsel %vm719, %v8378, 0
      %v8423 = vsel %vm719, %v8379, 0
      %v8426 = vsel %vm719, %v8380, 0
      %v8429 = vsel %vm719, %v8381, 0
      %v8432 = vsel %vm719, %v8382, 0
      %v8435 = vsel %vm719, %v8383, 0
      %v8438 = vsel %vm719, %v8384, 0
      %v8441 = vsel %vm719, %v8385, 0
      %v8444 = vsel %vm719, %v8386, 0
      %v8447 = vsel %vm719, %v8387, 0
      %v8450 = vsel %vm719, %v8388, 0
      %v8453 = vand.u32 %v8401, %v770
      %8455 = vmatpush.bf16.msra.mxu0 0
      %8456 = vmatpush.bf16.msra.mxu0 0
      %8457 = vmatpush.bf16.msra.mxu0 0
      %8458 = vmatpush.bf16.msra.mxu0 0
      %8459 = vmatpush.bf16.msra.mxu0 0
      %8460 = vmatpush.bf16.msra.mxu0 %v8453
      %8461 = vmatpush.bf16.msra.mxu0 %v8400
      %8462 = vmatpush.bf16.msra.mxu0 %v8399
      %8463 = vmatmul.bf16.gmra.mxu0 %v8405
      %v8464 = vpop.f32.mrf.mxu0
      %v8465 = vadd.f32 0.0, %v8464
      %v8466 = vpop.f32.mrf.mxu0
      %v8467 = vadd.f32 0.0, %v8466
      %8468 = vmatmul.bf16.gmra.mxu0 %v8408
      %v8469 = vpop.f32.mrf.mxu0
      %v8470 = vadd.f32 0.0, %v8469
      %v8471 = vpop.f32.mrf.mxu0
      %v8472 = vadd.f32 0.0, %v8471
      %8473 = vmatmul.bf16.gmra.mxu0 %v8411
      %v8474 = vpop.f32.mrf.mxu0
      %v8475 = vadd.f32 0.0, %v8474
      %v8476 = vpop.f32.mrf.mxu0
      %v8477 = vadd.f32 0.0, %v8476
      %8478 = vmatmul.bf16.gmra.mxu0 %v8414
      %v8479 = vpop.f32.mrf.mxu0
      %v8480 = vadd.f32 0.0, %v8479
      %v8481 = vpop.f32.mrf.mxu0
      %v8482 = vadd.f32 0.0, %v8481
      %8483 = vmatmul.bf16.gmra.mxu0 %v8417
      %v8484 = vpop.f32.mrf.mxu0
      %v8485 = vadd.f32 0.0, %v8484
      %v8486 = vpop.f32.mrf.mxu0
      %v8487 = vadd.f32 0.0, %v8486
      %8488 = vmatmul.bf16.gmra.mxu0 %v8420
      %v8489 = vpop.f32.mrf.mxu0
      %v8490 = vadd.f32 0.0, %v8489
      %v8491 = vpop.f32.mrf.mxu0
      %v8492 = vadd.f32 0.0, %v8491
      %8493 = vmatmul.bf16.gmra.mxu0 %v8423
      %v8494 = vpop.f32.mrf.mxu0
      %v8495 = vadd.f32 0.0, %v8494
      %v8496 = vpop.f32.mrf.mxu0
      %v8497 = vadd.f32 0.0, %v8496
      %8498 = vmatmul.bf16.gmra.mxu0 %v8426
      %v8499 = vpop.f32.mrf.mxu0
      %v8500 = vadd.f32 0.0, %v8499
      %v8501 = vpop.f32.mrf.mxu0
      %v8502 = vadd.f32 0.0, %v8501
      %8503 = vmatmul.bf16.gmra.mxu0 %v8429
      %v8504 = vpop.f32.mrf.mxu0
      %v8505 = vadd.f32 0.0, %v8504
      %v8506 = vpop.f32.mrf.mxu0
      %v8507 = vadd.f32 0.0, %v8506
      %8508 = vmatmul.bf16.gmra.mxu0 %v8432
      %v8509 = vpop.f32.mrf.mxu0
      %v8510 = vadd.f32 0.0, %v8509
      %v8511 = vpop.f32.mrf.mxu0
      %v8512 = vadd.f32 0.0, %v8511
      %8513 = vmatmul.bf16.gmra.mxu0 %v8435
      %v8514 = vpop.f32.mrf.mxu0
      %v8515 = vadd.f32 0.0, %v8514
      %v8516 = vpop.f32.mrf.mxu0
      %v8517 = vadd.f32 0.0, %v8516
      %8518 = vmatmul.bf16.gmra.mxu0 %v8438
      %v8519 = vpop.f32.mrf.mxu0
      %v8520 = vadd.f32 0.0, %v8519
      %v8521 = vpop.f32.mrf.mxu0
      %v8522 = vadd.f32 0.0, %v8521
      %8523 = vmatmul.bf16.gmra.mxu0 %v8441
      %v8524 = vpop.f32.mrf.mxu0
      %v8525 = vadd.f32 0.0, %v8524
      %v8526 = vpop.f32.mrf.mxu0
      %v8527 = vadd.f32 0.0, %v8526
      %8528 = vmatmul.bf16.gmra.mxu0 %v8444
      %v8529 = vpop.f32.mrf.mxu0
      %v8530 = vadd.f32 0.0, %v8529
      %v8531 = vpop.f32.mrf.mxu0
      %v8532 = vadd.f32 0.0, %v8531
      %8533 = vmatmul.bf16.gmra.mxu0 %v8447
      %v8534 = vpop.f32.mrf.mxu0
      %v8535 = vadd.f32 0.0, %v8534
      %v8536 = vpop.f32.mrf.mxu0
      %v8537 = vadd.f32 0.0, %v8536
      %8538 = vmatmul.bf16.gmra.mxu0 %v8450
      %v8539 = vpop.f32.mrf.mxu0
      %v8540 = vadd.f32 0.0, %v8539
      %v8541 = vpop.f32.mrf.mxu0
      %v8542 = vadd.f32 0.0, %v8541
      %8543 = vdwg.mxu0
      %v8544 = vadd.f32 %v7824, %v8465
      %v8545 = vadd.f32 %v7826, %v8467
      %v8546 = vadd.f32 %v7829, %v8470
      %v8547 = vadd.f32 %v7831, %v8472
      %v8548 = vadd.f32 %v7834, %v8475
      %v8549 = vadd.f32 %v7836, %v8477
      %v8550 = vadd.f32 %v7839, %v8480
      %v8551 = vadd.f32 %v7841, %v8482
      %v8552 = vadd.f32 %v7844, %v8485
      %v8553 = vadd.f32 %v7846, %v8487
      %v8554 = vadd.f32 %v7849, %v8490
      %v8555 = vadd.f32 %v7851, %v8492
      %v8556 = vadd.f32 %v7854, %v8495
      %v8557 = vadd.f32 %v7856, %v8497
      %v8558 = vadd.f32 %v7859, %v8500
      %v8559 = vadd.f32 %v7861, %v8502
      %v8560 = vadd.f32 %v7864, %v8505
      %v8561 = vadd.f32 %v7866, %v8507
      %v8562 = vadd.f32 %v7869, %v8510
      %v8563 = vadd.f32 %v7871, %v8512
      %v8564 = vadd.f32 %v7874, %v8515
      %v8565 = vadd.f32 %v7876, %v8517
      %v8566 = vadd.f32 %v7879, %v8520
      %v8567 = vadd.f32 %v7881, %v8522
      %v8568 = vadd.f32 %v7884, %v8525
      %v8569 = vadd.f32 %v7886, %v8527
      %v8570 = vadd.f32 %v7889, %v8530
      %v8571 = vadd.f32 %v7891, %v8532
      %v8572 = vadd.f32 %v7894, %v8535
      %v8573 = vadd.f32 %v7896, %v8537
      %v8574 = vadd.f32 %v7899, %v8540
      %v8575 = vadd.f32 %v7901, %v8542
      %v8576 = vld [vmem:[%s5625] sm:$0xe]
      %v8577 = vld [vmem:[%s5625 + $0xc] sm:$0xe]
      %v8578 = vld [vmem:[%s5625 + $0x18] sm:$0xe]
      %v8579 = vld [vmem:[%s5625 + $0x24] sm:$0xe]
      %v8580 = vld [vmem:[%s5625 + $0x30] sm:$0xe]
      %v8581 = vld [vmem:[%s5625 + $0x3c] sm:$0xe]
      %v8582 = vld [vmem:[%s5625 + $0x48] sm:$0xe]
      %v8583 = vld [vmem:[%s5625 + $0x54] sm:$0xe]
      %v8584 = vld [vmem:[%s5625 + $0x60] sm:$0xe]
      %v8585 = vld [vmem:[%s5625 + $0x6c] sm:$0xe]
      %v8586 = vld [vmem:[%s5625 + $0x78] sm:$0xe]
      %v8587 = vld [vmem:[%s5625 + $0x84] sm:$0xe]
      %v8588 = vld [vmem:[%s5625 + $0x90] sm:$0xe]
      %v8589 = vld [vmem:[%s5625 + $0x9c] sm:$0xe]
      %v8590 = vld [vmem:[%s5625 + $0xa8] sm:$0xe]
      %v8591 = vld [vmem:[%s5625 + $0xb4] sm:$0xe]
      %v8640 = vrot.slane %v8576, 5
      %v8641 = vrot.slane %v8640, 4
      %v8642 = vrot.slane %v7904, 5
      %v8643 = vsel %vm2855, %v8641, %v8642
      %v8644 = vrot.slane %v8642, 4
      %v8645 = vrot.slane %v7905, 5
      %v8646 = vsel %vm2855, %v8644, %v8645
      %v8647 = vrot.slane %v8577, 5
      %v8648 = vrot.slane %v8647, 4
      %v8649 = vrot.slane %v7907, 5
      %v8650 = vsel %vm2855, %v8648, %v8649
      %v8651 = vrot.slane %v8649, 4
      %v8652 = vrot.slane %v7908, 5
      %v8653 = vsel %vm2855, %v8651, %v8652
      %v8654 = vrot.slane %v8578, 5
      %v8655 = vrot.slane %v8654, 4
      %v8656 = vrot.slane %v7910, 5
      %v8657 = vsel %vm2855, %v8655, %v8656
      %v8658 = vrot.slane %v8656, 4
      %v8659 = vrot.slane %v7911, 5
      %v8660 = vsel %vm2855, %v8658, %v8659
      %v8661 = vrot.slane %v8579, 5
      %v8662 = vrot.slane %v8661, 4
      %v8663 = vrot.slane %v7913, 5
      %v8664 = vsel %vm2855, %v8662, %v8663
      %v8665 = vrot.slane %v8663, 4
      %v8666 = vrot.slane %v7914, 5
      %v8667 = vsel %vm2855, %v8665, %v8666
      %v8668 = vrot.slane %v8580, 5
      %v8669 = vrot.slane %v8668, 4
      %v8670 = vrot.slane %v7916, 5
      %v8671 = vsel %vm2855, %v8669, %v8670
      %v8672 = vrot.slane %v8670, 4
      %v8673 = vrot.slane %v7917, 5
      %v8674 = vsel %vm2855, %v8672, %v8673
      %v8675 = vrot.slane %v8581, 5
      %v8676 = vrot.slane %v8675, 4
      %v8677 = vrot.slane %v7919, 5
      %v8678 = vsel %vm2855, %v8676, %v8677
      %v8679 = vrot.slane %v8677, 4
      %v8680 = vrot.slane %v7920, 5
      %v8681 = vsel %vm2855, %v8679, %v8680
      %v8682 = vrot.slane %v8582, 5
      %v8683 = vrot.slane %v8682, 4
      %v8684 = vrot.slane %v7922, 5
      %v8685 = vsel %vm2855, %v8683, %v8684
      %v8686 = vrot.slane %v8684, 4
      %v8687 = vrot.slane %v7923, 5
      %v8688 = vsel %vm2855, %v8686, %v8687
      %v8689 = vrot.slane %v8583, 5
      %v8690 = vrot.slane %v8689, 4
      %v8691 = vrot.slane %v7925, 5
      %v8692 = vsel %vm2855, %v8690, %v8691
      %v8693 = vrot.slane %v8691, 4
      %v8694 = vrot.slane %v7926, 5
      %v8695 = vsel %vm2855, %v8693, %v8694
      %v8696 = vrot.slane %v8584, 5
      %v8697 = vrot.slane %v8696, 4
      %v8698 = vrot.slane %v7928, 5
      %v8699 = vsel %vm2855, %v8697, %v8698
      %v8700 = vrot.slane %v8698, 4
      %v8701 = vrot.slane %v7929, 5
      %v8702 = vsel %vm2855, %v8700, %v8701
      %v8703 = vrot.slane %v8585, 5
      %v8704 = vrot.slane %v8703, 4
      %v8705 = vrot.slane %v7931, 5
      %v8706 = vsel %vm2855, %v8704, %v8705
      %v8707 = vrot.slane %v8705, 4
      %v8708 = vrot.slane %v7932, 5
      %v8709 = vsel %vm2855, %v8707, %v8708
      %v8710 = vrot.slane %v8586, 5
      %v8711 = vrot.slane %v8710, 4
      %v8712 = vrot.slane %v7934, 5
      %v8713 = vsel %vm2855, %v8711, %v8712
      %v8714 = vrot.slane %v8712, 4
      %v8715 = vrot.slane %v7935, 5
      %v8716 = vsel %vm2855, %v8714, %v8715
      %v8717 = vrot.slane %v8587, 5
      %v8718 = vrot.slane %v8717, 4
      %v8719 = vrot.slane %v7937, 5
      %v8720 = vsel %vm2855, %v8718, %v8719
      %v8721 = vrot.slane %v8719, 4
      %v8722 = vrot.slane %v7938, 5
      %v8723 = vsel %vm2855, %v8721, %v8722
      %v8724 = vrot.slane %v8588, 5
      %v8725 = vrot.slane %v8724, 4
      %v8726 = vrot.slane %v7940, 5
      %v8727 = vsel %vm2855, %v8725, %v8726
      %v8728 = vrot.slane %v8726, 4
      %v8729 = vrot.slane %v7941, 5
      %v8730 = vsel %vm2855, %v8728, %v8729
      %v8731 = vrot.slane %v8589, 5
      %v8732 = vrot.slane %v8731, 4
      %v8733 = vrot.slane %v7943, 5
      %v8734 = vsel %vm2855, %v8732, %v8733
      %v8735 = vrot.slane %v8733, 4
      %v8736 = vrot.slane %v7944, 5
      %v8737 = vsel %vm2855, %v8735, %v8736
      %v8738 = vrot.slane %v8590, 5
      %v8739 = vrot.slane %v8738, 4
      %v8740 = vrot.slane %v7946, 5
      %v8741 = vsel %vm2855, %v8739, %v8740
      %v8742 = vrot.slane %v8740, 4
      %v8743 = vrot.slane %v7947, 5
      %v8744 = vsel %vm2855, %v8742, %v8743
      %v8745 = vrot.slane %v8591, 5
      %v8746 = vrot.slane %v8745, 4
      %v8747 = vrot.slane %v7949, 5
      %v8748 = vsel %vm2855, %v8746, %v8747
      %v8749 = vrot.slane %v8747, 4
      %v8750 = vrot.slane %v7950, 5
      %v8751 = vsel %vm2855, %v8749, %v8750
      %s8752 = scalar_lea.vmem %s1, 300
      %v8753 = vld [vmem:[%s8752] sm:$0xf]
      %v8754 = vld [vmem:[%s8752 + $0x4] sm:$0xf]
      %v8755 = vld [vmem:[%s8752 + $0x8] sm:$0xf]
      %v8756 = vld [vmem:[%s8752 + $0xc] sm:$0xf]
      %v8757 = vld [vmem:[%s8752 + $0x10] sm:$0x1]
      %v8758 = vunpack.c.l.b16 %v8643
      %v8759 = vunpack.c.l.b16 %v8646
      %v8760 = vunpack.c.l.b16 %v8650
      %v8761 = vunpack.c.l.b16 %v8653
      %v8762 = vunpack.c.l.b16 %v8657
      %v8763 = vunpack.c.l.b16 %v8660
      %v8764 = vunpack.c.l.b16 %v8664
      %v8765 = vunpack.c.l.b16 %v8667
      %v8766 = vunpack.c.l.b16 %v8671
      %v8767 = vunpack.c.l.b16 %v8674
      %v8768 = vunpack.c.l.b16 %v8678
      %v8769 = vunpack.c.l.b16 %v8681
      %v8770 = vunpack.c.l.b16 %v8685
      %v8771 = vunpack.c.l.b16 %v8688
      %v8772 = vunpack.c.l.b16 %v8692
      %v8773 = vunpack.c.l.b16 %v8695
      %v8774 = vunpack.c.l.b16 %v8699
      %v8775 = vunpack.c.l.b16 %v8702
      %v8776 = vunpack.c.l.b16 %v8706
      %v8777 = vunpack.c.l.b16 %v8709
      %v8778 = vunpack.c.l.b16 %v8713
      %v8779 = vunpack.c.l.b16 %v8716
      %v8780 = vunpack.c.l.b16 %v8720
      %v8781 = vunpack.c.l.b16 %v8723
      %v8782 = vunpack.c.l.b16 %v8727
      %v8783 = vunpack.c.l.b16 %v8730
      %v8784 = vunpack.c.l.b16 %v8734
      %v8785 = vunpack.c.l.b16 %v8737
      %v8786 = vunpack.c.l.b16 %v8741
      %v8787 = vunpack.c.l.b16 %v8744
      %v8788 = vunpack.c.l.b16 %v8748
      %v8789 = vunpack.c.l.b16 %v8751
      %v8790 = vpack.c.b16 %v8759, %v8758
      %v8791 = vpack.c.b16 %v8761, %v8760
      %v8792 = vpack.c.b16 %v8763, %v8762
      %v8793 = vpack.c.b16 %v8765, %v8764
      %v8794 = vpack.c.b16 %v8767, %v8766
      %v8795 = vpack.c.b16 %v8769, %v8768
      %v8796 = vpack.c.b16 %v8771, %v8770
      %v8797 = vpack.c.b16 %v8773, %v8772
      %v8798 = vpack.c.b16 %v8775, %v8774
      %v8799 = vpack.c.b16 %v8777, %v8776
      %v8800 = vpack.c.b16 %v8779, %v8778
      %v8801 = vpack.c.b16 %v8781, %v8780
      %v8802 = vpack.c.b16 %v8783, %v8782
      %v8803 = vpack.c.b16 %v8785, %v8784
      %v8804 = vpack.c.b16 %v8787, %v8786
      %v8805 = vpack.c.b16 %v8789, %v8788
      %v8811 = vunpack.c.l.b16 %v8753
      %v8812 = vunpack.c.l.b16 %v8754
      %v8813 = vunpack.c.l.b16 %v8755
      %v8814 = vunpack.c.l.b16 %v8756
      %v8815 = vunpack.c.l.b16 %v8757
      %v8816 = vpack.c.b16 %v8812, %v8811
      %v8817 = vpack.c.b16 %v8814, %v8813
      %v8818 = vpack.c.b16 %v8815, %v8815
      %v8822 = vsel %vm719, %v8790, 0
      %v8825 = vsel %vm719, %v8791, 0
      %v8828 = vsel %vm719, %v8792, 0
      %v8831 = vsel %vm719, %v8793, 0
      %v8834 = vsel %vm719, %v8794, 0
      %v8837 = vsel %vm719, %v8795, 0
      %v8840 = vsel %vm719, %v8796, 0
      %v8843 = vsel %vm719, %v8797, 0
      %v8846 = vsel %vm719, %v8798, 0
      %v8849 = vsel %vm719, %v8799, 0
      %v8852 = vsel %vm719, %v8800, 0
      %v8855 = vsel %vm719, %v8801, 0
      %v8858 = vsel %vm719, %v8802, 0
      %v8861 = vsel %vm719, %v8803, 0
      %v8864 = vsel %vm719, %v8804, 0
      %v8867 = vsel %vm719, %v8805, 0
      %v8870 = vand.u32 %v8818, %v770
      %8872 = vmatpush.bf16.msra.mxu0 0
      %8873 = vmatpush.bf16.msra.mxu0 0
      %8874 = vmatpush.bf16.msra.mxu0 0
      %8875 = vmatpush.bf16.msra.mxu0 0
      %8876 = vmatpush.bf16.msra.mxu0 0
      %8877 = vmatpush.bf16.msra.mxu0 %v8870
      %8878 = vmatpush.bf16.msra.mxu0 %v8817
      %8879 = vmatpush.bf16.msra.mxu0 %v8816
      %8880 = vmatmul.bf16.gmra.mxu0 %v8822
      %v8881 = vpop.f32.mrf.mxu0
      %v8882 = vadd.f32 0.0, %v8881
      %v8883 = vpop.f32.mrf.mxu0
      %v8884 = vadd.f32 0.0, %v8883
      %8885 = vmatmul.bf16.gmra.mxu0 %v8825
      %v8886 = vpop.f32.mrf.mxu0
      %v8887 = vadd.f32 0.0, %v8886
      %v8888 = vpop.f32.mrf.mxu0
      %v8889 = vadd.f32 0.0, %v8888
      %8890 = vmatmul.bf16.gmra.mxu0 %v8828
      %v8891 = vpop.f32.mrf.mxu0
      %v8892 = vadd.f32 0.0, %v8891
      %v8893 = vpop.f32.mrf.mxu0
      %v8894 = vadd.f32 0.0, %v8893
      %8895 = vmatmul.bf16.gmra.mxu0 %v8831
      %v8896 = vpop.f32.mrf.mxu0
      %v8897 = vadd.f32 0.0, %v8896
      %v8898 = vpop.f32.mrf.mxu0
      %v8899 = vadd.f32 0.0, %v8898
      %8900 = vmatmul.bf16.gmra.mxu0 %v8834
      %v8901 = vpop.f32.mrf.mxu0
      %v8902 = vadd.f32 0.0, %v8901
      %v8903 = vpop.f32.mrf.mxu0
      %v8904 = vadd.f32 0.0, %v8903
      %8905 = vmatmul.bf16.gmra.mxu0 %v8837
      %v8906 = vpop.f32.mrf.mxu0
      %v8907 = vadd.f32 0.0, %v8906
      %v8908 = vpop.f32.mrf.mxu0
      %v8909 = vadd.f32 0.0, %v8908
      %8910 = vmatmul.bf16.gmra.mxu0 %v8840
      %v8911 = vpop.f32.mrf.mxu0
      %v8912 = vadd.f32 0.0, %v8911
      %v8913 = vpop.f32.mrf.mxu0
      %v8914 = vadd.f32 0.0, %v8913
      %8915 = vmatmul.bf16.gmra.mxu0 %v8843
      %v8916 = vpop.f32.mrf.mxu0
      %v8917 = vadd.f32 0.0, %v8916
      %v8918 = vpop.f32.mrf.mxu0
      %v8919 = vadd.f32 0.0, %v8918
      %8920 = vmatmul.bf16.gmra.mxu0 %v8846
      %v8921 = vpop.f32.mrf.mxu0
      %v8922 = vadd.f32 0.0, %v8921
      %v8923 = vpop.f32.mrf.mxu0
      %v8924 = vadd.f32 0.0, %v8923
      %8925 = vmatmul.bf16.gmra.mxu0 %v8849
      %v8926 = vpop.f32.mrf.mxu0
      %v8927 = vadd.f32 0.0, %v8926
      %v8928 = vpop.f32.mrf.mxu0
      %v8929 = vadd.f32 0.0, %v8928
      %8930 = vmatmul.bf16.gmra.mxu0 %v8852
      %v8931 = vpop.f32.mrf.mxu0
      %v8932 = vadd.f32 0.0, %v8931
      %v8933 = vpop.f32.mrf.mxu0
      %v8934 = vadd.f32 0.0, %v8933
      %8935 = vmatmul.bf16.gmra.mxu0 %v8855
      %v8936 = vpop.f32.mrf.mxu0
      %v8937 = vadd.f32 0.0, %v8936
      %v8938 = vpop.f32.mrf.mxu0
      %v8939 = vadd.f32 0.0, %v8938
      %8940 = vmatmul.bf16.gmra.mxu0 %v8858
      %v8941 = vpop.f32.mrf.mxu0
      %v8942 = vadd.f32 0.0, %v8941
      %v8943 = vpop.f32.mrf.mxu0
      %v8944 = vadd.f32 0.0, %v8943
      %8945 = vmatmul.bf16.gmra.mxu0 %v8861
      %v8946 = vpop.f32.mrf.mxu0
      %v8947 = vadd.f32 0.0, %v8946
      %v8948 = vpop.f32.mrf.mxu0
      %v8949 = vadd.f32 0.0, %v8948
      %8950 = vmatmul.bf16.gmra.mxu0 %v8864
      %v8951 = vpop.f32.mrf.mxu0
      %v8952 = vadd.f32 0.0, %v8951
      %v8953 = vpop.f32.mrf.mxu0
      %v8954 = vadd.f32 0.0, %v8953
      %8955 = vmatmul.bf16.gmra.mxu0 %v8867
      %v8956 = vpop.f32.mrf.mxu0
      %v8957 = vadd.f32 0.0, %v8956
      %v8958 = vpop.f32.mrf.mxu0
      %v8959 = vadd.f32 0.0, %v8958
      %8960 = vdwg.mxu0
      %v8961 = vadd.f32 %v8544, %v8882
      %v8962 = vadd.f32 %v8545, %v8884
      %v8963 = vadd.f32 %v8546, %v8887
      %v8964 = vadd.f32 %v8547, %v8889
      %v8965 = vadd.f32 %v8548, %v8892
      %v8966 = vadd.f32 %v8549, %v8894
      %v8967 = vadd.f32 %v8550, %v8897
      %v8968 = vadd.f32 %v8551, %v8899
      %v8969 = vadd.f32 %v8552, %v8902
      %v8970 = vadd.f32 %v8553, %v8904
      %v8971 = vadd.f32 %v8554, %v8907
      %v8972 = vadd.f32 %v8555, %v8909
      %v8973 = vadd.f32 %v8556, %v8912
      %v8974 = vadd.f32 %v8557, %v8914
      %v8975 = vadd.f32 %v8558, %v8917
      %v8976 = vadd.f32 %v8559, %v8919
      %v8977 = vadd.f32 %v8560, %v8922
      %v8978 = vadd.f32 %v8561, %v8924
      %v8979 = vadd.f32 %v8562, %v8927
      %v8980 = vadd.f32 %v8563, %v8929
      %v8981 = vadd.f32 %v8564, %v8932
      %v8982 = vadd.f32 %v8565, %v8934
      %v8983 = vadd.f32 %v8566, %v8937
      %v8984 = vadd.f32 %v8567, %v8939
      %v8985 = vadd.f32 %v8568, %v8942
      %v8986 = vadd.f32 %v8569, %v8944
      %v8987 = vadd.f32 %v8570, %v8947
      %v8988 = vadd.f32 %v8571, %v8949
      %v8989 = vadd.f32 %v8572, %v8952
      %v8990 = vadd.f32 %v8573, %v8954
      %v8991 = vadd.f32 %v8574, %v8957
      %v8992 = vadd.f32 %v8575, %v8959
      %v8993 = vld [vmem:[%s2] sm:$0x1]
      %v8995 = vperm.slane %v8993, 0
      %v8997 = vadd.f32 %v8961, %v8995
      %v8998 = vadd.f32 %v8962, %v8995
      %v8999 = vadd.f32 %v8963, %v8995
      %v9000 = vadd.f32 %v8964, %v8995
      %v9001 = vadd.f32 %v8965, %v8995
      %v9002 = vadd.f32 %v8966, %v8995
      %v9003 = vadd.f32 %v8967, %v8995
      %v9004 = vadd.f32 %v8968, %v8995
      %v9005 = vadd.f32 %v8969, %v8995
      %v9006 = vadd.f32 %v8970, %v8995
      %v9007 = vadd.f32 %v8971, %v8995
      %v9008 = vadd.f32 %v8972, %v8995
      %v9009 = vadd.f32 %v8973, %v8995
      %v9010 = vadd.f32 %v8974, %v8995
      %v9011 = vadd.f32 %v8975, %v8995
      %v9012 = vadd.f32 %v8976, %v8995
      %v9013 = vadd.f32 %v8977, %v8995
      %v9014 = vadd.f32 %v8978, %v8995
      %v9015 = vadd.f32 %v8979, %v8995
      %v9016 = vadd.f32 %v8980, %v8995
      %v9017 = vadd.f32 %v8981, %v8995
      %v9018 = vadd.f32 %v8982, %v8995
      %v9019 = vadd.f32 %v8983, %v8995
      %v9020 = vadd.f32 %v8984, %v8995
      %v9021 = vadd.f32 %v8985, %v8995
      %v9022 = vadd.f32 %v8986, %v8995
      %v9023 = vadd.f32 %v8987, %v8995
      %v9024 = vadd.f32 %v8988, %v8995
      %v9025 = vadd.f32 %v8989, %v8995
      %v9026 = vadd.f32 %v8990, %v8995
      %v9027 = vadd.f32 %v8991, %v8995
      %v9028 = vadd.f32 %v8992, %v8995
      %v9029 = vpack.c.bf16 %v8997, %v8997
      %v9030 = vpack.c.bf16 %v8998, %v8998
      %v9031 = vpack.c.bf16 %v8999, %v8999
      %v9032 = vpack.c.bf16 %v9000, %v9000
      %v9033 = vpack.c.bf16 %v9001, %v9001
      %v9034 = vpack.c.bf16 %v9002, %v9002
      %v9035 = vpack.c.bf16 %v9003, %v9003
      %v9036 = vpack.c.bf16 %v9004, %v9004
      %v9037 = vpack.c.bf16 %v9005, %v9005
      %v9038 = vpack.c.bf16 %v9006, %v9006
      %v9039 = vpack.c.bf16 %v9007, %v9007
      %v9040 = vpack.c.bf16 %v9008, %v9008
      %v9041 = vpack.c.bf16 %v9009, %v9009
      %v9042 = vpack.c.bf16 %v9010, %v9010
      %v9043 = vpack.c.bf16 %v9011, %v9011
      %v9044 = vpack.c.bf16 %v9012, %v9012
      %v9045 = vpack.c.bf16 %v9013, %v9013
      %v9046 = vpack.c.bf16 %v9014, %v9014
      %v9047 = vpack.c.bf16 %v9015, %v9015
      %v9048 = vpack.c.bf16 %v9016, %v9016
      %v9049 = vpack.c.bf16 %v9017, %v9017
      %v9050 = vpack.c.bf16 %v9018, %v9018
      %v9051 = vpack.c.bf16 %v9019, %v9019
      %v9052 = vpack.c.bf16 %v9020, %v9020
      %v9053 = vpack.c.bf16 %v9021, %v9021
      %v9054 = vpack.c.bf16 %v9022, %v9022
      %v9055 = vpack.c.bf16 %v9023, %v9023
      %v9056 = vpack.c.bf16 %v9024, %v9024
      %v9057 = vpack.c.bf16 %v9025, %v9025
      %v9058 = vpack.c.bf16 %v9026, %v9026
      %v9059 = vpack.c.bf16 %v9027, %v9027
      %v9060 = vpack.c.bf16 %v9028, %v9028
      %s9061 = scalar_lea.vmem %s204, 384
      %9062 = vst.msk [vmem:[%s9061] sm:$0xf] %vm2145, %v9029
      %9063 = vst.msk [vmem:[%s9061 + $0x4] sm:$0xf] %vm2145, %v9030
      %9064 = vst.msk [vmem:[%s9061 + $0x8] sm:$0xf] %vm2145, %v9031
      %9065 = vst.msk [vmem:[%s9061 + $0xc] sm:$0xf] %vm2145, %v9032
      %9066 = vst.msk [vmem:[%s9061 + $0x10] sm:$0xf] %vm2145, %v9033
      %9067 = vst.msk [vmem:[%s9061 + $0x14] sm:$0xf] %vm2145, %v9034
      %9068 = vst.msk [vmem:[%s9061 + $0x18] sm:$0xf] %vm2145, %v9035
      %9069 = vst.msk [vmem:[%s9061 + $0x1c] sm:$0xf] %vm2145, %v9036
      %9070 = vst.msk [vmem:[%s9061 + $0x20] sm:$0xf] %vm2145, %v9037
      %9071 = vst.msk [vmem:[%s9061 + $0x24] sm:$0xf] %vm2145, %v9038
      %9072 = vst.msk [vmem:[%s9061 + $0x28] sm:$0xf] %vm2145, %v9039
      %9073 = vst.msk [vmem:[%s9061 + $0x2c] sm:$0xf] %vm2145, %v9040
      %9074 = vst.msk [vmem:[%s9061 + $0x30] sm:$0xf] %vm2145, %v9041
      %9075 = vst.msk [vmem:[%s9061 + $0x34] sm:$0xf] %vm2145, %v9042
      %9076 = vst.msk [vmem:[%s9061 + $0x38] sm:$0xf] %vm2145, %v9043
      %9077 = vst.msk [vmem:[%s9061 + $0x3c] sm:$0xf] %vm2145, %v9044
      %9078 = vst.msk [vmem:[%s9061 + $0x40] sm:$0xf] %vm2145, %v9045
      %9079 = vst.msk [vmem:[%s9061 + $0x44] sm:$0xf] %vm2145, %v9046
      %9080 = vst.msk [vmem:[%s9061 + $0x48] sm:$0xf] %vm2145, %v9047
      %9081 = vst.msk [vmem:[%s9061 + $0x4c] sm:$0xf] %vm2145, %v9048
      %9082 = vst.msk [vmem:[%s9061 + $0x50] sm:$0xf] %vm2145, %v9049
      %9083 = vst.msk [vmem:[%s9061 + $0x54] sm:$0xf] %vm2145, %v9050
      %9084 = vst.msk [vmem:[%s9061 + $0x58] sm:$0xf] %vm2145, %v9051
      %9085 = vst.msk [vmem:[%s9061 + $0x5c] sm:$0xf] %vm2145, %v9052
      %9086 = vst.msk [vmem:[%s9061 + $0x60] sm:$0xf] %vm2145, %v9053
      %9087 = vst.msk [vmem:[%s9061 + $0x64] sm:$0xf] %vm2145, %v9054
      %9088 = vst.msk [vmem:[%s9061 + $0x68] sm:$0xf] %vm2145, %v9055
      %9089 = vst.msk [vmem:[%s9061 + $0x6c] sm:$0xf] %vm2145, %v9056
      %9090 = vst.msk [vmem:[%s9061 + $0x70] sm:$0xf] %vm2145, %v9057
      %9091 = vst.msk [vmem:[%s9061 + $0x74] sm:$0xf] %vm2145, %v9058
      %9092 = vst.msk [vmem:[%s9061 + $0x78] sm:$0xf] %vm2145, %v9059
      %9093 = vst.msk [vmem:[%s9061 + $0x7c] sm:$0xf] %vm2145, %v9060
      %v9094 = vsel %vm2178, %v8997, 0.0
      %v9095 = vsel %vm2178, %v8998, 0.0
      %v9096 = vadd.f32 %v9094, %v9095
      %v9097 = vsel %vm2178, %v8999, 0.0
      %v9098 = vadd.f32 %v9096, %v9097
      %v9099 = vsel %vm2178, %v9000, 0.0
      %v9100 = vadd.f32 %v9098, %v9099
      %v9101 = vsel %vm2178, %v9001, 0.0
      %v9102 = vadd.f32 %v9100, %v9101
      %v9103 = vsel %vm2178, %v9002, 0.0
      %v9104 = vadd.f32 %v9102, %v9103
      %v9105 = vsel %vm2178, %v9003, 0.0
      %v9106 = vadd.f32 %v9104, %v9105
      %v9107 = vsel %vm2178, %v9004, 0.0
      %v9108 = vadd.f32 %v9106, %v9107
      %v9109 = vsel %vm2178, %v9005, 0.0
      %v9110 = vadd.f32 %v9108, %v9109
      %v9111 = vsel %vm2178, %v9006, 0.0
      %v9112 = vadd.f32 %v9110, %v9111
      %v9113 = vsel %vm2178, %v9007, 0.0
      %v9114 = vadd.f32 %v9112, %v9113
      %v9115 = vsel %vm2178, %v9008, 0.0
      %v9116 = vadd.f32 %v9114, %v9115
      %v9117 = vsel %vm2178, %v9009, 0.0
      %v9118 = vadd.f32 %v9116, %v9117
      %v9119 = vsel %vm2178, %v9010, 0.0
      %v9120 = vadd.f32 %v9118, %v9119
      %v9121 = vsel %vm2178, %v9011, 0.0
      %v9122 = vadd.f32 %v9120, %v9121
      %v9123 = vsel %vm2178, %v9012, 0.0
      %v9124 = vadd.f32 %v9122, %v9123
      %v9125 = vsel %vm2178, %v9013, 0.0
      %v9126 = vadd.f32 %v9124, %v9125
      %v9127 = vsel %vm2178, %v9014, 0.0
      %v9128 = vadd.f32 %v9126, %v9127
      %v9129 = vsel %vm2178, %v9015, 0.0
      %v9130 = vadd.f32 %v9128, %v9129
      %v9131 = vsel %vm2178, %v9016, 0.0
      %v9132 = vadd.f32 %v9130, %v9131
      %v9133 = vsel %vm2178, %v9017, 0.0
      %v9134 = vadd.f32 %v9132, %v9133
      %v9135 = vsel %vm2178, %v9018, 0.0
      %v9136 = vadd.f32 %v9134, %v9135
      %v9137 = vsel %vm2178, %v9019, 0.0
      %v9138 = vadd.f32 %v9136, %v9137
      %v9139 = vsel %vm2178, %v9020, 0.0
      %v9140 = vadd.f32 %v9138, %v9139
      %v9141 = vsel %vm2178, %v9021, 0.0
      %v9142 = vadd.f32 %v9140, %v9141
      %v9143 = vsel %vm2178, %v9022, 0.0
      %v9144 = vadd.f32 %v9142, %v9143
      %v9145 = vsel %vm2178, %v9023, 0.0
      %v9146 = vadd.f32 %v9144, %v9145
      %v9147 = vsel %vm2178, %v9024, 0.0
      %v9148 = vadd.f32 %v9146, %v9147
      %v9149 = vsel %vm2178, %v9025, 0.0
      %v9150 = vadd.f32 %v9148, %v9149
      %v9151 = vsel %vm2178, %v9026, 0.0
      %v9152 = vadd.f32 %v9150, %v9151
      %v9153 = vsel %vm2178, %v9027, 0.0
      %v9154 = vadd.f32 %v9152, %v9153
      %v9155 = vsel %vm2178, %v9028, 0.0
      %v9156 = vadd.f32 %v9154, %v9155
      %v9157 = vrot.slane %v9156, 4
      %v9158 = vadd.f32 %v9156, %v9157
      %v9159 = vrot.slane %v9158, 2
      %v9160 = vadd.f32 %v9158, %v9159
      %v9161 = vrot.slane %v9160, 1
      %v9162 = vadd.f32 %v9160, %v9161
      %v9163 = vadd.f32 %v6774, %v9162
      %v9164 = vmul.f32 %v8997, %v8997
      %v9165 = vmul.f32 %v8998, %v8998
      %v9166 = vmul.f32 %v8999, %v8999
      %v9167 = vmul.f32 %v9000, %v9000
      %v9168 = vmul.f32 %v9001, %v9001
      %v9169 = vmul.f32 %v9002, %v9002
      %v9170 = vmul.f32 %v9003, %v9003
      %v9171 = vmul.f32 %v9004, %v9004
      %v9172 = vmul.f32 %v9005, %v9005
      %v9173 = vmul.f32 %v9006, %v9006
      %v9174 = vmul.f32 %v9007, %v9007
      %v9175 = vmul.f32 %v9008, %v9008
      %v9176 = vmul.f32 %v9009, %v9009
      %v9177 = vmul.f32 %v9010, %v9010
      %v9178 = vmul.f32 %v9011, %v9011
      %v9179 = vmul.f32 %v9012, %v9012
      %v9180 = vmul.f32 %v9013, %v9013
      %v9181 = vmul.f32 %v9014, %v9014
      %v9182 = vmul.f32 %v9015, %v9015
      %v9183 = vmul.f32 %v9016, %v9016
      %v9184 = vmul.f32 %v9017, %v9017
      %v9185 = vmul.f32 %v9018, %v9018
      %v9186 = vmul.f32 %v9019, %v9019
      %v9187 = vmul.f32 %v9020, %v9020
      %v9188 = vmul.f32 %v9021, %v9021
      %v9189 = vmul.f32 %v9022, %v9022
      %v9190 = vmul.f32 %v9023, %v9023
      %v9191 = vmul.f32 %v9024, %v9024
      %v9192 = vmul.f32 %v9025, %v9025
      %v9193 = vmul.f32 %v9026, %v9026
      %v9194 = vmul.f32 %v9027, %v9027
      %v9195 = vmul.f32 %v9028, %v9028
      %v9196 = vsel %vm2178, %v9164, 0.0
      %v9197 = vsel %vm2178, %v9165, 0.0
      %v9198 = vadd.f32 %v9196, %v9197
      %v9199 = vsel %vm2178, %v9166, 0.0
      %v9200 = vadd.f32 %v9198, %v9199
      %v9201 = vsel %vm2178, %v9167, 0.0
      %v9202 = vadd.f32 %v9200, %v9201
      %v9203 = vsel %vm2178, %v9168, 0.0
      %v9204 = vadd.f32 %v9202, %v9203
      %v9205 = vsel %vm2178, %v9169, 0.0
      %v9206 = vadd.f32 %v9204, %v9205
      %v9207 = vsel %vm2178, %v9170, 0.0
      %v9208 = vadd.f32 %v9206, %v9207
      %v9209 = vsel %vm2178, %v9171, 0.0
      %v9210 = vadd.f32 %v9208, %v9209
      %v9211 = vsel %vm2178, %v9172, 0.0
      %v9212 = vadd.f32 %v9210, %v9211
      %v9213 = vsel %vm2178, %v9173, 0.0
      %v9214 = vadd.f32 %v9212, %v9213
      %v9215 = vsel %vm2178, %v9174, 0.0
      %v9216 = vadd.f32 %v9214, %v9215
      %v9217 = vsel %vm2178, %v9175, 0.0
      %v9218 = vadd.f32 %v9216, %v9217
      %v9219 = vsel %vm2178, %v9176, 0.0
      %v9220 = vadd.f32 %v9218, %v9219
      %v9221 = vsel %vm2178, %v9177, 0.0
      %v9222 = vadd.f32 %v9220, %v9221
      %v9223 = vsel %vm2178, %v9178, 0.0
      %v9224 = vadd.f32 %v9222, %v9223
      %v9225 = vsel %vm2178, %v9179, 0.0
      %v9226 = vadd.f32 %v9224, %v9225
      %v9227 = vsel %vm2178, %v9180, 0.0
      %v9228 = vadd.f32 %v9226, %v9227
      %v9229 = vsel %vm2178, %v9181, 0.0
      %v9230 = vadd.f32 %v9228, %v9229
      %v9231 = vsel %vm2178, %v9182, 0.0
      %v9232 = vadd.f32 %v9230, %v9231
      %v9233 = vsel %vm2178, %v9183, 0.0
      %v9234 = vadd.f32 %v9232, %v9233
      %v9235 = vsel %vm2178, %v9184, 0.0
      %v9236 = vadd.f32 %v9234, %v9235
      %v9237 = vsel %vm2178, %v9185, 0.0
      %v9238 = vadd.f32 %v9236, %v9237
      %v9239 = vsel %vm2178, %v9186, 0.0
      %v9240 = vadd.f32 %v9238, %v9239
      %v9241 = vsel %vm2178, %v9187, 0.0
      %v9242 = vadd.f32 %v9240, %v9241
      %v9243 = vsel %vm2178, %v9188, 0.0
      %v9244 = vadd.f32 %v9242, %v9243
      %v9245 = vsel %vm2178, %v9189, 0.0
      %v9246 = vadd.f32 %v9244, %v9245
      %v9247 = vsel %vm2178, %v9190, 0.0
      %v9248 = vadd.f32 %v9246, %v9247
      %v9249 = vsel %vm2178, %v9191, 0.0
      %v9250 = vadd.f32 %v9248, %v9249
      %v9251 = vsel %vm2178, %v9192, 0.0
      %v9252 = vadd.f32 %v9250, %v9251
      %v9253 = vsel %vm2178, %v9193, 0.0
      %v9254 = vadd.f32 %v9252, %v9253
      %v9255 = vsel %vm2178, %v9194, 0.0
      %v9256 = vadd.f32 %v9254, %v9255
      %v9257 = vsel %vm2178, %v9195, 0.0
      %v9258 = vadd.f32 %v9256, %v9257
      %v9259 = vrot.slane %v9258, 4
      %v9260 = vadd.f32 %v9258, %v9259
      %v9261 = vrot.slane %v9260, 2
      %v9262 = vadd.f32 %v9260, %v9261
      %v9263 = vrot.slane %v9262, 1
      %v9264 = vadd.f32 %v9262, %v9263
      %v9265 = vadd.f32 %v6876, %v9264
      %vm9266 = vcmask 122880
      %9267 = vst.msk [vmem:[%s208] sm:$0x1] %vm9266, %v9163
      %9268 = vst.msk [vmem:[%s208 + $0x1] sm:$0x1] %vm9266, %v9265
      %p9269 = scmp.lt.s32.totalorder %s16, 1
      %s9270 = scalar_select %p9269, %s16, 1
      %s9271 = smul.addr %s9270, 128
      %s9272 = smul.addr %s9271, 4
      %s9273 = scalar_lea.vmem %s3, %s9272
      %p9274 = scmp.lt.s32.totalorder %s16, 1
      %s9275 = scalar_select %p9274, %s16, 1
      %s9276 = smul.addr %s9275, 2
      %s9277 = scalar_lea.vmem %s4, %s9276
      // Predicated region
      $region33: #{decoder_block_forward.2} parent=31 // pred_check
        %p9278 = pneg %p102
      $region34: #{decoder_block_forward.2} parent=31 // pred_check_branch
        %9280 = sbr.rel (%p9278) target = $region36
      $region35: #{decoder_block_forward.2} parent=31 // pred_region
        _
      $region36: #{decoder_block_forward.2} parent=31 // pred_fallthru
        _
      // Predicated region
      $region37: #{decoder_block_forward.2} parent=31 // pred_check
        %p9281 = pneg %p128
      $region38: #{decoder_block_forward.2} parent=31 // pred_check_branch
        %9283 = sbr.rel (%p9281) target = $region40
      $region39: #{decoder_block_forward.2} parent=31 // pred_region
        _
      $region40: #{decoder_block_forward.2} parent=31 // pred_fallthru
        _
    $region32: #{decoder_block_forward.2} parent=5 // pred_fallthru
      _
    %p9284 = scmp.le.s32.totalorder 2, %s11
    // Predicated region
    $region41: #{decoder_block_forward.2} parent=5 // pred_check
      %p9285 = pneg %p9284
    $region42: #{decoder_block_forward.2} parent=5 // pred_check_branch
      %9287 = sbr.rel (%p9285) target = $region44
    $region43: #{decoder_block_forward.2} parent=5 // pred_region
      %s9288 = ssub.s32 %s11, 2
      // Predicated region
      $region45: #{decoder_block_forward.2} parent=43 // pred_check
        %p9289 = pneg %p108
      $region46: #{decoder_block_forward.2} parent=43 // pred_check_branch
        %9291 = sbr.rel (%p9289) target = $region48
      $region47: #{decoder_block_forward.2} parent=43 // pred_region
        %p9292 = scmp.lt.s32.totalorder %s17, 1
        %s9293 = scalar_select %p9292, %s17, 1
        %s9294 = smul.addr %s9293, 128
        %s9295 = smul.addr %s9294, 4
        %s9296 = scalar_lea.vmem %s3, %s9295
      $region48: #{decoder_block_forward.2} parent=43 // pred_fallthru
        _
      // Predicated region
      $region49: #{decoder_block_forward.2} parent=43 // pred_check
        %p9297 = pneg %p134
      $region50: #{decoder_block_forward.2} parent=43 // pred_check_branch
        %9299 = sbr.rel (%p9297) target = $region52
      $region51: #{decoder_block_forward.2} parent=43 // pred_region
        %p9300 = scmp.lt.s32.totalorder %s17, 1
        %s9301 = scalar_select %p9300, %s17, 1
        %s9302 = smul.addr %s9301, 2
        %s9303 = scalar_lea.vmem %s4, %s9302
      $region52: #{decoder_block_forward.2} parent=43 // pred_fallthru
        _
    $region44: #{decoder_block_forward.2} parent=5 // pred_fallthru
      _
  $region6: #{decoder_block_forward.2} parent=0 // loop_footer
    %s15 = sadd.s32 1, %s11
  $region7: #{decoder_block_forward.2} parent=0 // loop_footer_branch
    %10 = sbr.rel target = $region3
  $region8: #{decoder_block_forward.2} parent=0 // loop_exit
    _

</llo_original>
